<compile_context>
chip_gen: v7x
topology: tpu7x:2x2x1
jax: 0.10.0
libtpu: 0.0.40
codegen_flags: <defaults>
</compile_context>

<pallas_src>
import jax
import jax.numpy as jnp
from jax import lax
from jax.experimental import pallas as pl
from jax.experimental.pallas import tpu as pltpu

BN_EPS = 1e-5


# --------------------------------------------------------------------------------------
# Kernel helpers (traced inline inside the fused kernel)
# --------------------------------------------------------------------------------------
def _store_padded(xp_ref, h):
    """Write h (B, L, C) into xp_ref (B, L+2, C) with zero rows at both sequence edges."""
    B, L, C = h.shape
    zero_edge = jnp.zeros((B, 1, C), jnp.float32)
    xp_ref[:, 0:1, :] = zero_edge
    xp_ref[:, L + 1:L + 2, :] = zero_edge
    xp_ref[:, 1:L + 1, :] = h


def _conv_bn_act(xp_ref, w_ref, b_ref, alpha, beta, c):
    """Conv1d(k=3, pad=1) + BatchNorm1d(train-mode batch stats, gamma=1, beta=0) +
    polynomial activation, with BN+act fused into one per-channel quadratic in y.

    xp_ref : (B, L+2, Cin)  zero-padded input (VMEM scratch)
    w_ref  : (3, Cin, Cout) conv taps (tap k multiplies x_pad[l+k])
    b_ref  : (1, Cout)      conv bias
    alpha/beta/c : scalars (SMEM) of polynom_act
    returns: (B*L, Cout) f32
    """
    B, Lp2, Cin = xp_ref.shape
    L = Lp2 - 2
    N = B * L

    # Three shifted windows read directly from the padded ref (Mosaic folds the
    # windowing into the load); the flatten is layout-trivial (L % 8 == 0).
    x0 = xp_ref[:, 0:L, :].reshape(N, Cin)
    x1 = xp_ref[:, 1:L + 1, :].reshape(N, Cin)
    x2 = xp_ref[:, 2:L + 2, :].reshape(N, Cin)

    # Conv1d as three MXU matmuls + bias.  (f32 operands; cast to bf16 here for a
    # small extra win on v6e/v7x if reduced precision is acceptable.)
    y = (jnp.dot(x0, w_ref[0], preferred_element_type=jnp.float32)
         + jnp.dot(x1, w_ref[1], preferred_element_type=jnp.float32)
         + jnp.dot(x2, w_ref[2], preferred_element_type=jnp.float32)
         + b_ref[...])                                   # (N, Cout)

    # One-pass batch statistics over (B, L) per channel, biased variance, eps=1e-5.
    inv_n = 1.0 / N
    mu = jnp.sum(y, axis=0, keepdims=True) * inv_n                       # (1, Cout)
    var = jnp.sum(y * y, axis=0, keepdims=True) * inv_n - mu * mu        # (1, Cout)
    u = lax.rsqrt(var + BN_EPS)                                          # 1/sqrt(var+eps)
    m = mu * u

    # polynom_act(BN(y)) = alpha*yhat^2 + beta*yhat + c with yhat = u*y - m
    #                    = a'*y^2 + b'*y + c'   (per-channel coefficients)
    a_c = alpha * u * u
    b_c = u * beta - 2.0 * alpha * u * m
    c_c = (alpha * m - beta) * m + c
    return (a_c * y + b_c) * y + c_c                     # (N, Cout)


# --------------------------------------------------------------------------------------
# Fused kernel: conv/BN/act/pool x3 + global pool + Linear, all VMEM-resident
# --------------------------------------------------------------------------------------
def henet_fused_kernel(x_ref, w1_ref, b1_ref, w2_ref, b2_ref, w3_ref, b3_ref,
                       wl_ref, bl_ref, abc_ref, o_ref,
                       xp1_ref, z1_ref, xp2_ref, z2_ref, xp3_ref):
    """
    x_ref  : (B, 480, 3)      channels-last input                       [VMEM]
    w*_ref : (3, Cin, Cout)   conv taps;  b*_ref: (1, Cout) bias        [VMEM]
    wl_ref : (f3, n_classes)  linear weight; bl_ref: (1, n_classes)     [VMEM]
    abc_ref: (9,)             [a1,b1,c1, a2,b2,c2, a3,b3,c3]            [SMEM]
    o_ref  : (B, n_classes)   output                                    [VMEM]
    xp*_ref: zero-padded per-stage conv inputs                          [VMEM scratch]
    z*_ref : pre-pool activations (for stride-2 pooling reads)          [VMEM scratch]
    """
    B, L1, _ = x_ref.shape
    L2, L3 = L1 // 2, L1 // 4
    f1 = w1_ref.shape[2]
    f2 = w2_ref.shape[2]
    f3 = w3_ref.shape[2]

    # ---------------- stage 1: conv1 -> bn1 -> act1 -> avg_pool(2,2) ----------------
    _store_padded(xp1_ref, x_ref[...])
    z1_ref[...] = _conv_bn_act(xp1_ref, w1_ref, b1_ref,
                               abc_ref[0], abc_ref[1], abc_ref[2])        # (B*L1, f1)
    # AvgPool1d(k=2, s=2): even/odd rows via stride-2 VMEM reads + VPU average.
    # (rows are b*L1 + l with L1 even, so even/odd parity never crosses a batch edge)
    p1 = 0.5 * (z1_ref[pl.ds(0, B * L2, stride=2), :]
                + z1_ref[pl.ds(1, B * L2, stride=2), :])                  # (B*L2, f1)

    # ---------------- stage 2: conv2 -> bn2 -> act2 -> avg_pool(2,2) ----------------
    _store_padded(xp2_ref, p1.reshape(B, L2, f1))
    z2_ref[...] = _conv_bn_act(xp2_ref, w2_ref, b2_ref,
                               abc_ref[3], abc_ref[4], abc_ref[5])        # (B*L2, f2)
    p2 = 0.5 * (z2_ref[pl.ds(0, B * L3, stride=2), :]
                + z2_ref[pl.ds(1, B * L3, stride=2), :])                  # (B*L3, f2)

    # ---------------- stage 3: conv3 -> bn3 -> act3 -> global avg pool ---------------
    _store_padded(xp3_ref, p2.reshape(B, L3, f2))
    z3 = _conv_bn_act(xp3_ref, w3_ref, b3_ref,
                      abc_ref[6], abc_ref[7], abc_ref[8])                 # (B*L3, f3)

    # AdaptiveAvgPool1d(1): per-batch mean over the sequence axis (cheap reduce).
    feat = jnp.sum(z3.reshape(B, L3, f3), axis=1) * (1.0 / L3)            # (B, f3)

    # ---------------- Linear head ----------------
    o_ref[...] = (jnp.dot(feat, wl_ref[...], preferred_element_type=jnp.float32)
                  + bl_ref[...])


# --------------------------------------------------------------------------------------
# Forward (matches HENet.forward), single pallas_call, jitted
# --------------------------------------------------------------------------------------
@jax.jit
def henet_forward(x, params):
    B = x.shape[0]
    x = jnp.reshape(x, (B, 3, 480))                     # torch.reshape(x, (B, 3, 480))
    h = jnp.transpose(x, (0, 2, 1)).astype(jnp.float32)  # NCL -> (B, 480, 3) channels-last

    f1 = params["w1"].shape[2]
    f2 = params["w2"].shape[2]
    num_classes = params["wl"].shape[1]
    L1, L2, L3 = 480, 240, 120
    abc9 = jnp.concatenate([params["abc1"], params["abc2"], params["abc3"]])  # (9,)

    return pl.pallas_call(
        henet_fused_kernel,
        out_shape=jax.ShapeDtypeStruct((B, num_classes), jnp.float32),
        in_specs=(
            [pl.BlockSpec(memory_space=pltpu.MemorySpace.VMEM)] * 9     # h, w/b x3, wl, bl
            + [pl.BlockSpec(memory_space=pltpu.MemorySpace.SMEM)]       # abc scalars
        ),
        out_specs=pl.BlockSpec(memory_space=pltpu.MemorySpace.VMEM),
        scratch_shapes=[
            pltpu.VMEM((B, L1 + 2, 3), jnp.float32),    # xp1: padded stage-1 input
            pltpu.VMEM((B * L1, f1), jnp.float32),      # z1 : stage-1 pre-pool activation
            pltpu.VMEM((B, L2 + 2, f1), jnp.float32),   # xp2: padded stage-2 input
            pltpu.VMEM((B * L2, f2), jnp.float32),      # z2 : stage-2 pre-pool activation
            pltpu.VMEM((B, L3 + 2, f2), jnp.float32),   # xp3: padded stage-3 input
        ],
        # For large batch on v7x, add grid=(B,) + dimension_semantics=("parallel",)
        # to shard across the two TensorCores; not worth it at B=2.
    )(h, params["w1"], params["b1"], params["w2"], params["b2"],
      params["w3"], params["b3"], params["wl"], params["bl"], abc9)


# --------------------------------------------------------------------------------------
# Parameter init (deterministic, mirrors the PyTorch __init__ shapes / init schemes)
# --------------------------------------------------------------------------------------
def init_params(key, num_classes=10, filters=32):
    f1, f2, f3 = filters, filters * 2, filters * 4
    ks = jax.random.split(key, 11)

    def conv_init(kw, kb, cin, cout, k=3):
        bound = (6.0 / (cin * k + cout * k)) ** 0.5           # xavier_uniform
        w = jax.random.uniform(kw, (k, cin, cout), jnp.float32, -bound, bound)
        bb = 1.0 / (cin * k) ** 0.5                           # torch conv bias default
        b = jax.random.uniform(kb, (1, cout), jnp.float32, -bb, bb)
        return w, b

    w1, b1 = conv_init(ks[0], ks[1], 3, f1)
    w2, b2 = conv_init(ks[2], ks[3], f1, f2)
    w3, b3 = conv_init(ks[4], ks[5], f2, f3)
    abc1 = jax.random.normal(ks[6], (3,), jnp.float32)        # polynom_act params
    abc2 = jax.random.normal(ks[7], (3,), jnp.float32)
    abc3 = jax.random.normal(ks[8], (3,), jnp.float32)
    lb = 1.0 / f3 ** 0.5                                      # torch Linear default
    wl = jax.random.uniform(ks[9], (f3, num_classes), jnp.float32, -lb, lb)
    bl = jax.random.uniform(ks[10], (1, num_classes), jnp.float32, -lb, lb)
    return dict(w1=w1, b1=b1, abc1=abc1,
                w2=w2, b2=b2, abc2=abc2,
                w3=w3, b3=b3, abc3=abc3,
                wl=wl, bl=bl)


if __name__ == "__main__":
    key = jax.random.PRNGKey(0)
    k_x, k_p = jax.random.split(key)

    B = 2
    num_classes = 10
    filters = 32                                       # small for the demo (torch default 128)

    # Input with 3*480 features per example, as implied by the forward's reshape.
    x = jax.random.normal(k_x, (B, 3, 480), jnp.float32)
    params = init_params(k_p, num_classes=num_classes, filters=filters)

    out = henet_forward(x, params)
    out = jax.block_until_ready(out)
    assert out.shape == (B, num_classes)
    assert bool(jnp.all(jnp.isfinite(out)))
    print("KERNEL_OK")
</pallas_src>

<mosaic_0001>
module attributes {stable_mosaic.version = 11 : i64} {
  func.func @henet_fused_kernel(%arg0: memref<2x480x3xf32, #tpu.memory_space<vmem>>, %arg1: memref<3x3x32xf32, #tpu.memory_space<vmem>>, %arg2: memref<1x32xf32, #tpu.memory_space<vmem>>, %arg3: memref<3x32x64xf32, #tpu.memory_space<vmem>>, %arg4: memref<1x64xf32, #tpu.memory_space<vmem>>, %arg5: memref<3x64x128xf32, #tpu.memory_space<vmem>>, %arg6: memref<1x128xf32, #tpu.memory_space<vmem>>, %arg7: memref<128x10xf32, #tpu.memory_space<vmem>>, %arg8: memref<1x10xf32, #tpu.memory_space<vmem>>, %arg9: memref<9xf32, #tpu.memory_space<smem>>, %arg10: memref<2x10xf32, #tpu.memory_space<vmem>>, %arg11: memref<2x482x3xf32, #tpu.memory_space<vmem>>, %arg12: memref<960x32xf32, #tpu.memory_space<vmem>>, %arg13: memref<2x242x32xf32, #tpu.memory_space<vmem>>, %arg14: memref<480x64xf32, #tpu.memory_space<vmem>>, %arg15: memref<2x122x64xf32, #tpu.memory_space<vmem>>) attributes {dimension_semantics = [], scalar_prefetch = 0 : i64, scratch_operands = 5 : i64, tpu.core_type = #tpu.core_type<tc>} {
    %c0 = arith.constant 0 : index
    %c0_0 = arith.constant 0 : index
    %c0_1 = arith.constant 0 : index
    %0 = vector.load %arg0[%c0, %c0_0, %c0_1] : memref<2x480x3xf32, #tpu.memory_space<vmem>>, vector<2x480x3xf32>
    %cst = arith.constant 0.000000e+00 : f32
    %1 = vector.broadcast %cst : f32 to vector<2x1x3xf32>
    %c0_2 = arith.constant 0 : index
    %c0_3 = arith.constant 0 : index
    %c0_4 = arith.constant 0 : index
    %2 = vector.load %arg11[%c0_2, %c0_3, %c0_4] : memref<2x482x3xf32, #tpu.memory_space<vmem>>, vector<2x1x3xf32>
    tpu.vector_store %arg11[%c0_2, %c0_3, %c0_4], %1 {strides = array<i32>} : memref<2x482x3xf32, #tpu.memory_space<vmem>>, vector<2x1x3xf32>,
    %c0_5 = arith.constant 0 : index
    %c481 = arith.constant 481 : index
    %c0_6 = arith.constant 0 : index
    %3 = vector.load %arg11[%c0_5, %c481, %c0_6] : memref<2x482x3xf32, #tpu.memory_space<vmem>>, vector<2x1x3xf32>
    tpu.vector_store %arg11[%c0_5, %c481, %c0_6], %1 {strides = array<i32>} : memref<2x482x3xf32, #tpu.memory_space<vmem>>, vector<2x1x3xf32>,
    %c0_7 = arith.constant 0 : index
    %c1 = arith.constant 1 : index
    %c0_8 = arith.constant 0 : index
    %4 = vector.load %arg11[%c0_7, %c1, %c0_8] : memref<2x482x3xf32, #tpu.memory_space<vmem>>, vector<2x480x3xf32>
    tpu.vector_store %arg11[%c0_7, %c1, %c0_8], %0 {strides = array<i32>} : memref<2x482x3xf32, #tpu.memory_space<vmem>>, vector<2x480x3xf32>,
    %c0_9 = arith.constant 0 : index
    %5 = memref.load %arg9[%c0_9] : memref<9xf32, #tpu.memory_space<smem>>
    %c1_10 = arith.constant 1 : index
    %6 = memref.load %arg9[%c1_10] : memref<9xf32, #tpu.memory_space<smem>>
    %c2 = arith.constant 2 : index
    %7 = memref.load %arg9[%c2] : memref<9xf32, #tpu.memory_space<smem>>
    %c0_11 = arith.constant 0 : index
    %c0_12 = arith.constant 0 : index
    %c0_13 = arith.constant 0 : index
    %8 = vector.load %arg11[%c0_11, %c0_12, %c0_13] : memref<2x482x3xf32, #tpu.memory_space<vmem>>, vector<2x480x3xf32>
    %9 = vector.shape_cast %8 : vector<2x480x3xf32> to vector<960x3xf32>
    %c0_14 = arith.constant 0 : index
    %c1_15 = arith.constant 1 : index
    %c0_16 = arith.constant 0 : index
    %10 = vector.load %arg11[%c0_14, %c1_15, %c0_16] : memref<2x482x3xf32, #tpu.memory_space<vmem>>, vector<2x480x3xf32>
    %11 = vector.shape_cast %10 : vector<2x480x3xf32> to vector<960x3xf32>
    %c0_17 = arith.constant 0 : index
    %c2_18 = arith.constant 2 : index
    %c0_19 = arith.constant 0 : index
    %12 = vector.load %arg11[%c0_17, %c2_18, %c0_19] : memref<2x482x3xf32, #tpu.memory_space<vmem>>, vector<2x480x3xf32>
    %13 = vector.shape_cast %12 : vector<2x480x3xf32> to vector<960x3xf32>
    %c0_20 = arith.constant 0 : index
    %c0_21 = arith.constant 0 : index
    %c0_22 = arith.constant 0 : index
    %14 = vector.load %arg1[%c0_20, %c0_21, %c0_22] : memref<3x3x32xf32, #tpu.memory_space<vmem>>, vector<1x3x32xf32>
    %15 = vector.shape_cast %14 : vector<1x3x32xf32> to vector<3x32xf32>
    %cst_23 = arith.constant dense<0.000000e+00> : vector<960x32xf32>
    %16 = tpu.matmul %9, %15, %cst_23 {dimension_numbers = #tpu.dot_dimension_numbers<[1], [0], [0], [1], [0, 0, 1, 1], [], []>} : vector<960x3xf32>, vector<3x32xf32>, vector<960x32xf32> -> vector<960x32xf32>
    %c1_24 = arith.constant 1 : index
    %c0_25 = arith.constant 0 : index
    %c0_26 = arith.constant 0 : index
    %17 = vector.load %arg1[%c1_24, %c0_25, %c0_26] : memref<3x3x32xf32, #tpu.memory_space<vmem>>, vector<1x3x32xf32>
    %18 = vector.shape_cast %17 : vector<1x3x32xf32> to vector<3x32xf32>
    %cst_27 = arith.constant dense<0.000000e+00> : vector<960x32xf32>
    %19 = tpu.matmul %11, %18, %cst_27 {dimension_numbers = #tpu.dot_dimension_numbers<[1], [0], [0], [1], [0, 0, 1, 1], [], []>} : vector<960x3xf32>, vector<3x32xf32>, vector<960x32xf32> -> vector<960x32xf32>
    %20 = arith.addf %16, %19 : vector<960x32xf32>
    %c2_28 = arith.constant 2 : index
    %c0_29 = arith.constant 0 : index
    %c0_30 = arith.constant 0 : index
    %21 = vector.load %arg1[%c2_28, %c0_29, %c0_30] : memref<3x3x32xf32, #tpu.memory_space<vmem>>, vector<1x3x32xf32>
    %22 = vector.shape_cast %21 : vector<1x3x32xf32> to vector<3x32xf32>
    %cst_31 = arith.constant dense<0.000000e+00> : vector<960x32xf32>
    %23 = tpu.matmul %13, %22, %cst_31 {dimension_numbers = #tpu.dot_dimension_numbers<[1], [0], [0], [1], [0, 0, 1, 1], [], []>} : vector<960x3xf32>, vector<3x32xf32>, vector<960x32xf32> -> vector<960x32xf32>
    %24 = arith.addf %20, %23 : vector<960x32xf32>
    %c0_32 = arith.constant 0 : index
    %c0_33 = arith.constant 0 : index
    %25 = vector.load %arg2[%c0_32, %c0_33] : memref<1x32xf32, #tpu.memory_space<vmem>>, vector<1x32xf32>
    %26 = vector.broadcast %25 : vector<1x32xf32> to vector<960x32xf32>
    %27 = arith.addf %24, %26 : vector<960x32xf32>
    %cst_34 = arith.constant dense<0.000000e+00> : vector<32xf32>
    %28 = vector.multi_reduction <add>, %27, %cst_34 [0] : vector<960x32xf32> to vector<32xf32>
    %29 = vector.shape_cast %28 : vector<32xf32> to vector<1x32xf32>
    %cst_35 = arith.constant 0.00104166672 : f32
    %30 = vector.broadcast %cst_35 : f32 to vector<1x32xf32>
    %31 = arith.mulf %29, %30 : vector<1x32xf32>
    %32 = arith.mulf %27, %27 : vector<960x32xf32>
    %cst_36 = arith.constant dense<0.000000e+00> : vector<32xf32>
    %33 = vector.multi_reduction <add>, %32, %cst_36 [0] : vector<960x32xf32> to vector<32xf32>
    %34 = vector.shape_cast %33 : vector<32xf32> to vector<1x32xf32>
    %cst_37 = arith.constant 0.00104166672 : f32
    %35 = vector.broadcast %cst_37 : f32 to vector<1x32xf32>
    %36 = arith.mulf %34, %35 : vector<1x32xf32>
    %37 = arith.mulf %31, %31 : vector<1x32xf32>
    %38 = arith.subf %36, %37 : vector<1x32xf32>
    %cst_38 = arith.constant 9.99999974E-6 : f32
    %39 = vector.broadcast %cst_38 : f32 to vector<1x32xf32>
    %40 = arith.addf %38, %39 : vector<1x32xf32>
    %41 = math.rsqrt %40 : vector<1x32xf32>
    %42 = arith.mulf %31, %41 : vector<1x32xf32>
    %43 = vector.broadcast %5 : f32 to vector<1x32xf32>
    %44 = arith.mulf %43, %41 : vector<1x32xf32>
    %45 = arith.mulf %44, %41 : vector<1x32xf32>
    %46 = vector.broadcast %6 : f32 to vector<1x32xf32>
    %47 = arith.mulf %41, %46 : vector<1x32xf32>
    %cst_39 = arith.constant 2.000000e+00 : f32
    %48 = arith.mulf %cst_39, %5 : f32
    %49 = vector.broadcast %48 : f32 to vector<1x32xf32>
    %50 = arith.mulf %49, %41 : vector<1x32xf32>
    %51 = arith.mulf %50, %42 : vector<1x32xf32>
    %52 = arith.subf %47, %51 : vector<1x32xf32>
    %53 = vector.broadcast %5 : f32 to vector<1x32xf32>
    %54 = arith.mulf %53, %42 : vector<1x32xf32>
    %55 = vector.broadcast %6 : f32 to vector<1x32xf32>
    %56 = arith.subf %54, %55 : vector<1x32xf32>
    %57 = arith.mulf %56, %42 : vector<1x32xf32>
    %58 = vector.broadcast %7 : f32 to vector<1x32xf32>
    %59 = arith.addf %57, %58 : vector<1x32xf32>
    %60 = vector.broadcast %45 : vector<1x32xf32> to vector<960x32xf32>
    %61 = arith.mulf %60, %27 : vector<960x32xf32>
    %62 = vector.broadcast %52 : vector<1x32xf32> to vector<960x32xf32>
    %63 = arith.addf %61, %62 : vector<960x32xf32>
    %64 = arith.mulf %63, %27 : vector<960x32xf32>
    %65 = vector.broadcast %59 : vector<1x32xf32> to vector<960x32xf32>
    %66 = arith.addf %64, %65 : vector<960x32xf32>
    %c0_40 = arith.constant 0 : index
    %c0_41 = arith.constant 0 : index
    %67 = vector.load %arg12[%c0_40, %c0_41] : memref<960x32xf32, #tpu.memory_space<vmem>>, vector<960x32xf32>
    tpu.vector_store %arg12[%c0_40, %c0_41], %66 {strides = array<i32>} : memref<960x32xf32, #tpu.memory_space<vmem>>, vector<960x32xf32>,
    %c0_42 = arith.constant 0 : index
    %c0_43 = arith.constant 0 : index
    %68 = tpu.strided_load %arg12[%c0_42, %c0_43] {strides = array<i32: 2, 1>} : memref<960x32xf32, #tpu.memory_space<vmem>>, vector<480x32xf32>
    %c1_44 = arith.constant 1 : index
    %c0_45 = arith.constant 0 : index
    %69 = tpu.strided_load %arg12[%c1_44, %c0_45] {strides = array<i32: 2, 1>} : memref<960x32xf32, #tpu.memory_space<vmem>>, vector<480x32xf32>
    %70 = arith.addf %68, %69 : vector<480x32xf32>
    %cst_46 = arith.constant 5.000000e-01 : f32
    %71 = vector.broadcast %cst_46 : f32 to vector<480x32xf32>
    %72 = arith.mulf %71, %70 : vector<480x32xf32>
    %73 = vector.shape_cast %72 : vector<480x32xf32> to vector<2x240x32xf32>
    %cst_47 = arith.constant 0.000000e+00 : f32
    %74 = vector.broadcast %cst_47 : f32 to vector<2x1x32xf32>
    %c0_48 = arith.constant 0 : index
    %c0_49 = arith.constant 0 : index
    %c0_50 = arith.constant 0 : index
    %75 = vector.load %arg13[%c0_48, %c0_49, %c0_50] : memref<2x242x32xf32, #tpu.memory_space<vmem>>, vector<2x1x32xf32>
    tpu.vector_store %arg13[%c0_48, %c0_49, %c0_50], %74 {strides = array<i32>} : memref<2x242x32xf32, #tpu.memory_space<vmem>>, vector<2x1x32xf32>,
    %c0_51 = arith.constant 0 : index
    %c241 = arith.constant 241 : index
    %c0_52 = arith.constant 0 : index
    %76 = vector.load %arg13[%c0_51, %c241, %c0_52] : memref<2x242x32xf32, #tpu.memory_space<vmem>>, vector<2x1x32xf32>
    tpu.vector_store %arg13[%c0_51, %c241, %c0_52], %74 {strides = array<i32>} : memref<2x242x32xf32, #tpu.memory_space<vmem>>, vector<2x1x32xf32>,
    %c0_53 = arith.constant 0 : index
    %c1_54 = arith.constant 1 : index
    %c0_55 = arith.constant 0 : index
    %77 = vector.load %arg13[%c0_53, %c1_54, %c0_55] : memref<2x242x32xf32, #tpu.memory_space<vmem>>, vector<2x240x32xf32>
    tpu.vector_store %arg13[%c0_53, %c1_54, %c0_55], %73 {strides = array<i32>} : memref<2x242x32xf32, #tpu.memory_space<vmem>>, vector<2x240x32xf32>,
    %c3 = arith.constant 3 : index
    %78 = memref.load %arg9[%c3] : memref<9xf32, #tpu.memory_space<smem>>
    %c4 = arith.constant 4 : index
    %79 = memref.load %arg9[%c4] : memref<9xf32, #tpu.memory_space<smem>>
    %c5 = arith.constant 5 : index
    %80 = memref.load %arg9[%c5] : memref<9xf32, #tpu.memory_space<smem>>
    %c0_56 = arith.constant 0 : index
    %c0_57 = arith.constant 0 : index
    %c0_58 = arith.constant 0 : index
    %81 = vector.load %arg13[%c0_56, %c0_57, %c0_58] : memref<2x242x32xf32, #tpu.memory_space<vmem>>, vector<2x240x32xf32>
    %82 = vector.shape_cast %81 : vector<2x240x32xf32> to vector<480x32xf32>
    %c0_59 = arith.constant 0 : index
    %c1_60 = arith.constant 1 : index
    %c0_61 = arith.constant 0 : index
    %83 = vector.load %arg13[%c0_59, %c1_60, %c0_61] : memref<2x242x32xf32, #tpu.memory_space<vmem>>, vector<2x240x32xf32>
    %84 = vector.shape_cast %83 : vector<2x240x32xf32> to vector<480x32xf32>
    %c0_62 = arith.constant 0 : index
    %c2_63 = arith.constant 2 : index
    %c0_64 = arith.constant 0 : index
    %85 = vector.load %arg13[%c0_62, %c2_63, %c0_64] : memref<2x242x32xf32, #tpu.memory_space<vmem>>, vector<2x240x32xf32>
    %86 = vector.shape_cast %85 : vector<2x240x32xf32> to vector<480x32xf32>
    %c0_65 = arith.constant 0 : index
    %c0_66 = arith.constant 0 : index
    %c0_67 = arith.constant 0 : index
    %87 = vector.load %arg3[%c0_65, %c0_66, %c0_67] : memref<3x32x64xf32, #tpu.memory_space<vmem>>, vector<1x32x64xf32>
    %88 = vector.shape_cast %87 : vector<1x32x64xf32> to vector<32x64xf32>
    %cst_68 = arith.constant dense<0.000000e+00> : vector<480x64xf32>
    %89 = tpu.matmul %82, %88, %cst_68 {dimension_numbers = #tpu.dot_dimension_numbers<[1], [0], [0], [1], [0, 0, 1, 1], [], []>} : vector<480x32xf32>, vector<32x64xf32>, vector<480x64xf32> -> vector<480x64xf32>
    %c1_69 = arith.constant 1 : index
    %c0_70 = arith.constant 0 : index
    %c0_71 = arith.constant 0 : index
    %90 = vector.load %arg3[%c1_69, %c0_70, %c0_71] : memref<3x32x64xf32, #tpu.memory_space<vmem>>, vector<1x32x64xf32>
    %91 = vector.shape_cast %90 : vector<1x32x64xf32> to vector<32x64xf32>
    %cst_72 = arith.constant dense<0.000000e+00> : vector<480x64xf32>
    %92 = tpu.matmul %84, %91, %cst_72 {dimension_numbers = #tpu.dot_dimension_numbers<[1], [0], [0], [1], [0, 0, 1, 1], [], []>} : vector<480x32xf32>, vector<32x64xf32>, vector<480x64xf32> -> vector<480x64xf32>
    %93 = arith.addf %89, %92 : vector<480x64xf32>
    %c2_73 = arith.constant 2 : index
    %c0_74 = arith.constant 0 : index
    %c0_75 = arith.constant 0 : index
    %94 = vector.load %arg3[%c2_73, %c0_74, %c0_75] : memref<3x32x64xf32, #tpu.memory_space<vmem>>, vector<1x32x64xf32>
    %95 = vector.shape_cast %94 : vector<1x32x64xf32> to vector<32x64xf32>
    %cst_76 = arith.constant dense<0.000000e+00> : vector<480x64xf32>
    %96 = tpu.matmul %86, %95, %cst_76 {dimension_numbers = #tpu.dot_dimension_numbers<[1], [0], [0], [1], [0, 0, 1, 1], [], []>} : vector<480x32xf32>, vector<32x64xf32>, vector<480x64xf32> -> vector<480x64xf32>
    %97 = arith.addf %93, %96 : vector<480x64xf32>
    %c0_77 = arith.constant 0 : index
    %c0_78 = arith.constant 0 : index
    %98 = vector.load %arg4[%c0_77, %c0_78] : memref<1x64xf32, #tpu.memory_space<vmem>>, vector<1x64xf32>
    %99 = vector.broadcast %98 : vector<1x64xf32> to vector<480x64xf32>
    %100 = arith.addf %97, %99 : vector<480x64xf32>
    %cst_79 = arith.constant dense<0.000000e+00> : vector<64xf32>
    %101 = vector.multi_reduction <add>, %100, %cst_79 [0] : vector<480x64xf32> to vector<64xf32>
    %102 = vector.shape_cast %101 : vector<64xf32> to vector<1x64xf32>
    %cst_80 = arith.constant 0.00208333344 : f32
    %103 = vector.broadcast %cst_80 : f32 to vector<1x64xf32>
    %104 = arith.mulf %102, %103 : vector<1x64xf32>
    %105 = arith.mulf %100, %100 : vector<480x64xf32>
    %cst_81 = arith.constant dense<0.000000e+00> : vector<64xf32>
    %106 = vector.multi_reduction <add>, %105, %cst_81 [0] : vector<480x64xf32> to vector<64xf32>
    %107 = vector.shape_cast %106 : vector<64xf32> to vector<1x64xf32>
    %cst_82 = arith.constant 0.00208333344 : f32
    %108 = vector.broadcast %cst_82 : f32 to vector<1x64xf32>
    %109 = arith.mulf %107, %108 : vector<1x64xf32>
    %110 = arith.mulf %104, %104 : vector<1x64xf32>
    %111 = arith.subf %109, %110 : vector<1x64xf32>
    %cst_83 = arith.constant 9.99999974E-6 : f32
    %112 = vector.broadcast %cst_83 : f32 to vector<1x64xf32>
    %113 = arith.addf %111, %112 : vector<1x64xf32>
    %114 = math.rsqrt %113 : vector<1x64xf32>
    %115 = arith.mulf %104, %114 : vector<1x64xf32>
    %116 = vector.broadcast %78 : f32 to vector<1x64xf32>
    %117 = arith.mulf %116, %114 : vector<1x64xf32>
    %118 = arith.mulf %117, %114 : vector<1x64xf32>
    %119 = vector.broadcast %79 : f32 to vector<1x64xf32>
    %120 = arith.mulf %114, %119 : vector<1x64xf32>
    %cst_84 = arith.constant 2.000000e+00 : f32
    %121 = arith.mulf %cst_84, %78 : f32
    %122 = vector.broadcast %121 : f32 to vector<1x64xf32>
    %123 = arith.mulf %122, %114 : vector<1x64xf32>
    %124 = arith.mulf %123, %115 : vector<1x64xf32>
    %125 = arith.subf %120, %124 : vector<1x64xf32>
    %126 = vector.broadcast %78 : f32 to vector<1x64xf32>
    %127 = arith.mulf %126, %115 : vector<1x64xf32>
    %128 = vector.broadcast %79 : f32 to vector<1x64xf32>
    %129 = arith.subf %127, %128 : vector<1x64xf32>
    %130 = arith.mulf %129, %115 : vector<1x64xf32>
    %131 = vector.broadcast %80 : f32 to vector<1x64xf32>
    %132 = arith.addf %130, %131 : vector<1x64xf32>
    %133 = vector.broadcast %118 : vector<1x64xf32> to vector<480x64xf32>
    %134 = arith.mulf %133, %100 : vector<480x64xf32>
    %135 = vector.broadcast %125 : vector<1x64xf32> to vector<480x64xf32>
    %136 = arith.addf %134, %135 : vector<480x64xf32>
    %137 = arith.mulf %136, %100 : vector<480x64xf32>
    %138 = vector.broadcast %132 : vector<1x64xf32> to vector<480x64xf32>
    %139 = arith.addf %137, %138 : vector<480x64xf32>
    %c0_85 = arith.constant 0 : index
    %c0_86 = arith.constant 0 : index
    %140 = vector.load %arg14[%c0_85, %c0_86] : memref<480x64xf32, #tpu.memory_space<vmem>>, vector<480x64xf32>
    tpu.vector_store %arg14[%c0_85, %c0_86], %139 {strides = array<i32>} : memref<480x64xf32, #tpu.memory_space<vmem>>, vector<480x64xf32>,
    %c0_87 = arith.constant 0 : index
    %c0_88 = arith.constant 0 : index
    %141 = tpu.strided_load %arg14[%c0_87, %c0_88] {strides = array<i32: 2, 1>} : memref<480x64xf32, #tpu.memory_space<vmem>>, vector<240x64xf32>
    %c1_89 = arith.constant 1 : index
    %c0_90 = arith.constant 0 : index
    %142 = tpu.strided_load %arg14[%c1_89, %c0_90] {strides = array<i32: 2, 1>} : memref<480x64xf32, #tpu.memory_space<vmem>>, vector<240x64xf32>
    %143 = arith.addf %141, %142 : vector<240x64xf32>
    %cst_91 = arith.constant 5.000000e-01 : f32
    %144 = vector.broadcast %cst_91 : f32 to vector<240x64xf32>
    %145 = arith.mulf %144, %143 : vector<240x64xf32>
    %146 = vector.shape_cast %145 : vector<240x64xf32> to vector<2x120x64xf32>
    %cst_92 = arith.constant 0.000000e+00 : f32
    %147 = vector.broadcast %cst_92 : f32 to vector<2x1x64xf32>
    %c0_93 = arith.constant 0 : index
    %c0_94 = arith.constant 0 : index
    %c0_95 = arith.constant 0 : index
    %148 = vector.load %arg15[%c0_93, %c0_94, %c0_95] : memref<2x122x64xf32, #tpu.memory_space<vmem>>, vector<2x1x64xf32>
    tpu.vector_store %arg15[%c0_93, %c0_94, %c0_95], %147 {strides = array<i32>} : memref<2x122x64xf32, #tpu.memory_space<vmem>>, vector<2x1x64xf32>,
    %c0_96 = arith.constant 0 : index
    %c121 = arith.constant 121 : index
    %c0_97 = arith.constant 0 : index
    %149 = vector.load %arg15[%c0_96, %c121, %c0_97] : memref<2x122x64xf32, #tpu.memory_space<vmem>>, vector<2x1x64xf32>
    tpu.vector_store %arg15[%c0_96, %c121, %c0_97], %147 {strides = array<i32>} : memref<2x122x64xf32, #tpu.memory_space<vmem>>, vector<2x1x64xf32>,
    %c0_98 = arith.constant 0 : index
    %c1_99 = arith.constant 1 : index
    %c0_100 = arith.constant 0 : index
    %150 = vector.load %arg15[%c0_98, %c1_99, %c0_100] : memref<2x122x64xf32, #tpu.memory_space<vmem>>, vector<2x120x64xf32>
    tpu.vector_store %arg15[%c0_98, %c1_99, %c0_100], %146 {strides = array<i32>} : memref<2x122x64xf32, #tpu.memory_space<vmem>>, vector<2x120x64xf32>,
    %c6 = arith.constant 6 : index
    %151 = memref.load %arg9[%c6] : memref<9xf32, #tpu.memory_space<smem>>
    %c7 = arith.constant 7 : index
    %152 = memref.load %arg9[%c7] : memref<9xf32, #tpu.memory_space<smem>>
    %c8 = arith.constant 8 : index
    %153 = memref.load %arg9[%c8] : memref<9xf32, #tpu.memory_space<smem>>
    %c0_101 = arith.constant 0 : index
    %c0_102 = arith.constant 0 : index
    %c0_103 = arith.constant 0 : index
    %154 = vector.load %arg15[%c0_101, %c0_102, %c0_103] : memref<2x122x64xf32, #tpu.memory_space<vmem>>, vector<2x120x64xf32>
    %155 = vector.shape_cast %154 : vector<2x120x64xf32> to vector<240x64xf32>
    %c0_104 = arith.constant 0 : index
    %c1_105 = arith.constant 1 : index
    %c0_106 = arith.constant 0 : index
    %156 = vector.load %arg15[%c0_104, %c1_105, %c0_106] : memref<2x122x64xf32, #tpu.memory_space<vmem>>, vector<2x120x64xf32>
    %157 = vector.shape_cast %156 : vector<2x120x64xf32> to vector<240x64xf32>
    %c0_107 = arith.constant 0 : index
    %c2_108 = arith.constant 2 : index
    %c0_109 = arith.constant 0 : index
    %158 = vector.load %arg15[%c0_107, %c2_108, %c0_109] : memref<2x122x64xf32, #tpu.memory_space<vmem>>, vector<2x120x64xf32>
    %159 = vector.shape_cast %158 : vector<2x120x64xf32> to vector<240x64xf32>
    %c0_110 = arith.constant 0 : index
    %c0_111 = arith.constant 0 : index
    %c0_112 = arith.constant 0 : index
    %160 = vector.load %arg5[%c0_110, %c0_111, %c0_112] : memref<3x64x128xf32, #tpu.memory_space<vmem>>, vector<1x64x128xf32>
    %161 = vector.shape_cast %160 : vector<1x64x128xf32> to vector<64x128xf32>
    %cst_113 = arith.constant dense<0.000000e+00> : vector<240x128xf32>
    %162 = tpu.matmul %155, %161, %cst_113 {dimension_numbers = #tpu.dot_dimension_numbers<[1], [0], [0], [1], [0, 0, 1, 1], [], []>} : vector<240x64xf32>, vector<64x128xf32>, vector<240x128xf32> -> vector<240x128xf32>
    %c1_114 = arith.constant 1 : index
    %c0_115 = arith.constant 0 : index
    %c0_116 = arith.constant 0 : index
    %163 = vector.load %arg5[%c1_114, %c0_115, %c0_116] : memref<3x64x128xf32, #tpu.memory_space<vmem>>, vector<1x64x128xf32>
    %164 = vector.shape_cast %163 : vector<1x64x128xf32> to vector<64x128xf32>
    %cst_117 = arith.constant dense<0.000000e+00> : vector<240x128xf32>
    %165 = tpu.matmul %157, %164, %cst_117 {dimension_numbers = #tpu.dot_dimension_numbers<[1], [0], [0], [1], [0, 0, 1, 1], [], []>} : vector<240x64xf32>, vector<64x128xf32>, vector<240x128xf32> -> vector<240x128xf32>
    %166 = arith.addf %162, %165 : vector<240x128xf32>
    %c2_118 = arith.constant 2 : index
    %c0_119 = arith.constant 0 : index
    %c0_120 = arith.constant 0 : index
    %167 = vector.load %arg5[%c2_118, %c0_119, %c0_120] : memref<3x64x128xf32, #tpu.memory_space<vmem>>, vector<1x64x128xf32>
    %168 = vector.shape_cast %167 : vector<1x64x128xf32> to vector<64x128xf32>
    %cst_121 = arith.constant dense<0.000000e+00> : vector<240x128xf32>
    %169 = tpu.matmul %159, %168, %cst_121 {dimension_numbers = #tpu.dot_dimension_numbers<[1], [0], [0], [1], [0, 0, 1, 1], [], []>} : vector<240x64xf32>, vector<64x128xf32>, vector<240x128xf32> -> vector<240x128xf32>
    %170 = arith.addf %166, %169 : vector<240x128xf32>
    %c0_122 = arith.constant 0 : index
    %c0_123 = arith.constant 0 : index
    %171 = vector.load %arg6[%c0_122, %c0_123] : memref<1x128xf32, #tpu.memory_space<vmem>>, vector<1x128xf32>
    %172 = vector.broadcast %171 : vector<1x128xf32> to vector<240x128xf32>
    %173 = arith.addf %170, %172 : vector<240x128xf32>
    %cst_124 = arith.constant dense<0.000000e+00> : vector<128xf32>
    %174 = vector.multi_reduction <add>, %173, %cst_124 [0] : vector<240x128xf32> to vector<128xf32>
    %175 = vector.shape_cast %174 : vector<128xf32> to vector<1x128xf32>
    %cst_125 = arith.constant 0.00416666688 : f32
    %176 = vector.broadcast %cst_125 : f32 to vector<1x128xf32>
    %177 = arith.mulf %175, %176 : vector<1x128xf32>
    %178 = arith.mulf %173, %173 : vector<240x128xf32>
    %cst_126 = arith.constant dense<0.000000e+00> : vector<128xf32>
    %179 = vector.multi_reduction <add>, %178, %cst_126 [0] : vector<240x128xf32> to vector<128xf32>
    %180 = vector.shape_cast %179 : vector<128xf32> to vector<1x128xf32>
    %cst_127 = arith.constant 0.00416666688 : f32
    %181 = vector.broadcast %cst_127 : f32 to vector<1x128xf32>
    %182 = arith.mulf %180, %181 : vector<1x128xf32>
    %183 = arith.mulf %177, %177 : vector<1x128xf32>
    %184 = arith.subf %182, %183 : vector<1x128xf32>
    %cst_128 = arith.constant 9.99999974E-6 : f32
    %185 = vector.broadcast %cst_128 : f32 to vector<1x128xf32>
    %186 = arith.addf %184, %185 : vector<1x128xf32>
    %187 = math.rsqrt %186 : vector<1x128xf32>
    %188 = arith.mulf %177, %187 : vector<1x128xf32>
    %189 = vector.broadcast %151 : f32 to vector<1x128xf32>
    %190 = arith.mulf %189, %187 : vector<1x128xf32>
    %191 = arith.mulf %190, %187 : vector<1x128xf32>
    %192 = vector.broadcast %152 : f32 to vector<1x128xf32>
    %193 = arith.mulf %187, %192 : vector<1x128xf32>
    %cst_129 = arith.constant 2.000000e+00 : f32
    %194 = arith.mulf %cst_129, %151 : f32
    %195 = vector.broadcast %194 : f32 to vector<1x128xf32>
    %196 = arith.mulf %195, %187 : vector<1x128xf32>
    %197 = arith.mulf %196, %188 : vector<1x128xf32>
    %198 = arith.subf %193, %197 : vector<1x128xf32>
    %199 = vector.broadcast %151 : f32 to vector<1x128xf32>
    %200 = arith.mulf %199, %188 : vector<1x128xf32>
    %201 = vector.broadcast %152 : f32 to vector<1x128xf32>
    %202 = arith.subf %200, %201 : vector<1x128xf32>
    %203 = arith.mulf %202, %188 : vector<1x128xf32>
    %204 = vector.broadcast %153 : f32 to vector<1x128xf32>
    %205 = arith.addf %203, %204 : vector<1x128xf32>
    %206 = vector.broadcast %191 : vector<1x128xf32> to vector<240x128xf32>
    %207 = arith.mulf %206, %173 : vector<240x128xf32>
    %208 = vector.broadcast %198 : vector<1x128xf32> to vector<240x128xf32>
    %209 = arith.addf %207, %208 : vector<240x128xf32>
    %210 = arith.mulf %209, %173 : vector<240x128xf32>
    %211 = vector.broadcast %205 : vector<1x128xf32> to vector<240x128xf32>
    %212 = arith.addf %210, %211 : vector<240x128xf32>
    %213 = vector.shape_cast %212 : vector<240x128xf32> to vector<2x120x128xf32>
    %cst_130 = arith.constant dense<0.000000e+00> : vector<2x128xf32>
    %214 = vector.multi_reduction <add>, %213, %cst_130 [1] : vector<2x120x128xf32> to vector<2x128xf32>
    %cst_131 = arith.constant 0.00833333377 : f32
    %215 = vector.broadcast %cst_131 : f32 to vector<2x128xf32>
    %216 = arith.mulf %214, %215 : vector<2x128xf32>
    %c0_132 = arith.constant 0 : index
    %c0_133 = arith.constant 0 : index
    %217 = vector.load %arg7[%c0_132, %c0_133] : memref<128x10xf32, #tpu.memory_space<vmem>>, vector<128x10xf32>
    %cst_134 = arith.constant dense<0.000000e+00> : vector<2x10xf32>
    %218 = tpu.matmul %216, %217, %cst_134 {dimension_numbers = #tpu.dot_dimension_numbers<[1], [0], [0], [1], [0, 0, 1, 1], [], []>} : vector<2x128xf32>, vector<128x10xf32>, vector<2x10xf32> -> vector<2x10xf32>
    %c0_135 = arith.constant 0 : index
    %c0_136 = arith.constant 0 : index
    %219 = vector.load %arg8[%c0_135, %c0_136] : memref<1x10xf32, #tpu.memory_space<vmem>>, vector<1x10xf32>
    %220 = vector.broadcast %219 : vector<1x10xf32> to vector<2x10xf32>
    %221 = arith.addf %218, %220 : vector<2x10xf32>
    %c0_137 = arith.constant 0 : index
    %c0_138 = arith.constant 0 : index
    %222 = vector.load %arg10[%c0_137, %c0_138] : memref<2x10xf32, #tpu.memory_space<vmem>>, vector<2x10xf32>
    tpu.vector_store %arg10[%c0_137, %c0_138], %221 {strides = array<i32>} : memref<2x10xf32, #tpu.memory_space<vmem>>, vector<2x10xf32>,
    return
  }
}

</mosaic_0001>

<llo_original>
// kernel: henet_forward.1
$region0: #{henet_forward.1}
  #allocation0 [shape = 'u32[]', space=smem, size = 0x4, offset = 0x4, fixed_abs, tag = 'smem constant byte address 0x4 - core index']
  #allocation1 [shape = 'u32[144,128]{1,0:T(1,128)}', space=vmem, size = 0x12000, scoped, tag = 'internal scratch']
  #allocation2 [shape = 'f32[2,482,3]{2,1,0:T(8,128)}', space=vmem, size = 0x7a000, scoped, tag = 'scratch operand']
  #allocation3 [shape = 'f32[960,32]{1,0:T(8,128)}', space=vmem, size = 0x78000, scoped, tag = 'scratch operand']
  #allocation4 [shape = 'f32[2,242,32]{2,1,0:T(8,128)}', space=vmem, size = 0x3e000, scoped, tag = 'scratch operand']
  #allocation5 [shape = 'f32[480,64]{1,0:T(8,128)}', space=vmem, size = 0x3c000, scoped, tag = 'scratch operand']
  #allocation6 [shape = 'f32[2,122,64]{2,1,0:T(8,128)}', space=vmem, size = 0x20000, scoped, tag = 'scratch operand']
  %s0 = inlined_call_operand.vmem [shape: f32[2,480,3], index: 0, kind: input, shape index: {}]
  %s1 = inlined_call_operand.vmem [shape: f32[3,3,32], index: 1, kind: input, shape index: {}]
  %s2 = inlined_call_operand.vmem [shape: f32[1,32], index: 2, kind: input, shape index: {}]
  %s3 = inlined_call_operand.vmem [shape: f32[3,32,64], index: 3, kind: input, shape index: {}]
  %s4 = inlined_call_operand.vmem [shape: f32[1,64], index: 4, kind: input, shape index: {}]
  %s5 = inlined_call_operand.vmem [shape: f32[3,64,128], index: 5, kind: input, shape index: {}]
  %s6 = inlined_call_operand.vmem [shape: f32[1,128], index: 6, kind: input, shape index: {}]
  %s7 = inlined_call_operand.vmem [shape: f32[128,10], index: 7, kind: input, shape index: {}]
  %s8 = inlined_call_operand.vmem [shape: f32[1,10], index: 8, kind: input, shape index: {}]
  %s9 = inlined_call_operand.vmem [shape: f32[9], index: 9, kind: input, shape index: {}]
  %s10 = inlined_call_operand.hbm [shape: f32[2,10], index: 10, kind: output, shape index: {}]
  %s11 = sld [smem:[#allocation0]]
  $region54: #{henet_forward.1} parent=0
    _
  %s13 = ssub.s32 1, %s11
  %s14 = scalar_select 0, %s13, %s11
  $region1: #{henet_forward.1} parent=0
    #allocation7 [shape = 'u8[512]{0}', space=smem, size = 0x200, scoped, tag = 'input window, operand 9, single buffered']
    #allocation8 [shape = 's32[1]{0}', space=sflag, size = 0x4, scoped, tag = 'scoped memory for henet_forward.1']
    #allocation9 [shape = 's32[1]{0}', space=sflag, size = 0x4, scoped, tag = 'scoped memory for henet_forward.1']
    #allocation10 [shape = 'u8[1024]{0}', space=vmem, size = 0x400, scoped, tag = 'output window, operand 0, single buffered']
    %15 = vsyncpa [#allocation9], 0
    %16 = vsyncpa [#allocation8], 0
    // Predicated region
    $region2: #{henet_forward.1} parent=1 // pred_check
      _
    $region3: #{henet_forward.1} parent=1 // pred_check_branch
      %18 = sbr.rel (0) target = $region5
    $region4: #{henet_forward.1} parent=1 // pred_region
      _
    $region5: #{henet_forward.1} parent=1 // pred_fallthru
      _
    // Predicated region
    $region6: #{henet_forward.1} parent=1 // pred_check
      _
    $region7: #{henet_forward.1} parent=1 // pred_check_branch
      %20 = sbr.rel (0) target = $region9
    $region8: #{henet_forward.1} parent=1 // pred_region
      _
    $region9: #{henet_forward.1} parent=1 // pred_fallthru
      _
    // Predicated region
    $region10: #{henet_forward.1} parent=1 // pred_check
      _
    $region11: #{henet_forward.1} parent=1 // pred_check_branch
      %22 = sbr.rel (0) target = $region13
    $region12: #{henet_forward.1} parent=1 // pred_region
      _
    $region13: #{henet_forward.1} parent=1 // pred_fallthru
      _
    // Predicated region
    $region14: #{henet_forward.1} parent=1 // pred_check
      _
    $region15: #{henet_forward.1} parent=1 // pred_check_branch
      %24 = sbr.rel (0) target = $region17
    $region16: #{henet_forward.1} parent=1 // pred_region
      _
    $region17: #{henet_forward.1} parent=1 // pred_fallthru
      _
    // Predicated region
    $region18: #{henet_forward.1} parent=1 // pred_check
      _
    $region19: #{henet_forward.1} parent=1 // pred_check_branch
      %26 = sbr.rel (0) target = $region21
    $region20: #{henet_forward.1} parent=1 // pred_region
      _
    $region21: #{henet_forward.1} parent=1 // pred_fallthru
      _
    // Predicated region
    $region22: #{henet_forward.1} parent=1 // pred_check
      _
    $region23: #{henet_forward.1} parent=1 // pred_check_branch
      %28 = sbr.rel (0) target = $region25
    $region24: #{henet_forward.1} parent=1 // pred_region
      _
    $region25: #{henet_forward.1} parent=1 // pred_fallthru
      _
    // Predicated region
    $region26: #{henet_forward.1} parent=1 // pred_check
      _
    $region27: #{henet_forward.1} parent=1 // pred_check_branch
      %30 = sbr.rel (0) target = $region29
    $region28: #{henet_forward.1} parent=1 // pred_region
      _
    $region29: #{henet_forward.1} parent=1 // pred_fallthru
      _
    // Predicated region
    $region30: #{henet_forward.1} parent=1 // pred_check
      _
    $region31: #{henet_forward.1} parent=1 // pred_check_branch
      %32 = sbr.rel (0) target = $region33
    $region32: #{henet_forward.1} parent=1 // pred_region
      _
    $region33: #{henet_forward.1} parent=1 // pred_fallthru
      _
    // Predicated region
    $region34: #{henet_forward.1} parent=1 // pred_check
      _
    $region35: #{henet_forward.1} parent=1 // pred_check_branch
      %34 = sbr.rel (0) target = $region37
    $region36: #{henet_forward.1} parent=1 // pred_region
      _
    $region37: #{henet_forward.1} parent=1 // pred_fallthru
      _
    // Predicated region
    $region38: #{henet_forward.1} parent=1 // pred_check
      _
    $region39: #{henet_forward.1} parent=1 // pred_check_branch
      %36 = sbr.rel (0) target = $region41
    $region40: #{henet_forward.1} parent=1 // pred_region
      %s38 = ssub.s32 16, 16
      %39 = vsyncadd [#allocation9], %s38
      %s41 = sshll.u32 %s9, 4
      %s42 = int_to_ptr.vmem [resolvable:$true] %s41
      %44 = dma.vmem_to_smem %s42, 16, [#allocation7], [#allocation9]
    $region41: #{henet_forward.1} parent=1 // pred_fallthru
      _
    // Predicated region
    $region42: #{henet_forward.1} parent=1 // pred_check
      _
    $region43: #{henet_forward.1} parent=1 // pred_check_branch
      %46 = sbr.rel (0) target = $region45
    $region44: #{henet_forward.1} parent=1 // pred_region
      %47 = dma.done [#allocation9], 16
    $region45: #{henet_forward.1} parent=1 // pred_fallthru
      _
    %48 = sfence
    %v49 = vld [vmem:[%s0] sm:$0xff]
    %v50 = vld [vmem:[%s0 + $0x8] sm:$0xff]
    %v51 = vld [vmem:[%s0 + $0x10] sm:$0xff]
    %v52 = vld [vmem:[%s0 + $0x18] sm:$0xff]
    %v53 = vld [vmem:[%s0 + $0x20] sm:$0xff]
    %v54 = vld [vmem:[%s0 + $0x28] sm:$0xff]
    %v55 = vld [vmem:[%s0 + $0x30] sm:$0xff]
    %v56 = vld [vmem:[%s0 + $0x38] sm:$0xff]
    %v57 = vld [vmem:[%s0 + $0x40] sm:$0xff]
    %v58 = vld [vmem:[%s0 + $0x48] sm:$0xff]
    %v59 = vld [vmem:[%s0 + $0x50] sm:$0xff]
    %v60 = vld [vmem:[%s0 + $0x58] sm:$0xff]
    %v61 = vld [vmem:[%s0 + $0x60] sm:$0xff]
    %v62 = vld [vmem:[%s0 + $0x68] sm:$0xff]
    %v63 = vld [vmem:[%s0 + $0x70] sm:$0xff]
    %v64 = vld [vmem:[%s0 + $0x78] sm:$0xff]
    %v65 = vld [vmem:[%s0 + $0x80] sm:$0xff]
    %v66 = vld [vmem:[%s0 + $0x88] sm:$0xff]
    %v67 = vld [vmem:[%s0 + $0x90] sm:$0xff]
    %v68 = vld [vmem:[%s0 + $0x98] sm:$0xff]
    %v69 = vld [vmem:[%s0 + $0xa0] sm:$0xff]
    %v70 = vld [vmem:[%s0 + $0xa8] sm:$0xff]
    %v71 = vld [vmem:[%s0 + $0xb0] sm:$0xff]
    %v72 = vld [vmem:[%s0 + $0xb8] sm:$0xff]
    %v73 = vld [vmem:[%s0 + $0xc0] sm:$0xff]
    %v74 = vld [vmem:[%s0 + $0xc8] sm:$0xff]
    %v75 = vld [vmem:[%s0 + $0xd0] sm:$0xff]
    %v76 = vld [vmem:[%s0 + $0xd8] sm:$0xff]
    %v77 = vld [vmem:[%s0 + $0xe0] sm:$0xff]
    %v78 = vld [vmem:[%s0 + $0xe8] sm:$0xff]
    %v79 = vld [vmem:[%s0 + $0xf0] sm:$0xff]
    %v80 = vld [vmem:[%s0 + $0xf8] sm:$0xff]
    %v81 = vld [vmem:[%s0 + $0x100] sm:$0xff]
    %v82 = vld [vmem:[%s0 + $0x108] sm:$0xff]
    %v83 = vld [vmem:[%s0 + $0x110] sm:$0xff]
    %v84 = vld [vmem:[%s0 + $0x118] sm:$0xff]
    %v85 = vld [vmem:[%s0 + $0x120] sm:$0xff]
    %v86 = vld [vmem:[%s0 + $0x128] sm:$0xff]
    %v87 = vld [vmem:[%s0 + $0x130] sm:$0xff]
    %v88 = vld [vmem:[%s0 + $0x138] sm:$0xff]
    %v89 = vld [vmem:[%s0 + $0x140] sm:$0xff]
    %v90 = vld [vmem:[%s0 + $0x148] sm:$0xff]
    %v91 = vld [vmem:[%s0 + $0x150] sm:$0xff]
    %v92 = vld [vmem:[%s0 + $0x158] sm:$0xff]
    %v93 = vld [vmem:[%s0 + $0x160] sm:$0xff]
    %v94 = vld [vmem:[%s0 + $0x168] sm:$0xff]
    %v95 = vld [vmem:[%s0 + $0x170] sm:$0xff]
    %v96 = vld [vmem:[%s0 + $0x178] sm:$0xff]
    %v97 = vld [vmem:[%s0 + $0x180] sm:$0xff]
    %v98 = vld [vmem:[%s0 + $0x188] sm:$0xff]
    %v99 = vld [vmem:[%s0 + $0x190] sm:$0xff]
    %v100 = vld [vmem:[%s0 + $0x198] sm:$0xff]
    %v101 = vld [vmem:[%s0 + $0x1a0] sm:$0xff]
    %v102 = vld [vmem:[%s0 + $0x1a8] sm:$0xff]
    %v103 = vld [vmem:[%s0 + $0x1b0] sm:$0xff]
    %v104 = vld [vmem:[%s0 + $0x1b8] sm:$0xff]
    %v105 = vld [vmem:[%s0 + $0x1c0] sm:$0xff]
    %v106 = vld [vmem:[%s0 + $0x1c8] sm:$0xff]
    %v107 = vld [vmem:[%s0 + $0x1d0] sm:$0xff]
    %v108 = vld [vmem:[%s0 + $0x1d8] sm:$0xff]
    %v109 = vld [vmem:[%s0 + $0x1e0] sm:$0xff]
    %v110 = vld [vmem:[%s0 + $0x1e8] sm:$0xff]
    %v111 = vld [vmem:[%s0 + $0x1f0] sm:$0xff]
    %v112 = vld [vmem:[%s0 + $0x1f8] sm:$0xff]
    %v113 = vld [vmem:[%s0 + $0x200] sm:$0xff]
    %v114 = vld [vmem:[%s0 + $0x208] sm:$0xff]
    %v115 = vld [vmem:[%s0 + $0x210] sm:$0xff]
    %v116 = vld [vmem:[%s0 + $0x218] sm:$0xff]
    %v117 = vld [vmem:[%s0 + $0x220] sm:$0xff]
    %v118 = vld [vmem:[%s0 + $0x228] sm:$0xff]
    %v119 = vld [vmem:[%s0 + $0x230] sm:$0xff]
    %v120 = vld [vmem:[%s0 + $0x238] sm:$0xff]
    %v121 = vld [vmem:[%s0 + $0x240] sm:$0xff]
    %v122 = vld [vmem:[%s0 + $0x248] sm:$0xff]
    %v123 = vld [vmem:[%s0 + $0x250] sm:$0xff]
    %v124 = vld [vmem:[%s0 + $0x258] sm:$0xff]
    %v125 = vld [vmem:[%s0 + $0x260] sm:$0xff]
    %v126 = vld [vmem:[%s0 + $0x268] sm:$0xff]
    %v127 = vld [vmem:[%s0 + $0x270] sm:$0xff]
    %v128 = vld [vmem:[%s0 + $0x278] sm:$0xff]
    %v129 = vld [vmem:[%s0 + $0x280] sm:$0xff]
    %v130 = vld [vmem:[%s0 + $0x288] sm:$0xff]
    %v131 = vld [vmem:[%s0 + $0x290] sm:$0xff]
    %v132 = vld [vmem:[%s0 + $0x298] sm:$0xff]
    %v133 = vld [vmem:[%s0 + $0x2a0] sm:$0xff]
    %v134 = vld [vmem:[%s0 + $0x2a8] sm:$0xff]
    %v135 = vld [vmem:[%s0 + $0x2b0] sm:$0xff]
    %v136 = vld [vmem:[%s0 + $0x2b8] sm:$0xff]
    %v137 = vld [vmem:[%s0 + $0x2c0] sm:$0xff]
    %v138 = vld [vmem:[%s0 + $0x2c8] sm:$0xff]
    %v139 = vld [vmem:[%s0 + $0x2d0] sm:$0xff]
    %v140 = vld [vmem:[%s0 + $0x2d8] sm:$0xff]
    %v141 = vld [vmem:[%s0 + $0x2e0] sm:$0xff]
    %v142 = vld [vmem:[%s0 + $0x2e8] sm:$0xff]
    %v143 = vld [vmem:[%s0 + $0x2f0] sm:$0xff]
    %v144 = vld [vmem:[%s0 + $0x2f8] sm:$0xff]
    %v145 = vld [vmem:[%s0 + $0x300] sm:$0xff]
    %v146 = vld [vmem:[%s0 + $0x308] sm:$0xff]
    %v147 = vld [vmem:[%s0 + $0x310] sm:$0xff]
    %v148 = vld [vmem:[%s0 + $0x318] sm:$0xff]
    %v149 = vld [vmem:[%s0 + $0x320] sm:$0xff]
    %v150 = vld [vmem:[%s0 + $0x328] sm:$0xff]
    %v151 = vld [vmem:[%s0 + $0x330] sm:$0xff]
    %v152 = vld [vmem:[%s0 + $0x338] sm:$0xff]
    %v153 = vld [vmem:[%s0 + $0x340] sm:$0xff]
    %v154 = vld [vmem:[%s0 + $0x348] sm:$0xff]
    %v155 = vld [vmem:[%s0 + $0x350] sm:$0xff]
    %v156 = vld [vmem:[%s0 + $0x358] sm:$0xff]
    %v157 = vld [vmem:[%s0 + $0x360] sm:$0xff]
    %v158 = vld [vmem:[%s0 + $0x368] sm:$0xff]
    %v159 = vld [vmem:[%s0 + $0x370] sm:$0xff]
    %v160 = vld [vmem:[%s0 + $0x378] sm:$0xff]
    %v161 = vld [vmem:[%s0 + $0x380] sm:$0xff]
    %v162 = vld [vmem:[%s0 + $0x388] sm:$0xff]
    %v163 = vld [vmem:[%s0 + $0x390] sm:$0xff]
    %v164 = vld [vmem:[%s0 + $0x398] sm:$0xff]
    %v165 = vld [vmem:[%s0 + $0x3a0] sm:$0xff]
    %v166 = vld [vmem:[%s0 + $0x3a8] sm:$0xff]
    %v167 = vld [vmem:[%s0 + $0x3b0] sm:$0xff]
    %v168 = vld [vmem:[%s0 + $0x3b8] sm:$0xff]
    %vm169 = vcmask 16384
    %170 = vst.msk [vmem:[#allocation2] sm:$0x1] %vm169, 0.0
    %171 = vst.msk [vmem:[#allocation2 + $0x1e8] sm:$0x1] %vm169, 0.0
    %172 = vst.msk [vmem:[#allocation2 + $0x1e1] sm:$0x1] %vm169, 0.0
    %173 = vst.msk [vmem:[#allocation2 + $0x3c9] sm:$0x1] %vm169, 0.0
    %vm174 = vcmask 23552
    %175 = vst.msk [vmem:[#allocation2 + $0x1] sm:$0xff] %vm174, %v49
    %176 = vst.msk [vmem:[#allocation2 + $0x9] sm:$0xff] %vm174, %v50
    %177 = vst.msk [vmem:[#allocation2 + $0x11] sm:$0xff] %vm174, %v51
    %178 = vst.msk [vmem:[#allocation2 + $0x19] sm:$0xff] %vm174, %v52
    %179 = vst.msk [vmem:[#allocation2 + $0x21] sm:$0xff] %vm174, %v53
    %180 = vst.msk [vmem:[#allocation2 + $0x29] sm:$0xff] %vm174, %v54
    %181 = vst.msk [vmem:[#allocation2 + $0x31] sm:$0xff] %vm174, %v55
    %182 = vst.msk [vmem:[#allocation2 + $0x39] sm:$0xff] %vm174, %v56
    %183 = vst.msk [vmem:[#allocation2 + $0x41] sm:$0xff] %vm174, %v57
    %184 = vst.msk [vmem:[#allocation2 + $0x49] sm:$0xff] %vm174, %v58
    %185 = vst.msk [vmem:[#allocation2 + $0x51] sm:$0xff] %vm174, %v59
    %186 = vst.msk [vmem:[#allocation2 + $0x59] sm:$0xff] %vm174, %v60
    %187 = vst.msk [vmem:[#allocation2 + $0x61] sm:$0xff] %vm174, %v61
    %188 = vst.msk [vmem:[#allocation2 + $0x69] sm:$0xff] %vm174, %v62
    %189 = vst.msk [vmem:[#allocation2 + $0x71] sm:$0xff] %vm174, %v63
    %190 = vst.msk [vmem:[#allocation2 + $0x79] sm:$0xff] %vm174, %v64
    %191 = vst.msk [vmem:[#allocation2 + $0x81] sm:$0xff] %vm174, %v65
    %192 = vst.msk [vmem:[#allocation2 + $0x89] sm:$0xff] %vm174, %v66
    %193 = vst.msk [vmem:[#allocation2 + $0x91] sm:$0xff] %vm174, %v67
    %194 = vst.msk [vmem:[#allocation2 + $0x99] sm:$0xff] %vm174, %v68
    %195 = vst.msk [vmem:[#allocation2 + $0xa1] sm:$0xff] %vm174, %v69
    %196 = vst.msk [vmem:[#allocation2 + $0xa9] sm:$0xff] %vm174, %v70
    %197 = vst.msk [vmem:[#allocation2 + $0xb1] sm:$0xff] %vm174, %v71
    %198 = vst.msk [vmem:[#allocation2 + $0xb9] sm:$0xff] %vm174, %v72
    %199 = vst.msk [vmem:[#allocation2 + $0xc1] sm:$0xff] %vm174, %v73
    %200 = vst.msk [vmem:[#allocation2 + $0xc9] sm:$0xff] %vm174, %v74
    %201 = vst.msk [vmem:[#allocation2 + $0xd1] sm:$0xff] %vm174, %v75
    %202 = vst.msk [vmem:[#allocation2 + $0xd9] sm:$0xff] %vm174, %v76
    %203 = vst.msk [vmem:[#allocation2 + $0xe1] sm:$0xff] %vm174, %v77
    %204 = vst.msk [vmem:[#allocation2 + $0xe9] sm:$0xff] %vm174, %v78
    %205 = vst.msk [vmem:[#allocation2 + $0xf1] sm:$0xff] %vm174, %v79
    %206 = vst.msk [vmem:[#allocation2 + $0xf9] sm:$0xff] %vm174, %v80
    %207 = vst.msk [vmem:[#allocation2 + $0x101] sm:$0xff] %vm174, %v81
    %208 = vst.msk [vmem:[#allocation2 + $0x109] sm:$0xff] %vm174, %v82
    %209 = vst.msk [vmem:[#allocation2 + $0x111] sm:$0xff] %vm174, %v83
    %210 = vst.msk [vmem:[#allocation2 + $0x119] sm:$0xff] %vm174, %v84
    %211 = vst.msk [vmem:[#allocation2 + $0x121] sm:$0xff] %vm174, %v85
    %212 = vst.msk [vmem:[#allocation2 + $0x129] sm:$0xff] %vm174, %v86
    %213 = vst.msk [vmem:[#allocation2 + $0x131] sm:$0xff] %vm174, %v87
    %214 = vst.msk [vmem:[#allocation2 + $0x139] sm:$0xff] %vm174, %v88
    %215 = vst.msk [vmem:[#allocation2 + $0x141] sm:$0xff] %vm174, %v89
    %216 = vst.msk [vmem:[#allocation2 + $0x149] sm:$0xff] %vm174, %v90
    %217 = vst.msk [vmem:[#allocation2 + $0x151] sm:$0xff] %vm174, %v91
    %218 = vst.msk [vmem:[#allocation2 + $0x159] sm:$0xff] %vm174, %v92
    %219 = vst.msk [vmem:[#allocation2 + $0x161] sm:$0xff] %vm174, %v93
    %220 = vst.msk [vmem:[#allocation2 + $0x169] sm:$0xff] %vm174, %v94
    %221 = vst.msk [vmem:[#allocation2 + $0x171] sm:$0xff] %vm174, %v95
    %222 = vst.msk [vmem:[#allocation2 + $0x179] sm:$0xff] %vm174, %v96
    %223 = vst.msk [vmem:[#allocation2 + $0x181] sm:$0xff] %vm174, %v97
    %224 = vst.msk [vmem:[#allocation2 + $0x189] sm:$0xff] %vm174, %v98
    %225 = vst.msk [vmem:[#allocation2 + $0x191] sm:$0xff] %vm174, %v99
    %226 = vst.msk [vmem:[#allocation2 + $0x199] sm:$0xff] %vm174, %v100
    %227 = vst.msk [vmem:[#allocation2 + $0x1a1] sm:$0xff] %vm174, %v101
    %228 = vst.msk [vmem:[#allocation2 + $0x1a9] sm:$0xff] %vm174, %v102
    %229 = vst.msk [vmem:[#allocation2 + $0x1b1] sm:$0xff] %vm174, %v103
    %230 = vst.msk [vmem:[#allocation2 + $0x1b9] sm:$0xff] %vm174, %v104
    %231 = vst.msk [vmem:[#allocation2 + $0x1c1] sm:$0xff] %vm174, %v105
    %232 = vst.msk [vmem:[#allocation2 + $0x1c9] sm:$0xff] %vm174, %v106
    %233 = vst.msk [vmem:[#allocation2 + $0x1d1] sm:$0xff] %vm174, %v107
    %234 = vst.msk [vmem:[#allocation2 + $0x1d9] sm:$0xff] %vm174, %v108
    %235 = vst.msk [vmem:[#allocation2 + $0x1e9] sm:$0xff] %vm174, %v109
    %236 = vst.msk [vmem:[#allocation2 + $0x1f1] sm:$0xff] %vm174, %v110
    %237 = vst.msk [vmem:[#allocation2 + $0x1f9] sm:$0xff] %vm174, %v111
    %238 = vst.msk [vmem:[#allocation2 + $0x201] sm:$0xff] %vm174, %v112
    %239 = vst.msk [vmem:[#allocation2 + $0x209] sm:$0xff] %vm174, %v113
    %240 = vst.msk [vmem:[#allocation2 + $0x211] sm:$0xff] %vm174, %v114
    %241 = vst.msk [vmem:[#allocation2 + $0x219] sm:$0xff] %vm174, %v115
    %242 = vst.msk [vmem:[#allocation2 + $0x221] sm:$0xff] %vm174, %v116
    %243 = vst.msk [vmem:[#allocation2 + $0x229] sm:$0xff] %vm174, %v117
    %244 = vst.msk [vmem:[#allocation2 + $0x231] sm:$0xff] %vm174, %v118
    %245 = vst.msk [vmem:[#allocation2 + $0x239] sm:$0xff] %vm174, %v119
    %246 = vst.msk [vmem:[#allocation2 + $0x241] sm:$0xff] %vm174, %v120
    %247 = vst.msk [vmem:[#allocation2 + $0x249] sm:$0xff] %vm174, %v121
    %248 = vst.msk [vmem:[#allocation2 + $0x251] sm:$0xff] %vm174, %v122
    %249 = vst.msk [vmem:[#allocation2 + $0x259] sm:$0xff] %vm174, %v123
    %250 = vst.msk [vmem:[#allocation2 + $0x261] sm:$0xff] %vm174, %v124
    %251 = vst.msk [vmem:[#allocation2 + $0x269] sm:$0xff] %vm174, %v125
    %252 = vst.msk [vmem:[#allocation2 + $0x271] sm:$0xff] %vm174, %v126
    %253 = vst.msk [vmem:[#allocation2 + $0x279] sm:$0xff] %vm174, %v127
    %254 = vst.msk [vmem:[#allocation2 + $0x281] sm:$0xff] %vm174, %v128
    %255 = vst.msk [vmem:[#allocation2 + $0x289] sm:$0xff] %vm174, %v129
    %256 = vst.msk [vmem:[#allocation2 + $0x291] sm:$0xff] %vm174, %v130
    %257 = vst.msk [vmem:[#allocation2 + $0x299] sm:$0xff] %vm174, %v131
    %258 = vst.msk [vmem:[#allocation2 + $0x2a1] sm:$0xff] %vm174, %v132
    %259 = vst.msk [vmem:[#allocation2 + $0x2a9] sm:$0xff] %vm174, %v133
    %260 = vst.msk [vmem:[#allocation2 + $0x2b1] sm:$0xff] %vm174, %v134
    %261 = vst.msk [vmem:[#allocation2 + $0x2b9] sm:$0xff] %vm174, %v135
    %262 = vst.msk [vmem:[#allocation2 + $0x2c1] sm:$0xff] %vm174, %v136
    %263 = vst.msk [vmem:[#allocation2 + $0x2c9] sm:$0xff] %vm174, %v137
    %264 = vst.msk [vmem:[#allocation2 + $0x2d1] sm:$0xff] %vm174, %v138
    %265 = vst.msk [vmem:[#allocation2 + $0x2d9] sm:$0xff] %vm174, %v139
    %266 = vst.msk [vmem:[#allocation2 + $0x2e1] sm:$0xff] %vm174, %v140
    %267 = vst.msk [vmem:[#allocation2 + $0x2e9] sm:$0xff] %vm174, %v141
    %268 = vst.msk [vmem:[#allocation2 + $0x2f1] sm:$0xff] %vm174, %v142
    %269 = vst.msk [vmem:[#allocation2 + $0x2f9] sm:$0xff] %vm174, %v143
    %270 = vst.msk [vmem:[#allocation2 + $0x301] sm:$0xff] %vm174, %v144
    %271 = vst.msk [vmem:[#allocation2 + $0x309] sm:$0xff] %vm174, %v145
    %272 = vst.msk [vmem:[#allocation2 + $0x311] sm:$0xff] %vm174, %v146
    %273 = vst.msk [vmem:[#allocation2 + $0x319] sm:$0xff] %vm174, %v147
    %274 = vst.msk [vmem:[#allocation2 + $0x321] sm:$0xff] %vm174, %v148
    %275 = vst.msk [vmem:[#allocation2 + $0x329] sm:$0xff] %vm174, %v149
    %276 = vst.msk [vmem:[#allocation2 + $0x331] sm:$0xff] %vm174, %v150
    %277 = vst.msk [vmem:[#allocation2 + $0x339] sm:$0xff] %vm174, %v151
    %278 = vst.msk [vmem:[#allocation2 + $0x341] sm:$0xff] %vm174, %v152
    %279 = vst.msk [vmem:[#allocation2 + $0x349] sm:$0xff] %vm174, %v153
    %280 = vst.msk [vmem:[#allocation2 + $0x351] sm:$0xff] %vm174, %v154
    %281 = vst.msk [vmem:[#allocation2 + $0x359] sm:$0xff] %vm174, %v155
    %282 = vst.msk [vmem:[#allocation2 + $0x361] sm:$0xff] %vm174, %v156
    %283 = vst.msk [vmem:[#allocation2 + $0x369] sm:$0xff] %vm174, %v157
    %284 = vst.msk [vmem:[#allocation2 + $0x371] sm:$0xff] %vm174, %v158
    %285 = vst.msk [vmem:[#allocation2 + $0x379] sm:$0xff] %vm174, %v159
    %286 = vst.msk [vmem:[#allocation2 + $0x381] sm:$0xff] %vm174, %v160
    %287 = vst.msk [vmem:[#allocation2 + $0x389] sm:$0xff] %vm174, %v161
    %288 = vst.msk [vmem:[#allocation2 + $0x391] sm:$0xff] %vm174, %v162
    %289 = vst.msk [vmem:[#allocation2 + $0x399] sm:$0xff] %vm174, %v163
    %290 = vst.msk [vmem:[#allocation2 + $0x3a1] sm:$0xff] %vm174, %v164
    %291 = vst.msk [vmem:[#allocation2 + $0x3a9] sm:$0xff] %vm174, %v165
    %292 = vst.msk [vmem:[#allocation2 + $0x3b1] sm:$0xff] %vm174, %v166
    %293 = vst.msk [vmem:[#allocation2 + $0x3b9] sm:$0xff] %vm174, %v167
    %294 = vst.msk [vmem:[#allocation2 + $0x3c1] sm:$0xff] %vm174, %v168
    %s295 = sld [smem:[#allocation7]]
    %s296 = sld [smem:[#allocation7 + $0x1]]
    %s297 = sld [smem:[#allocation7 + $0x2]]
    %v298 = vld [vmem:[#allocation2] sm:$0xff]
    %v299 = vld [vmem:[#allocation2 + $0x8] sm:$0xff]
    %v300 = vld [vmem:[#allocation2 + $0x10] sm:$0xff]
    %v301 = vld [vmem:[#allocation2 + $0x18] sm:$0xff]
    %v302 = vld [vmem:[#allocation2 + $0x20] sm:$0xff]
    %v303 = vld [vmem:[#allocation2 + $0x28] sm:$0xff]
    %v304 = vld [vmem:[#allocation2 + $0x30] sm:$0xff]
    %v305 = vld [vmem:[#allocation2 + $0x38] sm:$0xff]
    %v306 = vld [vmem:[#allocation2 + $0x40] sm:$0xff]
    %v307 = vld [vmem:[#allocation2 + $0x48] sm:$0xff]
    %v308 = vld [vmem:[#allocation2 + $0x50] sm:$0xff]
    %v309 = vld [vmem:[#allocation2 + $0x58] sm:$0xff]
    %v310 = vld [vmem:[#allocation2 + $0x60] sm:$0xff]
    %v311 = vld [vmem:[#allocation2 + $0x68] sm:$0xff]
    %v312 = vld [vmem:[#allocation2 + $0x70] sm:$0xff]
    %v313 = vld [vmem:[#allocation2 + $0x78] sm:$0xff]
    %v314 = vld [vmem:[#allocation2 + $0x80] sm:$0xff]
    %v315 = vld [vmem:[#allocation2 + $0x88] sm:$0xff]
    %v316 = vld [vmem:[#allocation2 + $0x90] sm:$0xff]
    %v317 = vld [vmem:[#allocation2 + $0x98] sm:$0xff]
    %v318 = vld [vmem:[#allocation2 + $0xa0] sm:$0xff]
    %v319 = vld [vmem:[#allocation2 + $0xa8] sm:$0xff]
    %v320 = vld [vmem:[#allocation2 + $0xb0] sm:$0xff]
    %v321 = vld [vmem:[#allocation2 + $0xb8] sm:$0xff]
    %v322 = vld [vmem:[#allocation2 + $0xc0] sm:$0xff]
    %v323 = vld [vmem:[#allocation2 + $0xc8] sm:$0xff]
    %v324 = vld [vmem:[#allocation2 + $0xd0] sm:$0xff]
    %v325 = vld [vmem:[#allocation2 + $0xd8] sm:$0xff]
    %v326 = vld [vmem:[#allocation2 + $0xe0] sm:$0xff]
    %v327 = vld [vmem:[#allocation2 + $0xe8] sm:$0xff]
    %v328 = vld [vmem:[#allocation2 + $0xf0] sm:$0xff]
    %v329 = vld [vmem:[#allocation2 + $0xf8] sm:$0xff]
    %v330 = vld [vmem:[#allocation2 + $0x100] sm:$0xff]
    %v331 = vld [vmem:[#allocation2 + $0x108] sm:$0xff]
    %v332 = vld [vmem:[#allocation2 + $0x110] sm:$0xff]
    %v333 = vld [vmem:[#allocation2 + $0x118] sm:$0xff]
    %v334 = vld [vmem:[#allocation2 + $0x120] sm:$0xff]
    %v335 = vld [vmem:[#allocation2 + $0x128] sm:$0xff]
    %v336 = vld [vmem:[#allocation2 + $0x130] sm:$0xff]
    %v337 = vld [vmem:[#allocation2 + $0x138] sm:$0xff]
    %v338 = vld [vmem:[#allocation2 + $0x140] sm:$0xff]
    %v339 = vld [vmem:[#allocation2 + $0x148] sm:$0xff]
    %v340 = vld [vmem:[#allocation2 + $0x150] sm:$0xff]
    %v341 = vld [vmem:[#allocation2 + $0x158] sm:$0xff]
    %v342 = vld [vmem:[#allocation2 + $0x160] sm:$0xff]
    %v343 = vld [vmem:[#allocation2 + $0x168] sm:$0xff]
    %v344 = vld [vmem:[#allocation2 + $0x170] sm:$0xff]
    %v345 = vld [vmem:[#allocation2 + $0x178] sm:$0xff]
    %v346 = vld [vmem:[#allocation2 + $0x180] sm:$0xff]
    %v347 = vld [vmem:[#allocation2 + $0x188] sm:$0xff]
    %v348 = vld [vmem:[#allocation2 + $0x190] sm:$0xff]
    %v349 = vld [vmem:[#allocation2 + $0x198] sm:$0xff]
    %v350 = vld [vmem:[#allocation2 + $0x1a0] sm:$0xff]
    %v351 = vld [vmem:[#allocation2 + $0x1a8] sm:$0xff]
    %v352 = vld [vmem:[#allocation2 + $0x1b0] sm:$0xff]
    %v353 = vld [vmem:[#allocation2 + $0x1b8] sm:$0xff]
    %v354 = vld [vmem:[#allocation2 + $0x1c0] sm:$0xff]
    %v355 = vld [vmem:[#allocation2 + $0x1c8] sm:$0xff]
    %v356 = vld [vmem:[#allocation2 + $0x1d0] sm:$0xff]
    %v357 = vld [vmem:[#allocation2 + $0x1d8] sm:$0xff]
    %v358 = vld [vmem:[#allocation2 + $0x1e8] sm:$0xff]
    %v359 = vld [vmem:[#allocation2 + $0x1f0] sm:$0xff]
    %v360 = vld [vmem:[#allocation2 + $0x1f8] sm:$0xff]
    %v361 = vld [vmem:[#allocation2 + $0x200] sm:$0xff]
    %v362 = vld [vmem:[#allocation2 + $0x208] sm:$0xff]
    %v363 = vld [vmem:[#allocation2 + $0x210] sm:$0xff]
    %v364 = vld [vmem:[#allocation2 + $0x218] sm:$0xff]
    %v365 = vld [vmem:[#allocation2 + $0x220] sm:$0xff]
    %v366 = vld [vmem:[#allocation2 + $0x228] sm:$0xff]
    %v367 = vld [vmem:[#allocation2 + $0x230] sm:$0xff]
    %v368 = vld [vmem:[#allocation2 + $0x238] sm:$0xff]
    %v369 = vld [vmem:[#allocation2 + $0x240] sm:$0xff]
    %v370 = vld [vmem:[#allocation2 + $0x248] sm:$0xff]
    %v371 = vld [vmem:[#allocation2 + $0x250] sm:$0xff]
    %v372 = vld [vmem:[#allocation2 + $0x258] sm:$0xff]
    %v373 = vld [vmem:[#allocation2 + $0x260] sm:$0xff]
    %v374 = vld [vmem:[#allocation2 + $0x268] sm:$0xff]
    %v375 = vld [vmem:[#allocation2 + $0x270] sm:$0xff]
    %v376 = vld [vmem:[#allocation2 + $0x278] sm:$0xff]
    %v377 = vld [vmem:[#allocation2 + $0x280] sm:$0xff]
    %v378 = vld [vmem:[#allocation2 + $0x288] sm:$0xff]
    %v379 = vld [vmem:[#allocation2 + $0x290] sm:$0xff]
    %v380 = vld [vmem:[#allocation2 + $0x298] sm:$0xff]
    %v381 = vld [vmem:[#allocation2 + $0x2a0] sm:$0xff]
    %v382 = vld [vmem:[#allocation2 + $0x2a8] sm:$0xff]
    %v383 = vld [vmem:[#allocation2 + $0x2b0] sm:$0xff]
    %v384 = vld [vmem:[#allocation2 + $0x2b8] sm:$0xff]
    %v385 = vld [vmem:[#allocation2 + $0x2c0] sm:$0xff]
    %v386 = vld [vmem:[#allocation2 + $0x2c8] sm:$0xff]
    %v387 = vld [vmem:[#allocation2 + $0x2d0] sm:$0xff]
    %v388 = vld [vmem:[#allocation2 + $0x2d8] sm:$0xff]
    %v389 = vld [vmem:[#allocation2 + $0x2e0] sm:$0xff]
    %v390 = vld [vmem:[#allocation2 + $0x2e8] sm:$0xff]
    %v391 = vld [vmem:[#allocation2 + $0x2f0] sm:$0xff]
    %v392 = vld [vmem:[#allocation2 + $0x2f8] sm:$0xff]
    %v393 = vld [vmem:[#allocation2 + $0x300] sm:$0xff]
    %v394 = vld [vmem:[#allocation2 + $0x308] sm:$0xff]
    %v395 = vld [vmem:[#allocation2 + $0x310] sm:$0xff]
    %v396 = vld [vmem:[#allocation2 + $0x318] sm:$0xff]
    %v397 = vld [vmem:[#allocation2 + $0x320] sm:$0xff]
    %v398 = vld [vmem:[#allocation2 + $0x328] sm:$0xff]
    %v399 = vld [vmem:[#allocation2 + $0x330] sm:$0xff]
    %v400 = vld [vmem:[#allocation2 + $0x338] sm:$0xff]
    %v401 = vld [vmem:[#allocation2 + $0x340] sm:$0xff]
    %v402 = vld [vmem:[#allocation2 + $0x348] sm:$0xff]
    %v403 = vld [vmem:[#allocation2 + $0x350] sm:$0xff]
    %v404 = vld [vmem:[#allocation2 + $0x358] sm:$0xff]
    %v405 = vld [vmem:[#allocation2 + $0x360] sm:$0xff]
    %v406 = vld [vmem:[#allocation2 + $0x368] sm:$0xff]
    %v407 = vld [vmem:[#allocation2 + $0x370] sm:$0xff]
    %v408 = vld [vmem:[#allocation2 + $0x378] sm:$0xff]
    %v409 = vld [vmem:[#allocation2 + $0x380] sm:$0xff]
    %v410 = vld [vmem:[#allocation2 + $0x388] sm:$0xff]
    %v411 = vld [vmem:[#allocation2 + $0x390] sm:$0xff]
    %v412 = vld [vmem:[#allocation2 + $0x398] sm:$0xff]
    %v413 = vld [vmem:[#allocation2 + $0x3a0] sm:$0xff]
    %v414 = vld [vmem:[#allocation2 + $0x3a8] sm:$0xff]
    %v415 = vld [vmem:[#allocation2 + $0x3b0] sm:$0xff]
    %v416 = vld [vmem:[#allocation2 + $0x3b8] sm:$0xff]
    %v417 = vld [vmem:[#allocation2 + $0x3c0] sm:$0xff]
    %v418 = vld [vmem:[#allocation2 + $0x1] sm:$0xff]
    %v419 = vld [vmem:[#allocation2 + $0x9] sm:$0xff]
    %v420 = vld [vmem:[#allocation2 + $0x11] sm:$0xff]
    %v421 = vld [vmem:[#allocation2 + $0x19] sm:$0xff]
    %v422 = vld [vmem:[#allocation2 + $0x21] sm:$0xff]
    %v423 = vld [vmem:[#allocation2 + $0x29] sm:$0xff]
    %v424 = vld [vmem:[#allocation2 + $0x31] sm:$0xff]
    %v425 = vld [vmem:[#allocation2 + $0x39] sm:$0xff]
    %v426 = vld [vmem:[#allocation2 + $0x41] sm:$0xff]
    %v427 = vld [vmem:[#allocation2 + $0x49] sm:$0xff]
    %v428 = vld [vmem:[#allocation2 + $0x51] sm:$0xff]
    %v429 = vld [vmem:[#allocation2 + $0x59] sm:$0xff]
    %v430 = vld [vmem:[#allocation2 + $0x61] sm:$0xff]
    %v431 = vld [vmem:[#allocation2 + $0x69] sm:$0xff]
    %v432 = vld [vmem:[#allocation2 + $0x71] sm:$0xff]
    %v433 = vld [vmem:[#allocation2 + $0x79] sm:$0xff]
    %v434 = vld [vmem:[#allocation2 + $0x81] sm:$0xff]
    %v435 = vld [vmem:[#allocation2 + $0x89] sm:$0xff]
    %v436 = vld [vmem:[#allocation2 + $0x91] sm:$0xff]
    %v437 = vld [vmem:[#allocation2 + $0x99] sm:$0xff]
    %v438 = vld [vmem:[#allocation2 + $0xa1] sm:$0xff]
    %v439 = vld [vmem:[#allocation2 + $0xa9] sm:$0xff]
    %v440 = vld [vmem:[#allocation2 + $0xb1] sm:$0xff]
    %v441 = vld [vmem:[#allocation2 + $0xb9] sm:$0xff]
    %v442 = vld [vmem:[#allocation2 + $0xc1] sm:$0xff]
    %v443 = vld [vmem:[#allocation2 + $0xc9] sm:$0xff]
    %v444 = vld [vmem:[#allocation2 + $0xd1] sm:$0xff]
    %v445 = vld [vmem:[#allocation2 + $0xd9] sm:$0xff]
    %v446 = vld [vmem:[#allocation2 + $0xe1] sm:$0xff]
    %v447 = vld [vmem:[#allocation2 + $0xe9] sm:$0xff]
    %v448 = vld [vmem:[#allocation2 + $0xf1] sm:$0xff]
    %v449 = vld [vmem:[#allocation2 + $0xf9] sm:$0xff]
    %v450 = vld [vmem:[#allocation2 + $0x101] sm:$0xff]
    %v451 = vld [vmem:[#allocation2 + $0x109] sm:$0xff]
    %v452 = vld [vmem:[#allocation2 + $0x111] sm:$0xff]
    %v453 = vld [vmem:[#allocation2 + $0x119] sm:$0xff]
    %v454 = vld [vmem:[#allocation2 + $0x121] sm:$0xff]
    %v455 = vld [vmem:[#allocation2 + $0x129] sm:$0xff]
    %v456 = vld [vmem:[#allocation2 + $0x131] sm:$0xff]
    %v457 = vld [vmem:[#allocation2 + $0x139] sm:$0xff]
    %v458 = vld [vmem:[#allocation2 + $0x141] sm:$0xff]
    %v459 = vld [vmem:[#allocation2 + $0x149] sm:$0xff]
    %v460 = vld [vmem:[#allocation2 + $0x151] sm:$0xff]
    %v461 = vld [vmem:[#allocation2 + $0x159] sm:$0xff]
    %v462 = vld [vmem:[#allocation2 + $0x161] sm:$0xff]
    %v463 = vld [vmem:[#allocation2 + $0x169] sm:$0xff]
    %v464 = vld [vmem:[#allocation2 + $0x171] sm:$0xff]
    %v465 = vld [vmem:[#allocation2 + $0x179] sm:$0xff]
    %v466 = vld [vmem:[#allocation2 + $0x181] sm:$0xff]
    %v467 = vld [vmem:[#allocation2 + $0x189] sm:$0xff]
    %v468 = vld [vmem:[#allocation2 + $0x191] sm:$0xff]
    %v469 = vld [vmem:[#allocation2 + $0x199] sm:$0xff]
    %v470 = vld [vmem:[#allocation2 + $0x1a1] sm:$0xff]
    %v471 = vld [vmem:[#allocation2 + $0x1a9] sm:$0xff]
    %v472 = vld [vmem:[#allocation2 + $0x1b1] sm:$0xff]
    %v473 = vld [vmem:[#allocation2 + $0x1b9] sm:$0xff]
    %v474 = vld [vmem:[#allocation2 + $0x1c1] sm:$0xff]
    %v475 = vld [vmem:[#allocation2 + $0x1c9] sm:$0xff]
    %v476 = vld [vmem:[#allocation2 + $0x1d1] sm:$0xff]
    %v477 = vld [vmem:[#allocation2 + $0x1d9] sm:$0xff]
    %v478 = vld [vmem:[#allocation2 + $0x1e9] sm:$0xff]
    %v479 = vld [vmem:[#allocation2 + $0x1f1] sm:$0xff]
    %v480 = vld [vmem:[#allocation2 + $0x1f9] sm:$0xff]
    %v481 = vld [vmem:[#allocation2 + $0x201] sm:$0xff]
    %v482 = vld [vmem:[#allocation2 + $0x209] sm:$0xff]
    %v483 = vld [vmem:[#allocation2 + $0x211] sm:$0xff]
    %v484 = vld [vmem:[#allocation2 + $0x219] sm:$0xff]
    %v485 = vld [vmem:[#allocation2 + $0x221] sm:$0xff]
    %v486 = vld [vmem:[#allocation2 + $0x229] sm:$0xff]
    %v487 = vld [vmem:[#allocation2 + $0x231] sm:$0xff]
    %v488 = vld [vmem:[#allocation2 + $0x239] sm:$0xff]
    %v489 = vld [vmem:[#allocation2 + $0x241] sm:$0xff]
    %v490 = vld [vmem:[#allocation2 + $0x249] sm:$0xff]
    %v491 = vld [vmem:[#allocation2 + $0x251] sm:$0xff]
    %v492 = vld [vmem:[#allocation2 + $0x259] sm:$0xff]
    %v493 = vld [vmem:[#allocation2 + $0x261] sm:$0xff]
    %v494 = vld [vmem:[#allocation2 + $0x269] sm:$0xff]
    %v495 = vld [vmem:[#allocation2 + $0x271] sm:$0xff]
    %v496 = vld [vmem:[#allocation2 + $0x279] sm:$0xff]
    %v497 = vld [vmem:[#allocation2 + $0x281] sm:$0xff]
    %v498 = vld [vmem:[#allocation2 + $0x289] sm:$0xff]
    %v499 = vld [vmem:[#allocation2 + $0x291] sm:$0xff]
    %v500 = vld [vmem:[#allocation2 + $0x299] sm:$0xff]
    %v501 = vld [vmem:[#allocation2 + $0x2a1] sm:$0xff]
    %v502 = vld [vmem:[#allocation2 + $0x2a9] sm:$0xff]
    %v503 = vld [vmem:[#allocation2 + $0x2b1] sm:$0xff]
    %v504 = vld [vmem:[#allocation2 + $0x2b9] sm:$0xff]
    %v505 = vld [vmem:[#allocation2 + $0x2c1] sm:$0xff]
    %v506 = vld [vmem:[#allocation2 + $0x2c9] sm:$0xff]
    %v507 = vld [vmem:[#allocation2 + $0x2d1] sm:$0xff]
    %v508 = vld [vmem:[#allocation2 + $0x2d9] sm:$0xff]
    %v509 = vld [vmem:[#allocation2 + $0x2e1] sm:$0xff]
    %v510 = vld [vmem:[#allocation2 + $0x2e9] sm:$0xff]
    %v511 = vld [vmem:[#allocation2 + $0x2f1] sm:$0xff]
    %v512 = vld [vmem:[#allocation2 + $0x2f9] sm:$0xff]
    %v513 = vld [vmem:[#allocation2 + $0x301] sm:$0xff]
    %v514 = vld [vmem:[#allocation2 + $0x309] sm:$0xff]
    %v515 = vld [vmem:[#allocation2 + $0x311] sm:$0xff]
    %v516 = vld [vmem:[#allocation2 + $0x319] sm:$0xff]
    %v517 = vld [vmem:[#allocation2 + $0x321] sm:$0xff]
    %v518 = vld [vmem:[#allocation2 + $0x329] sm:$0xff]
    %v519 = vld [vmem:[#allocation2 + $0x331] sm:$0xff]
    %v520 = vld [vmem:[#allocation2 + $0x339] sm:$0xff]
    %v521 = vld [vmem:[#allocation2 + $0x341] sm:$0xff]
    %v522 = vld [vmem:[#allocation2 + $0x349] sm:$0xff]
    %v523 = vld [vmem:[#allocation2 + $0x351] sm:$0xff]
    %v524 = vld [vmem:[#allocation2 + $0x359] sm:$0xff]
    %v525 = vld [vmem:[#allocation2 + $0x361] sm:$0xff]
    %v526 = vld [vmem:[#allocation2 + $0x369] sm:$0xff]
    %v527 = vld [vmem:[#allocation2 + $0x371] sm:$0xff]
    %v528 = vld [vmem:[#allocation2 + $0x379] sm:$0xff]
    %v529 = vld [vmem:[#allocation2 + $0x381] sm:$0xff]
    %v530 = vld [vmem:[#allocation2 + $0x389] sm:$0xff]
    %v531 = vld [vmem:[#allocation2 + $0x391] sm:$0xff]
    %v532 = vld [vmem:[#allocation2 + $0x399] sm:$0xff]
    %v533 = vld [vmem:[#allocation2 + $0x3a1] sm:$0xff]
    %v534 = vld [vmem:[#allocation2 + $0x3a9] sm:$0xff]
    %v535 = vld [vmem:[#allocation2 + $0x3b1] sm:$0xff]
    %v536 = vld [vmem:[#allocation2 + $0x3b9] sm:$0xff]
    %v537 = vld [vmem:[#allocation2 + $0x3c1] sm:$0xff]
    %v538 = vld [vmem:[#allocation2 + $0x2] sm:$0xff]
    %v539 = vld [vmem:[#allocation2 + $0xa] sm:$0xff]
    %v540 = vld [vmem:[#allocation2 + $0x12] sm:$0xff]
    %v541 = vld [vmem:[#allocation2 + $0x1a] sm:$0xff]
    %v542 = vld [vmem:[#allocation2 + $0x22] sm:$0xff]
    %v543 = vld [vmem:[#allocation2 + $0x2a] sm:$0xff]
    %v544 = vld [vmem:[#allocation2 + $0x32] sm:$0xff]
    %v545 = vld [vmem:[#allocation2 + $0x3a] sm:$0xff]
    %v546 = vld [vmem:[#allocation2 + $0x42] sm:$0xff]
    %v547 = vld [vmem:[#allocation2 + $0x4a] sm:$0xff]
    %v548 = vld [vmem:[#allocation2 + $0x52] sm:$0xff]
    %v549 = vld [vmem:[#allocation2 + $0x5a] sm:$0xff]
    %v550 = vld [vmem:[#allocation2 + $0x62] sm:$0xff]
    %v551 = vld [vmem:[#allocation2 + $0x6a] sm:$0xff]
    %v552 = vld [vmem:[#allocation2 + $0x72] sm:$0xff]
    %v553 = vld [vmem:[#allocation2 + $0x7a] sm:$0xff]
    %v554 = vld [vmem:[#allocation2 + $0x82] sm:$0xff]
    %v555 = vld [vmem:[#allocation2 + $0x8a] sm:$0xff]
    %v556 = vld [vmem:[#allocation2 + $0x92] sm:$0xff]
    %v557 = vld [vmem:[#allocation2 + $0x9a] sm:$0xff]
    %v558 = vld [vmem:[#allocation2 + $0xa2] sm:$0xff]
    %v559 = vld [vmem:[#allocation2 + $0xaa] sm:$0xff]
    %v560 = vld [vmem:[#allocation2 + $0xb2] sm:$0xff]
    %v561 = vld [vmem:[#allocation2 + $0xba] sm:$0xff]
    %v562 = vld [vmem:[#allocation2 + $0xc2] sm:$0xff]
    %v563 = vld [vmem:[#allocation2 + $0xca] sm:$0xff]
    %v564 = vld [vmem:[#allocation2 + $0xd2] sm:$0xff]
    %v565 = vld [vmem:[#allocation2 + $0xda] sm:$0xff]
    %v566 = vld [vmem:[#allocation2 + $0xe2] sm:$0xff]
    %v567 = vld [vmem:[#allocation2 + $0xea] sm:$0xff]
    %v568 = vld [vmem:[#allocation2 + $0xf2] sm:$0xff]
    %v569 = vld [vmem:[#allocation2 + $0xfa] sm:$0xff]
    %v570 = vld [vmem:[#allocation2 + $0x102] sm:$0xff]
    %v571 = vld [vmem:[#allocation2 + $0x10a] sm:$0xff]
    %v572 = vld [vmem:[#allocation2 + $0x112] sm:$0xff]
    %v573 = vld [vmem:[#allocation2 + $0x11a] sm:$0xff]
    %v574 = vld [vmem:[#allocation2 + $0x122] sm:$0xff]
    %v575 = vld [vmem:[#allocation2 + $0x12a] sm:$0xff]
    %v576 = vld [vmem:[#allocation2 + $0x132] sm:$0xff]
    %v577 = vld [vmem:[#allocation2 + $0x13a] sm:$0xff]
    %v578 = vld [vmem:[#allocation2 + $0x142] sm:$0xff]
    %v579 = vld [vmem:[#allocation2 + $0x14a] sm:$0xff]
    %v580 = vld [vmem:[#allocation2 + $0x152] sm:$0xff]
    %v581 = vld [vmem:[#allocation2 + $0x15a] sm:$0xff]
    %v582 = vld [vmem:[#allocation2 + $0x162] sm:$0xff]
    %v583 = vld [vmem:[#allocation2 + $0x16a] sm:$0xff]
    %v584 = vld [vmem:[#allocation2 + $0x172] sm:$0xff]
    %v585 = vld [vmem:[#allocation2 + $0x17a] sm:$0xff]
    %v586 = vld [vmem:[#allocation2 + $0x182] sm:$0xff]
    %v587 = vld [vmem:[#allocation2 + $0x18a] sm:$0xff]
    %v588 = vld [vmem:[#allocation2 + $0x192] sm:$0xff]
    %v589 = vld [vmem:[#allocation2 + $0x19a] sm:$0xff]
    %v590 = vld [vmem:[#allocation2 + $0x1a2] sm:$0xff]
    %v591 = vld [vmem:[#allocation2 + $0x1aa] sm:$0xff]
    %v592 = vld [vmem:[#allocation2 + $0x1b2] sm:$0xff]
    %v593 = vld [vmem:[#allocation2 + $0x1ba] sm:$0xff]
    %v594 = vld [vmem:[#allocation2 + $0x1c2] sm:$0xff]
    %v595 = vld [vmem:[#allocation2 + $0x1ca] sm:$0xff]
    %v596 = vld [vmem:[#allocation2 + $0x1d2] sm:$0xff]
    %v597 = vld [vmem:[#allocation2 + $0x1da] sm:$0xff]
    %v598 = vld [vmem:[#allocation2 + $0x1ea] sm:$0xff]
    %v599 = vld [vmem:[#allocation2 + $0x1f2] sm:$0xff]
    %v600 = vld [vmem:[#allocation2 + $0x1fa] sm:$0xff]
    %v601 = vld [vmem:[#allocation2 + $0x202] sm:$0xff]
    %v602 = vld [vmem:[#allocation2 + $0x20a] sm:$0xff]
    %v603 = vld [vmem:[#allocation2 + $0x212] sm:$0xff]
    %v604 = vld [vmem:[#allocation2 + $0x21a] sm:$0xff]
    %v605 = vld [vmem:[#allocation2 + $0x222] sm:$0xff]
    %v606 = vld [vmem:[#allocation2 + $0x22a] sm:$0xff]
    %v607 = vld [vmem:[#allocation2 + $0x232] sm:$0xff]
    %v608 = vld [vmem:[#allocation2 + $0x23a] sm:$0xff]
    %v609 = vld [vmem:[#allocation2 + $0x242] sm:$0xff]
    %v610 = vld [vmem:[#allocation2 + $0x24a] sm:$0xff]
    %v611 = vld [vmem:[#allocation2 + $0x252] sm:$0xff]
    %v612 = vld [vmem:[#allocation2 + $0x25a] sm:$0xff]
    %v613 = vld [vmem:[#allocation2 + $0x262] sm:$0xff]
    %v614 = vld [vmem:[#allocation2 + $0x26a] sm:$0xff]
    %v615 = vld [vmem:[#allocation2 + $0x272] sm:$0xff]
    %v616 = vld [vmem:[#allocation2 + $0x27a] sm:$0xff]
    %v617 = vld [vmem:[#allocation2 + $0x282] sm:$0xff]
    %v618 = vld [vmem:[#allocation2 + $0x28a] sm:$0xff]
    %v619 = vld [vmem:[#allocation2 + $0x292] sm:$0xff]
    %v620 = vld [vmem:[#allocation2 + $0x29a] sm:$0xff]
    %v621 = vld [vmem:[#allocation2 + $0x2a2] sm:$0xff]
    %v622 = vld [vmem:[#allocation2 + $0x2aa] sm:$0xff]
    %v623 = vld [vmem:[#allocation2 + $0x2b2] sm:$0xff]
    %v624 = vld [vmem:[#allocation2 + $0x2ba] sm:$0xff]
    %v625 = vld [vmem:[#allocation2 + $0x2c2] sm:$0xff]
    %v626 = vld [vmem:[#allocation2 + $0x2ca] sm:$0xff]
    %v627 = vld [vmem:[#allocation2 + $0x2d2] sm:$0xff]
    %v628 = vld [vmem:[#allocation2 + $0x2da] sm:$0xff]
    %v629 = vld [vmem:[#allocation2 + $0x2e2] sm:$0xff]
    %v630 = vld [vmem:[#allocation2 + $0x2ea] sm:$0xff]
    %v631 = vld [vmem:[#allocation2 + $0x2f2] sm:$0xff]
    %v632 = vld [vmem:[#allocation2 + $0x2fa] sm:$0xff]
    %v633 = vld [vmem:[#allocation2 + $0x302] sm:$0xff]
    %v634 = vld [vmem:[#allocation2 + $0x30a] sm:$0xff]
    %v635 = vld [vmem:[#allocation2 + $0x312] sm:$0xff]
    %v636 = vld [vmem:[#allocation2 + $0x31a] sm:$0xff]
    %v637 = vld [vmem:[#allocation2 + $0x322] sm:$0xff]
    %v638 = vld [vmem:[#allocation2 + $0x32a] sm:$0xff]
    %v639 = vld [vmem:[#allocation2 + $0x332] sm:$0xff]
    %v640 = vld [vmem:[#allocation2 + $0x33a] sm:$0xff]
    %v641 = vld [vmem:[#allocation2 + $0x342] sm:$0xff]
    %v642 = vld [vmem:[#allocation2 + $0x34a] sm:$0xff]
    %v643 = vld [vmem:[#allocation2 + $0x352] sm:$0xff]
    %v644 = vld [vmem:[#allocation2 + $0x35a] sm:$0xff]
    %v645 = vld [vmem:[#allocation2 + $0x362] sm:$0xff]
    %v646 = vld [vmem:[#allocation2 + $0x36a] sm:$0xff]
    %v647 = vld [vmem:[#allocation2 + $0x372] sm:$0xff]
    %v648 = vld [vmem:[#allocation2 + $0x37a] sm:$0xff]
    %v649 = vld [vmem:[#allocation2 + $0x382] sm:$0xff]
    %v650 = vld [vmem:[#allocation2 + $0x38a] sm:$0xff]
    %v651 = vld [vmem:[#allocation2 + $0x392] sm:$0xff]
    %v652 = vld [vmem:[#allocation2 + $0x39a] sm:$0xff]
    %v653 = vld [vmem:[#allocation2 + $0x3a2] sm:$0xff]
    %v654 = vld [vmem:[#allocation2 + $0x3aa] sm:$0xff]
    %v655 = vld [vmem:[#allocation2 + $0x3b2] sm:$0xff]
    %v656 = vld [vmem:[#allocation2 + $0x3ba] sm:$0xff]
    %v657 = vld [vmem:[#allocation2 + $0x3c2] sm:$0xff]
    %v658 = vld [vmem:[%s1] sm:$0x7]
    %s659 = scalar_lea.vmem %s1, 4
    %v660 = vld [vmem:[%s659] sm:$0x7]
    %v662 = vsel %vm174, %v418, 0
    %v665 = vsel %vm174, %v419, 0
    %v668 = vsel %vm174, %v420, 0
    %v671 = vsel %vm174, %v421, 0
    %v674 = vsel %vm174, %v422, 0
    %v677 = vsel %vm174, %v423, 0
    %v680 = vsel %vm174, %v424, 0
    %v683 = vsel %vm174, %v425, 0
    %v686 = vsel %vm174, %v426, 0
    %v689 = vsel %vm174, %v427, 0
    %v692 = vsel %vm174, %v428, 0
    %v695 = vsel %vm174, %v429, 0
    %v698 = vsel %vm174, %v430, 0
    %v701 = vsel %vm174, %v431, 0
    %v704 = vsel %vm174, %v432, 0
    %v707 = vsel %vm174, %v433, 0
    %v710 = vsel %vm174, %v434, 0
    %v713 = vsel %vm174, %v435, 0
    %v716 = vsel %vm174, %v436, 0
    %v719 = vsel %vm174, %v437, 0
    %v722 = vsel %vm174, %v438, 0
    %v725 = vsel %vm174, %v439, 0
    %v728 = vsel %vm174, %v440, 0
    %v731 = vsel %vm174, %v441, 0
    %v734 = vsel %vm174, %v442, 0
    %v737 = vsel %vm174, %v443, 0
    %v740 = vsel %vm174, %v444, 0
    %v743 = vsel %vm174, %v445, 0
    %v746 = vsel %vm174, %v446, 0
    %v749 = vsel %vm174, %v447, 0
    %v752 = vsel %vm174, %v448, 0
    %v755 = vsel %vm174, %v449, 0
    %v758 = vsel %vm174, %v450, 0
    %v761 = vsel %vm174, %v451, 0
    %v764 = vsel %vm174, %v452, 0
    %v767 = vsel %vm174, %v453, 0
    %v770 = vsel %vm174, %v454, 0
    %v773 = vsel %vm174, %v455, 0
    %v776 = vsel %vm174, %v456, 0
    %v779 = vsel %vm174, %v457, 0
    %v782 = vsel %vm174, %v458, 0
    %v785 = vsel %vm174, %v459, 0
    %v788 = vsel %vm174, %v460, 0
    %v791 = vsel %vm174, %v461, 0
    %v794 = vsel %vm174, %v462, 0
    %v797 = vsel %vm174, %v463, 0
    %v800 = vsel %vm174, %v464, 0
    %v803 = vsel %vm174, %v465, 0
    %v806 = vsel %vm174, %v466, 0
    %v809 = vsel %vm174, %v467, 0
    %v812 = vsel %vm174, %v468, 0
    %v815 = vsel %vm174, %v469, 0
    %v818 = vsel %vm174, %v470, 0
    %v821 = vsel %vm174, %v471, 0
    %v824 = vsel %vm174, %v472, 0
    %v827 = vsel %vm174, %v473, 0
    %v830 = vsel %vm174, %v474, 0
    %v833 = vsel %vm174, %v475, 0
    %v836 = vsel %vm174, %v476, 0
    %v839 = vsel %vm174, %v477, 0
    %v842 = vsel %vm174, %v478, 0
    %v845 = vsel %vm174, %v479, 0
    %v848 = vsel %vm174, %v480, 0
    %v851 = vsel %vm174, %v481, 0
    %v854 = vsel %vm174, %v482, 0
    %v857 = vsel %vm174, %v483, 0
    %v860 = vsel %vm174, %v484, 0
    %v863 = vsel %vm174, %v485, 0
    %v866 = vsel %vm174, %v486, 0
    %v869 = vsel %vm174, %v487, 0
    %v872 = vsel %vm174, %v488, 0
    %v875 = vsel %vm174, %v489, 0
    %v878 = vsel %vm174, %v490, 0
    %v881 = vsel %vm174, %v491, 0
    %v884 = vsel %vm174, %v492, 0
    %v887 = vsel %vm174, %v493, 0
    %v890 = vsel %vm174, %v494, 0
    %v893 = vsel %vm174, %v495, 0
    %v896 = vsel %vm174, %v496, 0
    %v899 = vsel %vm174, %v497, 0
    %v902 = vsel %vm174, %v498, 0
    %v905 = vsel %vm174, %v499, 0
    %v908 = vsel %vm174, %v500, 0
    %v911 = vsel %vm174, %v501, 0
    %v914 = vsel %vm174, %v502, 0
    %v917 = vsel %vm174, %v503, 0
    %v920 = vsel %vm174, %v504, 0
    %v923 = vsel %vm174, %v505, 0
    %v926 = vsel %vm174, %v506, 0
    %v929 = vsel %vm174, %v507, 0
    %v932 = vsel %vm174, %v508, 0
    %v935 = vsel %vm174, %v509, 0
    %v938 = vsel %vm174, %v510, 0
    %v941 = vsel %vm174, %v511, 0
    %v944 = vsel %vm174, %v512, 0
    %v947 = vsel %vm174, %v513, 0
    %v950 = vsel %vm174, %v514, 0
    %v953 = vsel %vm174, %v515, 0
    %v956 = vsel %vm174, %v516, 0
    %v959 = vsel %vm174, %v517, 0
    %v962 = vsel %vm174, %v518, 0
    %v965 = vsel %vm174, %v519, 0
    %v968 = vsel %vm174, %v520, 0
    %v971 = vsel %vm174, %v521, 0
    %v974 = vsel %vm174, %v522, 0
    %v977 = vsel %vm174, %v523, 0
    %v980 = vsel %vm174, %v524, 0
    %v983 = vsel %vm174, %v525, 0
    %v986 = vsel %vm174, %v526, 0
    %v989 = vsel %vm174, %v527, 0
    %v992 = vsel %vm174, %v528, 0
    %v995 = vsel %vm174, %v529, 0
    %v998 = vsel %vm174, %v530, 0
    %v1001 = vsel %vm174, %v531, 0
    %v1004 = vsel %vm174, %v532, 0
    %v1007 = vsel %vm174, %v533, 0
    %v1010 = vsel %vm174, %v534, 0
    %v1013 = vsel %vm174, %v535, 0
    %v1016 = vsel %vm174, %v536, 0
    %v1019 = vsel %vm174, %v537, 0
    %vm1021 = vcmask 1042432
    %v1023 = vsel %vm1021, %v660, 0
    %1025 = vmatprep.subr.mxu0 0.0
    %1026 = vmatpush1.msra.mxu0 %v1023
    %1027 = vmatprep.subr.mxu0 0.0
    %1028 = vmatpush1.msra.mxu0 0.0
    %1029 = vmatprep.subr.mxu0 0.0
    %1030 = vmatpush1.msra.mxu0 0.0
    %1031 = vmatprep.subr.mxu0 0.0
    %1032 = vmatpush1.msra.mxu0 0.0
    %1033 = vmatprep.subr.mxu0 0.0
    %1034 = vmatpush1.msra.mxu0 0.0
    %1035 = vmatprep.subr.mxu0 0.0
    %1036 = vmatpush1.msra.mxu0 0.0
    %1037 = vmatprep.subr.mxu0 0.0
    %1038 = vmatpush1.msra.mxu0 0.0
    %1039 = vmatprep.subr.mxu0 0.0
    %1040 = vmatpush1.msra.mxu0 0.0
    %1041 = vmatprep.subr.mxu0 0.0
    %1042 = vmatpush1.msra.mxu0 0.0
    %1043 = vmatprep.subr.mxu0 0.0
    %1044 = vmatpush1.msra.mxu0 0.0
    %1045 = vmatprep.subr.mxu0 0.0
    %1046 = vmatpush1.msra.mxu0 0.0
    %1047 = vmatprep.subr.mxu0 0.0
    %1048 = vmatpush1.msra.mxu0 0.0
    %1049 = vmatprep.subr.mxu0 0.0
    %1050 = vmatpush1.msra.mxu0 0.0
    %1051 = vmatprep.subr.mxu0 0.0
    %1052 = vmatpush1.msra.mxu0 0.0
    %1053 = vmatprep.subr.mxu0 0.0
    %1054 = vmatpush1.msra.mxu0 0.0
    %1055 = vmatprep.subr.mxu0 0.0
    %1056 = vmatpush1.msra.mxu0 0.0
    %1057 = vmatprep.subr.mxu0 0.0
    %1058 = vmatpush1.msra.mxu0 0.0
    %1059 = vmatprep.subr.mxu0 0.0
    %1060 = vmatpush1.msra.mxu0 0.0
    %1061 = vmatprep.subr.mxu0 0.0
    %1062 = vmatpush1.msra.mxu0 0.0
    %1063 = vmatprep.subr.mxu0 0.0
    %1064 = vmatpush1.msra.mxu0 0.0
    %1065 = vmatprep.subr.mxu0 0.0
    %1066 = vmatpush1.msra.mxu0 0.0
    %1067 = vmatprep.subr.mxu0 0.0
    %1068 = vmatpush1.msra.mxu0 0.0
    %1069 = vmatprep.subr.mxu0 0.0
    %1070 = vmatpush1.msra.mxu0 0.0
    %1071 = vmatprep.subr.mxu0 0.0
    %1072 = vmatpush1.msra.mxu0 0.0
    %1073 = vmatprep.subr.mxu0 0.0
    %1074 = vmatpush1.msra.mxu0 0.0
    %1075 = vmatprep.subr.mxu0 0.0
    %1076 = vmatpush1.msra.mxu0 0.0
    %1077 = vmatprep.subr.mxu0 0.0
    %1078 = vmatpush1.msra.mxu0 0.0
    %1079 = vmatprep.subr.mxu0 0.0
    %1080 = vmatpush1.msra.mxu0 0.0
    %1081 = vmatprep.subr.mxu0 0.0
    %1082 = vmatpush1.msra.mxu0 0.0
    %1083 = vmatprep.subr.mxu0 0.0
    %1084 = vmatpush1.msra.mxu0 0.0
    %1085 = vmatprep.subr.mxu0 0.0
    %1086 = vmatpush1.msra.mxu0 0.0
    %1087 = vmatprep.subr.mxu0 0.0
    %1088 = vmatpush1.msra.mxu0 0.0
    %1089 = vmatprep.mubr.f32.mxu0 0.0
    %1090 = vmatmul.mubr.f32.gmra.mrb[0].mxu0 %v662
    %v1091 = vpop.f32.mrb[0].mxu0
    %v1092 = vadd.f32 0.0, %v1091
    %v1093 = vpop.f32.mrb[0].mxu0
    %1094 = vmatprep.mubr.f32.mxu0 0.0
    %1095 = vmatmul.mubr.f32.gmra.mrb[0].mxu0 %v665
    %v1096 = vpop.f32.mrb[0].mxu0
    %v1097 = vadd.f32 0.0, %v1096
    %v1098 = vpop.f32.mrb[0].mxu0
    %1099 = vmatprep.mubr.f32.mxu0 0.0
    %1100 = vmatmul.mubr.f32.gmra.mrb[0].mxu0 %v668
    %v1101 = vpop.f32.mrb[0].mxu0
    %v1102 = vadd.f32 0.0, %v1101
    %v1103 = vpop.f32.mrb[0].mxu0
    %1104 = vmatprep.mubr.f32.mxu0 0.0
    %1105 = vmatmul.mubr.f32.gmra.mrb[0].mxu0 %v671
    %v1106 = vpop.f32.mrb[0].mxu0
    %v1107 = vadd.f32 0.0, %v1106
    %v1108 = vpop.f32.mrb[0].mxu0
    %1109 = vmatprep.mubr.f32.mxu0 0.0
    %1110 = vmatmul.mubr.f32.gmra.mrb[0].mxu0 %v674
    %v1111 = vpop.f32.mrb[0].mxu0
    %v1112 = vadd.f32 0.0, %v1111
    %v1113 = vpop.f32.mrb[0].mxu0
    %1114 = vmatprep.mubr.f32.mxu0 0.0
    %1115 = vmatmul.mubr.f32.gmra.mrb[0].mxu0 %v677
    %v1116 = vpop.f32.mrb[0].mxu0
    %v1117 = vadd.f32 0.0, %v1116
    %v1118 = vpop.f32.mrb[0].mxu0
    %1119 = vmatprep.mubr.f32.mxu0 0.0
    %1120 = vmatmul.mubr.f32.gmra.mrb[0].mxu0 %v680
    %v1121 = vpop.f32.mrb[0].mxu0
    %v1122 = vadd.f32 0.0, %v1121
    %v1123 = vpop.f32.mrb[0].mxu0
    %1124 = vmatprep.mubr.f32.mxu0 0.0
    %1125 = vmatmul.mubr.f32.gmra.mrb[0].mxu0 %v683
    %v1126 = vpop.f32.mrb[0].mxu0
    %v1127 = vadd.f32 0.0, %v1126
    %v1128 = vpop.f32.mrb[0].mxu0
    %1129 = vmatprep.mubr.f32.mxu0 0.0
    %1130 = vmatmul.mubr.f32.gmra.mrb[0].mxu0 %v686
    %v1131 = vpop.f32.mrb[0].mxu0
    %v1132 = vadd.f32 0.0, %v1131
    %v1133 = vpop.f32.mrb[0].mxu0
    %1134 = vmatprep.mubr.f32.mxu0 0.0
    %1135 = vmatmul.mubr.f32.gmra.mrb[0].mxu0 %v689
    %v1136 = vpop.f32.mrb[0].mxu0
    %v1137 = vadd.f32 0.0, %v1136
    %v1138 = vpop.f32.mrb[0].mxu0
    %1139 = vmatprep.mubr.f32.mxu0 0.0
    %1140 = vmatmul.mubr.f32.gmra.mrb[0].mxu0 %v692
    %v1141 = vpop.f32.mrb[0].mxu0
    %v1142 = vadd.f32 0.0, %v1141
    %v1143 = vpop.f32.mrb[0].mxu0
    %1144 = vmatprep.mubr.f32.mxu0 0.0
    %1145 = vmatmul.mubr.f32.gmra.mrb[0].mxu0 %v695
    %v1146 = vpop.f32.mrb[0].mxu0
    %v1147 = vadd.f32 0.0, %v1146
    %v1148 = vpop.f32.mrb[0].mxu0
    %1149 = vmatprep.mubr.f32.mxu0 0.0
    %1150 = vmatmul.mubr.f32.gmra.mrb[0].mxu0 %v698
    %v1151 = vpop.f32.mrb[0].mxu0
    %v1152 = vadd.f32 0.0, %v1151
    %v1153 = vpop.f32.mrb[0].mxu0
    %1154 = vmatprep.mubr.f32.mxu0 0.0
    %1155 = vmatmul.mubr.f32.gmra.mrb[0].mxu0 %v701
    %v1156 = vpop.f32.mrb[0].mxu0
    %v1157 = vadd.f32 0.0, %v1156
    %v1158 = vpop.f32.mrb[0].mxu0
    %1159 = vmatprep.mubr.f32.mxu0 0.0
    %1160 = vmatmul.mubr.f32.gmra.mrb[0].mxu0 %v704
    %v1161 = vpop.f32.mrb[0].mxu0
    %v1162 = vadd.f32 0.0, %v1161
    %v1163 = vpop.f32.mrb[0].mxu0
    %1164 = vmatprep.mubr.f32.mxu0 0.0
    %1165 = vmatmul.mubr.f32.gmra.mrb[0].mxu0 %v707
    %v1166 = vpop.f32.mrb[0].mxu0
    %v1167 = vadd.f32 0.0, %v1166
    %v1168 = vpop.f32.mrb[0].mxu0
    %1169 = vmatprep.mubr.f32.mxu0 0.0
    %1170 = vmatmul.mubr.f32.gmra.mrb[0].mxu0 %v710
    %v1171 = vpop.f32.mrb[0].mxu0
    %v1172 = vadd.f32 0.0, %v1171
    %v1173 = vpop.f32.mrb[0].mxu0
    %1174 = vmatprep.mubr.f32.mxu0 0.0
    %1175 = vmatmul.mubr.f32.gmra.mrb[0].mxu0 %v713
    %v1176 = vpop.f32.mrb[0].mxu0
    %v1177 = vadd.f32 0.0, %v1176
    %v1178 = vpop.f32.mrb[0].mxu0
    %1179 = vmatprep.mubr.f32.mxu0 0.0
    %1180 = vmatmul.mubr.f32.gmra.mrb[0].mxu0 %v716
    %v1181 = vpop.f32.mrb[0].mxu0
    %v1182 = vadd.f32 0.0, %v1181
    %v1183 = vpop.f32.mrb[0].mxu0
    %1184 = vmatprep.mubr.f32.mxu0 0.0
    %1185 = vmatmul.mubr.f32.gmra.mrb[0].mxu0 %v719
    %v1186 = vpop.f32.mrb[0].mxu0
    %v1187 = vadd.f32 0.0, %v1186
    %v1188 = vpop.f32.mrb[0].mxu0
    %1189 = vmatprep.mubr.f32.mxu0 0.0
    %1190 = vmatmul.mubr.f32.gmra.mrb[0].mxu0 %v722
    %v1191 = vpop.f32.mrb[0].mxu0
    %v1192 = vadd.f32 0.0, %v1191
    %v1193 = vpop.f32.mrb[0].mxu0
    %1194 = vmatprep.mubr.f32.mxu0 0.0
    %1195 = vmatmul.mubr.f32.gmra.mrb[0].mxu0 %v725
    %v1196 = vpop.f32.mrb[0].mxu0
    %v1197 = vadd.f32 0.0, %v1196
    %v1198 = vpop.f32.mrb[0].mxu0
    %1199 = vmatprep.mubr.f32.mxu0 0.0
    %1200 = vmatmul.mubr.f32.gmra.mrb[0].mxu0 %v728
    %v1201 = vpop.f32.mrb[0].mxu0
    %v1202 = vadd.f32 0.0, %v1201
    %v1203 = vpop.f32.mrb[0].mxu0
    %1204 = vmatprep.mubr.f32.mxu0 0.0
    %1205 = vmatmul.mubr.f32.gmra.mrb[0].mxu0 %v731
    %v1206 = vpop.f32.mrb[0].mxu0
    %v1207 = vadd.f32 0.0, %v1206
    %v1208 = vpop.f32.mrb[0].mxu0
    %1209 = vmatprep.mubr.f32.mxu0 0.0
    %1210 = vmatmul.mubr.f32.gmra.mrb[0].mxu0 %v734
    %v1211 = vpop.f32.mrb[0].mxu0
    %v1212 = vadd.f32 0.0, %v1211
    %v1213 = vpop.f32.mrb[0].mxu0
    %1214 = vmatprep.mubr.f32.mxu0 0.0
    %1215 = vmatmul.mubr.f32.gmra.mrb[0].mxu0 %v737
    %v1216 = vpop.f32.mrb[0].mxu0
    %v1217 = vadd.f32 0.0, %v1216
    %v1218 = vpop.f32.mrb[0].mxu0
    %1219 = vmatprep.mubr.f32.mxu0 0.0
    %1220 = vmatmul.mubr.f32.gmra.mrb[0].mxu0 %v740
    %v1221 = vpop.f32.mrb[0].mxu0
    %v1222 = vadd.f32 0.0, %v1221
    %v1223 = vpop.f32.mrb[0].mxu0
    %1224 = vmatprep.mubr.f32.mxu0 0.0
    %1225 = vmatmul.mubr.f32.gmra.mrb[0].mxu0 %v743
    %v1226 = vpop.f32.mrb[0].mxu0
    %v1227 = vadd.f32 0.0, %v1226
    %v1228 = vpop.f32.mrb[0].mxu0
    %1229 = vmatprep.mubr.f32.mxu0 0.0
    %1230 = vmatmul.mubr.f32.gmra.mrb[0].mxu0 %v746
    %v1231 = vpop.f32.mrb[0].mxu0
    %v1232 = vadd.f32 0.0, %v1231
    %v1233 = vpop.f32.mrb[0].mxu0
    %1234 = vmatprep.mubr.f32.mxu0 0.0
    %1235 = vmatmul.mubr.f32.gmra.mrb[0].mxu0 %v749
    %v1236 = vpop.f32.mrb[0].mxu0
    %v1237 = vadd.f32 0.0, %v1236
    %v1238 = vpop.f32.mrb[0].mxu0
    %1239 = vmatprep.mubr.f32.mxu0 0.0
    %1240 = vmatmul.mubr.f32.gmra.mrb[0].mxu0 %v752
    %v1241 = vpop.f32.mrb[0].mxu0
    %v1242 = vadd.f32 0.0, %v1241
    %v1243 = vpop.f32.mrb[0].mxu0
    %1244 = vmatprep.mubr.f32.mxu0 0.0
    %1245 = vmatmul.mubr.f32.gmra.mrb[0].mxu0 %v755
    %v1246 = vpop.f32.mrb[0].mxu0
    %v1247 = vadd.f32 0.0, %v1246
    %v1248 = vpop.f32.mrb[0].mxu0
    %1249 = vmatprep.mubr.f32.mxu0 0.0
    %1250 = vmatmul.mubr.f32.gmra.mrb[0].mxu0 %v758
    %v1251 = vpop.f32.mrb[0].mxu0
    %v1252 = vadd.f32 0.0, %v1251
    %v1253 = vpop.f32.mrb[0].mxu0
    %1254 = vmatprep.mubr.f32.mxu0 0.0
    %1255 = vmatmul.mubr.f32.gmra.mrb[0].mxu0 %v761
    %v1256 = vpop.f32.mrb[0].mxu0
    %v1257 = vadd.f32 0.0, %v1256
    %v1258 = vpop.f32.mrb[0].mxu0
    %1259 = vmatprep.mubr.f32.mxu0 0.0
    %1260 = vmatmul.mubr.f32.gmra.mrb[0].mxu0 %v764
    %v1261 = vpop.f32.mrb[0].mxu0
    %v1262 = vadd.f32 0.0, %v1261
    %v1263 = vpop.f32.mrb[0].mxu0
    %1264 = vmatprep.mubr.f32.mxu0 0.0
    %1265 = vmatmul.mubr.f32.gmra.mrb[0].mxu0 %v767
    %v1266 = vpop.f32.mrb[0].mxu0
    %v1267 = vadd.f32 0.0, %v1266
    %v1268 = vpop.f32.mrb[0].mxu0
    %1269 = vmatprep.mubr.f32.mxu0 0.0
    %1270 = vmatmul.mubr.f32.gmra.mrb[0].mxu0 %v770
    %v1271 = vpop.f32.mrb[0].mxu0
    %v1272 = vadd.f32 0.0, %v1271
    %v1273 = vpop.f32.mrb[0].mxu0
    %1274 = vmatprep.mubr.f32.mxu0 0.0
    %1275 = vmatmul.mubr.f32.gmra.mrb[0].mxu0 %v773
    %v1276 = vpop.f32.mrb[0].mxu0
    %v1277 = vadd.f32 0.0, %v1276
    %v1278 = vpop.f32.mrb[0].mxu0
    %1279 = vmatprep.mubr.f32.mxu0 0.0
    %1280 = vmatmul.mubr.f32.gmra.mrb[0].mxu0 %v776
    %v1281 = vpop.f32.mrb[0].mxu0
    %v1282 = vadd.f32 0.0, %v1281
    %v1283 = vpop.f32.mrb[0].mxu0
    %1284 = vmatprep.mubr.f32.mxu0 0.0
    %1285 = vmatmul.mubr.f32.gmra.mrb[0].mxu0 %v779
    %v1286 = vpop.f32.mrb[0].mxu0
    %v1287 = vadd.f32 0.0, %v1286
    %v1288 = vpop.f32.mrb[0].mxu0
    %1289 = vmatprep.mubr.f32.mxu0 0.0
    %1290 = vmatmul.mubr.f32.gmra.mrb[0].mxu0 %v782
    %v1291 = vpop.f32.mrb[0].mxu0
    %v1292 = vadd.f32 0.0, %v1291
    %v1293 = vpop.f32.mrb[0].mxu0
    %1294 = vmatprep.mubr.f32.mxu0 0.0
    %1295 = vmatmul.mubr.f32.gmra.mrb[0].mxu0 %v785
    %v1296 = vpop.f32.mrb[0].mxu0
    %v1297 = vadd.f32 0.0, %v1296
    %v1298 = vpop.f32.mrb[0].mxu0
    %1299 = vmatprep.mubr.f32.mxu0 0.0
    %1300 = vmatmul.mubr.f32.gmra.mrb[0].mxu0 %v788
    %v1301 = vpop.f32.mrb[0].mxu0
    %v1302 = vadd.f32 0.0, %v1301
    %v1303 = vpop.f32.mrb[0].mxu0
    %1304 = vmatprep.mubr.f32.mxu0 0.0
    %1305 = vmatmul.mubr.f32.gmra.mrb[0].mxu0 %v791
    %v1306 = vpop.f32.mrb[0].mxu0
    %v1307 = vadd.f32 0.0, %v1306
    %v1308 = vpop.f32.mrb[0].mxu0
    %1309 = vmatprep.mubr.f32.mxu0 0.0
    %1310 = vmatmul.mubr.f32.gmra.mrb[0].mxu0 %v794
    %v1311 = vpop.f32.mrb[0].mxu0
    %v1312 = vadd.f32 0.0, %v1311
    %v1313 = vpop.f32.mrb[0].mxu0
    %1314 = vmatprep.mubr.f32.mxu0 0.0
    %1315 = vmatmul.mubr.f32.gmra.mrb[0].mxu0 %v797
    %v1316 = vpop.f32.mrb[0].mxu0
    %v1317 = vadd.f32 0.0, %v1316
    %v1318 = vpop.f32.mrb[0].mxu0
    %1319 = vmatprep.mubr.f32.mxu0 0.0
    %1320 = vmatmul.mubr.f32.gmra.mrb[0].mxu0 %v800
    %v1321 = vpop.f32.mrb[0].mxu0
    %v1322 = vadd.f32 0.0, %v1321
    %v1323 = vpop.f32.mrb[0].mxu0
    %1324 = vmatprep.mubr.f32.mxu0 0.0
    %1325 = vmatmul.mubr.f32.gmra.mrb[0].mxu0 %v803
    %v1326 = vpop.f32.mrb[0].mxu0
    %v1327 = vadd.f32 0.0, %v1326
    %v1328 = vpop.f32.mrb[0].mxu0
    %1329 = vmatprep.mubr.f32.mxu0 0.0
    %1330 = vmatmul.mubr.f32.gmra.mrb[0].mxu0 %v806
    %v1331 = vpop.f32.mrb[0].mxu0
    %v1332 = vadd.f32 0.0, %v1331
    %v1333 = vpop.f32.mrb[0].mxu0
    %1334 = vmatprep.mubr.f32.mxu0 0.0
    %1335 = vmatmul.mubr.f32.gmra.mrb[0].mxu0 %v809
    %v1336 = vpop.f32.mrb[0].mxu0
    %v1337 = vadd.f32 0.0, %v1336
    %v1338 = vpop.f32.mrb[0].mxu0
    %1339 = vmatprep.mubr.f32.mxu0 0.0
    %1340 = vmatmul.mubr.f32.gmra.mrb[0].mxu0 %v812
    %v1341 = vpop.f32.mrb[0].mxu0
    %v1342 = vadd.f32 0.0, %v1341
    %v1343 = vpop.f32.mrb[0].mxu0
    %1344 = vmatprep.mubr.f32.mxu0 0.0
    %1345 = vmatmul.mubr.f32.gmra.mrb[0].mxu0 %v815
    %v1346 = vpop.f32.mrb[0].mxu0
    %v1347 = vadd.f32 0.0, %v1346
    %v1348 = vpop.f32.mrb[0].mxu0
    %1349 = vmatprep.mubr.f32.mxu0 0.0
    %1350 = vmatmul.mubr.f32.gmra.mrb[0].mxu0 %v818
    %v1351 = vpop.f32.mrb[0].mxu0
    %v1352 = vadd.f32 0.0, %v1351
    %v1353 = vpop.f32.mrb[0].mxu0
    %1354 = vmatprep.mubr.f32.mxu0 0.0
    %1355 = vmatmul.mubr.f32.gmra.mrb[0].mxu0 %v821
    %v1356 = vpop.f32.mrb[0].mxu0
    %v1357 = vadd.f32 0.0, %v1356
    %v1358 = vpop.f32.mrb[0].mxu0
    %1359 = vmatprep.mubr.f32.mxu0 0.0
    %1360 = vmatmul.mubr.f32.gmra.mrb[0].mxu0 %v824
    %v1361 = vpop.f32.mrb[0].mxu0
    %v1362 = vadd.f32 0.0, %v1361
    %v1363 = vpop.f32.mrb[0].mxu0
    %1364 = vmatprep.mubr.f32.mxu0 0.0
    %1365 = vmatmul.mubr.f32.gmra.mrb[0].mxu0 %v827
    %v1366 = vpop.f32.mrb[0].mxu0
    %v1367 = vadd.f32 0.0, %v1366
    %v1368 = vpop.f32.mrb[0].mxu0
    %1369 = vmatprep.mubr.f32.mxu0 0.0
    %1370 = vmatmul.mubr.f32.gmra.mrb[0].mxu0 %v830
    %v1371 = vpop.f32.mrb[0].mxu0
    %v1372 = vadd.f32 0.0, %v1371
    %v1373 = vpop.f32.mrb[0].mxu0
    %1374 = vmatprep.mubr.f32.mxu0 0.0
    %1375 = vmatmul.mubr.f32.gmra.mrb[0].mxu0 %v833
    %v1376 = vpop.f32.mrb[0].mxu0
    %v1377 = vadd.f32 0.0, %v1376
    %v1378 = vpop.f32.mrb[0].mxu0
    %1379 = vmatprep.mubr.f32.mxu0 0.0
    %1380 = vmatmul.mubr.f32.gmra.mrb[0].mxu0 %v836
    %v1381 = vpop.f32.mrb[0].mxu0
    %v1382 = vadd.f32 0.0, %v1381
    %v1383 = vpop.f32.mrb[0].mxu0
    %1384 = vmatprep.mubr.f32.mxu0 0.0
    %1385 = vmatmul.mubr.f32.gmra.mrb[0].mxu0 %v839
    %v1386 = vpop.f32.mrb[0].mxu0
    %v1387 = vadd.f32 0.0, %v1386
    %v1388 = vpop.f32.mrb[0].mxu0
    %1389 = vmatprep.mubr.f32.mxu0 0.0
    %1390 = vmatmul.mubr.f32.gmra.mrb[0].mxu0 %v842
    %v1391 = vpop.f32.mrb[0].mxu0
    %v1392 = vadd.f32 0.0, %v1391
    %v1393 = vpop.f32.mrb[0].mxu0
    %1394 = vmatprep.mubr.f32.mxu0 0.0
    %1395 = vmatmul.mubr.f32.gmra.mrb[0].mxu0 %v845
    %v1396 = vpop.f32.mrb[0].mxu0
    %v1397 = vadd.f32 0.0, %v1396
    %v1398 = vpop.f32.mrb[0].mxu0
    %1399 = vmatprep.mubr.f32.mxu0 0.0
    %1400 = vmatmul.mubr.f32.gmra.mrb[0].mxu0 %v848
    %v1401 = vpop.f32.mrb[0].mxu0
    %v1402 = vadd.f32 0.0, %v1401
    %v1403 = vpop.f32.mrb[0].mxu0
    %1404 = vmatprep.mubr.f32.mxu0 0.0
    %1405 = vmatmul.mubr.f32.gmra.mrb[0].mxu0 %v851
    %v1406 = vpop.f32.mrb[0].mxu0
    %v1407 = vadd.f32 0.0, %v1406
    %v1408 = vpop.f32.mrb[0].mxu0
    %1409 = vmatprep.mubr.f32.mxu0 0.0
    %1410 = vmatmul.mubr.f32.gmra.mrb[0].mxu0 %v854
    %v1411 = vpop.f32.mrb[0].mxu0
    %v1412 = vadd.f32 0.0, %v1411
    %v1413 = vpop.f32.mrb[0].mxu0
    %1414 = vmatprep.mubr.f32.mxu0 0.0
    %1415 = vmatmul.mubr.f32.gmra.mrb[0].mxu0 %v857
    %v1416 = vpop.f32.mrb[0].mxu0
    %v1417 = vadd.f32 0.0, %v1416
    %v1418 = vpop.f32.mrb[0].mxu0
    %1419 = vmatprep.mubr.f32.mxu0 0.0
    %1420 = vmatmul.mubr.f32.gmra.mrb[0].mxu0 %v860
    %v1421 = vpop.f32.mrb[0].mxu0
    %v1422 = vadd.f32 0.0, %v1421
    %v1423 = vpop.f32.mrb[0].mxu0
    %1424 = vmatprep.mubr.f32.mxu0 0.0
    %1425 = vmatmul.mubr.f32.gmra.mrb[0].mxu0 %v863
    %v1426 = vpop.f32.mrb[0].mxu0
    %v1427 = vadd.f32 0.0, %v1426
    %v1428 = vpop.f32.mrb[0].mxu0
    %1429 = vmatprep.mubr.f32.mxu0 0.0
    %1430 = vmatmul.mubr.f32.gmra.mrb[0].mxu0 %v866
    %v1431 = vpop.f32.mrb[0].mxu0
    %v1432 = vadd.f32 0.0, %v1431
    %v1433 = vpop.f32.mrb[0].mxu0
    %1434 = vmatprep.mubr.f32.mxu0 0.0
    %1435 = vmatmul.mubr.f32.gmra.mrb[0].mxu0 %v869
    %v1436 = vpop.f32.mrb[0].mxu0
    %v1437 = vadd.f32 0.0, %v1436
    %v1438 = vpop.f32.mrb[0].mxu0
    %1439 = vmatprep.mubr.f32.mxu0 0.0
    %1440 = vmatmul.mubr.f32.gmra.mrb[0].mxu0 %v872
    %v1441 = vpop.f32.mrb[0].mxu0
    %v1442 = vadd.f32 0.0, %v1441
    %v1443 = vpop.f32.mrb[0].mxu0
    %1444 = vmatprep.mubr.f32.mxu0 0.0
    %1445 = vmatmul.mubr.f32.gmra.mrb[0].mxu0 %v875
    %v1446 = vpop.f32.mrb[0].mxu0
    %v1447 = vadd.f32 0.0, %v1446
    %v1448 = vpop.f32.mrb[0].mxu0
    %1449 = vmatprep.mubr.f32.mxu0 0.0
    %1450 = vmatmul.mubr.f32.gmra.mrb[0].mxu0 %v878
    %v1451 = vpop.f32.mrb[0].mxu0
    %v1452 = vadd.f32 0.0, %v1451
    %v1453 = vpop.f32.mrb[0].mxu0
    %1454 = vmatprep.mubr.f32.mxu0 0.0
    %1455 = vmatmul.mubr.f32.gmra.mrb[0].mxu0 %v881
    %v1456 = vpop.f32.mrb[0].mxu0
    %v1457 = vadd.f32 0.0, %v1456
    %v1458 = vpop.f32.mrb[0].mxu0
    %1459 = vmatprep.mubr.f32.mxu0 0.0
    %1460 = vmatmul.mubr.f32.gmra.mrb[0].mxu0 %v884
    %v1461 = vpop.f32.mrb[0].mxu0
    %v1462 = vadd.f32 0.0, %v1461
    %v1463 = vpop.f32.mrb[0].mxu0
    %1464 = vmatprep.mubr.f32.mxu0 0.0
    %1465 = vmatmul.mubr.f32.gmra.mrb[0].mxu0 %v887
    %v1466 = vpop.f32.mrb[0].mxu0
    %v1467 = vadd.f32 0.0, %v1466
    %v1468 = vpop.f32.mrb[0].mxu0
    %1469 = vmatprep.mubr.f32.mxu0 0.0
    %1470 = vmatmul.mubr.f32.gmra.mrb[0].mxu0 %v890
    %v1471 = vpop.f32.mrb[0].mxu0
    %v1472 = vadd.f32 0.0, %v1471
    %v1473 = vpop.f32.mrb[0].mxu0
    %1474 = vmatprep.mubr.f32.mxu0 0.0
    %1475 = vmatmul.mubr.f32.gmra.mrb[0].mxu0 %v893
    %v1476 = vpop.f32.mrb[0].mxu0
    %v1477 = vadd.f32 0.0, %v1476
    %v1478 = vpop.f32.mrb[0].mxu0
    %1479 = vmatprep.mubr.f32.mxu0 0.0
    %1480 = vmatmul.mubr.f32.gmra.mrb[0].mxu0 %v896
    %v1481 = vpop.f32.mrb[0].mxu0
    %v1482 = vadd.f32 0.0, %v1481
    %v1483 = vpop.f32.mrb[0].mxu0
    %1484 = vmatprep.mubr.f32.mxu0 0.0
    %1485 = vmatmul.mubr.f32.gmra.mrb[0].mxu0 %v899
    %v1486 = vpop.f32.mrb[0].mxu0
    %v1487 = vadd.f32 0.0, %v1486
    %v1488 = vpop.f32.mrb[0].mxu0
    %1489 = vmatprep.mubr.f32.mxu0 0.0
    %1490 = vmatmul.mubr.f32.gmra.mrb[0].mxu0 %v902
    %v1491 = vpop.f32.mrb[0].mxu0
    %v1492 = vadd.f32 0.0, %v1491
    %v1493 = vpop.f32.mrb[0].mxu0
    %1494 = vmatprep.mubr.f32.mxu0 0.0
    %1495 = vmatmul.mubr.f32.gmra.mrb[0].mxu0 %v905
    %v1496 = vpop.f32.mrb[0].mxu0
    %v1497 = vadd.f32 0.0, %v1496
    %v1498 = vpop.f32.mrb[0].mxu0
    %1499 = vmatprep.mubr.f32.mxu0 0.0
    %1500 = vmatmul.mubr.f32.gmra.mrb[0].mxu0 %v908
    %v1501 = vpop.f32.mrb[0].mxu0
    %v1502 = vadd.f32 0.0, %v1501
    %v1503 = vpop.f32.mrb[0].mxu0
    %1504 = vmatprep.mubr.f32.mxu0 0.0
    %1505 = vmatmul.mubr.f32.gmra.mrb[0].mxu0 %v911
    %v1506 = vpop.f32.mrb[0].mxu0
    %v1507 = vadd.f32 0.0, %v1506
    %v1508 = vpop.f32.mrb[0].mxu0
    %1509 = vmatprep.mubr.f32.mxu0 0.0
    %1510 = vmatmul.mubr.f32.gmra.mrb[0].mxu0 %v914
    %v1511 = vpop.f32.mrb[0].mxu0
    %v1512 = vadd.f32 0.0, %v1511
    %v1513 = vpop.f32.mrb[0].mxu0
    %1514 = vmatprep.mubr.f32.mxu0 0.0
    %1515 = vmatmul.mubr.f32.gmra.mrb[0].mxu0 %v917
    %v1516 = vpop.f32.mrb[0].mxu0
    %v1517 = vadd.f32 0.0, %v1516
    %v1518 = vpop.f32.mrb[0].mxu0
    %1519 = vmatprep.mubr.f32.mxu0 0.0
    %1520 = vmatmul.mubr.f32.gmra.mrb[0].mxu0 %v920
    %v1521 = vpop.f32.mrb[0].mxu0
    %v1522 = vadd.f32 0.0, %v1521
    %v1523 = vpop.f32.mrb[0].mxu0
    %1524 = vmatprep.mubr.f32.mxu0 0.0
    %1525 = vmatmul.mubr.f32.gmra.mrb[0].mxu0 %v923
    %v1526 = vpop.f32.mrb[0].mxu0
    %v1527 = vadd.f32 0.0, %v1526
    %v1528 = vpop.f32.mrb[0].mxu0
    %1529 = vmatprep.mubr.f32.mxu0 0.0
    %1530 = vmatmul.mubr.f32.gmra.mrb[0].mxu0 %v926
    %v1531 = vpop.f32.mrb[0].mxu0
    %v1532 = vadd.f32 0.0, %v1531
    %v1533 = vpop.f32.mrb[0].mxu0
    %1534 = vmatprep.mubr.f32.mxu0 0.0
    %1535 = vmatmul.mubr.f32.gmra.mrb[0].mxu0 %v929
    %v1536 = vpop.f32.mrb[0].mxu0
    %v1537 = vadd.f32 0.0, %v1536
    %v1538 = vpop.f32.mrb[0].mxu0
    %1539 = vmatprep.mubr.f32.mxu0 0.0
    %1540 = vmatmul.mubr.f32.gmra.mrb[0].mxu0 %v932
    %v1541 = vpop.f32.mrb[0].mxu0
    %v1542 = vadd.f32 0.0, %v1541
    %v1543 = vpop.f32.mrb[0].mxu0
    %1544 = vmatprep.mubr.f32.mxu0 0.0
    %1545 = vmatmul.mubr.f32.gmra.mrb[0].mxu0 %v935
    %v1546 = vpop.f32.mrb[0].mxu0
    %v1547 = vadd.f32 0.0, %v1546
    %v1548 = vpop.f32.mrb[0].mxu0
    %1549 = vmatprep.mubr.f32.mxu0 0.0
    %1550 = vmatmul.mubr.f32.gmra.mrb[0].mxu0 %v938
    %v1551 = vpop.f32.mrb[0].mxu0
    %v1552 = vadd.f32 0.0, %v1551
    %v1553 = vpop.f32.mrb[0].mxu0
    %1554 = vmatprep.mubr.f32.mxu0 0.0
    %1555 = vmatmul.mubr.f32.gmra.mrb[0].mxu0 %v941
    %v1556 = vpop.f32.mrb[0].mxu0
    %v1557 = vadd.f32 0.0, %v1556
    %v1558 = vpop.f32.mrb[0].mxu0
    %1559 = vmatprep.mubr.f32.mxu0 0.0
    %1560 = vmatmul.mubr.f32.gmra.mrb[0].mxu0 %v944
    %v1561 = vpop.f32.mrb[0].mxu0
    %v1562 = vadd.f32 0.0, %v1561
    %v1563 = vpop.f32.mrb[0].mxu0
    %1564 = vmatprep.mubr.f32.mxu0 0.0
    %1565 = vmatmul.mubr.f32.gmra.mrb[0].mxu0 %v947
    %v1566 = vpop.f32.mrb[0].mxu0
    %v1567 = vadd.f32 0.0, %v1566
    %v1568 = vpop.f32.mrb[0].mxu0
    %1569 = vmatprep.mubr.f32.mxu0 0.0
    %1570 = vmatmul.mubr.f32.gmra.mrb[0].mxu0 %v950
    %v1571 = vpop.f32.mrb[0].mxu0
    %v1572 = vadd.f32 0.0, %v1571
    %v1573 = vpop.f32.mrb[0].mxu0
    %1574 = vmatprep.mubr.f32.mxu0 0.0
    %1575 = vmatmul.mubr.f32.gmra.mrb[0].mxu0 %v953
    %v1576 = vpop.f32.mrb[0].mxu0
    %v1577 = vadd.f32 0.0, %v1576
    %v1578 = vpop.f32.mrb[0].mxu0
    %1579 = vmatprep.mubr.f32.mxu0 0.0
    %1580 = vmatmul.mubr.f32.gmra.mrb[0].mxu0 %v956
    %v1581 = vpop.f32.mrb[0].mxu0
    %v1582 = vadd.f32 0.0, %v1581
    %v1583 = vpop.f32.mrb[0].mxu0
    %1584 = vmatprep.mubr.f32.mxu0 0.0
    %1585 = vmatmul.mubr.f32.gmra.mrb[0].mxu0 %v959
    %v1586 = vpop.f32.mrb[0].mxu0
    %v1587 = vadd.f32 0.0, %v1586
    %v1588 = vpop.f32.mrb[0].mxu0
    %1589 = vmatprep.mubr.f32.mxu0 0.0
    %1590 = vmatmul.mubr.f32.gmra.mrb[0].mxu0 %v962
    %v1591 = vpop.f32.mrb[0].mxu0
    %v1592 = vadd.f32 0.0, %v1591
    %v1593 = vpop.f32.mrb[0].mxu0
    %1594 = vmatprep.mubr.f32.mxu0 0.0
    %1595 = vmatmul.mubr.f32.gmra.mrb[0].mxu0 %v965
    %v1596 = vpop.f32.mrb[0].mxu0
    %v1597 = vadd.f32 0.0, %v1596
    %v1598 = vpop.f32.mrb[0].mxu0
    %1599 = vmatprep.mubr.f32.mxu0 0.0
    %1600 = vmatmul.mubr.f32.gmra.mrb[0].mxu0 %v968
    %v1601 = vpop.f32.mrb[0].mxu0
    %v1602 = vadd.f32 0.0, %v1601
    %v1603 = vpop.f32.mrb[0].mxu0
    %1604 = vmatprep.mubr.f32.mxu0 0.0
    %1605 = vmatmul.mubr.f32.gmra.mrb[0].mxu0 %v971
    %v1606 = vpop.f32.mrb[0].mxu0
    %v1607 = vadd.f32 0.0, %v1606
    %v1608 = vpop.f32.mrb[0].mxu0
    %1609 = vmatprep.mubr.f32.mxu0 0.0
    %1610 = vmatmul.mubr.f32.gmra.mrb[0].mxu0 %v974
    %v1611 = vpop.f32.mrb[0].mxu0
    %v1612 = vadd.f32 0.0, %v1611
    %v1613 = vpop.f32.mrb[0].mxu0
    %1614 = vmatprep.mubr.f32.mxu0 0.0
    %1615 = vmatmul.mubr.f32.gmra.mrb[0].mxu0 %v977
    %v1616 = vpop.f32.mrb[0].mxu0
    %v1617 = vadd.f32 0.0, %v1616
    %v1618 = vpop.f32.mrb[0].mxu0
    %1619 = vmatprep.mubr.f32.mxu0 0.0
    %1620 = vmatmul.mubr.f32.gmra.mrb[0].mxu0 %v980
    %v1621 = vpop.f32.mrb[0].mxu0
    %v1622 = vadd.f32 0.0, %v1621
    %v1623 = vpop.f32.mrb[0].mxu0
    %1624 = vmatprep.mubr.f32.mxu0 0.0
    %1625 = vmatmul.mubr.f32.gmra.mrb[0].mxu0 %v983
    %v1626 = vpop.f32.mrb[0].mxu0
    %v1627 = vadd.f32 0.0, %v1626
    %v1628 = vpop.f32.mrb[0].mxu0
    %1629 = vmatprep.mubr.f32.mxu0 0.0
    %1630 = vmatmul.mubr.f32.gmra.mrb[0].mxu0 %v986
    %v1631 = vpop.f32.mrb[0].mxu0
    %v1632 = vadd.f32 0.0, %v1631
    %v1633 = vpop.f32.mrb[0].mxu0
    %1634 = vmatprep.mubr.f32.mxu0 0.0
    %1635 = vmatmul.mubr.f32.gmra.mrb[0].mxu0 %v989
    %v1636 = vpop.f32.mrb[0].mxu0
    %v1637 = vadd.f32 0.0, %v1636
    %v1638 = vpop.f32.mrb[0].mxu0
    %1639 = vmatprep.mubr.f32.mxu0 0.0
    %1640 = vmatmul.mubr.f32.gmra.mrb[0].mxu0 %v992
    %v1641 = vpop.f32.mrb[0].mxu0
    %v1642 = vadd.f32 0.0, %v1641
    %v1643 = vpop.f32.mrb[0].mxu0
    %1644 = vmatprep.mubr.f32.mxu0 0.0
    %1645 = vmatmul.mubr.f32.gmra.mrb[0].mxu0 %v995
    %v1646 = vpop.f32.mrb[0].mxu0
    %v1647 = vadd.f32 0.0, %v1646
    %v1648 = vpop.f32.mrb[0].mxu0
    %1649 = vmatprep.mubr.f32.mxu0 0.0
    %1650 = vmatmul.mubr.f32.gmra.mrb[0].mxu0 %v998
    %v1651 = vpop.f32.mrb[0].mxu0
    %v1652 = vadd.f32 0.0, %v1651
    %v1653 = vpop.f32.mrb[0].mxu0
    %1654 = vmatprep.mubr.f32.mxu0 0.0
    %1655 = vmatmul.mubr.f32.gmra.mrb[0].mxu0 %v1001
    %v1656 = vpop.f32.mrb[0].mxu0
    %v1657 = vadd.f32 0.0, %v1656
    %v1658 = vpop.f32.mrb[0].mxu0
    %1659 = vmatprep.mubr.f32.mxu0 0.0
    %1660 = vmatmul.mubr.f32.gmra.mrb[0].mxu0 %v1004
    %v1661 = vpop.f32.mrb[0].mxu0
    %v1662 = vadd.f32 0.0, %v1661
    %v1663 = vpop.f32.mrb[0].mxu0
    %1664 = vmatprep.mubr.f32.mxu0 0.0
    %1665 = vmatmul.mubr.f32.gmra.mrb[0].mxu0 %v1007
    %v1666 = vpop.f32.mrb[0].mxu0
    %v1667 = vadd.f32 0.0, %v1666
    %v1668 = vpop.f32.mrb[0].mxu0
    %1669 = vmatprep.mubr.f32.mxu0 0.0
    %1670 = vmatmul.mubr.f32.gmra.mrb[0].mxu0 %v1010
    %v1671 = vpop.f32.mrb[0].mxu0
    %v1672 = vadd.f32 0.0, %v1671
    %v1673 = vpop.f32.mrb[0].mxu0
    %1674 = vmatprep.mubr.f32.mxu0 0.0
    %1675 = vmatmul.mubr.f32.gmra.mrb[0].mxu0 %v1013
    %v1676 = vpop.f32.mrb[0].mxu0
    %v1677 = vadd.f32 0.0, %v1676
    %v1678 = vpop.f32.mrb[0].mxu0
    %1679 = vmatprep.mubr.f32.mxu0 0.0
    %1680 = vmatmul.mubr.f32.gmra.mrb[0].mxu0 %v1016
    %v1681 = vpop.f32.mrb[0].mxu0
    %v1682 = vadd.f32 0.0, %v1681
    %v1683 = vpop.f32.mrb[0].mxu0
    %1684 = vmatprep.mubr.f32.mxu0 0.0
    %1685 = vmatmul.mubr.f32.gmra.mrb[0].mxu0 %v1019
    %v1686 = vpop.f32.mrb[0].mxu0
    %v1687 = vadd.f32 0.0, %v1686
    %v1688 = vpop.f32.mrb[0].mxu0
    %1689 = vdwg.mxu0
    %v1691 = vsel %vm174, %v298, 0
    %v1694 = vsel %vm174, %v299, 0
    %v1697 = vsel %vm174, %v300, 0
    %v1700 = vsel %vm174, %v301, 0
    %v1703 = vsel %vm174, %v302, 0
    %v1706 = vsel %vm174, %v303, 0
    %v1709 = vsel %vm174, %v304, 0
    %v1712 = vsel %vm174, %v305, 0
    %v1715 = vsel %vm174, %v306, 0
    %v1718 = vsel %vm174, %v307, 0
    %v1721 = vsel %vm174, %v308, 0
    %v1724 = vsel %vm174, %v309, 0
    %v1727 = vsel %vm174, %v310, 0
    %v1730 = vsel %vm174, %v311, 0
    %v1733 = vsel %vm174, %v312, 0
    %v1736 = vsel %vm174, %v313, 0
    %v1739 = vsel %vm174, %v314, 0
    %v1742 = vsel %vm174, %v315, 0
    %v1745 = vsel %vm174, %v316, 0
    %v1748 = vsel %vm174, %v317, 0
    %v1751 = vsel %vm174, %v318, 0
    %v1754 = vsel %vm174, %v319, 0
    %v1757 = vsel %vm174, %v320, 0
    %v1760 = vsel %vm174, %v321, 0
    %v1763 = vsel %vm174, %v322, 0
    %v1766 = vsel %vm174, %v323, 0
    %v1769 = vsel %vm174, %v324, 0
    %v1772 = vsel %vm174, %v325, 0
    %v1775 = vsel %vm174, %v326, 0
    %v1778 = vsel %vm174, %v327, 0
    %v1781 = vsel %vm174, %v328, 0
    %v1784 = vsel %vm174, %v329, 0
    %v1787 = vsel %vm174, %v330, 0
    %v1790 = vsel %vm174, %v331, 0
    %v1793 = vsel %vm174, %v332, 0
    %v1796 = vsel %vm174, %v333, 0
    %v1799 = vsel %vm174, %v334, 0
    %v1802 = vsel %vm174, %v335, 0
    %v1805 = vsel %vm174, %v336, 0
    %v1808 = vsel %vm174, %v337, 0
    %v1811 = vsel %vm174, %v338, 0
    %v1814 = vsel %vm174, %v339, 0
    %v1817 = vsel %vm174, %v340, 0
    %v1820 = vsel %vm174, %v341, 0
    %v1823 = vsel %vm174, %v342, 0
    %v1826 = vsel %vm174, %v343, 0
    %v1829 = vsel %vm174, %v344, 0
    %v1832 = vsel %vm174, %v345, 0
    %v1835 = vsel %vm174, %v346, 0
    %v1838 = vsel %vm174, %v347, 0
    %v1841 = vsel %vm174, %v348, 0
    %v1844 = vsel %vm174, %v349, 0
    %v1847 = vsel %vm174, %v350, 0
    %v1850 = vsel %vm174, %v351, 0
    %v1853 = vsel %vm174, %v352, 0
    %v1856 = vsel %vm174, %v353, 0
    %v1859 = vsel %vm174, %v354, 0
    %v1862 = vsel %vm174, %v355, 0
    %v1865 = vsel %vm174, %v356, 0
    %v1868 = vsel %vm174, %v357, 0
    %v1871 = vsel %vm174, %v358, 0
    %v1874 = vsel %vm174, %v359, 0
    %v1877 = vsel %vm174, %v360, 0
    %v1880 = vsel %vm174, %v361, 0
    %v1883 = vsel %vm174, %v362, 0
    %v1886 = vsel %vm174, %v363, 0
    %v1889 = vsel %vm174, %v364, 0
    %v1892 = vsel %vm174, %v365, 0
    %v1895 = vsel %vm174, %v366, 0
    %v1898 = vsel %vm174, %v367, 0
    %v1901 = vsel %vm174, %v368, 0
    %v1904 = vsel %vm174, %v369, 0
    %v1907 = vsel %vm174, %v370, 0
    %v1910 = vsel %vm174, %v371, 0
    %v1913 = vsel %vm174, %v372, 0
    %v1916 = vsel %vm174, %v373, 0
    %v1919 = vsel %vm174, %v374, 0
    %v1922 = vsel %vm174, %v375, 0
    %v1925 = vsel %vm174, %v376, 0
    %v1928 = vsel %vm174, %v377, 0
    %v1931 = vsel %vm174, %v378, 0
    %v1934 = vsel %vm174, %v379, 0
    %v1937 = vsel %vm174, %v380, 0
    %v1940 = vsel %vm174, %v381, 0
    %v1943 = vsel %vm174, %v382, 0
    %v1946 = vsel %vm174, %v383, 0
    %v1949 = vsel %vm174, %v384, 0
    %v1952 = vsel %vm174, %v385, 0
    %v1955 = vsel %vm174, %v386, 0
    %v1958 = vsel %vm174, %v387, 0
    %v1961 = vsel %vm174, %v388, 0
    %v1964 = vsel %vm174, %v389, 0
    %v1967 = vsel %vm174, %v390, 0
    %v1970 = vsel %vm174, %v391, 0
    %v1973 = vsel %vm174, %v392, 0
    %v1976 = vsel %vm174, %v393, 0
    %v1979 = vsel %vm174, %v394, 0
    %v1982 = vsel %vm174, %v395, 0
    %v1985 = vsel %vm174, %v396, 0
    %v1988 = vsel %vm174, %v397, 0
    %v1991 = vsel %vm174, %v398, 0
    %v1994 = vsel %vm174, %v399, 0
    %v1997 = vsel %vm174, %v400, 0
    %v2000 = vsel %vm174, %v401, 0
    %v2003 = vsel %vm174, %v402, 0
    %v2006 = vsel %vm174, %v403, 0
    %v2009 = vsel %vm174, %v404, 0
    %v2012 = vsel %vm174, %v405, 0
    %v2015 = vsel %vm174, %v406, 0
    %v2018 = vsel %vm174, %v407, 0
    %v2021 = vsel %vm174, %v408, 0
    %v2024 = vsel %vm174, %v409, 0
    %v2027 = vsel %vm174, %v410, 0
    %v2030 = vsel %vm174, %v411, 0
    %v2033 = vsel %vm174, %v412, 0
    %v2036 = vsel %vm174, %v413, 0
    %v2039 = vsel %vm174, %v414, 0
    %v2042 = vsel %vm174, %v415, 0
    %v2045 = vsel %vm174, %v416, 0
    %v2048 = vsel %vm174, %v417, 0
    %v2051 = vsel %vm1021, %v658, 0
    %2053 = vmatprep.subr.mxu0 0.0
    %2054 = vmatpush1.msra.mxu0 %v2051
    %2055 = vmatprep.subr.mxu0 0.0
    %2056 = vmatpush1.msra.mxu0 0.0
    %2057 = vmatprep.subr.mxu0 0.0
    %2058 = vmatpush1.msra.mxu0 0.0
    %2059 = vmatprep.subr.mxu0 0.0
    %2060 = vmatpush1.msra.mxu0 0.0
    %2061 = vmatprep.subr.mxu0 0.0
    %2062 = vmatpush1.msra.mxu0 0.0
    %2063 = vmatprep.subr.mxu0 0.0
    %2064 = vmatpush1.msra.mxu0 0.0
    %2065 = vmatprep.subr.mxu0 0.0
    %2066 = vmatpush1.msra.mxu0 0.0
    %2067 = vmatprep.subr.mxu0 0.0
    %2068 = vmatpush1.msra.mxu0 0.0
    %2069 = vmatprep.subr.mxu0 0.0
    %2070 = vmatpush1.msra.mxu0 0.0
    %2071 = vmatprep.subr.mxu0 0.0
    %2072 = vmatpush1.msra.mxu0 0.0
    %2073 = vmatprep.subr.mxu0 0.0
    %2074 = vmatpush1.msra.mxu0 0.0
    %2075 = vmatprep.subr.mxu0 0.0
    %2076 = vmatpush1.msra.mxu0 0.0
    %2077 = vmatprep.subr.mxu0 0.0
    %2078 = vmatpush1.msra.mxu0 0.0
    %2079 = vmatprep.subr.mxu0 0.0
    %2080 = vmatpush1.msra.mxu0 0.0
    %2081 = vmatprep.subr.mxu0 0.0
    %2082 = vmatpush1.msra.mxu0 0.0
    %2083 = vmatprep.subr.mxu0 0.0
    %2084 = vmatpush1.msra.mxu0 0.0
    %2085 = vmatprep.subr.mxu0 0.0
    %2086 = vmatpush1.msra.mxu0 0.0
    %2087 = vmatprep.subr.mxu0 0.0
    %2088 = vmatpush1.msra.mxu0 0.0
    %2089 = vmatprep.subr.mxu0 0.0
    %2090 = vmatpush1.msra.mxu0 0.0
    %2091 = vmatprep.subr.mxu0 0.0
    %2092 = vmatpush1.msra.mxu0 0.0
    %2093 = vmatprep.subr.mxu0 0.0
    %2094 = vmatpush1.msra.mxu0 0.0
    %2095 = vmatprep.subr.mxu0 0.0
    %2096 = vmatpush1.msra.mxu0 0.0
    %2097 = vmatprep.subr.mxu0 0.0
    %2098 = vmatpush1.msra.mxu0 0.0
    %2099 = vmatprep.subr.mxu0 0.0
    %2100 = vmatpush1.msra.mxu0 0.0
    %2101 = vmatprep.subr.mxu0 0.0
    %2102 = vmatpush1.msra.mxu0 0.0
    %2103 = vmatprep.subr.mxu0 0.0
    %2104 = vmatpush1.msra.mxu0 0.0
    %2105 = vmatprep.subr.mxu0 0.0
    %2106 = vmatpush1.msra.mxu0 0.0
    %2107 = vmatprep.subr.mxu0 0.0
    %2108 = vmatpush1.msra.mxu0 0.0
    %2109 = vmatprep.subr.mxu0 0.0
    %2110 = vmatpush1.msra.mxu0 0.0
    %2111 = vmatprep.subr.mxu0 0.0
    %2112 = vmatpush1.msra.mxu0 0.0
    %2113 = vmatprep.subr.mxu0 0.0
    %2114 = vmatpush1.msra.mxu0 0.0
    %2115 = vmatprep.subr.mxu0 0.0
    %2116 = vmatpush1.msra.mxu0 0.0
    %2117 = vmatprep.mubr.f32.mxu0 0.0
    %2118 = vmatmul.mubr.f32.gmra.mrb[0].mxu0 %v1691
    %v2119 = vpop.f32.mrb[0].mxu0
    %v2120 = vadd.f32 %v1092, %v2119
    %v2121 = vpop.f32.mrb[0].mxu0
    %2122 = vmatprep.mubr.f32.mxu0 0.0
    %2123 = vmatmul.mubr.f32.gmra.mrb[0].mxu0 %v1694
    %v2124 = vpop.f32.mrb[0].mxu0
    %v2125 = vadd.f32 %v1097, %v2124
    %v2126 = vpop.f32.mrb[0].mxu0
    %2127 = vmatprep.mubr.f32.mxu0 0.0
    %2128 = vmatmul.mubr.f32.gmra.mrb[0].mxu0 %v1697
    %v2129 = vpop.f32.mrb[0].mxu0
    %v2130 = vadd.f32 %v1102, %v2129
    %v2131 = vpop.f32.mrb[0].mxu0
    %2132 = vmatprep.mubr.f32.mxu0 0.0
    %2133 = vmatmul.mubr.f32.gmra.mrb[0].mxu0 %v1700
    %v2134 = vpop.f32.mrb[0].mxu0
    %v2135 = vadd.f32 %v1107, %v2134
    %v2136 = vpop.f32.mrb[0].mxu0
    %2137 = vmatprep.mubr.f32.mxu0 0.0
    %2138 = vmatmul.mubr.f32.gmra.mrb[0].mxu0 %v1703
    %v2139 = vpop.f32.mrb[0].mxu0
    %v2140 = vadd.f32 %v1112, %v2139
    %v2141 = vpop.f32.mrb[0].mxu0
    %2142 = vmatprep.mubr.f32.mxu0 0.0
    %2143 = vmatmul.mubr.f32.gmra.mrb[0].mxu0 %v1706
    %v2144 = vpop.f32.mrb[0].mxu0
    %v2145 = vadd.f32 %v1117, %v2144
    %v2146 = vpop.f32.mrb[0].mxu0
    %2147 = vmatprep.mubr.f32.mxu0 0.0
    %2148 = vmatmul.mubr.f32.gmra.mrb[0].mxu0 %v1709
    %v2149 = vpop.f32.mrb[0].mxu0
    %v2150 = vadd.f32 %v1122, %v2149
    %v2151 = vpop.f32.mrb[0].mxu0
    %2152 = vmatprep.mubr.f32.mxu0 0.0
    %2153 = vmatmul.mubr.f32.gmra.mrb[0].mxu0 %v1712
    %v2154 = vpop.f32.mrb[0].mxu0
    %v2155 = vadd.f32 %v1127, %v2154
    %v2156 = vpop.f32.mrb[0].mxu0
    %2157 = vmatprep.mubr.f32.mxu0 0.0
    %2158 = vmatmul.mubr.f32.gmra.mrb[0].mxu0 %v1715
    %v2159 = vpop.f32.mrb[0].mxu0
    %v2160 = vadd.f32 %v1132, %v2159
    %v2161 = vpop.f32.mrb[0].mxu0
    %2162 = vmatprep.mubr.f32.mxu0 0.0
    %2163 = vmatmul.mubr.f32.gmra.mrb[0].mxu0 %v1718
    %v2164 = vpop.f32.mrb[0].mxu0
    %v2165 = vadd.f32 %v1137, %v2164
    %v2166 = vpop.f32.mrb[0].mxu0
    %2167 = vmatprep.mubr.f32.mxu0 0.0
    %2168 = vmatmul.mubr.f32.gmra.mrb[0].mxu0 %v1721
    %v2169 = vpop.f32.mrb[0].mxu0
    %v2170 = vadd.f32 %v1142, %v2169
    %v2171 = vpop.f32.mrb[0].mxu0
    %2172 = vmatprep.mubr.f32.mxu0 0.0
    %2173 = vmatmul.mubr.f32.gmra.mrb[0].mxu0 %v1724
    %v2174 = vpop.f32.mrb[0].mxu0
    %v2175 = vadd.f32 %v1147, %v2174
    %v2176 = vpop.f32.mrb[0].mxu0
    %2177 = vmatprep.mubr.f32.mxu0 0.0
    %2178 = vmatmul.mubr.f32.gmra.mrb[0].mxu0 %v1727
    %v2179 = vpop.f32.mrb[0].mxu0
    %v2180 = vadd.f32 %v1152, %v2179
    %v2181 = vpop.f32.mrb[0].mxu0
    %2182 = vmatprep.mubr.f32.mxu0 0.0
    %2183 = vmatmul.mubr.f32.gmra.mrb[0].mxu0 %v1730
    %v2184 = vpop.f32.mrb[0].mxu0
    %v2185 = vadd.f32 %v1157, %v2184
    %v2186 = vpop.f32.mrb[0].mxu0
    %2187 = vmatprep.mubr.f32.mxu0 0.0
    %2188 = vmatmul.mubr.f32.gmra.mrb[0].mxu0 %v1733
    %v2189 = vpop.f32.mrb[0].mxu0
    %v2190 = vadd.f32 %v1162, %v2189
    %v2191 = vpop.f32.mrb[0].mxu0
    %2192 = vmatprep.mubr.f32.mxu0 0.0
    %2193 = vmatmul.mubr.f32.gmra.mrb[0].mxu0 %v1736
    %v2194 = vpop.f32.mrb[0].mxu0
    %v2195 = vadd.f32 %v1167, %v2194
    %v2196 = vpop.f32.mrb[0].mxu0
    %2197 = vmatprep.mubr.f32.mxu0 0.0
    %2198 = vmatmul.mubr.f32.gmra.mrb[0].mxu0 %v1739
    %v2199 = vpop.f32.mrb[0].mxu0
    %v2200 = vadd.f32 %v1172, %v2199
    %v2201 = vpop.f32.mrb[0].mxu0
    %2202 = vmatprep.mubr.f32.mxu0 0.0
    %2203 = vmatmul.mubr.f32.gmra.mrb[0].mxu0 %v1742
    %v2204 = vpop.f32.mrb[0].mxu0
    %v2205 = vadd.f32 %v1177, %v2204
    %v2206 = vpop.f32.mrb[0].mxu0
    %2207 = vmatprep.mubr.f32.mxu0 0.0
    %2208 = vmatmul.mubr.f32.gmra.mrb[0].mxu0 %v1745
    %v2209 = vpop.f32.mrb[0].mxu0
    %v2210 = vadd.f32 %v1182, %v2209
    %v2211 = vpop.f32.mrb[0].mxu0
    %2212 = vmatprep.mubr.f32.mxu0 0.0
    %2213 = vmatmul.mubr.f32.gmra.mrb[0].mxu0 %v1748
    %v2214 = vpop.f32.mrb[0].mxu0
    %v2215 = vadd.f32 %v1187, %v2214
    %v2216 = vpop.f32.mrb[0].mxu0
    %2217 = vmatprep.mubr.f32.mxu0 0.0
    %2218 = vmatmul.mubr.f32.gmra.mrb[0].mxu0 %v1751
    %v2219 = vpop.f32.mrb[0].mxu0
    %v2220 = vadd.f32 %v1192, %v2219
    %v2221 = vpop.f32.mrb[0].mxu0
    %2222 = vmatprep.mubr.f32.mxu0 0.0
    %2223 = vmatmul.mubr.f32.gmra.mrb[0].mxu0 %v1754
    %v2224 = vpop.f32.mrb[0].mxu0
    %v2225 = vadd.f32 %v1197, %v2224
    %v2226 = vpop.f32.mrb[0].mxu0
    %2227 = vmatprep.mubr.f32.mxu0 0.0
    %2228 = vmatmul.mubr.f32.gmra.mrb[0].mxu0 %v1757
    %v2229 = vpop.f32.mrb[0].mxu0
    %v2230 = vadd.f32 %v1202, %v2229
    %v2231 = vpop.f32.mrb[0].mxu0
    %2232 = vmatprep.mubr.f32.mxu0 0.0
    %2233 = vmatmul.mubr.f32.gmra.mrb[0].mxu0 %v1760
    %v2234 = vpop.f32.mrb[0].mxu0
    %v2235 = vadd.f32 %v1207, %v2234
    %v2236 = vpop.f32.mrb[0].mxu0
    %2237 = vmatprep.mubr.f32.mxu0 0.0
    %2238 = vmatmul.mubr.f32.gmra.mrb[0].mxu0 %v1763
    %v2239 = vpop.f32.mrb[0].mxu0
    %v2240 = vadd.f32 %v1212, %v2239
    %v2241 = vpop.f32.mrb[0].mxu0
    %2242 = vmatprep.mubr.f32.mxu0 0.0
    %2243 = vmatmul.mubr.f32.gmra.mrb[0].mxu0 %v1766
    %v2244 = vpop.f32.mrb[0].mxu0
    %v2245 = vadd.f32 %v1217, %v2244
    %v2246 = vpop.f32.mrb[0].mxu0
    %2247 = vmatprep.mubr.f32.mxu0 0.0
    %2248 = vmatmul.mubr.f32.gmra.mrb[0].mxu0 %v1769
    %v2249 = vpop.f32.mrb[0].mxu0
    %v2250 = vadd.f32 %v1222, %v2249
    %v2251 = vpop.f32.mrb[0].mxu0
    %2252 = vmatprep.mubr.f32.mxu0 0.0
    %2253 = vmatmul.mubr.f32.gmra.mrb[0].mxu0 %v1772
    %v2254 = vpop.f32.mrb[0].mxu0
    %v2255 = vadd.f32 %v1227, %v2254
    %v2256 = vpop.f32.mrb[0].mxu0
    %2257 = vmatprep.mubr.f32.mxu0 0.0
    %2258 = vmatmul.mubr.f32.gmra.mrb[0].mxu0 %v1775
    %v2259 = vpop.f32.mrb[0].mxu0
    %v2260 = vadd.f32 %v1232, %v2259
    %v2261 = vpop.f32.mrb[0].mxu0
    %2262 = vmatprep.mubr.f32.mxu0 0.0
    %2263 = vmatmul.mubr.f32.gmra.mrb[0].mxu0 %v1778
    %v2264 = vpop.f32.mrb[0].mxu0
    %v2265 = vadd.f32 %v1237, %v2264
    %v2266 = vpop.f32.mrb[0].mxu0
    %2267 = vmatprep.mubr.f32.mxu0 0.0
    %2268 = vmatmul.mubr.f32.gmra.mrb[0].mxu0 %v1781
    %v2269 = vpop.f32.mrb[0].mxu0
    %v2270 = vadd.f32 %v1242, %v2269
    %v2271 = vpop.f32.mrb[0].mxu0
    %2272 = vmatprep.mubr.f32.mxu0 0.0
    %2273 = vmatmul.mubr.f32.gmra.mrb[0].mxu0 %v1784
    %v2274 = vpop.f32.mrb[0].mxu0
    %v2275 = vadd.f32 %v1247, %v2274
    %v2276 = vpop.f32.mrb[0].mxu0
    %2277 = vmatprep.mubr.f32.mxu0 0.0
    %2278 = vmatmul.mubr.f32.gmra.mrb[0].mxu0 %v1787
    %v2279 = vpop.f32.mrb[0].mxu0
    %v2280 = vadd.f32 %v1252, %v2279
    %v2281 = vpop.f32.mrb[0].mxu0
    %2282 = vmatprep.mubr.f32.mxu0 0.0
    %2283 = vmatmul.mubr.f32.gmra.mrb[0].mxu0 %v1790
    %v2284 = vpop.f32.mrb[0].mxu0
    %v2285 = vadd.f32 %v1257, %v2284
    %v2286 = vpop.f32.mrb[0].mxu0
    %2287 = vmatprep.mubr.f32.mxu0 0.0
    %2288 = vmatmul.mubr.f32.gmra.mrb[0].mxu0 %v1793
    %v2289 = vpop.f32.mrb[0].mxu0
    %v2290 = vadd.f32 %v1262, %v2289
    %v2291 = vpop.f32.mrb[0].mxu0
    %2292 = vmatprep.mubr.f32.mxu0 0.0
    %2293 = vmatmul.mubr.f32.gmra.mrb[0].mxu0 %v1796
    %v2294 = vpop.f32.mrb[0].mxu0
    %v2295 = vadd.f32 %v1267, %v2294
    %v2296 = vpop.f32.mrb[0].mxu0
    %2297 = vmatprep.mubr.f32.mxu0 0.0
    %2298 = vmatmul.mubr.f32.gmra.mrb[0].mxu0 %v1799
    %v2299 = vpop.f32.mrb[0].mxu0
    %v2300 = vadd.f32 %v1272, %v2299
    %v2301 = vpop.f32.mrb[0].mxu0
    %2302 = vmatprep.mubr.f32.mxu0 0.0
    %2303 = vmatmul.mubr.f32.gmra.mrb[0].mxu0 %v1802
    %v2304 = vpop.f32.mrb[0].mxu0
    %v2305 = vadd.f32 %v1277, %v2304
    %v2306 = vpop.f32.mrb[0].mxu0
    %2307 = vmatprep.mubr.f32.mxu0 0.0
    %2308 = vmatmul.mubr.f32.gmra.mrb[0].mxu0 %v1805
    %v2309 = vpop.f32.mrb[0].mxu0
    %v2310 = vadd.f32 %v1282, %v2309
    %v2311 = vpop.f32.mrb[0].mxu0
    %2312 = vmatprep.mubr.f32.mxu0 0.0
    %2313 = vmatmul.mubr.f32.gmra.mrb[0].mxu0 %v1808
    %v2314 = vpop.f32.mrb[0].mxu0
    %v2315 = vadd.f32 %v1287, %v2314
    %v2316 = vpop.f32.mrb[0].mxu0
    %2317 = vmatprep.mubr.f32.mxu0 0.0
    %2318 = vmatmul.mubr.f32.gmra.mrb[0].mxu0 %v1811
    %v2319 = vpop.f32.mrb[0].mxu0
    %v2320 = vadd.f32 %v1292, %v2319
    %v2321 = vpop.f32.mrb[0].mxu0
    %2322 = vmatprep.mubr.f32.mxu0 0.0
    %2323 = vmatmul.mubr.f32.gmra.mrb[0].mxu0 %v1814
    %v2324 = vpop.f32.mrb[0].mxu0
    %v2325 = vadd.f32 %v1297, %v2324
    %v2326 = vpop.f32.mrb[0].mxu0
    %2327 = vmatprep.mubr.f32.mxu0 0.0
    %2328 = vmatmul.mubr.f32.gmra.mrb[0].mxu0 %v1817
    %v2329 = vpop.f32.mrb[0].mxu0
    %v2330 = vadd.f32 %v1302, %v2329
    %v2331 = vpop.f32.mrb[0].mxu0
    %2332 = vmatprep.mubr.f32.mxu0 0.0
    %2333 = vmatmul.mubr.f32.gmra.mrb[0].mxu0 %v1820
    %v2334 = vpop.f32.mrb[0].mxu0
    %v2335 = vadd.f32 %v1307, %v2334
    %v2336 = vpop.f32.mrb[0].mxu0
    %2337 = vmatprep.mubr.f32.mxu0 0.0
    %2338 = vmatmul.mubr.f32.gmra.mrb[0].mxu0 %v1823
    %v2339 = vpop.f32.mrb[0].mxu0
    %v2340 = vadd.f32 %v1312, %v2339
    %v2341 = vpop.f32.mrb[0].mxu0
    %2342 = vmatprep.mubr.f32.mxu0 0.0
    %2343 = vmatmul.mubr.f32.gmra.mrb[0].mxu0 %v1826
    %v2344 = vpop.f32.mrb[0].mxu0
    %v2345 = vadd.f32 %v1317, %v2344
    %v2346 = vpop.f32.mrb[0].mxu0
    %2347 = vmatprep.mubr.f32.mxu0 0.0
    %2348 = vmatmul.mubr.f32.gmra.mrb[0].mxu0 %v1829
    %v2349 = vpop.f32.mrb[0].mxu0
    %v2350 = vadd.f32 %v1322, %v2349
    %v2351 = vpop.f32.mrb[0].mxu0
    %2352 = vmatprep.mubr.f32.mxu0 0.0
    %2353 = vmatmul.mubr.f32.gmra.mrb[0].mxu0 %v1832
    %v2354 = vpop.f32.mrb[0].mxu0
    %v2355 = vadd.f32 %v1327, %v2354
    %v2356 = vpop.f32.mrb[0].mxu0
    %2357 = vmatprep.mubr.f32.mxu0 0.0
    %2358 = vmatmul.mubr.f32.gmra.mrb[0].mxu0 %v1835
    %v2359 = vpop.f32.mrb[0].mxu0
    %v2360 = vadd.f32 %v1332, %v2359
    %v2361 = vpop.f32.mrb[0].mxu0
    %2362 = vmatprep.mubr.f32.mxu0 0.0
    %2363 = vmatmul.mubr.f32.gmra.mrb[0].mxu0 %v1838
    %v2364 = vpop.f32.mrb[0].mxu0
    %v2365 = vadd.f32 %v1337, %v2364
    %v2366 = vpop.f32.mrb[0].mxu0
    %2367 = vmatprep.mubr.f32.mxu0 0.0
    %2368 = vmatmul.mubr.f32.gmra.mrb[0].mxu0 %v1841
    %v2369 = vpop.f32.mrb[0].mxu0
    %v2370 = vadd.f32 %v1342, %v2369
    %v2371 = vpop.f32.mrb[0].mxu0
    %2372 = vmatprep.mubr.f32.mxu0 0.0
    %2373 = vmatmul.mubr.f32.gmra.mrb[0].mxu0 %v1844
    %v2374 = vpop.f32.mrb[0].mxu0
    %v2375 = vadd.f32 %v1347, %v2374
    %v2376 = vpop.f32.mrb[0].mxu0
    %2377 = vmatprep.mubr.f32.mxu0 0.0
    %2378 = vmatmul.mubr.f32.gmra.mrb[0].mxu0 %v1847
    %v2379 = vpop.f32.mrb[0].mxu0
    %v2380 = vadd.f32 %v1352, %v2379
    %v2381 = vpop.f32.mrb[0].mxu0
    %2382 = vmatprep.mubr.f32.mxu0 0.0
    %2383 = vmatmul.mubr.f32.gmra.mrb[0].mxu0 %v1850
    %v2384 = vpop.f32.mrb[0].mxu0
    %v2385 = vadd.f32 %v1357, %v2384
    %v2386 = vpop.f32.mrb[0].mxu0
    %2387 = vmatprep.mubr.f32.mxu0 0.0
    %2388 = vmatmul.mubr.f32.gmra.mrb[0].mxu0 %v1853
    %v2389 = vpop.f32.mrb[0].mxu0
    %v2390 = vadd.f32 %v1362, %v2389
    %v2391 = vpop.f32.mrb[0].mxu0
    %2392 = vmatprep.mubr.f32.mxu0 0.0
    %2393 = vmatmul.mubr.f32.gmra.mrb[0].mxu0 %v1856
    %v2394 = vpop.f32.mrb[0].mxu0
    %v2395 = vadd.f32 %v1367, %v2394
    %v2396 = vpop.f32.mrb[0].mxu0
    %2397 = vmatprep.mubr.f32.mxu0 0.0
    %2398 = vmatmul.mubr.f32.gmra.mrb[0].mxu0 %v1859
    %v2399 = vpop.f32.mrb[0].mxu0
    %v2400 = vadd.f32 %v1372, %v2399
    %v2401 = vpop.f32.mrb[0].mxu0
    %2402 = vmatprep.mubr.f32.mxu0 0.0
    %2403 = vmatmul.mubr.f32.gmra.mrb[0].mxu0 %v1862
    %v2404 = vpop.f32.mrb[0].mxu0
    %v2405 = vadd.f32 %v1377, %v2404
    %v2406 = vpop.f32.mrb[0].mxu0
    %2407 = vmatprep.mubr.f32.mxu0 0.0
    %2408 = vmatmul.mubr.f32.gmra.mrb[0].mxu0 %v1865
    %v2409 = vpop.f32.mrb[0].mxu0
    %v2410 = vadd.f32 %v1382, %v2409
    %v2411 = vpop.f32.mrb[0].mxu0
    %2412 = vmatprep.mubr.f32.mxu0 0.0
    %2413 = vmatmul.mubr.f32.gmra.mrb[0].mxu0 %v1868
    %v2414 = vpop.f32.mrb[0].mxu0
    %v2415 = vadd.f32 %v1387, %v2414
    %v2416 = vpop.f32.mrb[0].mxu0
    %2417 = vmatprep.mubr.f32.mxu0 0.0
    %2418 = vmatmul.mubr.f32.gmra.mrb[0].mxu0 %v1871
    %v2419 = vpop.f32.mrb[0].mxu0
    %v2420 = vadd.f32 %v1392, %v2419
    %v2421 = vpop.f32.mrb[0].mxu0
    %2422 = vmatprep.mubr.f32.mxu0 0.0
    %2423 = vmatmul.mubr.f32.gmra.mrb[0].mxu0 %v1874
    %v2424 = vpop.f32.mrb[0].mxu0
    %v2425 = vadd.f32 %v1397, %v2424
    %v2426 = vpop.f32.mrb[0].mxu0
    %2427 = vmatprep.mubr.f32.mxu0 0.0
    %2428 = vmatmul.mubr.f32.gmra.mrb[0].mxu0 %v1877
    %v2429 = vpop.f32.mrb[0].mxu0
    %v2430 = vadd.f32 %v1402, %v2429
    %v2431 = vpop.f32.mrb[0].mxu0
    %2432 = vmatprep.mubr.f32.mxu0 0.0
    %2433 = vmatmul.mubr.f32.gmra.mrb[0].mxu0 %v1880
    %v2434 = vpop.f32.mrb[0].mxu0
    %v2435 = vadd.f32 %v1407, %v2434
    %v2436 = vpop.f32.mrb[0].mxu0
    %2437 = vmatprep.mubr.f32.mxu0 0.0
    %2438 = vmatmul.mubr.f32.gmra.mrb[0].mxu0 %v1883
    %v2439 = vpop.f32.mrb[0].mxu0
    %v2440 = vadd.f32 %v1412, %v2439
    %v2441 = vpop.f32.mrb[0].mxu0
    %2442 = vmatprep.mubr.f32.mxu0 0.0
    %2443 = vmatmul.mubr.f32.gmra.mrb[0].mxu0 %v1886
    %v2444 = vpop.f32.mrb[0].mxu0
    %v2445 = vadd.f32 %v1417, %v2444
    %v2446 = vpop.f32.mrb[0].mxu0
    %2447 = vmatprep.mubr.f32.mxu0 0.0
    %2448 = vmatmul.mubr.f32.gmra.mrb[0].mxu0 %v1889
    %v2449 = vpop.f32.mrb[0].mxu0
    %v2450 = vadd.f32 %v1422, %v2449
    %v2451 = vpop.f32.mrb[0].mxu0
    %2452 = vmatprep.mubr.f32.mxu0 0.0
    %2453 = vmatmul.mubr.f32.gmra.mrb[0].mxu0 %v1892
    %v2454 = vpop.f32.mrb[0].mxu0
    %v2455 = vadd.f32 %v1427, %v2454
    %v2456 = vpop.f32.mrb[0].mxu0
    %2457 = vmatprep.mubr.f32.mxu0 0.0
    %2458 = vmatmul.mubr.f32.gmra.mrb[0].mxu0 %v1895
    %v2459 = vpop.f32.mrb[0].mxu0
    %v2460 = vadd.f32 %v1432, %v2459
    %v2461 = vpop.f32.mrb[0].mxu0
    %2462 = vmatprep.mubr.f32.mxu0 0.0
    %2463 = vmatmul.mubr.f32.gmra.mrb[0].mxu0 %v1898
    %v2464 = vpop.f32.mrb[0].mxu0
    %v2465 = vadd.f32 %v1437, %v2464
    %v2466 = vpop.f32.mrb[0].mxu0
    %2467 = vmatprep.mubr.f32.mxu0 0.0
    %2468 = vmatmul.mubr.f32.gmra.mrb[0].mxu0 %v1901
    %v2469 = vpop.f32.mrb[0].mxu0
    %v2470 = vadd.f32 %v1442, %v2469
    %v2471 = vpop.f32.mrb[0].mxu0
    %2472 = vmatprep.mubr.f32.mxu0 0.0
    %2473 = vmatmul.mubr.f32.gmra.mrb[0].mxu0 %v1904
    %v2474 = vpop.f32.mrb[0].mxu0
    %v2475 = vadd.f32 %v1447, %v2474
    %v2476 = vpop.f32.mrb[0].mxu0
    %2477 = vmatprep.mubr.f32.mxu0 0.0
    %2478 = vmatmul.mubr.f32.gmra.mrb[0].mxu0 %v1907
    %v2479 = vpop.f32.mrb[0].mxu0
    %v2480 = vadd.f32 %v1452, %v2479
    %v2481 = vpop.f32.mrb[0].mxu0
    %2482 = vmatprep.mubr.f32.mxu0 0.0
    %2483 = vmatmul.mubr.f32.gmra.mrb[0].mxu0 %v1910
    %v2484 = vpop.f32.mrb[0].mxu0
    %v2485 = vadd.f32 %v1457, %v2484
    %v2486 = vpop.f32.mrb[0].mxu0
    %2487 = vmatprep.mubr.f32.mxu0 0.0
    %2488 = vmatmul.mubr.f32.gmra.mrb[0].mxu0 %v1913
    %v2489 = vpop.f32.mrb[0].mxu0
    %v2490 = vadd.f32 %v1462, %v2489
    %v2491 = vpop.f32.mrb[0].mxu0
    %2492 = vmatprep.mubr.f32.mxu0 0.0
    %2493 = vmatmul.mubr.f32.gmra.mrb[0].mxu0 %v1916
    %v2494 = vpop.f32.mrb[0].mxu0
    %v2495 = vadd.f32 %v1467, %v2494
    %v2496 = vpop.f32.mrb[0].mxu0
    %2497 = vmatprep.mubr.f32.mxu0 0.0
    %2498 = vmatmul.mubr.f32.gmra.mrb[0].mxu0 %v1919
    %v2499 = vpop.f32.mrb[0].mxu0
    %v2500 = vadd.f32 %v1472, %v2499
    %v2501 = vpop.f32.mrb[0].mxu0
    %2502 = vmatprep.mubr.f32.mxu0 0.0
    %2503 = vmatmul.mubr.f32.gmra.mrb[0].mxu0 %v1922
    %v2504 = vpop.f32.mrb[0].mxu0
    %v2505 = vadd.f32 %v1477, %v2504
    %v2506 = vpop.f32.mrb[0].mxu0
    %2507 = vmatprep.mubr.f32.mxu0 0.0
    %2508 = vmatmul.mubr.f32.gmra.mrb[0].mxu0 %v1925
    %v2509 = vpop.f32.mrb[0].mxu0
    %v2510 = vadd.f32 %v1482, %v2509
    %v2511 = vpop.f32.mrb[0].mxu0
    %2512 = vmatprep.mubr.f32.mxu0 0.0
    %2513 = vmatmul.mubr.f32.gmra.mrb[0].mxu0 %v1928
    %v2514 = vpop.f32.mrb[0].mxu0
    %v2515 = vadd.f32 %v1487, %v2514
    %v2516 = vpop.f32.mrb[0].mxu0
    %2517 = vmatprep.mubr.f32.mxu0 0.0
    %2518 = vmatmul.mubr.f32.gmra.mrb[0].mxu0 %v1931
    %v2519 = vpop.f32.mrb[0].mxu0
    %v2520 = vadd.f32 %v1492, %v2519
    %v2521 = vpop.f32.mrb[0].mxu0
    %2522 = vmatprep.mubr.f32.mxu0 0.0
    %2523 = vmatmul.mubr.f32.gmra.mrb[0].mxu0 %v1934
    %v2524 = vpop.f32.mrb[0].mxu0
    %v2525 = vadd.f32 %v1497, %v2524
    %v2526 = vpop.f32.mrb[0].mxu0
    %2527 = vmatprep.mubr.f32.mxu0 0.0
    %2528 = vmatmul.mubr.f32.gmra.mrb[0].mxu0 %v1937
    %v2529 = vpop.f32.mrb[0].mxu0
    %v2530 = vadd.f32 %v1502, %v2529
    %v2531 = vpop.f32.mrb[0].mxu0
    %2532 = vmatprep.mubr.f32.mxu0 0.0
    %2533 = vmatmul.mubr.f32.gmra.mrb[0].mxu0 %v1940
    %v2534 = vpop.f32.mrb[0].mxu0
    %v2535 = vadd.f32 %v1507, %v2534
    %v2536 = vpop.f32.mrb[0].mxu0
    %2537 = vmatprep.mubr.f32.mxu0 0.0
    %2538 = vmatmul.mubr.f32.gmra.mrb[0].mxu0 %v1943
    %v2539 = vpop.f32.mrb[0].mxu0
    %v2540 = vadd.f32 %v1512, %v2539
    %v2541 = vpop.f32.mrb[0].mxu0
    %2542 = vmatprep.mubr.f32.mxu0 0.0
    %2543 = vmatmul.mubr.f32.gmra.mrb[0].mxu0 %v1946
    %v2544 = vpop.f32.mrb[0].mxu0
    %v2545 = vadd.f32 %v1517, %v2544
    %v2546 = vpop.f32.mrb[0].mxu0
    %2547 = vmatprep.mubr.f32.mxu0 0.0
    %2548 = vmatmul.mubr.f32.gmra.mrb[0].mxu0 %v1949
    %v2549 = vpop.f32.mrb[0].mxu0
    %v2550 = vadd.f32 %v1522, %v2549
    %v2551 = vpop.f32.mrb[0].mxu0
    %2552 = vmatprep.mubr.f32.mxu0 0.0
    %2553 = vmatmul.mubr.f32.gmra.mrb[0].mxu0 %v1952
    %v2554 = vpop.f32.mrb[0].mxu0
    %v2555 = vadd.f32 %v1527, %v2554
    %v2556 = vpop.f32.mrb[0].mxu0
    %2557 = vmatprep.mubr.f32.mxu0 0.0
    %2558 = vmatmul.mubr.f32.gmra.mrb[0].mxu0 %v1955
    %v2559 = vpop.f32.mrb[0].mxu0
    %v2560 = vadd.f32 %v1532, %v2559
    %v2561 = vpop.f32.mrb[0].mxu0
    %2562 = vmatprep.mubr.f32.mxu0 0.0
    %2563 = vmatmul.mubr.f32.gmra.mrb[0].mxu0 %v1958
    %v2564 = vpop.f32.mrb[0].mxu0
    %v2565 = vadd.f32 %v1537, %v2564
    %v2566 = vpop.f32.mrb[0].mxu0
    %2567 = vmatprep.mubr.f32.mxu0 0.0
    %2568 = vmatmul.mubr.f32.gmra.mrb[0].mxu0 %v1961
    %v2569 = vpop.f32.mrb[0].mxu0
    %v2570 = vadd.f32 %v1542, %v2569
    %v2571 = vpop.f32.mrb[0].mxu0
    %2572 = vmatprep.mubr.f32.mxu0 0.0
    %2573 = vmatmul.mubr.f32.gmra.mrb[0].mxu0 %v1964
    %v2574 = vpop.f32.mrb[0].mxu0
    %v2575 = vadd.f32 %v1547, %v2574
    %v2576 = vpop.f32.mrb[0].mxu0
    %2577 = vmatprep.mubr.f32.mxu0 0.0
    %2578 = vmatmul.mubr.f32.gmra.mrb[0].mxu0 %v1967
    %v2579 = vpop.f32.mrb[0].mxu0
    %v2580 = vadd.f32 %v1552, %v2579
    %v2581 = vpop.f32.mrb[0].mxu0
    %2582 = vmatprep.mubr.f32.mxu0 0.0
    %2583 = vmatmul.mubr.f32.gmra.mrb[0].mxu0 %v1970
    %v2584 = vpop.f32.mrb[0].mxu0
    %v2585 = vadd.f32 %v1557, %v2584
    %v2586 = vpop.f32.mrb[0].mxu0
    %2587 = vmatprep.mubr.f32.mxu0 0.0
    %2588 = vmatmul.mubr.f32.gmra.mrb[0].mxu0 %v1973
    %v2589 = vpop.f32.mrb[0].mxu0
    %v2590 = vadd.f32 %v1562, %v2589
    %v2591 = vpop.f32.mrb[0].mxu0
    %2592 = vmatprep.mubr.f32.mxu0 0.0
    %2593 = vmatmul.mubr.f32.gmra.mrb[0].mxu0 %v1976
    %v2594 = vpop.f32.mrb[0].mxu0
    %v2595 = vadd.f32 %v1567, %v2594
    %v2596 = vpop.f32.mrb[0].mxu0
    %2597 = vmatprep.mubr.f32.mxu0 0.0
    %2598 = vmatmul.mubr.f32.gmra.mrb[0].mxu0 %v1979
    %v2599 = vpop.f32.mrb[0].mxu0
    %v2600 = vadd.f32 %v1572, %v2599
    %v2601 = vpop.f32.mrb[0].mxu0
    %2602 = vmatprep.mubr.f32.mxu0 0.0
    %2603 = vmatmul.mubr.f32.gmra.mrb[0].mxu0 %v1982
    %v2604 = vpop.f32.mrb[0].mxu0
    %v2605 = vadd.f32 %v1577, %v2604
    %v2606 = vpop.f32.mrb[0].mxu0
    %2607 = vmatprep.mubr.f32.mxu0 0.0
    %2608 = vmatmul.mubr.f32.gmra.mrb[0].mxu0 %v1985
    %v2609 = vpop.f32.mrb[0].mxu0
    %v2610 = vadd.f32 %v1582, %v2609
    %v2611 = vpop.f32.mrb[0].mxu0
    %2612 = vmatprep.mubr.f32.mxu0 0.0
    %2613 = vmatmul.mubr.f32.gmra.mrb[0].mxu0 %v1988
    %v2614 = vpop.f32.mrb[0].mxu0
    %v2615 = vadd.f32 %v1587, %v2614
    %v2616 = vpop.f32.mrb[0].mxu0
    %2617 = vmatprep.mubr.f32.mxu0 0.0
    %2618 = vmatmul.mubr.f32.gmra.mrb[0].mxu0 %v1991
    %v2619 = vpop.f32.mrb[0].mxu0
    %v2620 = vadd.f32 %v1592, %v2619
    %v2621 = vpop.f32.mrb[0].mxu0
    %2622 = vmatprep.mubr.f32.mxu0 0.0
    %2623 = vmatmul.mubr.f32.gmra.mrb[0].mxu0 %v1994
    %v2624 = vpop.f32.mrb[0].mxu0
    %v2625 = vadd.f32 %v1597, %v2624
    %v2626 = vpop.f32.mrb[0].mxu0
    %2627 = vmatprep.mubr.f32.mxu0 0.0
    %2628 = vmatmul.mubr.f32.gmra.mrb[0].mxu0 %v1997
    %v2629 = vpop.f32.mrb[0].mxu0
    %v2630 = vadd.f32 %v1602, %v2629
    %v2631 = vpop.f32.mrb[0].mxu0
    %2632 = vmatprep.mubr.f32.mxu0 0.0
    %2633 = vmatmul.mubr.f32.gmra.mrb[0].mxu0 %v2000
    %v2634 = vpop.f32.mrb[0].mxu0
    %v2635 = vadd.f32 %v1607, %v2634
    %v2636 = vpop.f32.mrb[0].mxu0
    %2637 = vmatprep.mubr.f32.mxu0 0.0
    %2638 = vmatmul.mubr.f32.gmra.mrb[0].mxu0 %v2003
    %v2639 = vpop.f32.mrb[0].mxu0
    %v2640 = vadd.f32 %v1612, %v2639
    %v2641 = vpop.f32.mrb[0].mxu0
    %2642 = vmatprep.mubr.f32.mxu0 0.0
    %2643 = vmatmul.mubr.f32.gmra.mrb[0].mxu0 %v2006
    %v2644 = vpop.f32.mrb[0].mxu0
    %v2645 = vadd.f32 %v1617, %v2644
    %v2646 = vpop.f32.mrb[0].mxu0
    %2647 = vmatprep.mubr.f32.mxu0 0.0
    %2648 = vmatmul.mubr.f32.gmra.mrb[0].mxu0 %v2009
    %v2649 = vpop.f32.mrb[0].mxu0
    %v2650 = vadd.f32 %v1622, %v2649
    %v2651 = vpop.f32.mrb[0].mxu0
    %2652 = vmatprep.mubr.f32.mxu0 0.0
    %2653 = vmatmul.mubr.f32.gmra.mrb[0].mxu0 %v2012
    %v2654 = vpop.f32.mrb[0].mxu0
    %v2655 = vadd.f32 %v1627, %v2654
    %v2656 = vpop.f32.mrb[0].mxu0
    %2657 = vmatprep.mubr.f32.mxu0 0.0
    %2658 = vmatmul.mubr.f32.gmra.mrb[0].mxu0 %v2015
    %v2659 = vpop.f32.mrb[0].mxu0
    %v2660 = vadd.f32 %v1632, %v2659
    %v2661 = vpop.f32.mrb[0].mxu0
    %2662 = vmatprep.mubr.f32.mxu0 0.0
    %2663 = vmatmul.mubr.f32.gmra.mrb[0].mxu0 %v2018
    %v2664 = vpop.f32.mrb[0].mxu0
    %v2665 = vadd.f32 %v1637, %v2664
    %v2666 = vpop.f32.mrb[0].mxu0
    %2667 = vmatprep.mubr.f32.mxu0 0.0
    %2668 = vmatmul.mubr.f32.gmra.mrb[0].mxu0 %v2021
    %v2669 = vpop.f32.mrb[0].mxu0
    %v2670 = vadd.f32 %v1642, %v2669
    %v2671 = vpop.f32.mrb[0].mxu0
    %2672 = vmatprep.mubr.f32.mxu0 0.0
    %2673 = vmatmul.mubr.f32.gmra.mrb[0].mxu0 %v2024
    %v2674 = vpop.f32.mrb[0].mxu0
    %v2675 = vadd.f32 %v1647, %v2674
    %v2676 = vpop.f32.mrb[0].mxu0
    %2677 = vmatprep.mubr.f32.mxu0 0.0
    %2678 = vmatmul.mubr.f32.gmra.mrb[0].mxu0 %v2027
    %v2679 = vpop.f32.mrb[0].mxu0
    %v2680 = vadd.f32 %v1652, %v2679
    %v2681 = vpop.f32.mrb[0].mxu0
    %2682 = vmatprep.mubr.f32.mxu0 0.0
    %2683 = vmatmul.mubr.f32.gmra.mrb[0].mxu0 %v2030
    %v2684 = vpop.f32.mrb[0].mxu0
    %v2685 = vadd.f32 %v1657, %v2684
    %v2686 = vpop.f32.mrb[0].mxu0
    %2687 = vmatprep.mubr.f32.mxu0 0.0
    %2688 = vmatmul.mubr.f32.gmra.mrb[0].mxu0 %v2033
    %v2689 = vpop.f32.mrb[0].mxu0
    %v2690 = vadd.f32 %v1662, %v2689
    %v2691 = vpop.f32.mrb[0].mxu0
    %2692 = vmatprep.mubr.f32.mxu0 0.0
    %2693 = vmatmul.mubr.f32.gmra.mrb[0].mxu0 %v2036
    %v2694 = vpop.f32.mrb[0].mxu0
    %v2695 = vadd.f32 %v1667, %v2694
    %v2696 = vpop.f32.mrb[0].mxu0
    %2697 = vmatprep.mubr.f32.mxu0 0.0
    %2698 = vmatmul.mubr.f32.gmra.mrb[0].mxu0 %v2039
    %v2699 = vpop.f32.mrb[0].mxu0
    %v2700 = vadd.f32 %v1672, %v2699
    %v2701 = vpop.f32.mrb[0].mxu0
    %2702 = vmatprep.mubr.f32.mxu0 0.0
    %2703 = vmatmul.mubr.f32.gmra.mrb[0].mxu0 %v2042
    %v2704 = vpop.f32.mrb[0].mxu0
    %v2705 = vadd.f32 %v1677, %v2704
    %v2706 = vpop.f32.mrb[0].mxu0
    %2707 = vmatprep.mubr.f32.mxu0 0.0
    %2708 = vmatmul.mubr.f32.gmra.mrb[0].mxu0 %v2045
    %v2709 = vpop.f32.mrb[0].mxu0
    %v2710 = vadd.f32 %v1682, %v2709
    %v2711 = vpop.f32.mrb[0].mxu0
    %2712 = vmatprep.mubr.f32.mxu0 0.0
    %2713 = vmatmul.mubr.f32.gmra.mrb[0].mxu0 %v2048
    %v2714 = vpop.f32.mrb[0].mxu0
    %v2715 = vadd.f32 %v1687, %v2714
    %v2716 = vpop.f32.mrb[0].mxu0
    %2717 = vdwg.mxu0
    %s2718 = scalar_lea.vmem %s1, 8
    %v2719 = vld [vmem:[%s2718] sm:$0x7]
    %v2721 = vsel %vm174, %v538, 0
    %v2724 = vsel %vm174, %v539, 0
    %v2727 = vsel %vm174, %v540, 0
    %v2730 = vsel %vm174, %v541, 0
    %v2733 = vsel %vm174, %v542, 0
    %v2736 = vsel %vm174, %v543, 0
    %v2739 = vsel %vm174, %v544, 0
    %v2742 = vsel %vm174, %v545, 0
    %v2745 = vsel %vm174, %v546, 0
    %v2748 = vsel %vm174, %v547, 0
    %v2751 = vsel %vm174, %v548, 0
    %v2754 = vsel %vm174, %v549, 0
    %v2757 = vsel %vm174, %v550, 0
    %v2760 = vsel %vm174, %v551, 0
    %v2763 = vsel %vm174, %v552, 0
    %v2766 = vsel %vm174, %v553, 0
    %v2769 = vsel %vm174, %v554, 0
    %v2772 = vsel %vm174, %v555, 0
    %v2775 = vsel %vm174, %v556, 0
    %v2778 = vsel %vm174, %v557, 0
    %v2781 = vsel %vm174, %v558, 0
    %v2784 = vsel %vm174, %v559, 0
    %v2787 = vsel %vm174, %v560, 0
    %v2790 = vsel %vm174, %v561, 0
    %v2793 = vsel %vm174, %v562, 0
    %v2796 = vsel %vm174, %v563, 0
    %v2799 = vsel %vm174, %v564, 0
    %v2802 = vsel %vm174, %v565, 0
    %v2805 = vsel %vm174, %v566, 0
    %v2808 = vsel %vm174, %v567, 0
    %v2811 = vsel %vm174, %v568, 0
    %v2814 = vsel %vm174, %v569, 0
    %v2817 = vsel %vm174, %v570, 0
    %v2820 = vsel %vm174, %v571, 0
    %v2823 = vsel %vm174, %v572, 0
    %v2826 = vsel %vm174, %v573, 0
    %v2829 = vsel %vm174, %v574, 0
    %v2832 = vsel %vm174, %v575, 0
    %v2835 = vsel %vm174, %v576, 0
    %v2838 = vsel %vm174, %v577, 0
    %v2841 = vsel %vm174, %v578, 0
    %v2844 = vsel %vm174, %v579, 0
    %v2847 = vsel %vm174, %v580, 0
    %v2850 = vsel %vm174, %v581, 0
    %v2853 = vsel %vm174, %v582, 0
    %v2856 = vsel %vm174, %v583, 0
    %v2859 = vsel %vm174, %v584, 0
    %v2862 = vsel %vm174, %v585, 0
    %v2865 = vsel %vm174, %v586, 0
    %v2868 = vsel %vm174, %v587, 0
    %v2871 = vsel %vm174, %v588, 0
    %v2874 = vsel %vm174, %v589, 0
    %v2877 = vsel %vm174, %v590, 0
    %v2880 = vsel %vm174, %v591, 0
    %v2883 = vsel %vm174, %v592, 0
    %v2886 = vsel %vm174, %v593, 0
    %v2889 = vsel %vm174, %v594, 0
    %v2892 = vsel %vm174, %v595, 0
    %v2895 = vsel %vm174, %v596, 0
    %v2898 = vsel %vm174, %v597, 0
    %v2901 = vsel %vm174, %v598, 0
    %v2904 = vsel %vm174, %v599, 0
    %v2907 = vsel %vm174, %v600, 0
    %v2910 = vsel %vm174, %v601, 0
    %v2913 = vsel %vm174, %v602, 0
    %v2916 = vsel %vm174, %v603, 0
    %v2919 = vsel %vm174, %v604, 0
    %v2922 = vsel %vm174, %v605, 0
    %v2925 = vsel %vm174, %v606, 0
    %v2928 = vsel %vm174, %v607, 0
    %v2931 = vsel %vm174, %v608, 0
    %v2934 = vsel %vm174, %v609, 0
    %v2937 = vsel %vm174, %v610, 0
    %v2940 = vsel %vm174, %v611, 0
    %v2943 = vsel %vm174, %v612, 0
    %v2946 = vsel %vm174, %v613, 0
    %v2949 = vsel %vm174, %v614, 0
    %v2952 = vsel %vm174, %v615, 0
    %v2955 = vsel %vm174, %v616, 0
    %v2958 = vsel %vm174, %v617, 0
    %v2961 = vsel %vm174, %v618, 0
    %v2964 = vsel %vm174, %v619, 0
    %v2967 = vsel %vm174, %v620, 0
    %v2970 = vsel %vm174, %v621, 0
    %v2973 = vsel %vm174, %v622, 0
    %v2976 = vsel %vm174, %v623, 0
    %v2979 = vsel %vm174, %v624, 0
    %v2982 = vsel %vm174, %v625, 0
    %v2985 = vsel %vm174, %v626, 0
    %v2988 = vsel %vm174, %v627, 0
    %v2991 = vsel %vm174, %v628, 0
    %v2994 = vsel %vm174, %v629, 0
    %v2997 = vsel %vm174, %v630, 0
    %v3000 = vsel %vm174, %v631, 0
    %v3003 = vsel %vm174, %v632, 0
    %v3006 = vsel %vm174, %v633, 0
    %v3009 = vsel %vm174, %v634, 0
    %v3012 = vsel %vm174, %v635, 0
    %v3015 = vsel %vm174, %v636, 0
    %v3018 = vsel %vm174, %v637, 0
    %v3021 = vsel %vm174, %v638, 0
    %v3024 = vsel %vm174, %v639, 0
    %v3027 = vsel %vm174, %v640, 0
    %v3030 = vsel %vm174, %v641, 0
    %v3033 = vsel %vm174, %v642, 0
    %v3036 = vsel %vm174, %v643, 0
    %v3039 = vsel %vm174, %v644, 0
    %v3042 = vsel %vm174, %v645, 0
    %v3045 = vsel %vm174, %v646, 0
    %v3048 = vsel %vm174, %v647, 0
    %v3051 = vsel %vm174, %v648, 0
    %v3054 = vsel %vm174, %v649, 0
    %v3057 = vsel %vm174, %v650, 0
    %v3060 = vsel %vm174, %v651, 0
    %v3063 = vsel %vm174, %v652, 0
    %v3066 = vsel %vm174, %v653, 0
    %v3069 = vsel %vm174, %v654, 0
    %v3072 = vsel %vm174, %v655, 0
    %v3075 = vsel %vm174, %v656, 0
    %v3078 = vsel %vm174, %v657, 0
    %v3081 = vsel %vm1021, %v2719, 0
    %3083 = vmatprep.subr.mxu0 0.0
    %3084 = vmatpush1.msra.mxu0 %v3081
    %3085 = vmatprep.subr.mxu0 0.0
    %3086 = vmatpush1.msra.mxu0 0.0
    %3087 = vmatprep.subr.mxu0 0.0
    %3088 = vmatpush1.msra.mxu0 0.0
    %3089 = vmatprep.subr.mxu0 0.0
    %3090 = vmatpush1.msra.mxu0 0.0
    %3091 = vmatprep.subr.mxu0 0.0
    %3092 = vmatpush1.msra.mxu0 0.0
    %3093 = vmatprep.subr.mxu0 0.0
    %3094 = vmatpush1.msra.mxu0 0.0
    %3095 = vmatprep.subr.mxu0 0.0
    %3096 = vmatpush1.msra.mxu0 0.0
    %3097 = vmatprep.subr.mxu0 0.0
    %3098 = vmatpush1.msra.mxu0 0.0
    %3099 = vmatprep.subr.mxu0 0.0
    %3100 = vmatpush1.msra.mxu0 0.0
    %3101 = vmatprep.subr.mxu0 0.0
    %3102 = vmatpush1.msra.mxu0 0.0
    %3103 = vmatprep.subr.mxu0 0.0
    %3104 = vmatpush1.msra.mxu0 0.0
    %3105 = vmatprep.subr.mxu0 0.0
    %3106 = vmatpush1.msra.mxu0 0.0
    %3107 = vmatprep.subr.mxu0 0.0
    %3108 = vmatpush1.msra.mxu0 0.0
    %3109 = vmatprep.subr.mxu0 0.0
    %3110 = vmatpush1.msra.mxu0 0.0
    %3111 = vmatprep.subr.mxu0 0.0
    %3112 = vmatpush1.msra.mxu0 0.0
    %3113 = vmatprep.subr.mxu0 0.0
    %3114 = vmatpush1.msra.mxu0 0.0
    %3115 = vmatprep.subr.mxu0 0.0
    %3116 = vmatpush1.msra.mxu0 0.0
    %3117 = vmatprep.subr.mxu0 0.0
    %3118 = vmatpush1.msra.mxu0 0.0
    %3119 = vmatprep.subr.mxu0 0.0
    %3120 = vmatpush1.msra.mxu0 0.0
    %3121 = vmatprep.subr.mxu0 0.0
    %3122 = vmatpush1.msra.mxu0 0.0
    %3123 = vmatprep.subr.mxu0 0.0
    %3124 = vmatpush1.msra.mxu0 0.0
    %3125 = vmatprep.subr.mxu0 0.0
    %3126 = vmatpush1.msra.mxu0 0.0
    %3127 = vmatprep.subr.mxu0 0.0
    %3128 = vmatpush1.msra.mxu0 0.0
    %3129 = vmatprep.subr.mxu0 0.0
    %3130 = vmatpush1.msra.mxu0 0.0
    %3131 = vmatprep.subr.mxu0 0.0
    %3132 = vmatpush1.msra.mxu0 0.0
    %3133 = vmatprep.subr.mxu0 0.0
    %3134 = vmatpush1.msra.mxu0 0.0
    %3135 = vmatprep.subr.mxu0 0.0
    %3136 = vmatpush1.msra.mxu0 0.0
    %3137 = vmatprep.subr.mxu0 0.0
    %3138 = vmatpush1.msra.mxu0 0.0
    %3139 = vmatprep.subr.mxu0 0.0
    %3140 = vmatpush1.msra.mxu0 0.0
    %3141 = vmatprep.subr.mxu0 0.0
    %3142 = vmatpush1.msra.mxu0 0.0
    %3143 = vmatprep.subr.mxu0 0.0
    %3144 = vmatpush1.msra.mxu0 0.0
    %3145 = vmatprep.subr.mxu0 0.0
    %3146 = vmatpush1.msra.mxu0 0.0
    %3147 = vmatprep.mubr.f32.mxu0 0.0
    %3148 = vmatmul.mubr.f32.gmra.mrb[0].mxu0 %v2721
    %v3149 = vpop.f32.mrb[0].mxu0
    %v3150 = vadd.f32 0.0, %v3149
    %v3151 = vpop.f32.mrb[0].mxu0
    %3152 = vmatprep.mubr.f32.mxu0 0.0
    %3153 = vmatmul.mubr.f32.gmra.mrb[0].mxu0 %v2724
    %v3154 = vpop.f32.mrb[0].mxu0
    %v3155 = vadd.f32 0.0, %v3154
    %v3156 = vpop.f32.mrb[0].mxu0
    %3157 = vmatprep.mubr.f32.mxu0 0.0
    %3158 = vmatmul.mubr.f32.gmra.mrb[0].mxu0 %v2727
    %v3159 = vpop.f32.mrb[0].mxu0
    %v3160 = vadd.f32 0.0, %v3159
    %v3161 = vpop.f32.mrb[0].mxu0
    %3162 = vmatprep.mubr.f32.mxu0 0.0
    %3163 = vmatmul.mubr.f32.gmra.mrb[0].mxu0 %v2730
    %v3164 = vpop.f32.mrb[0].mxu0
    %v3165 = vadd.f32 0.0, %v3164
    %v3166 = vpop.f32.mrb[0].mxu0
    %3167 = vmatprep.mubr.f32.mxu0 0.0
    %3168 = vmatmul.mubr.f32.gmra.mrb[0].mxu0 %v2733
    %v3169 = vpop.f32.mrb[0].mxu0
    %v3170 = vadd.f32 0.0, %v3169
    %v3171 = vpop.f32.mrb[0].mxu0
    %3172 = vmatprep.mubr.f32.mxu0 0.0
    %3173 = vmatmul.mubr.f32.gmra.mrb[0].mxu0 %v2736
    %v3174 = vpop.f32.mrb[0].mxu0
    %v3175 = vadd.f32 0.0, %v3174
    %v3176 = vpop.f32.mrb[0].mxu0
    %3177 = vmatprep.mubr.f32.mxu0 0.0
    %3178 = vmatmul.mubr.f32.gmra.mrb[0].mxu0 %v2739
    %v3179 = vpop.f32.mrb[0].mxu0
    %v3180 = vadd.f32 0.0, %v3179
    %v3181 = vpop.f32.mrb[0].mxu0
    %3182 = vmatprep.mubr.f32.mxu0 0.0
    %3183 = vmatmul.mubr.f32.gmra.mrb[0].mxu0 %v2742
    %v3184 = vpop.f32.mrb[0].mxu0
    %v3185 = vadd.f32 0.0, %v3184
    %v3186 = vpop.f32.mrb[0].mxu0
    %3187 = vmatprep.mubr.f32.mxu0 0.0
    %3188 = vmatmul.mubr.f32.gmra.mrb[0].mxu0 %v2745
    %v3189 = vpop.f32.mrb[0].mxu0
    %v3190 = vadd.f32 0.0, %v3189
    %v3191 = vpop.f32.mrb[0].mxu0
    %3192 = vmatprep.mubr.f32.mxu0 0.0
    %3193 = vmatmul.mubr.f32.gmra.mrb[0].mxu0 %v2748
    %v3194 = vpop.f32.mrb[0].mxu0
    %v3195 = vadd.f32 0.0, %v3194
    %v3196 = vpop.f32.mrb[0].mxu0
    %3197 = vmatprep.mubr.f32.mxu0 0.0
    %3198 = vmatmul.mubr.f32.gmra.mrb[0].mxu0 %v2751
    %v3199 = vpop.f32.mrb[0].mxu0
    %v3200 = vadd.f32 0.0, %v3199
    %v3201 = vpop.f32.mrb[0].mxu0
    %3202 = vmatprep.mubr.f32.mxu0 0.0
    %3203 = vmatmul.mubr.f32.gmra.mrb[0].mxu0 %v2754
    %v3204 = vpop.f32.mrb[0].mxu0
    %v3205 = vadd.f32 0.0, %v3204
    %v3206 = vpop.f32.mrb[0].mxu0
    %3207 = vmatprep.mubr.f32.mxu0 0.0
    %3208 = vmatmul.mubr.f32.gmra.mrb[0].mxu0 %v2757
    %v3209 = vpop.f32.mrb[0].mxu0
    %v3210 = vadd.f32 0.0, %v3209
    %v3211 = vpop.f32.mrb[0].mxu0
    %3212 = vmatprep.mubr.f32.mxu0 0.0
    %3213 = vmatmul.mubr.f32.gmra.mrb[0].mxu0 %v2760
    %v3214 = vpop.f32.mrb[0].mxu0
    %v3215 = vadd.f32 0.0, %v3214
    %v3216 = vpop.f32.mrb[0].mxu0
    %3217 = vmatprep.mubr.f32.mxu0 0.0
    %3218 = vmatmul.mubr.f32.gmra.mrb[0].mxu0 %v2763
    %v3219 = vpop.f32.mrb[0].mxu0
    %v3220 = vadd.f32 0.0, %v3219
    %v3221 = vpop.f32.mrb[0].mxu0
    %3222 = vmatprep.mubr.f32.mxu0 0.0
    %3223 = vmatmul.mubr.f32.gmra.mrb[0].mxu0 %v2766
    %v3224 = vpop.f32.mrb[0].mxu0
    %v3225 = vadd.f32 0.0, %v3224
    %v3226 = vpop.f32.mrb[0].mxu0
    %3227 = vmatprep.mubr.f32.mxu0 0.0
    %3228 = vmatmul.mubr.f32.gmra.mrb[0].mxu0 %v2769
    %v3229 = vpop.f32.mrb[0].mxu0
    %v3230 = vadd.f32 0.0, %v3229
    %v3231 = vpop.f32.mrb[0].mxu0
    %3232 = vmatprep.mubr.f32.mxu0 0.0
    %3233 = vmatmul.mubr.f32.gmra.mrb[0].mxu0 %v2772
    %v3234 = vpop.f32.mrb[0].mxu0
    %v3235 = vadd.f32 0.0, %v3234
    %v3236 = vpop.f32.mrb[0].mxu0
    %3237 = vmatprep.mubr.f32.mxu0 0.0
    %3238 = vmatmul.mubr.f32.gmra.mrb[0].mxu0 %v2775
    %v3239 = vpop.f32.mrb[0].mxu0
    %v3240 = vadd.f32 0.0, %v3239
    %v3241 = vpop.f32.mrb[0].mxu0
    %3242 = vmatprep.mubr.f32.mxu0 0.0
    %3243 = vmatmul.mubr.f32.gmra.mrb[0].mxu0 %v2778
    %v3244 = vpop.f32.mrb[0].mxu0
    %v3245 = vadd.f32 0.0, %v3244
    %v3246 = vpop.f32.mrb[0].mxu0
    %3247 = vmatprep.mubr.f32.mxu0 0.0
    %3248 = vmatmul.mubr.f32.gmra.mrb[0].mxu0 %v2781
    %v3249 = vpop.f32.mrb[0].mxu0
    %v3250 = vadd.f32 0.0, %v3249
    %v3251 = vpop.f32.mrb[0].mxu0
    %3252 = vmatprep.mubr.f32.mxu0 0.0
    %3253 = vmatmul.mubr.f32.gmra.mrb[0].mxu0 %v2784
    %v3254 = vpop.f32.mrb[0].mxu0
    %v3255 = vadd.f32 0.0, %v3254
    %v3256 = vpop.f32.mrb[0].mxu0
    %3257 = vmatprep.mubr.f32.mxu0 0.0
    %3258 = vmatmul.mubr.f32.gmra.mrb[0].mxu0 %v2787
    %v3259 = vpop.f32.mrb[0].mxu0
    %v3260 = vadd.f32 0.0, %v3259
    %v3261 = vpop.f32.mrb[0].mxu0
    %3262 = vmatprep.mubr.f32.mxu0 0.0
    %3263 = vmatmul.mubr.f32.gmra.mrb[0].mxu0 %v2790
    %v3264 = vpop.f32.mrb[0].mxu0
    %v3265 = vadd.f32 0.0, %v3264
    %v3266 = vpop.f32.mrb[0].mxu0
    %3267 = vmatprep.mubr.f32.mxu0 0.0
    %3268 = vmatmul.mubr.f32.gmra.mrb[0].mxu0 %v2793
    %v3269 = vpop.f32.mrb[0].mxu0
    %v3270 = vadd.f32 0.0, %v3269
    %v3271 = vpop.f32.mrb[0].mxu0
    %3272 = vmatprep.mubr.f32.mxu0 0.0
    %3273 = vmatmul.mubr.f32.gmra.mrb[0].mxu0 %v2796
    %v3274 = vpop.f32.mrb[0].mxu0
    %v3275 = vadd.f32 0.0, %v3274
    %v3276 = vpop.f32.mrb[0].mxu0
    %3277 = vmatprep.mubr.f32.mxu0 0.0
    %3278 = vmatmul.mubr.f32.gmra.mrb[0].mxu0 %v2799
    %v3279 = vpop.f32.mrb[0].mxu0
    %v3280 = vadd.f32 0.0, %v3279
    %v3281 = vpop.f32.mrb[0].mxu0
    %3282 = vmatprep.mubr.f32.mxu0 0.0
    %3283 = vmatmul.mubr.f32.gmra.mrb[0].mxu0 %v2802
    %v3284 = vpop.f32.mrb[0].mxu0
    %v3285 = vadd.f32 0.0, %v3284
    %v3286 = vpop.f32.mrb[0].mxu0
    %3287 = vmatprep.mubr.f32.mxu0 0.0
    %3288 = vmatmul.mubr.f32.gmra.mrb[0].mxu0 %v2805
    %v3289 = vpop.f32.mrb[0].mxu0
    %v3290 = vadd.f32 0.0, %v3289
    %v3291 = vpop.f32.mrb[0].mxu0
    %3292 = vmatprep.mubr.f32.mxu0 0.0
    %3293 = vmatmul.mubr.f32.gmra.mrb[0].mxu0 %v2808
    %v3294 = vpop.f32.mrb[0].mxu0
    %v3295 = vadd.f32 0.0, %v3294
    %v3296 = vpop.f32.mrb[0].mxu0
    %3297 = vmatprep.mubr.f32.mxu0 0.0
    %3298 = vmatmul.mubr.f32.gmra.mrb[0].mxu0 %v2811
    %v3299 = vpop.f32.mrb[0].mxu0
    %v3300 = vadd.f32 0.0, %v3299
    %v3301 = vpop.f32.mrb[0].mxu0
    %3302 = vmatprep.mubr.f32.mxu0 0.0
    %3303 = vmatmul.mubr.f32.gmra.mrb[0].mxu0 %v2814
    %v3304 = vpop.f32.mrb[0].mxu0
    %v3305 = vadd.f32 0.0, %v3304
    %v3306 = vpop.f32.mrb[0].mxu0
    %3307 = vmatprep.mubr.f32.mxu0 0.0
    %3308 = vmatmul.mubr.f32.gmra.mrb[0].mxu0 %v2817
    %v3309 = vpop.f32.mrb[0].mxu0
    %v3310 = vadd.f32 0.0, %v3309
    %v3311 = vpop.f32.mrb[0].mxu0
    %3312 = vmatprep.mubr.f32.mxu0 0.0
    %3313 = vmatmul.mubr.f32.gmra.mrb[0].mxu0 %v2820
    %v3314 = vpop.f32.mrb[0].mxu0
    %v3315 = vadd.f32 0.0, %v3314
    %v3316 = vpop.f32.mrb[0].mxu0
    %3317 = vmatprep.mubr.f32.mxu0 0.0
    %3318 = vmatmul.mubr.f32.gmra.mrb[0].mxu0 %v2823
    %v3319 = vpop.f32.mrb[0].mxu0
    %v3320 = vadd.f32 0.0, %v3319
    %v3321 = vpop.f32.mrb[0].mxu0
    %3322 = vmatprep.mubr.f32.mxu0 0.0
    %3323 = vmatmul.mubr.f32.gmra.mrb[0].mxu0 %v2826
    %v3324 = vpop.f32.mrb[0].mxu0
    %v3325 = vadd.f32 0.0, %v3324
    %v3326 = vpop.f32.mrb[0].mxu0
    %3327 = vmatprep.mubr.f32.mxu0 0.0
    %3328 = vmatmul.mubr.f32.gmra.mrb[0].mxu0 %v2829
    %v3329 = vpop.f32.mrb[0].mxu0
    %v3330 = vadd.f32 0.0, %v3329
    %v3331 = vpop.f32.mrb[0].mxu0
    %3332 = vmatprep.mubr.f32.mxu0 0.0
    %3333 = vmatmul.mubr.f32.gmra.mrb[0].mxu0 %v2832
    %v3334 = vpop.f32.mrb[0].mxu0
    %v3335 = vadd.f32 0.0, %v3334
    %v3336 = vpop.f32.mrb[0].mxu0
    %3337 = vmatprep.mubr.f32.mxu0 0.0
    %3338 = vmatmul.mubr.f32.gmra.mrb[0].mxu0 %v2835
    %v3339 = vpop.f32.mrb[0].mxu0
    %v3340 = vadd.f32 0.0, %v3339
    %v3341 = vpop.f32.mrb[0].mxu0
    %3342 = vmatprep.mubr.f32.mxu0 0.0
    %3343 = vmatmul.mubr.f32.gmra.mrb[0].mxu0 %v2838
    %v3344 = vpop.f32.mrb[0].mxu0
    %v3345 = vadd.f32 0.0, %v3344
    %v3346 = vpop.f32.mrb[0].mxu0
    %3347 = vmatprep.mubr.f32.mxu0 0.0
    %3348 = vmatmul.mubr.f32.gmra.mrb[0].mxu0 %v2841
    %v3349 = vpop.f32.mrb[0].mxu0
    %v3350 = vadd.f32 0.0, %v3349
    %v3351 = vpop.f32.mrb[0].mxu0
    %3352 = vmatprep.mubr.f32.mxu0 0.0
    %3353 = vmatmul.mubr.f32.gmra.mrb[0].mxu0 %v2844
    %v3354 = vpop.f32.mrb[0].mxu0
    %v3355 = vadd.f32 0.0, %v3354
    %v3356 = vpop.f32.mrb[0].mxu0
    %3357 = vmatprep.mubr.f32.mxu0 0.0
    %3358 = vmatmul.mubr.f32.gmra.mrb[0].mxu0 %v2847
    %v3359 = vpop.f32.mrb[0].mxu0
    %v3360 = vadd.f32 0.0, %v3359
    %v3361 = vpop.f32.mrb[0].mxu0
    %3362 = vmatprep.mubr.f32.mxu0 0.0
    %3363 = vmatmul.mubr.f32.gmra.mrb[0].mxu0 %v2850
    %v3364 = vpop.f32.mrb[0].mxu0
    %v3365 = vadd.f32 0.0, %v3364
    %v3366 = vpop.f32.mrb[0].mxu0
    %3367 = vmatprep.mubr.f32.mxu0 0.0
    %3368 = vmatmul.mubr.f32.gmra.mrb[0].mxu0 %v2853
    %v3369 = vpop.f32.mrb[0].mxu0
    %v3370 = vadd.f32 0.0, %v3369
    %v3371 = vpop.f32.mrb[0].mxu0
    %3372 = vmatprep.mubr.f32.mxu0 0.0
    %3373 = vmatmul.mubr.f32.gmra.mrb[0].mxu0 %v2856
    %v3374 = vpop.f32.mrb[0].mxu0
    %v3375 = vadd.f32 0.0, %v3374
    %v3376 = vpop.f32.mrb[0].mxu0
    %3377 = vmatprep.mubr.f32.mxu0 0.0
    %3378 = vmatmul.mubr.f32.gmra.mrb[0].mxu0 %v2859
    %v3379 = vpop.f32.mrb[0].mxu0
    %v3380 = vadd.f32 0.0, %v3379
    %v3381 = vpop.f32.mrb[0].mxu0
    %3382 = vmatprep.mubr.f32.mxu0 0.0
    %3383 = vmatmul.mubr.f32.gmra.mrb[0].mxu0 %v2862
    %v3384 = vpop.f32.mrb[0].mxu0
    %v3385 = vadd.f32 0.0, %v3384
    %v3386 = vpop.f32.mrb[0].mxu0
    %3387 = vmatprep.mubr.f32.mxu0 0.0
    %3388 = vmatmul.mubr.f32.gmra.mrb[0].mxu0 %v2865
    %v3389 = vpop.f32.mrb[0].mxu0
    %v3390 = vadd.f32 0.0, %v3389
    %v3391 = vpop.f32.mrb[0].mxu0
    %3392 = vmatprep.mubr.f32.mxu0 0.0
    %3393 = vmatmul.mubr.f32.gmra.mrb[0].mxu0 %v2868
    %v3394 = vpop.f32.mrb[0].mxu0
    %v3395 = vadd.f32 0.0, %v3394
    %v3396 = vpop.f32.mrb[0].mxu0
    %3397 = vmatprep.mubr.f32.mxu0 0.0
    %3398 = vmatmul.mubr.f32.gmra.mrb[0].mxu0 %v2871
    %v3399 = vpop.f32.mrb[0].mxu0
    %v3400 = vadd.f32 0.0, %v3399
    %v3401 = vpop.f32.mrb[0].mxu0
    %3402 = vmatprep.mubr.f32.mxu0 0.0
    %3403 = vmatmul.mubr.f32.gmra.mrb[0].mxu0 %v2874
    %v3404 = vpop.f32.mrb[0].mxu0
    %v3405 = vadd.f32 0.0, %v3404
    %v3406 = vpop.f32.mrb[0].mxu0
    %3407 = vmatprep.mubr.f32.mxu0 0.0
    %3408 = vmatmul.mubr.f32.gmra.mrb[0].mxu0 %v2877
    %v3409 = vpop.f32.mrb[0].mxu0
    %v3410 = vadd.f32 0.0, %v3409
    %v3411 = vpop.f32.mrb[0].mxu0
    %3412 = vmatprep.mubr.f32.mxu0 0.0
    %3413 = vmatmul.mubr.f32.gmra.mrb[0].mxu0 %v2880
    %v3414 = vpop.f32.mrb[0].mxu0
    %v3415 = vadd.f32 0.0, %v3414
    %v3416 = vpop.f32.mrb[0].mxu0
    %3417 = vmatprep.mubr.f32.mxu0 0.0
    %3418 = vmatmul.mubr.f32.gmra.mrb[0].mxu0 %v2883
    %v3419 = vpop.f32.mrb[0].mxu0
    %v3420 = vadd.f32 0.0, %v3419
    %v3421 = vpop.f32.mrb[0].mxu0
    %3422 = vmatprep.mubr.f32.mxu0 0.0
    %3423 = vmatmul.mubr.f32.gmra.mrb[0].mxu0 %v2886
    %v3424 = vpop.f32.mrb[0].mxu0
    %v3425 = vadd.f32 0.0, %v3424
    %v3426 = vpop.f32.mrb[0].mxu0
    %3427 = vmatprep.mubr.f32.mxu0 0.0
    %3428 = vmatmul.mubr.f32.gmra.mrb[0].mxu0 %v2889
    %v3429 = vpop.f32.mrb[0].mxu0
    %v3430 = vadd.f32 0.0, %v3429
    %v3431 = vpop.f32.mrb[0].mxu0
    %3432 = vmatprep.mubr.f32.mxu0 0.0
    %3433 = vmatmul.mubr.f32.gmra.mrb[0].mxu0 %v2892
    %v3434 = vpop.f32.mrb[0].mxu0
    %v3435 = vadd.f32 0.0, %v3434
    %v3436 = vpop.f32.mrb[0].mxu0
    %3437 = vmatprep.mubr.f32.mxu0 0.0
    %3438 = vmatmul.mubr.f32.gmra.mrb[0].mxu0 %v2895
    %v3439 = vpop.f32.mrb[0].mxu0
    %v3440 = vadd.f32 0.0, %v3439
    %v3441 = vpop.f32.mrb[0].mxu0
    %3442 = vmatprep.mubr.f32.mxu0 0.0
    %3443 = vmatmul.mubr.f32.gmra.mrb[0].mxu0 %v2898
    %v3444 = vpop.f32.mrb[0].mxu0
    %v3445 = vadd.f32 0.0, %v3444
    %v3446 = vpop.f32.mrb[0].mxu0
    %3447 = vmatprep.mubr.f32.mxu0 0.0
    %3448 = vmatmul.mubr.f32.gmra.mrb[0].mxu0 %v2901
    %v3449 = vpop.f32.mrb[0].mxu0
    %v3450 = vadd.f32 0.0, %v3449
    %v3451 = vpop.f32.mrb[0].mxu0
    %3452 = vmatprep.mubr.f32.mxu0 0.0
    %3453 = vmatmul.mubr.f32.gmra.mrb[0].mxu0 %v2904
    %v3454 = vpop.f32.mrb[0].mxu0
    %v3455 = vadd.f32 0.0, %v3454
    %v3456 = vpop.f32.mrb[0].mxu0
    %3457 = vmatprep.mubr.f32.mxu0 0.0
    %3458 = vmatmul.mubr.f32.gmra.mrb[0].mxu0 %v2907
    %v3459 = vpop.f32.mrb[0].mxu0
    %v3460 = vadd.f32 0.0, %v3459
    %v3461 = vpop.f32.mrb[0].mxu0
    %3462 = vmatprep.mubr.f32.mxu0 0.0
    %3463 = vmatmul.mubr.f32.gmra.mrb[0].mxu0 %v2910
    %v3464 = vpop.f32.mrb[0].mxu0
    %v3465 = vadd.f32 0.0, %v3464
    %v3466 = vpop.f32.mrb[0].mxu0
    %3467 = vmatprep.mubr.f32.mxu0 0.0
    %3468 = vmatmul.mubr.f32.gmra.mrb[0].mxu0 %v2913
    %v3469 = vpop.f32.mrb[0].mxu0
    %v3470 = vadd.f32 0.0, %v3469
    %v3471 = vpop.f32.mrb[0].mxu0
    %3472 = vmatprep.mubr.f32.mxu0 0.0
    %3473 = vmatmul.mubr.f32.gmra.mrb[0].mxu0 %v2916
    %v3474 = vpop.f32.mrb[0].mxu0
    %v3475 = vadd.f32 0.0, %v3474
    %v3476 = vpop.f32.mrb[0].mxu0
    %3477 = vmatprep.mubr.f32.mxu0 0.0
    %3478 = vmatmul.mubr.f32.gmra.mrb[0].mxu0 %v2919
    %v3479 = vpop.f32.mrb[0].mxu0
    %v3480 = vadd.f32 0.0, %v3479
    %v3481 = vpop.f32.mrb[0].mxu0
    %3482 = vmatprep.mubr.f32.mxu0 0.0
    %3483 = vmatmul.mubr.f32.gmra.mrb[0].mxu0 %v2922
    %v3484 = vpop.f32.mrb[0].mxu0
    %v3485 = vadd.f32 0.0, %v3484
    %v3486 = vpop.f32.mrb[0].mxu0
    %3487 = vmatprep.mubr.f32.mxu0 0.0
    %3488 = vmatmul.mubr.f32.gmra.mrb[0].mxu0 %v2925
    %v3489 = vpop.f32.mrb[0].mxu0
    %v3490 = vadd.f32 0.0, %v3489
    %v3491 = vpop.f32.mrb[0].mxu0
    %3492 = vmatprep.mubr.f32.mxu0 0.0
    %3493 = vmatmul.mubr.f32.gmra.mrb[0].mxu0 %v2928
    %v3494 = vpop.f32.mrb[0].mxu0
    %v3495 = vadd.f32 0.0, %v3494
    %v3496 = vpop.f32.mrb[0].mxu0
    %3497 = vmatprep.mubr.f32.mxu0 0.0
    %3498 = vmatmul.mubr.f32.gmra.mrb[0].mxu0 %v2931
    %v3499 = vpop.f32.mrb[0].mxu0
    %v3500 = vadd.f32 0.0, %v3499
    %v3501 = vpop.f32.mrb[0].mxu0
    %3502 = vmatprep.mubr.f32.mxu0 0.0
    %3503 = vmatmul.mubr.f32.gmra.mrb[0].mxu0 %v2934
    %v3504 = vpop.f32.mrb[0].mxu0
    %v3505 = vadd.f32 0.0, %v3504
    %v3506 = vpop.f32.mrb[0].mxu0
    %3507 = vmatprep.mubr.f32.mxu0 0.0
    %3508 = vmatmul.mubr.f32.gmra.mrb[0].mxu0 %v2937
    %v3509 = vpop.f32.mrb[0].mxu0
    %v3510 = vadd.f32 0.0, %v3509
    %v3511 = vpop.f32.mrb[0].mxu0
    %3512 = vmatprep.mubr.f32.mxu0 0.0
    %3513 = vmatmul.mubr.f32.gmra.mrb[0].mxu0 %v2940
    %v3514 = vpop.f32.mrb[0].mxu0
    %v3515 = vadd.f32 0.0, %v3514
    %v3516 = vpop.f32.mrb[0].mxu0
    %3517 = vmatprep.mubr.f32.mxu0 0.0
    %3518 = vmatmul.mubr.f32.gmra.mrb[0].mxu0 %v2943
    %v3519 = vpop.f32.mrb[0].mxu0
    %v3520 = vadd.f32 0.0, %v3519
    %v3521 = vpop.f32.mrb[0].mxu0
    %3522 = vmatprep.mubr.f32.mxu0 0.0
    %3523 = vmatmul.mubr.f32.gmra.mrb[0].mxu0 %v2946
    %v3524 = vpop.f32.mrb[0].mxu0
    %v3525 = vadd.f32 0.0, %v3524
    %v3526 = vpop.f32.mrb[0].mxu0
    %3527 = vmatprep.mubr.f32.mxu0 0.0
    %3528 = vmatmul.mubr.f32.gmra.mrb[0].mxu0 %v2949
    %v3529 = vpop.f32.mrb[0].mxu0
    %v3530 = vadd.f32 0.0, %v3529
    %v3531 = vpop.f32.mrb[0].mxu0
    %3532 = vmatprep.mubr.f32.mxu0 0.0
    %3533 = vmatmul.mubr.f32.gmra.mrb[0].mxu0 %v2952
    %v3534 = vpop.f32.mrb[0].mxu0
    %v3535 = vadd.f32 0.0, %v3534
    %v3536 = vpop.f32.mrb[0].mxu0
    %3537 = vmatprep.mubr.f32.mxu0 0.0
    %3538 = vmatmul.mubr.f32.gmra.mrb[0].mxu0 %v2955
    %v3539 = vpop.f32.mrb[0].mxu0
    %v3540 = vadd.f32 0.0, %v3539
    %v3541 = vpop.f32.mrb[0].mxu0
    %3542 = vmatprep.mubr.f32.mxu0 0.0
    %3543 = vmatmul.mubr.f32.gmra.mrb[0].mxu0 %v2958
    %v3544 = vpop.f32.mrb[0].mxu0
    %v3545 = vadd.f32 0.0, %v3544
    %v3546 = vpop.f32.mrb[0].mxu0
    %3547 = vmatprep.mubr.f32.mxu0 0.0
    %3548 = vmatmul.mubr.f32.gmra.mrb[0].mxu0 %v2961
    %v3549 = vpop.f32.mrb[0].mxu0
    %v3550 = vadd.f32 0.0, %v3549
    %v3551 = vpop.f32.mrb[0].mxu0
    %3552 = vmatprep.mubr.f32.mxu0 0.0
    %3553 = vmatmul.mubr.f32.gmra.mrb[0].mxu0 %v2964
    %v3554 = vpop.f32.mrb[0].mxu0
    %v3555 = vadd.f32 0.0, %v3554
    %v3556 = vpop.f32.mrb[0].mxu0
    %3557 = vmatprep.mubr.f32.mxu0 0.0
    %3558 = vmatmul.mubr.f32.gmra.mrb[0].mxu0 %v2967
    %v3559 = vpop.f32.mrb[0].mxu0
    %v3560 = vadd.f32 0.0, %v3559
    %v3561 = vpop.f32.mrb[0].mxu0
    %3562 = vmatprep.mubr.f32.mxu0 0.0
    %3563 = vmatmul.mubr.f32.gmra.mrb[0].mxu0 %v2970
    %v3564 = vpop.f32.mrb[0].mxu0
    %v3565 = vadd.f32 0.0, %v3564
    %v3566 = vpop.f32.mrb[0].mxu0
    %3567 = vmatprep.mubr.f32.mxu0 0.0
    %3568 = vmatmul.mubr.f32.gmra.mrb[0].mxu0 %v2973
    %v3569 = vpop.f32.mrb[0].mxu0
    %v3570 = vadd.f32 0.0, %v3569
    %v3571 = vpop.f32.mrb[0].mxu0
    %3572 = vmatprep.mubr.f32.mxu0 0.0
    %3573 = vmatmul.mubr.f32.gmra.mrb[0].mxu0 %v2976
    %v3574 = vpop.f32.mrb[0].mxu0
    %v3575 = vadd.f32 0.0, %v3574
    %v3576 = vpop.f32.mrb[0].mxu0
    %3577 = vmatprep.mubr.f32.mxu0 0.0
    %3578 = vmatmul.mubr.f32.gmra.mrb[0].mxu0 %v2979
    %v3579 = vpop.f32.mrb[0].mxu0
    %v3580 = vadd.f32 0.0, %v3579
    %v3581 = vpop.f32.mrb[0].mxu0
    %3582 = vmatprep.mubr.f32.mxu0 0.0
    %3583 = vmatmul.mubr.f32.gmra.mrb[0].mxu0 %v2982
    %v3584 = vpop.f32.mrb[0].mxu0
    %v3585 = vadd.f32 0.0, %v3584
    %v3586 = vpop.f32.mrb[0].mxu0
    %3587 = vmatprep.mubr.f32.mxu0 0.0
    %3588 = vmatmul.mubr.f32.gmra.mrb[0].mxu0 %v2985
    %v3589 = vpop.f32.mrb[0].mxu0
    %v3590 = vadd.f32 0.0, %v3589
    %v3591 = vpop.f32.mrb[0].mxu0
    %3592 = vmatprep.mubr.f32.mxu0 0.0
    %3593 = vmatmul.mubr.f32.gmra.mrb[0].mxu0 %v2988
    %v3594 = vpop.f32.mrb[0].mxu0
    %v3595 = vadd.f32 0.0, %v3594
    %v3596 = vpop.f32.mrb[0].mxu0
    %3597 = vmatprep.mubr.f32.mxu0 0.0
    %3598 = vmatmul.mubr.f32.gmra.mrb[0].mxu0 %v2991
    %v3599 = vpop.f32.mrb[0].mxu0
    %v3600 = vadd.f32 0.0, %v3599
    %v3601 = vpop.f32.mrb[0].mxu0
    %3602 = vmatprep.mubr.f32.mxu0 0.0
    %3603 = vmatmul.mubr.f32.gmra.mrb[0].mxu0 %v2994
    %v3604 = vpop.f32.mrb[0].mxu0
    %v3605 = vadd.f32 0.0, %v3604
    %v3606 = vpop.f32.mrb[0].mxu0
    %3607 = vmatprep.mubr.f32.mxu0 0.0
    %3608 = vmatmul.mubr.f32.gmra.mrb[0].mxu0 %v2997
    %v3609 = vpop.f32.mrb[0].mxu0
    %v3610 = vadd.f32 0.0, %v3609
    %v3611 = vpop.f32.mrb[0].mxu0
    %3612 = vmatprep.mubr.f32.mxu0 0.0
    %3613 = vmatmul.mubr.f32.gmra.mrb[0].mxu0 %v3000
    %v3614 = vpop.f32.mrb[0].mxu0
    %v3615 = vadd.f32 0.0, %v3614
    %v3616 = vpop.f32.mrb[0].mxu0
    %3617 = vmatprep.mubr.f32.mxu0 0.0
    %3618 = vmatmul.mubr.f32.gmra.mrb[0].mxu0 %v3003
    %v3619 = vpop.f32.mrb[0].mxu0
    %v3620 = vadd.f32 0.0, %v3619
    %v3621 = vpop.f32.mrb[0].mxu0
    %3622 = vmatprep.mubr.f32.mxu0 0.0
    %3623 = vmatmul.mubr.f32.gmra.mrb[0].mxu0 %v3006
    %v3624 = vpop.f32.mrb[0].mxu0
    %v3625 = vadd.f32 0.0, %v3624
    %v3626 = vpop.f32.mrb[0].mxu0
    %3627 = vmatprep.mubr.f32.mxu0 0.0
    %3628 = vmatmul.mubr.f32.gmra.mrb[0].mxu0 %v3009
    %v3629 = vpop.f32.mrb[0].mxu0
    %v3630 = vadd.f32 0.0, %v3629
    %v3631 = vpop.f32.mrb[0].mxu0
    %3632 = vmatprep.mubr.f32.mxu0 0.0
    %3633 = vmatmul.mubr.f32.gmra.mrb[0].mxu0 %v3012
    %v3634 = vpop.f32.mrb[0].mxu0
    %v3635 = vadd.f32 0.0, %v3634
    %v3636 = vpop.f32.mrb[0].mxu0
    %3637 = vmatprep.mubr.f32.mxu0 0.0
    %3638 = vmatmul.mubr.f32.gmra.mrb[0].mxu0 %v3015
    %v3639 = vpop.f32.mrb[0].mxu0
    %v3640 = vadd.f32 0.0, %v3639
    %v3641 = vpop.f32.mrb[0].mxu0
    %3642 = vmatprep.mubr.f32.mxu0 0.0
    %3643 = vmatmul.mubr.f32.gmra.mrb[0].mxu0 %v3018
    %v3644 = vpop.f32.mrb[0].mxu0
    %v3645 = vadd.f32 0.0, %v3644
    %v3646 = vpop.f32.mrb[0].mxu0
    %3647 = vmatprep.mubr.f32.mxu0 0.0
    %3648 = vmatmul.mubr.f32.gmra.mrb[0].mxu0 %v3021
    %v3649 = vpop.f32.mrb[0].mxu0
    %v3650 = vadd.f32 0.0, %v3649
    %v3651 = vpop.f32.mrb[0].mxu0
    %3652 = vmatprep.mubr.f32.mxu0 0.0
    %3653 = vmatmul.mubr.f32.gmra.mrb[0].mxu0 %v3024
    %v3654 = vpop.f32.mrb[0].mxu0
    %v3655 = vadd.f32 0.0, %v3654
    %v3656 = vpop.f32.mrb[0].mxu0
    %3657 = vmatprep.mubr.f32.mxu0 0.0
    %3658 = vmatmul.mubr.f32.gmra.mrb[0].mxu0 %v3027
    %v3659 = vpop.f32.mrb[0].mxu0
    %v3660 = vadd.f32 0.0, %v3659
    %v3661 = vpop.f32.mrb[0].mxu0
    %3662 = vmatprep.mubr.f32.mxu0 0.0
    %3663 = vmatmul.mubr.f32.gmra.mrb[0].mxu0 %v3030
    %v3664 = vpop.f32.mrb[0].mxu0
    %v3665 = vadd.f32 0.0, %v3664
    %v3666 = vpop.f32.mrb[0].mxu0
    %3667 = vmatprep.mubr.f32.mxu0 0.0
    %3668 = vmatmul.mubr.f32.gmra.mrb[0].mxu0 %v3033
    %v3669 = vpop.f32.mrb[0].mxu0
    %v3670 = vadd.f32 0.0, %v3669
    %v3671 = vpop.f32.mrb[0].mxu0
    %3672 = vmatprep.mubr.f32.mxu0 0.0
    %3673 = vmatmul.mubr.f32.gmra.mrb[0].mxu0 %v3036
    %v3674 = vpop.f32.mrb[0].mxu0
    %v3675 = vadd.f32 0.0, %v3674
    %v3676 = vpop.f32.mrb[0].mxu0
    %3677 = vmatprep.mubr.f32.mxu0 0.0
    %3678 = vmatmul.mubr.f32.gmra.mrb[0].mxu0 %v3039
    %v3679 = vpop.f32.mrb[0].mxu0
    %v3680 = vadd.f32 0.0, %v3679
    %v3681 = vpop.f32.mrb[0].mxu0
    %3682 = vmatprep.mubr.f32.mxu0 0.0
    %3683 = vmatmul.mubr.f32.gmra.mrb[0].mxu0 %v3042
    %v3684 = vpop.f32.mrb[0].mxu0
    %v3685 = vadd.f32 0.0, %v3684
    %v3686 = vpop.f32.mrb[0].mxu0
    %3687 = vmatprep.mubr.f32.mxu0 0.0
    %3688 = vmatmul.mubr.f32.gmra.mrb[0].mxu0 %v3045
    %v3689 = vpop.f32.mrb[0].mxu0
    %v3690 = vadd.f32 0.0, %v3689
    %v3691 = vpop.f32.mrb[0].mxu0
    %3692 = vmatprep.mubr.f32.mxu0 0.0
    %3693 = vmatmul.mubr.f32.gmra.mrb[0].mxu0 %v3048
    %v3694 = vpop.f32.mrb[0].mxu0
    %v3695 = vadd.f32 0.0, %v3694
    %v3696 = vpop.f32.mrb[0].mxu0
    %3697 = vmatprep.mubr.f32.mxu0 0.0
    %3698 = vmatmul.mubr.f32.gmra.mrb[0].mxu0 %v3051
    %v3699 = vpop.f32.mrb[0].mxu0
    %v3700 = vadd.f32 0.0, %v3699
    %v3701 = vpop.f32.mrb[0].mxu0
    %3702 = vmatprep.mubr.f32.mxu0 0.0
    %3703 = vmatmul.mubr.f32.gmra.mrb[0].mxu0 %v3054
    %v3704 = vpop.f32.mrb[0].mxu0
    %v3705 = vadd.f32 0.0, %v3704
    %v3706 = vpop.f32.mrb[0].mxu0
    %3707 = vmatprep.mubr.f32.mxu0 0.0
    %3708 = vmatmul.mubr.f32.gmra.mrb[0].mxu0 %v3057
    %v3709 = vpop.f32.mrb[0].mxu0
    %v3710 = vadd.f32 0.0, %v3709
    %v3711 = vpop.f32.mrb[0].mxu0
    %3712 = vmatprep.mubr.f32.mxu0 0.0
    %3713 = vmatmul.mubr.f32.gmra.mrb[0].mxu0 %v3060
    %v3714 = vpop.f32.mrb[0].mxu0
    %v3715 = vadd.f32 0.0, %v3714
    %v3716 = vpop.f32.mrb[0].mxu0
    %3717 = vmatprep.mubr.f32.mxu0 0.0
    %3718 = vmatmul.mubr.f32.gmra.mrb[0].mxu0 %v3063
    %v3719 = vpop.f32.mrb[0].mxu0
    %v3720 = vadd.f32 0.0, %v3719
    %v3721 = vpop.f32.mrb[0].mxu0
    %3722 = vmatprep.mubr.f32.mxu0 0.0
    %3723 = vmatmul.mubr.f32.gmra.mrb[0].mxu0 %v3066
    %v3724 = vpop.f32.mrb[0].mxu0
    %v3725 = vadd.f32 0.0, %v3724
    %v3726 = vpop.f32.mrb[0].mxu0
    %3727 = vmatprep.mubr.f32.mxu0 0.0
    %3728 = vmatmul.mubr.f32.gmra.mrb[0].mxu0 %v3069
    %v3729 = vpop.f32.mrb[0].mxu0
    %v3730 = vadd.f32 0.0, %v3729
    %v3731 = vpop.f32.mrb[0].mxu0
    %3732 = vmatprep.mubr.f32.mxu0 0.0
    %3733 = vmatmul.mubr.f32.gmra.mrb[0].mxu0 %v3072
    %v3734 = vpop.f32.mrb[0].mxu0
    %v3735 = vadd.f32 0.0, %v3734
    %v3736 = vpop.f32.mrb[0].mxu0
    %3737 = vmatprep.mubr.f32.mxu0 0.0
    %3738 = vmatmul.mubr.f32.gmra.mrb[0].mxu0 %v3075
    %v3739 = vpop.f32.mrb[0].mxu0
    %v3740 = vadd.f32 0.0, %v3739
    %v3741 = vpop.f32.mrb[0].mxu0
    %3742 = vmatprep.mubr.f32.mxu0 0.0
    %3743 = vmatmul.mubr.f32.gmra.mrb[0].mxu0 %v3078
    %v3744 = vpop.f32.mrb[0].mxu0
    %v3745 = vadd.f32 0.0, %v3744
    %v3746 = vpop.f32.mrb[0].mxu0
    %3747 = vdwg.mxu0
    %v3748 = vadd.f32 %v2120, %v3150
    %v3749 = vadd.f32 %v2125, %v3155
    %v3750 = vadd.f32 %v2130, %v3160
    %v3751 = vadd.f32 %v2135, %v3165
    %v3752 = vadd.f32 %v2140, %v3170
    %v3753 = vadd.f32 %v2145, %v3175
    %v3754 = vadd.f32 %v2150, %v3180
    %v3755 = vadd.f32 %v2155, %v3185
    %v3756 = vadd.f32 %v2160, %v3190
    %v3757 = vadd.f32 %v2165, %v3195
    %v3758 = vadd.f32 %v2170, %v3200
    %v3759 = vadd.f32 %v2175, %v3205
    %v3760 = vadd.f32 %v2180, %v3210
    %v3761 = vadd.f32 %v2185, %v3215
    %v3762 = vadd.f32 %v2190, %v3220
    %v3763 = vadd.f32 %v2195, %v3225
    %v3764 = vadd.f32 %v2200, %v3230
    %v3765 = vadd.f32 %v2205, %v3235
    %v3766 = vadd.f32 %v2210, %v3240
    %v3767 = vadd.f32 %v2215, %v3245
    %v3768 = vadd.f32 %v2220, %v3250
    %v3769 = vadd.f32 %v2225, %v3255
    %v3770 = vadd.f32 %v2230, %v3260
    %v3771 = vadd.f32 %v2235, %v3265
    %v3772 = vadd.f32 %v2240, %v3270
    %v3773 = vadd.f32 %v2245, %v3275
    %v3774 = vadd.f32 %v2250, %v3280
    %v3775 = vadd.f32 %v2255, %v3285
    %v3776 = vadd.f32 %v2260, %v3290
    %v3777 = vadd.f32 %v2265, %v3295
    %v3778 = vadd.f32 %v2270, %v3300
    %v3779 = vadd.f32 %v2275, %v3305
    %v3780 = vadd.f32 %v2280, %v3310
    %v3781 = vadd.f32 %v2285, %v3315
    %v3782 = vadd.f32 %v2290, %v3320
    %v3783 = vadd.f32 %v2295, %v3325
    %v3784 = vadd.f32 %v2300, %v3330
    %v3785 = vadd.f32 %v2305, %v3335
    %v3786 = vadd.f32 %v2310, %v3340
    %v3787 = vadd.f32 %v2315, %v3345
    %v3788 = vadd.f32 %v2320, %v3350
    %v3789 = vadd.f32 %v2325, %v3355
    %v3790 = vadd.f32 %v2330, %v3360
    %v3791 = vadd.f32 %v2335, %v3365
    %v3792 = vadd.f32 %v2340, %v3370
    %v3793 = vadd.f32 %v2345, %v3375
    %v3794 = vadd.f32 %v2350, %v3380
    %v3795 = vadd.f32 %v2355, %v3385
    %v3796 = vadd.f32 %v2360, %v3390
    %v3797 = vadd.f32 %v2365, %v3395
    %v3798 = vadd.f32 %v2370, %v3400
    %v3799 = vadd.f32 %v2375, %v3405
    %v3800 = vadd.f32 %v2380, %v3410
    %v3801 = vadd.f32 %v2385, %v3415
    %v3802 = vadd.f32 %v2390, %v3420
    %v3803 = vadd.f32 %v2395, %v3425
    %v3804 = vadd.f32 %v2400, %v3430
    %v3805 = vadd.f32 %v2405, %v3435
    %v3806 = vadd.f32 %v2410, %v3440
    %v3807 = vadd.f32 %v2415, %v3445
    %v3808 = vadd.f32 %v2420, %v3450
    %v3809 = vadd.f32 %v2425, %v3455
    %v3810 = vadd.f32 %v2430, %v3460
    %v3811 = vadd.f32 %v2435, %v3465
    %v3812 = vadd.f32 %v2440, %v3470
    %v3813 = vadd.f32 %v2445, %v3475
    %v3814 = vadd.f32 %v2450, %v3480
    %v3815 = vadd.f32 %v2455, %v3485
    %v3816 = vadd.f32 %v2460, %v3490
    %v3817 = vadd.f32 %v2465, %v3495
    %v3818 = vadd.f32 %v2470, %v3500
    %v3819 = vadd.f32 %v2475, %v3505
    %v3820 = vadd.f32 %v2480, %v3510
    %v3821 = vadd.f32 %v2485, %v3515
    %v3822 = vadd.f32 %v2490, %v3520
    %v3823 = vadd.f32 %v2495, %v3525
    %v3824 = vadd.f32 %v2500, %v3530
    %v3825 = vadd.f32 %v2505, %v3535
    %v3826 = vadd.f32 %v2510, %v3540
    %v3827 = vadd.f32 %v2515, %v3545
    %v3828 = vadd.f32 %v2520, %v3550
    %v3829 = vadd.f32 %v2525, %v3555
    %v3830 = vadd.f32 %v2530, %v3560
    %v3831 = vadd.f32 %v2535, %v3565
    %v3832 = vadd.f32 %v2540, %v3570
    %v3833 = vadd.f32 %v2545, %v3575
    %v3834 = vadd.f32 %v2550, %v3580
    %v3835 = vadd.f32 %v2555, %v3585
    %v3836 = vadd.f32 %v2560, %v3590
    %v3837 = vadd.f32 %v2565, %v3595
    %v3838 = vadd.f32 %v2570, %v3600
    %v3839 = vadd.f32 %v2575, %v3605
    %v3840 = vadd.f32 %v2580, %v3610
    %v3841 = vadd.f32 %v2585, %v3615
    %v3842 = vadd.f32 %v2590, %v3620
    %v3843 = vadd.f32 %v2595, %v3625
    %v3844 = vadd.f32 %v2600, %v3630
    %v3845 = vadd.f32 %v2605, %v3635
    %v3846 = vadd.f32 %v2610, %v3640
    %v3847 = vadd.f32 %v2615, %v3645
    %v3848 = vadd.f32 %v2620, %v3650
    %v3849 = vadd.f32 %v2625, %v3655
    %v3850 = vadd.f32 %v2630, %v3660
    %v3851 = vadd.f32 %v2635, %v3665
    %v3852 = vadd.f32 %v2640, %v3670
    %v3853 = vadd.f32 %v2645, %v3675
    %v3854 = vadd.f32 %v2650, %v3680
    %v3855 = vadd.f32 %v2655, %v3685
    %v3856 = vadd.f32 %v2660, %v3690
    %v3857 = vadd.f32 %v2665, %v3695
    %v3858 = vadd.f32 %v2670, %v3700
    %v3859 = vadd.f32 %v2675, %v3705
    %v3860 = vadd.f32 %v2680, %v3710
    %v3861 = vadd.f32 %v2685, %v3715
    %v3862 = vadd.f32 %v2690, %v3720
    %v3863 = vadd.f32 %v2695, %v3725
    %v3864 = vadd.f32 %v2700, %v3730
    %v3865 = vadd.f32 %v2705, %v3735
    %v3866 = vadd.f32 %v2710, %v3740
    %v3867 = vadd.f32 %v2715, %v3745
    %v3868 = vld [vmem:[%s2] sm:$0x1]
    %v3870 = vlaneseq
    %v3871 = vshrl.u32 %v3870, 7
    %v3872 = vsub.s32 0, %v3871
    %v3873 = vrot.slane %v3868, %v3872
    %v3875 = vadd.f32 %v3748, %v3873
    %v3876 = vadd.f32 %v3749, %v3873
    %v3877 = vadd.f32 %v3750, %v3873
    %v3878 = vadd.f32 %v3751, %v3873
    %v3879 = vadd.f32 %v3752, %v3873
    %v3880 = vadd.f32 %v3753, %v3873
    %v3881 = vadd.f32 %v3754, %v3873
    %v3882 = vadd.f32 %v3755, %v3873
    %v3883 = vadd.f32 %v3756, %v3873
    %v3884 = vadd.f32 %v3757, %v3873
    %v3885 = vadd.f32 %v3758, %v3873
    %v3886 = vadd.f32 %v3759, %v3873
    %v3887 = vadd.f32 %v3760, %v3873
    %v3888 = vadd.f32 %v3761, %v3873
    %v3889 = vadd.f32 %v3762, %v3873
    %v3890 = vadd.f32 %v3763, %v3873
    %v3891 = vadd.f32 %v3764, %v3873
    %v3892 = vadd.f32 %v3765, %v3873
    %v3893 = vadd.f32 %v3766, %v3873
    %v3894 = vadd.f32 %v3767, %v3873
    %v3895 = vadd.f32 %v3768, %v3873
    %v3896 = vadd.f32 %v3769, %v3873
    %v3897 = vadd.f32 %v3770, %v3873
    %v3898 = vadd.f32 %v3771, %v3873
    %v3899 = vadd.f32 %v3772, %v3873
    %v3900 = vadd.f32 %v3773, %v3873
    %v3901 = vadd.f32 %v3774, %v3873
    %v3902 = vadd.f32 %v3775, %v3873
    %v3903 = vadd.f32 %v3776, %v3873
    %v3904 = vadd.f32 %v3777, %v3873
    %v3905 = vadd.f32 %v3778, %v3873
    %v3906 = vadd.f32 %v3779, %v3873
    %v3907 = vadd.f32 %v3780, %v3873
    %v3908 = vadd.f32 %v3781, %v3873
    %v3909 = vadd.f32 %v3782, %v3873
    %v3910 = vadd.f32 %v3783, %v3873
    %v3911 = vadd.f32 %v3784, %v3873
    %v3912 = vadd.f32 %v3785, %v3873
    %v3913 = vadd.f32 %v3786, %v3873
    %v3914 = vadd.f32 %v3787, %v3873
    %v3915 = vadd.f32 %v3788, %v3873
    %v3916 = vadd.f32 %v3789, %v3873
    %v3917 = vadd.f32 %v3790, %v3873
    %v3918 = vadd.f32 %v3791, %v3873
    %v3919 = vadd.f32 %v3792, %v3873
    %v3920 = vadd.f32 %v3793, %v3873
    %v3921 = vadd.f32 %v3794, %v3873
    %v3922 = vadd.f32 %v3795, %v3873
    %v3923 = vadd.f32 %v3796, %v3873
    %v3924 = vadd.f32 %v3797, %v3873
    %v3925 = vadd.f32 %v3798, %v3873
    %v3926 = vadd.f32 %v3799, %v3873
    %v3927 = vadd.f32 %v3800, %v3873
    %v3928 = vadd.f32 %v3801, %v3873
    %v3929 = vadd.f32 %v3802, %v3873
    %v3930 = vadd.f32 %v3803, %v3873
    %v3931 = vadd.f32 %v3804, %v3873
    %v3932 = vadd.f32 %v3805, %v3873
    %v3933 = vadd.f32 %v3806, %v3873
    %v3934 = vadd.f32 %v3807, %v3873
    %v3935 = vadd.f32 %v3808, %v3873
    %v3936 = vadd.f32 %v3809, %v3873
    %v3937 = vadd.f32 %v3810, %v3873
    %v3938 = vadd.f32 %v3811, %v3873
    %v3939 = vadd.f32 %v3812, %v3873
    %v3940 = vadd.f32 %v3813, %v3873
    %v3941 = vadd.f32 %v3814, %v3873
    %v3942 = vadd.f32 %v3815, %v3873
    %v3943 = vadd.f32 %v3816, %v3873
    %v3944 = vadd.f32 %v3817, %v3873
    %v3945 = vadd.f32 %v3818, %v3873
    %v3946 = vadd.f32 %v3819, %v3873
    %v3947 = vadd.f32 %v3820, %v3873
    %v3948 = vadd.f32 %v3821, %v3873
    %v3949 = vadd.f32 %v3822, %v3873
    %v3950 = vadd.f32 %v3823, %v3873
    %v3951 = vadd.f32 %v3824, %v3873
    %v3952 = vadd.f32 %v3825, %v3873
    %v3953 = vadd.f32 %v3826, %v3873
    %v3954 = vadd.f32 %v3827, %v3873
    %v3955 = vadd.f32 %v3828, %v3873
    %v3956 = vadd.f32 %v3829, %v3873
    %v3957 = vadd.f32 %v3830, %v3873
    %v3958 = vadd.f32 %v3831, %v3873
    %v3959 = vadd.f32 %v3832, %v3873
    %v3960 = vadd.f32 %v3833, %v3873
    %v3961 = vadd.f32 %v3834, %v3873
    %v3962 = vadd.f32 %v3835, %v3873
    %v3963 = vadd.f32 %v3836, %v3873
    %v3964 = vadd.f32 %v3837, %v3873
    %v3965 = vadd.f32 %v3838, %v3873
    %v3966 = vadd.f32 %v3839, %v3873
    %v3967 = vadd.f32 %v3840, %v3873
    %v3968 = vadd.f32 %v3841, %v3873
    %v3969 = vadd.f32 %v3842, %v3873
    %v3970 = vadd.f32 %v3843, %v3873
    %v3971 = vadd.f32 %v3844, %v3873
    %v3972 = vadd.f32 %v3845, %v3873
    %v3973 = vadd.f32 %v3846, %v3873
    %v3974 = vadd.f32 %v3847, %v3873
    %v3975 = vadd.f32 %v3848, %v3873
    %v3976 = vadd.f32 %v3849, %v3873
    %v3977 = vadd.f32 %v3850, %v3873
    %v3978 = vadd.f32 %v3851, %v3873
    %v3979 = vadd.f32 %v3852, %v3873
    %v3980 = vadd.f32 %v3853, %v3873
    %v3981 = vadd.f32 %v3854, %v3873
    %v3982 = vadd.f32 %v3855, %v3873
    %v3983 = vadd.f32 %v3856, %v3873
    %v3984 = vadd.f32 %v3857, %v3873
    %v3985 = vadd.f32 %v3858, %v3873
    %v3986 = vadd.f32 %v3859, %v3873
    %v3987 = vadd.f32 %v3860, %v3873
    %v3988 = vadd.f32 %v3861, %v3873
    %v3989 = vadd.f32 %v3862, %v3873
    %v3990 = vadd.f32 %v3863, %v3873
    %v3991 = vadd.f32 %v3864, %v3873
    %v3992 = vadd.f32 %v3865, %v3873
    %v3993 = vadd.f32 %v3866, %v3873
    %v3994 = vadd.f32 %v3867, %v3873
    %vm3995 = vcmask 261120
    %v3996 = vsel %vm3995, %v3875, 0.0
    %v3997 = vsel %vm3995, %v3876, 0.0
    %v3998 = vadd.f32 %v3996, %v3997
    %v3999 = vsel %vm3995, %v3877, 0.0
    %v4000 = vadd.f32 %v3998, %v3999
    %v4001 = vsel %vm3995, %v3878, 0.0
    %v4002 = vadd.f32 %v4000, %v4001
    %v4003 = vsel %vm3995, %v3879, 0.0
    %v4004 = vadd.f32 %v4002, %v4003
    %v4005 = vsel %vm3995, %v3880, 0.0
    %v4006 = vadd.f32 %v4004, %v4005
    %v4007 = vsel %vm3995, %v3881, 0.0
    %v4008 = vadd.f32 %v4006, %v4007
    %v4009 = vsel %vm3995, %v3882, 0.0
    %v4010 = vadd.f32 %v4008, %v4009
    %v4011 = vsel %vm3995, %v3883, 0.0
    %v4012 = vadd.f32 %v4010, %v4011
    %v4013 = vsel %vm3995, %v3884, 0.0
    %v4014 = vadd.f32 %v4012, %v4013
    %v4015 = vsel %vm3995, %v3885, 0.0
    %v4016 = vadd.f32 %v4014, %v4015
    %v4017 = vsel %vm3995, %v3886, 0.0
    %v4018 = vadd.f32 %v4016, %v4017
    %v4019 = vsel %vm3995, %v3887, 0.0
    %v4020 = vadd.f32 %v4018, %v4019
    %v4021 = vsel %vm3995, %v3888, 0.0
    %v4022 = vadd.f32 %v4020, %v4021
    %v4023 = vsel %vm3995, %v3889, 0.0
    %v4024 = vadd.f32 %v4022, %v4023
    %v4025 = vsel %vm3995, %v3890, 0.0
    %v4026 = vadd.f32 %v4024, %v4025
    %v4027 = vsel %vm3995, %v3891, 0.0
    %v4028 = vadd.f32 %v4026, %v4027
    %v4029 = vsel %vm3995, %v3892, 0.0
    %v4030 = vadd.f32 %v4028, %v4029
    %v4031 = vsel %vm3995, %v3893, 0.0
    %v4032 = vadd.f32 %v4030, %v4031
    %v4033 = vsel %vm3995, %v3894, 0.0
    %v4034 = vadd.f32 %v4032, %v4033
    %v4035 = vsel %vm3995, %v3895, 0.0
    %v4036 = vadd.f32 %v4034, %v4035
    %v4037 = vsel %vm3995, %v3896, 0.0
    %v4038 = vadd.f32 %v4036, %v4037
    %v4039 = vsel %vm3995, %v3897, 0.0
    %v4040 = vadd.f32 %v4038, %v4039
    %v4041 = vsel %vm3995, %v3898, 0.0
    %v4042 = vadd.f32 %v4040, %v4041
    %v4043 = vsel %vm3995, %v3899, 0.0
    %v4044 = vadd.f32 %v4042, %v4043
    %v4045 = vsel %vm3995, %v3900, 0.0
    %v4046 = vadd.f32 %v4044, %v4045
    %v4047 = vsel %vm3995, %v3901, 0.0
    %v4048 = vadd.f32 %v4046, %v4047
    %v4049 = vsel %vm3995, %v3902, 0.0
    %v4050 = vadd.f32 %v4048, %v4049
    %v4051 = vsel %vm3995, %v3903, 0.0
    %v4052 = vadd.f32 %v4050, %v4051
    %v4053 = vsel %vm3995, %v3904, 0.0
    %v4054 = vadd.f32 %v4052, %v4053
    %v4055 = vsel %vm3995, %v3905, 0.0
    %v4056 = vadd.f32 %v4054, %v4055
    %v4057 = vsel %vm3995, %v3906, 0.0
    %v4058 = vadd.f32 %v4056, %v4057
    %v4059 = vsel %vm3995, %v3907, 0.0
    %v4060 = vadd.f32 %v4058, %v4059
    %v4061 = vsel %vm3995, %v3908, 0.0
    %v4062 = vadd.f32 %v4060, %v4061
    %v4063 = vsel %vm3995, %v3909, 0.0
    %v4064 = vadd.f32 %v4062, %v4063
    %v4065 = vsel %vm3995, %v3910, 0.0
    %v4066 = vadd.f32 %v4064, %v4065
    %v4067 = vsel %vm3995, %v3911, 0.0
    %v4068 = vadd.f32 %v4066, %v4067
    %v4069 = vsel %vm3995, %v3912, 0.0
    %v4070 = vadd.f32 %v4068, %v4069
    %v4071 = vsel %vm3995, %v3913, 0.0
    %v4072 = vadd.f32 %v4070, %v4071
    %v4073 = vsel %vm3995, %v3914, 0.0
    %v4074 = vadd.f32 %v4072, %v4073
    %v4075 = vsel %vm3995, %v3915, 0.0
    %v4076 = vadd.f32 %v4074, %v4075
    %v4077 = vsel %vm3995, %v3916, 0.0
    %v4078 = vadd.f32 %v4076, %v4077
    %v4079 = vsel %vm3995, %v3917, 0.0
    %v4080 = vadd.f32 %v4078, %v4079
    %v4081 = vsel %vm3995, %v3918, 0.0
    %v4082 = vadd.f32 %v4080, %v4081
    %v4083 = vsel %vm3995, %v3919, 0.0
    %v4084 = vadd.f32 %v4082, %v4083
    %v4085 = vsel %vm3995, %v3920, 0.0
    %v4086 = vadd.f32 %v4084, %v4085
    %v4087 = vsel %vm3995, %v3921, 0.0
    %v4088 = vadd.f32 %v4086, %v4087
    %v4089 = vsel %vm3995, %v3922, 0.0
    %v4090 = vadd.f32 %v4088, %v4089
    %v4091 = vsel %vm3995, %v3923, 0.0
    %v4092 = vadd.f32 %v4090, %v4091
    %v4093 = vsel %vm3995, %v3924, 0.0
    %v4094 = vadd.f32 %v4092, %v4093
    %v4095 = vsel %vm3995, %v3925, 0.0
    %v4096 = vadd.f32 %v4094, %v4095
    %v4097 = vsel %vm3995, %v3926, 0.0
    %v4098 = vadd.f32 %v4096, %v4097
    %v4099 = vsel %vm3995, %v3927, 0.0
    %v4100 = vadd.f32 %v4098, %v4099
    %v4101 = vsel %vm3995, %v3928, 0.0
    %v4102 = vadd.f32 %v4100, %v4101
    %v4103 = vsel %vm3995, %v3929, 0.0
    %v4104 = vadd.f32 %v4102, %v4103
    %v4105 = vsel %vm3995, %v3930, 0.0
    %v4106 = vadd.f32 %v4104, %v4105
    %v4107 = vsel %vm3995, %v3931, 0.0
    %v4108 = vadd.f32 %v4106, %v4107
    %v4109 = vsel %vm3995, %v3932, 0.0
    %v4110 = vadd.f32 %v4108, %v4109
    %v4111 = vsel %vm3995, %v3933, 0.0
    %v4112 = vadd.f32 %v4110, %v4111
    %v4113 = vsel %vm3995, %v3934, 0.0
    %v4114 = vadd.f32 %v4112, %v4113
    %v4115 = vsel %vm3995, %v3935, 0.0
    %v4116 = vadd.f32 %v4114, %v4115
    %v4117 = vsel %vm3995, %v3936, 0.0
    %v4118 = vadd.f32 %v4116, %v4117
    %v4119 = vsel %vm3995, %v3937, 0.0
    %v4120 = vadd.f32 %v4118, %v4119
    %v4121 = vsel %vm3995, %v3938, 0.0
    %v4122 = vadd.f32 %v4120, %v4121
    %v4123 = vsel %vm3995, %v3939, 0.0
    %v4124 = vadd.f32 %v4122, %v4123
    %v4125 = vsel %vm3995, %v3940, 0.0
    %v4126 = vadd.f32 %v4124, %v4125
    %v4127 = vsel %vm3995, %v3941, 0.0
    %v4128 = vadd.f32 %v4126, %v4127
    %v4129 = vsel %vm3995, %v3942, 0.0
    %v4130 = vadd.f32 %v4128, %v4129
    %v4131 = vsel %vm3995, %v3943, 0.0
    %v4132 = vadd.f32 %v4130, %v4131
    %v4133 = vsel %vm3995, %v3944, 0.0
    %v4134 = vadd.f32 %v4132, %v4133
    %v4135 = vsel %vm3995, %v3945, 0.0
    %v4136 = vadd.f32 %v4134, %v4135
    %v4137 = vsel %vm3995, %v3946, 0.0
    %v4138 = vadd.f32 %v4136, %v4137
    %v4139 = vsel %vm3995, %v3947, 0.0
    %v4140 = vadd.f32 %v4138, %v4139
    %v4141 = vsel %vm3995, %v3948, 0.0
    %v4142 = vadd.f32 %v4140, %v4141
    %v4143 = vsel %vm3995, %v3949, 0.0
    %v4144 = vadd.f32 %v4142, %v4143
    %v4145 = vsel %vm3995, %v3950, 0.0
    %v4146 = vadd.f32 %v4144, %v4145
    %v4147 = vsel %vm3995, %v3951, 0.0
    %v4148 = vadd.f32 %v4146, %v4147
    %v4149 = vsel %vm3995, %v3952, 0.0
    %v4150 = vadd.f32 %v4148, %v4149
    %v4151 = vsel %vm3995, %v3953, 0.0
    %v4152 = vadd.f32 %v4150, %v4151
    %v4153 = vsel %vm3995, %v3954, 0.0
    %v4154 = vadd.f32 %v4152, %v4153
    %v4155 = vsel %vm3995, %v3955, 0.0
    %v4156 = vadd.f32 %v4154, %v4155
    %v4157 = vsel %vm3995, %v3956, 0.0
    %v4158 = vadd.f32 %v4156, %v4157
    %v4159 = vsel %vm3995, %v3957, 0.0
    %v4160 = vadd.f32 %v4158, %v4159
    %v4161 = vsel %vm3995, %v3958, 0.0
    %v4162 = vadd.f32 %v4160, %v4161
    %v4163 = vsel %vm3995, %v3959, 0.0
    %v4164 = vadd.f32 %v4162, %v4163
    %v4165 = vsel %vm3995, %v3960, 0.0
    %v4166 = vadd.f32 %v4164, %v4165
    %v4167 = vsel %vm3995, %v3961, 0.0
    %v4168 = vadd.f32 %v4166, %v4167
    %v4169 = vsel %vm3995, %v3962, 0.0
    %v4170 = vadd.f32 %v4168, %v4169
    %v4171 = vsel %vm3995, %v3963, 0.0
    %v4172 = vadd.f32 %v4170, %v4171
    %v4173 = vsel %vm3995, %v3964, 0.0
    %v4174 = vadd.f32 %v4172, %v4173
    %v4175 = vsel %vm3995, %v3965, 0.0
    %v4176 = vadd.f32 %v4174, %v4175
    %v4177 = vsel %vm3995, %v3966, 0.0
    %v4178 = vadd.f32 %v4176, %v4177
    %v4179 = vsel %vm3995, %v3967, 0.0
    %v4180 = vadd.f32 %v4178, %v4179
    %v4181 = vsel %vm3995, %v3968, 0.0
    %v4182 = vadd.f32 %v4180, %v4181
    %v4183 = vsel %vm3995, %v3969, 0.0
    %v4184 = vadd.f32 %v4182, %v4183
    %v4185 = vsel %vm3995, %v3970, 0.0
    %v4186 = vadd.f32 %v4184, %v4185
    %v4187 = vsel %vm3995, %v3971, 0.0
    %v4188 = vadd.f32 %v4186, %v4187
    %v4189 = vsel %vm3995, %v3972, 0.0
    %v4190 = vadd.f32 %v4188, %v4189
    %v4191 = vsel %vm3995, %v3973, 0.0
    %v4192 = vadd.f32 %v4190, %v4191
    %v4193 = vsel %vm3995, %v3974, 0.0
    %v4194 = vadd.f32 %v4192, %v4193
    %v4195 = vsel %vm3995, %v3975, 0.0
    %v4196 = vadd.f32 %v4194, %v4195
    %v4197 = vsel %vm3995, %v3976, 0.0
    %v4198 = vadd.f32 %v4196, %v4197
    %v4199 = vsel %vm3995, %v3977, 0.0
    %v4200 = vadd.f32 %v4198, %v4199
    %v4201 = vsel %vm3995, %v3978, 0.0
    %v4202 = vadd.f32 %v4200, %v4201
    %v4203 = vsel %vm3995, %v3979, 0.0
    %v4204 = vadd.f32 %v4202, %v4203
    %v4205 = vsel %vm3995, %v3980, 0.0
    %v4206 = vadd.f32 %v4204, %v4205
    %v4207 = vsel %vm3995, %v3981, 0.0
    %v4208 = vadd.f32 %v4206, %v4207
    %v4209 = vsel %vm3995, %v3982, 0.0
    %v4210 = vadd.f32 %v4208, %v4209
    %v4211 = vsel %vm3995, %v3983, 0.0
    %v4212 = vadd.f32 %v4210, %v4211
    %v4213 = vsel %vm3995, %v3984, 0.0
    %v4214 = vadd.f32 %v4212, %v4213
    %v4215 = vsel %vm3995, %v3985, 0.0
    %v4216 = vadd.f32 %v4214, %v4215
    %v4217 = vsel %vm3995, %v3986, 0.0
    %v4218 = vadd.f32 %v4216, %v4217
    %v4219 = vsel %vm3995, %v3987, 0.0
    %v4220 = vadd.f32 %v4218, %v4219
    %v4221 = vsel %vm3995, %v3988, 0.0
    %v4222 = vadd.f32 %v4220, %v4221
    %v4223 = vsel %vm3995, %v3989, 0.0
    %v4224 = vadd.f32 %v4222, %v4223
    %v4225 = vsel %vm3995, %v3990, 0.0
    %v4226 = vadd.f32 %v4224, %v4225
    %v4227 = vsel %vm3995, %v3991, 0.0
    %v4228 = vadd.f32 %v4226, %v4227
    %v4229 = vsel %vm3995, %v3992, 0.0
    %v4230 = vadd.f32 %v4228, %v4229
    %v4231 = vsel %vm3995, %v3993, 0.0
    %v4232 = vadd.f32 %v4230, %v4231
    %v4233 = vsel %vm3995, %v3994, 0.0
    %v4234 = vadd.f32 %v4232, %v4233
    %v4235 = vrot.slane %v4234, 4
    %v4236 = vadd.f32 %v4234, %v4235
    %v4237 = vrot.slane %v4236, 2
    %v4238 = vadd.f32 %v4236, %v4237
    %v4239 = vrot.slane %v4238, 1
    %v4240 = vadd.f32 %v4238, %v4239
    %v4241 = vmul.f32 %v4240, 0.0010416667
    %v4242 = vmul.f32 %v3875, %v3875
    %v4243 = vmul.f32 %v3876, %v3876
    %v4244 = vmul.f32 %v3877, %v3877
    %v4245 = vmul.f32 %v3878, %v3878
    %v4246 = vmul.f32 %v3879, %v3879
    %v4247 = vmul.f32 %v3880, %v3880
    %v4248 = vmul.f32 %v3881, %v3881
    %v4249 = vmul.f32 %v3882, %v3882
    %v4250 = vmul.f32 %v3883, %v3883
    %v4251 = vmul.f32 %v3884, %v3884
    %v4252 = vmul.f32 %v3885, %v3885
    %v4253 = vmul.f32 %v3886, %v3886
    %v4254 = vmul.f32 %v3887, %v3887
    %v4255 = vmul.f32 %v3888, %v3888
    %v4256 = vmul.f32 %v3889, %v3889
    %v4257 = vmul.f32 %v3890, %v3890
    %v4258 = vmul.f32 %v3891, %v3891
    %v4259 = vmul.f32 %v3892, %v3892
    %v4260 = vmul.f32 %v3893, %v3893
    %v4261 = vmul.f32 %v3894, %v3894
    %v4262 = vmul.f32 %v3895, %v3895
    %v4263 = vmul.f32 %v3896, %v3896
    %v4264 = vmul.f32 %v3897, %v3897
    %v4265 = vmul.f32 %v3898, %v3898
    %v4266 = vmul.f32 %v3899, %v3899
    %v4267 = vmul.f32 %v3900, %v3900
    %v4268 = vmul.f32 %v3901, %v3901
    %v4269 = vmul.f32 %v3902, %v3902
    %v4270 = vmul.f32 %v3903, %v3903
    %v4271 = vmul.f32 %v3904, %v3904
    %v4272 = vmul.f32 %v3905, %v3905
    %v4273 = vmul.f32 %v3906, %v3906
    %v4274 = vmul.f32 %v3907, %v3907
    %v4275 = vmul.f32 %v3908, %v3908
    %v4276 = vmul.f32 %v3909, %v3909
    %v4277 = vmul.f32 %v3910, %v3910
    %v4278 = vmul.f32 %v3911, %v3911
    %v4279 = vmul.f32 %v3912, %v3912
    %v4280 = vmul.f32 %v3913, %v3913
    %v4281 = vmul.f32 %v3914, %v3914
    %v4282 = vmul.f32 %v3915, %v3915
    %v4283 = vmul.f32 %v3916, %v3916
    %v4284 = vmul.f32 %v3917, %v3917
    %v4285 = vmul.f32 %v3918, %v3918
    %v4286 = vmul.f32 %v3919, %v3919
    %v4287 = vmul.f32 %v3920, %v3920
    %v4288 = vmul.f32 %v3921, %v3921
    %v4289 = vmul.f32 %v3922, %v3922
    %v4290 = vmul.f32 %v3923, %v3923
    %v4291 = vmul.f32 %v3924, %v3924
    %v4292 = vmul.f32 %v3925, %v3925
    %v4293 = vmul.f32 %v3926, %v3926
    %v4294 = vmul.f32 %v3927, %v3927
    %v4295 = vmul.f32 %v3928, %v3928
    %v4296 = vmul.f32 %v3929, %v3929
    %v4297 = vmul.f32 %v3930, %v3930
    %v4298 = vmul.f32 %v3931, %v3931
    %v4299 = vmul.f32 %v3932, %v3932
    %v4300 = vmul.f32 %v3933, %v3933
    %v4301 = vmul.f32 %v3934, %v3934
    %v4302 = vmul.f32 %v3935, %v3935
    %v4303 = vmul.f32 %v3936, %v3936
    %v4304 = vmul.f32 %v3937, %v3937
    %v4305 = vmul.f32 %v3938, %v3938
    %v4306 = vmul.f32 %v3939, %v3939
    %v4307 = vmul.f32 %v3940, %v3940
    %v4308 = vmul.f32 %v3941, %v3941
    %v4309 = vmul.f32 %v3942, %v3942
    %v4310 = vmul.f32 %v3943, %v3943
    %v4311 = vmul.f32 %v3944, %v3944
    %v4312 = vmul.f32 %v3945, %v3945
    %v4313 = vmul.f32 %v3946, %v3946
    %v4314 = vmul.f32 %v3947, %v3947
    %v4315 = vmul.f32 %v3948, %v3948
    %v4316 = vmul.f32 %v3949, %v3949
    %v4317 = vmul.f32 %v3950, %v3950
    %v4318 = vmul.f32 %v3951, %v3951
    %v4319 = vmul.f32 %v3952, %v3952
    %v4320 = vmul.f32 %v3953, %v3953
    %v4321 = vmul.f32 %v3954, %v3954
    %v4322 = vmul.f32 %v3955, %v3955
    %v4323 = vmul.f32 %v3956, %v3956
    %v4324 = vmul.f32 %v3957, %v3957
    %v4325 = vmul.f32 %v3958, %v3958
    %v4326 = vmul.f32 %v3959, %v3959
    %v4327 = vmul.f32 %v3960, %v3960
    %v4328 = vmul.f32 %v3961, %v3961
    %v4329 = vmul.f32 %v3962, %v3962
    %v4330 = vmul.f32 %v3963, %v3963
    %v4331 = vmul.f32 %v3964, %v3964
    %v4332 = vmul.f32 %v3965, %v3965
    %v4333 = vmul.f32 %v3966, %v3966
    %v4334 = vmul.f32 %v3967, %v3967
    %v4335 = vmul.f32 %v3968, %v3968
    %v4336 = vmul.f32 %v3969, %v3969
    %v4337 = vmul.f32 %v3970, %v3970
    %v4338 = vmul.f32 %v3971, %v3971
    %v4339 = vmul.f32 %v3972, %v3972
    %v4340 = vmul.f32 %v3973, %v3973
    %v4341 = vmul.f32 %v3974, %v3974
    %v4342 = vmul.f32 %v3975, %v3975
    %v4343 = vmul.f32 %v3976, %v3976
    %v4344 = vmul.f32 %v3977, %v3977
    %v4345 = vmul.f32 %v3978, %v3978
    %v4346 = vmul.f32 %v3979, %v3979
    %v4347 = vmul.f32 %v3980, %v3980
    %v4348 = vmul.f32 %v3981, %v3981
    %v4349 = vmul.f32 %v3982, %v3982
    %v4350 = vmul.f32 %v3983, %v3983
    %v4351 = vmul.f32 %v3984, %v3984
    %v4352 = vmul.f32 %v3985, %v3985
    %v4353 = vmul.f32 %v3986, %v3986
    %v4354 = vmul.f32 %v3987, %v3987
    %v4355 = vmul.f32 %v3988, %v3988
    %v4356 = vmul.f32 %v3989, %v3989
    %v4357 = vmul.f32 %v3990, %v3990
    %v4358 = vmul.f32 %v3991, %v3991
    %v4359 = vmul.f32 %v3992, %v3992
    %v4360 = vmul.f32 %v3993, %v3993
    %v4361 = vmul.f32 %v3994, %v3994
    %v4362 = vsel %vm3995, %v4242, 0.0
    %v4363 = vsel %vm3995, %v4243, 0.0
    %v4364 = vadd.f32 %v4362, %v4363
    %v4365 = vsel %vm3995, %v4244, 0.0
    %v4366 = vadd.f32 %v4364, %v4365
    %v4367 = vsel %vm3995, %v4245, 0.0
    %v4368 = vadd.f32 %v4366, %v4367
    %v4369 = vsel %vm3995, %v4246, 0.0
    %v4370 = vadd.f32 %v4368, %v4369
    %v4371 = vsel %vm3995, %v4247, 0.0
    %v4372 = vadd.f32 %v4370, %v4371
    %v4373 = vsel %vm3995, %v4248, 0.0
    %v4374 = vadd.f32 %v4372, %v4373
    %v4375 = vsel %vm3995, %v4249, 0.0
    %v4376 = vadd.f32 %v4374, %v4375
    %v4377 = vsel %vm3995, %v4250, 0.0
    %v4378 = vadd.f32 %v4376, %v4377
    %v4379 = vsel %vm3995, %v4251, 0.0
    %v4380 = vadd.f32 %v4378, %v4379
    %v4381 = vsel %vm3995, %v4252, 0.0
    %v4382 = vadd.f32 %v4380, %v4381
    %v4383 = vsel %vm3995, %v4253, 0.0
    %v4384 = vadd.f32 %v4382, %v4383
    %v4385 = vsel %vm3995, %v4254, 0.0
    %v4386 = vadd.f32 %v4384, %v4385
    %v4387 = vsel %vm3995, %v4255, 0.0
    %v4388 = vadd.f32 %v4386, %v4387
    %v4389 = vsel %vm3995, %v4256, 0.0
    %v4390 = vadd.f32 %v4388, %v4389
    %v4391 = vsel %vm3995, %v4257, 0.0
    %v4392 = vadd.f32 %v4390, %v4391
    %v4393 = vsel %vm3995, %v4258, 0.0
    %v4394 = vadd.f32 %v4392, %v4393
    %v4395 = vsel %vm3995, %v4259, 0.0
    %v4396 = vadd.f32 %v4394, %v4395
    %v4397 = vsel %vm3995, %v4260, 0.0
    %v4398 = vadd.f32 %v4396, %v4397
    %v4399 = vsel %vm3995, %v4261, 0.0
    %v4400 = vadd.f32 %v4398, %v4399
    %v4401 = vsel %vm3995, %v4262, 0.0
    %v4402 = vadd.f32 %v4400, %v4401
    %v4403 = vsel %vm3995, %v4263, 0.0
    %v4404 = vadd.f32 %v4402, %v4403
    %v4405 = vsel %vm3995, %v4264, 0.0
    %v4406 = vadd.f32 %v4404, %v4405
    %v4407 = vsel %vm3995, %v4265, 0.0
    %v4408 = vadd.f32 %v4406, %v4407
    %v4409 = vsel %vm3995, %v4266, 0.0
    %v4410 = vadd.f32 %v4408, %v4409
    %v4411 = vsel %vm3995, %v4267, 0.0
    %v4412 = vadd.f32 %v4410, %v4411
    %v4413 = vsel %vm3995, %v4268, 0.0
    %v4414 = vadd.f32 %v4412, %v4413
    %v4415 = vsel %vm3995, %v4269, 0.0
    %v4416 = vadd.f32 %v4414, %v4415
    %v4417 = vsel %vm3995, %v4270, 0.0
    %v4418 = vadd.f32 %v4416, %v4417
    %v4419 = vsel %vm3995, %v4271, 0.0
    %v4420 = vadd.f32 %v4418, %v4419
    %v4421 = vsel %vm3995, %v4272, 0.0
    %v4422 = vadd.f32 %v4420, %v4421
    %v4423 = vsel %vm3995, %v4273, 0.0
    %v4424 = vadd.f32 %v4422, %v4423
    %v4425 = vsel %vm3995, %v4274, 0.0
    %v4426 = vadd.f32 %v4424, %v4425
    %v4427 = vsel %vm3995, %v4275, 0.0
    %v4428 = vadd.f32 %v4426, %v4427
    %v4429 = vsel %vm3995, %v4276, 0.0
    %v4430 = vadd.f32 %v4428, %v4429
    %v4431 = vsel %vm3995, %v4277, 0.0
    %v4432 = vadd.f32 %v4430, %v4431
    %v4433 = vsel %vm3995, %v4278, 0.0
    %v4434 = vadd.f32 %v4432, %v4433
    %v4435 = vsel %vm3995, %v4279, 0.0
    %v4436 = vadd.f32 %v4434, %v4435
    %v4437 = vsel %vm3995, %v4280, 0.0
    %v4438 = vadd.f32 %v4436, %v4437
    %v4439 = vsel %vm3995, %v4281, 0.0
    %v4440 = vadd.f32 %v4438, %v4439
    %v4441 = vsel %vm3995, %v4282, 0.0
    %v4442 = vadd.f32 %v4440, %v4441
    %v4443 = vsel %vm3995, %v4283, 0.0
    %v4444 = vadd.f32 %v4442, %v4443
    %v4445 = vsel %vm3995, %v4284, 0.0
    %v4446 = vadd.f32 %v4444, %v4445
    %v4447 = vsel %vm3995, %v4285, 0.0
    %v4448 = vadd.f32 %v4446, %v4447
    %v4449 = vsel %vm3995, %v4286, 0.0
    %v4450 = vadd.f32 %v4448, %v4449
    %v4451 = vsel %vm3995, %v4287, 0.0
    %v4452 = vadd.f32 %v4450, %v4451
    %v4453 = vsel %vm3995, %v4288, 0.0
    %v4454 = vadd.f32 %v4452, %v4453
    %v4455 = vsel %vm3995, %v4289, 0.0
    %v4456 = vadd.f32 %v4454, %v4455
    %v4457 = vsel %vm3995, %v4290, 0.0
    %v4458 = vadd.f32 %v4456, %v4457
    %v4459 = vsel %vm3995, %v4291, 0.0
    %v4460 = vadd.f32 %v4458, %v4459
    %v4461 = vsel %vm3995, %v4292, 0.0
    %v4462 = vadd.f32 %v4460, %v4461
    %v4463 = vsel %vm3995, %v4293, 0.0
    %v4464 = vadd.f32 %v4462, %v4463
    %v4465 = vsel %vm3995, %v4294, 0.0
    %v4466 = vadd.f32 %v4464, %v4465
    %v4467 = vsel %vm3995, %v4295, 0.0
    %v4468 = vadd.f32 %v4466, %v4467
    %v4469 = vsel %vm3995, %v4296, 0.0
    %v4470 = vadd.f32 %v4468, %v4469
    %v4471 = vsel %vm3995, %v4297, 0.0
    %v4472 = vadd.f32 %v4470, %v4471
    %v4473 = vsel %vm3995, %v4298, 0.0
    %v4474 = vadd.f32 %v4472, %v4473
    %v4475 = vsel %vm3995, %v4299, 0.0
    %v4476 = vadd.f32 %v4474, %v4475
    %v4477 = vsel %vm3995, %v4300, 0.0
    %v4478 = vadd.f32 %v4476, %v4477
    %v4479 = vsel %vm3995, %v4301, 0.0
    %v4480 = vadd.f32 %v4478, %v4479
    %v4481 = vsel %vm3995, %v4302, 0.0
    %v4482 = vadd.f32 %v4480, %v4481
    %v4483 = vsel %vm3995, %v4303, 0.0
    %v4484 = vadd.f32 %v4482, %v4483
    %v4485 = vsel %vm3995, %v4304, 0.0
    %v4486 = vadd.f32 %v4484, %v4485
    %v4487 = vsel %vm3995, %v4305, 0.0
    %v4488 = vadd.f32 %v4486, %v4487
    %v4489 = vsel %vm3995, %v4306, 0.0
    %v4490 = vadd.f32 %v4488, %v4489
    %v4491 = vsel %vm3995, %v4307, 0.0
    %v4492 = vadd.f32 %v4490, %v4491
    %v4493 = vsel %vm3995, %v4308, 0.0
    %v4494 = vadd.f32 %v4492, %v4493
    %v4495 = vsel %vm3995, %v4309, 0.0
    %v4496 = vadd.f32 %v4494, %v4495
    %v4497 = vsel %vm3995, %v4310, 0.0
    %v4498 = vadd.f32 %v4496, %v4497
    %v4499 = vsel %vm3995, %v4311, 0.0
    %v4500 = vadd.f32 %v4498, %v4499
    %v4501 = vsel %vm3995, %v4312, 0.0
    %v4502 = vadd.f32 %v4500, %v4501
    %v4503 = vsel %vm3995, %v4313, 0.0
    %v4504 = vadd.f32 %v4502, %v4503
    %v4505 = vsel %vm3995, %v4314, 0.0
    %v4506 = vadd.f32 %v4504, %v4505
    %v4507 = vsel %vm3995, %v4315, 0.0
    %v4508 = vadd.f32 %v4506, %v4507
    %v4509 = vsel %vm3995, %v4316, 0.0
    %v4510 = vadd.f32 %v4508, %v4509
    %v4511 = vsel %vm3995, %v4317, 0.0
    %v4512 = vadd.f32 %v4510, %v4511
    %v4513 = vsel %vm3995, %v4318, 0.0
    %v4514 = vadd.f32 %v4512, %v4513
    %v4515 = vsel %vm3995, %v4319, 0.0
    %v4516 = vadd.f32 %v4514, %v4515
    %v4517 = vsel %vm3995, %v4320, 0.0
    %v4518 = vadd.f32 %v4516, %v4517
    %v4519 = vsel %vm3995, %v4321, 0.0
    %v4520 = vadd.f32 %v4518, %v4519
    %v4521 = vsel %vm3995, %v4322, 0.0
    %v4522 = vadd.f32 %v4520, %v4521
    %v4523 = vsel %vm3995, %v4323, 0.0
    %v4524 = vadd.f32 %v4522, %v4523
    %v4525 = vsel %vm3995, %v4324, 0.0
    %v4526 = vadd.f32 %v4524, %v4525
    %v4527 = vsel %vm3995, %v4325, 0.0
    %v4528 = vadd.f32 %v4526, %v4527
    %v4529 = vsel %vm3995, %v4326, 0.0
    %v4530 = vadd.f32 %v4528, %v4529
    %v4531 = vsel %vm3995, %v4327, 0.0
    %v4532 = vadd.f32 %v4530, %v4531
    %v4533 = vsel %vm3995, %v4328, 0.0
    %v4534 = vadd.f32 %v4532, %v4533
    %v4535 = vsel %vm3995, %v4329, 0.0
    %v4536 = vadd.f32 %v4534, %v4535
    %v4537 = vsel %vm3995, %v4330, 0.0
    %v4538 = vadd.f32 %v4536, %v4537
    %v4539 = vsel %vm3995, %v4331, 0.0
    %v4540 = vadd.f32 %v4538, %v4539
    %v4541 = vsel %vm3995, %v4332, 0.0
    %v4542 = vadd.f32 %v4540, %v4541
    %v4543 = vsel %vm3995, %v4333, 0.0
    %v4544 = vadd.f32 %v4542, %v4543
    %v4545 = vsel %vm3995, %v4334, 0.0
    %v4546 = vadd.f32 %v4544, %v4545
    %v4547 = vsel %vm3995, %v4335, 0.0
    %v4548 = vadd.f32 %v4546, %v4547
    %v4549 = vsel %vm3995, %v4336, 0.0
    %v4550 = vadd.f32 %v4548, %v4549
    %v4551 = vsel %vm3995, %v4337, 0.0
    %v4552 = vadd.f32 %v4550, %v4551
    %v4553 = vsel %vm3995, %v4338, 0.0
    %v4554 = vadd.f32 %v4552, %v4553
    %v4555 = vsel %vm3995, %v4339, 0.0
    %v4556 = vadd.f32 %v4554, %v4555
    %v4557 = vsel %vm3995, %v4340, 0.0
    %v4558 = vadd.f32 %v4556, %v4557
    %v4559 = vsel %vm3995, %v4341, 0.0
    %v4560 = vadd.f32 %v4558, %v4559
    %v4561 = vsel %vm3995, %v4342, 0.0
    %v4562 = vadd.f32 %v4560, %v4561
    %v4563 = vsel %vm3995, %v4343, 0.0
    %v4564 = vadd.f32 %v4562, %v4563
    %v4565 = vsel %vm3995, %v4344, 0.0
    %v4566 = vadd.f32 %v4564, %v4565
    %v4567 = vsel %vm3995, %v4345, 0.0
    %v4568 = vadd.f32 %v4566, %v4567
    %v4569 = vsel %vm3995, %v4346, 0.0
    %v4570 = vadd.f32 %v4568, %v4569
    %v4571 = vsel %vm3995, %v4347, 0.0
    %v4572 = vadd.f32 %v4570, %v4571
    %v4573 = vsel %vm3995, %v4348, 0.0
    %v4574 = vadd.f32 %v4572, %v4573
    %v4575 = vsel %vm3995, %v4349, 0.0
    %v4576 = vadd.f32 %v4574, %v4575
    %v4577 = vsel %vm3995, %v4350, 0.0
    %v4578 = vadd.f32 %v4576, %v4577
    %v4579 = vsel %vm3995, %v4351, 0.0
    %v4580 = vadd.f32 %v4578, %v4579
    %v4581 = vsel %vm3995, %v4352, 0.0
    %v4582 = vadd.f32 %v4580, %v4581
    %v4583 = vsel %vm3995, %v4353, 0.0
    %v4584 = vadd.f32 %v4582, %v4583
    %v4585 = vsel %vm3995, %v4354, 0.0
    %v4586 = vadd.f32 %v4584, %v4585
    %v4587 = vsel %vm3995, %v4355, 0.0
    %v4588 = vadd.f32 %v4586, %v4587
    %v4589 = vsel %vm3995, %v4356, 0.0
    %v4590 = vadd.f32 %v4588, %v4589
    %v4591 = vsel %vm3995, %v4357, 0.0
    %v4592 = vadd.f32 %v4590, %v4591
    %v4593 = vsel %vm3995, %v4358, 0.0
    %v4594 = vadd.f32 %v4592, %v4593
    %v4595 = vsel %vm3995, %v4359, 0.0
    %v4596 = vadd.f32 %v4594, %v4595
    %v4597 = vsel %vm3995, %v4360, 0.0
    %v4598 = vadd.f32 %v4596, %v4597
    %v4599 = vsel %vm3995, %v4361, 0.0
    %v4600 = vadd.f32 %v4598, %v4599
    %v4601 = vrot.slane %v4600, 4
    %v4602 = vadd.f32 %v4600, %v4601
    %v4603 = vrot.slane %v4602, 2
    %v4604 = vadd.f32 %v4602, %v4603
    %v4605 = vrot.slane %v4604, 1
    %v4606 = vadd.f32 %v4604, %v4605
    %v4607 = vmul.f32 %v4606, 0.0010416667
    %v4608 = vmul.f32 %v4241, %v4241
    %v4609 = vsub.f32 %v4607, %v4608
    %v4610 = vadd.f32 %v4609, 1e-05
    %v4611 = vrsqrt.pop %v4610
    %v4612 = vmul.f32 %v4241, %v4611
    %v4613 = vstv %s295
    %v4614 = vmul.f32 %v4613, %v4611
    %v4615 = vmul.f32 %v4614, %v4611
    %v4616 = vstv %s296
    %v4617 = vmul.f32 %v4611, %v4616
    %s4618 = smul.f32 %s295, 2.0
    %v4619 = vstv %s4618
    %v4620 = vmul.f32 %v4619, %v4611
    %v4621 = vmul.f32 %v4620, %v4612
    %v4622 = vsub.f32 %v4617, %v4621
    %v4623 = vmul.f32 %v4613, %v4612
    %v4624 = vsub.f32 %v4623, %v4616
    %v4625 = vmul.f32 %v4624, %v4612
    %v4626 = vstv %s297
    %v4627 = vadd.f32 %v4625, %v4626
    %v4628 = vmul.f32 %v4615, %v3875
    %v4629 = vmul.f32 %v4615, %v3876
    %v4630 = vmul.f32 %v4615, %v3877
    %v4631 = vmul.f32 %v4615, %v3878
    %v4632 = vmul.f32 %v4615, %v3879
    %v4633 = vmul.f32 %v4615, %v3880
    %v4634 = vmul.f32 %v4615, %v3881
    %v4635 = vmul.f32 %v4615, %v3882
    %v4636 = vmul.f32 %v4615, %v3883
    %v4637 = vmul.f32 %v4615, %v3884
    %v4638 = vmul.f32 %v4615, %v3885
    %v4639 = vmul.f32 %v4615, %v3886
    %v4640 = vmul.f32 %v4615, %v3887
    %v4641 = vmul.f32 %v4615, %v3888
    %v4642 = vmul.f32 %v4615, %v3889
    %v4643 = vmul.f32 %v4615, %v3890
    %v4644 = vmul.f32 %v4615, %v3891
    %v4645 = vmul.f32 %v4615, %v3892
    %v4646 = vmul.f32 %v4615, %v3893
    %v4647 = vmul.f32 %v4615, %v3894
    %v4648 = vmul.f32 %v4615, %v3895
    %v4649 = vmul.f32 %v4615, %v3896
    %v4650 = vmul.f32 %v4615, %v3897
    %v4651 = vmul.f32 %v4615, %v3898
    %v4652 = vmul.f32 %v4615, %v3899
    %v4653 = vmul.f32 %v4615, %v3900
    %v4654 = vmul.f32 %v4615, %v3901
    %v4655 = vmul.f32 %v4615, %v3902
    %v4656 = vmul.f32 %v4615, %v3903
    %v4657 = vmul.f32 %v4615, %v3904
    %v4658 = vmul.f32 %v4615, %v3905
    %v4659 = vmul.f32 %v4615, %v3906
    %v4660 = vmul.f32 %v4615, %v3907
    %v4661 = vmul.f32 %v4615, %v3908
    %v4662 = vmul.f32 %v4615, %v3909
    %v4663 = vmul.f32 %v4615, %v3910
    %v4664 = vmul.f32 %v4615, %v3911
    %v4665 = vmul.f32 %v4615, %v3912
    %v4666 = vmul.f32 %v4615, %v3913
    %v4667 = vmul.f32 %v4615, %v3914
    %v4668 = vmul.f32 %v4615, %v3915
    %v4669 = vmul.f32 %v4615, %v3916
    %v4670 = vmul.f32 %v4615, %v3917
    %v4671 = vmul.f32 %v4615, %v3918
    %v4672 = vmul.f32 %v4615, %v3919
    %v4673 = vmul.f32 %v4615, %v3920
    %v4674 = vmul.f32 %v4615, %v3921
    %v4675 = vmul.f32 %v4615, %v3922
    %v4676 = vmul.f32 %v4615, %v3923
    %v4677 = vmul.f32 %v4615, %v3924
    %v4678 = vmul.f32 %v4615, %v3925
    %v4679 = vmul.f32 %v4615, %v3926
    %v4680 = vmul.f32 %v4615, %v3927
    %v4681 = vmul.f32 %v4615, %v3928
    %v4682 = vmul.f32 %v4615, %v3929
    %v4683 = vmul.f32 %v4615, %v3930
    %v4684 = vmul.f32 %v4615, %v3931
    %v4685 = vmul.f32 %v4615, %v3932
    %v4686 = vmul.f32 %v4615, %v3933
    %v4687 = vmul.f32 %v4615, %v3934
    %v4688 = vmul.f32 %v4615, %v3935
    %v4689 = vmul.f32 %v4615, %v3936
    %v4690 = vmul.f32 %v4615, %v3937
    %v4691 = vmul.f32 %v4615, %v3938
    %v4692 = vmul.f32 %v4615, %v3939
    %v4693 = vmul.f32 %v4615, %v3940
    %v4694 = vmul.f32 %v4615, %v3941
    %v4695 = vmul.f32 %v4615, %v3942
    %v4696 = vmul.f32 %v4615, %v3943
    %v4697 = vmul.f32 %v4615, %v3944
    %v4698 = vmul.f32 %v4615, %v3945
    %v4699 = vmul.f32 %v4615, %v3946
    %v4700 = vmul.f32 %v4615, %v3947
    %v4701 = vmul.f32 %v4615, %v3948
    %v4702 = vmul.f32 %v4615, %v3949
    %v4703 = vmul.f32 %v4615, %v3950
    %v4704 = vmul.f32 %v4615, %v3951
    %v4705 = vmul.f32 %v4615, %v3952
    %v4706 = vmul.f32 %v4615, %v3953
    %v4707 = vmul.f32 %v4615, %v3954
    %v4708 = vmul.f32 %v4615, %v3955
    %v4709 = vmul.f32 %v4615, %v3956
    %v4710 = vmul.f32 %v4615, %v3957
    %v4711 = vmul.f32 %v4615, %v3958
    %v4712 = vmul.f32 %v4615, %v3959
    %v4713 = vmul.f32 %v4615, %v3960
    %v4714 = vmul.f32 %v4615, %v3961
    %v4715 = vmul.f32 %v4615, %v3962
    %v4716 = vmul.f32 %v4615, %v3963
    %v4717 = vmul.f32 %v4615, %v3964
    %v4718 = vmul.f32 %v4615, %v3965
    %v4719 = vmul.f32 %v4615, %v3966
    %v4720 = vmul.f32 %v4615, %v3967
    %v4721 = vmul.f32 %v4615, %v3968
    %v4722 = vmul.f32 %v4615, %v3969
    %v4723 = vmul.f32 %v4615, %v3970
    %v4724 = vmul.f32 %v4615, %v3971
    %v4725 = vmul.f32 %v4615, %v3972
    %v4726 = vmul.f32 %v4615, %v3973
    %v4727 = vmul.f32 %v4615, %v3974
    %v4728 = vmul.f32 %v4615, %v3975
    %v4729 = vmul.f32 %v4615, %v3976
    %v4730 = vmul.f32 %v4615, %v3977
    %v4731 = vmul.f32 %v4615, %v3978
    %v4732 = vmul.f32 %v4615, %v3979
    %v4733 = vmul.f32 %v4615, %v3980
    %v4734 = vmul.f32 %v4615, %v3981
    %v4735 = vmul.f32 %v4615, %v3982
    %v4736 = vmul.f32 %v4615, %v3983
    %v4737 = vmul.f32 %v4615, %v3984
    %v4738 = vmul.f32 %v4615, %v3985
    %v4739 = vmul.f32 %v4615, %v3986
    %v4740 = vmul.f32 %v4615, %v3987
    %v4741 = vmul.f32 %v4615, %v3988
    %v4742 = vmul.f32 %v4615, %v3989
    %v4743 = vmul.f32 %v4615, %v3990
    %v4744 = vmul.f32 %v4615, %v3991
    %v4745 = vmul.f32 %v4615, %v3992
    %v4746 = vmul.f32 %v4615, %v3993
    %v4747 = vmul.f32 %v4615, %v3994
    %v4748 = vadd.f32 %v4628, %v4622
    %v4749 = vadd.f32 %v4629, %v4622
    %v4750 = vadd.f32 %v4630, %v4622
    %v4751 = vadd.f32 %v4631, %v4622
    %v4752 = vadd.f32 %v4632, %v4622
    %v4753 = vadd.f32 %v4633, %v4622
    %v4754 = vadd.f32 %v4634, %v4622
    %v4755 = vadd.f32 %v4635, %v4622
    %v4756 = vadd.f32 %v4636, %v4622
    %v4757 = vadd.f32 %v4637, %v4622
    %v4758 = vadd.f32 %v4638, %v4622
    %v4759 = vadd.f32 %v4639, %v4622
    %v4760 = vadd.f32 %v4640, %v4622
    %v4761 = vadd.f32 %v4641, %v4622
    %v4762 = vadd.f32 %v4642, %v4622
    %v4763 = vadd.f32 %v4643, %v4622
    %v4764 = vadd.f32 %v4644, %v4622
    %v4765 = vadd.f32 %v4645, %v4622
    %v4766 = vadd.f32 %v4646, %v4622
    %v4767 = vadd.f32 %v4647, %v4622
    %v4768 = vadd.f32 %v4648, %v4622
    %v4769 = vadd.f32 %v4649, %v4622
    %v4770 = vadd.f32 %v4650, %v4622
    %v4771 = vadd.f32 %v4651, %v4622
    %v4772 = vadd.f32 %v4652, %v4622
    %v4773 = vadd.f32 %v4653, %v4622
    %v4774 = vadd.f32 %v4654, %v4622
    %v4775 = vadd.f32 %v4655, %v4622
    %v4776 = vadd.f32 %v4656, %v4622
    %v4777 = vadd.f32 %v4657, %v4622
    %v4778 = vadd.f32 %v4658, %v4622
    %v4779 = vadd.f32 %v4659, %v4622
    %v4780 = vadd.f32 %v4660, %v4622
    %v4781 = vadd.f32 %v4661, %v4622
    %v4782 = vadd.f32 %v4662, %v4622
    %v4783 = vadd.f32 %v4663, %v4622
    %v4784 = vadd.f32 %v4664, %v4622
    %v4785 = vadd.f32 %v4665, %v4622
    %v4786 = vadd.f32 %v4666, %v4622
    %v4787 = vadd.f32 %v4667, %v4622
    %v4788 = vadd.f32 %v4668, %v4622
    %v4789 = vadd.f32 %v4669, %v4622
    %v4790 = vadd.f32 %v4670, %v4622
    %v4791 = vadd.f32 %v4671, %v4622
    %v4792 = vadd.f32 %v4672, %v4622
    %v4793 = vadd.f32 %v4673, %v4622
    %v4794 = vadd.f32 %v4674, %v4622
    %v4795 = vadd.f32 %v4675, %v4622
    %v4796 = vadd.f32 %v4676, %v4622
    %v4797 = vadd.f32 %v4677, %v4622
    %v4798 = vadd.f32 %v4678, %v4622
    %v4799 = vadd.f32 %v4679, %v4622
    %v4800 = vadd.f32 %v4680, %v4622
    %v4801 = vadd.f32 %v4681, %v4622
    %v4802 = vadd.f32 %v4682, %v4622
    %v4803 = vadd.f32 %v4683, %v4622
    %v4804 = vadd.f32 %v4684, %v4622
    %v4805 = vadd.f32 %v4685, %v4622
    %v4806 = vadd.f32 %v4686, %v4622
    %v4807 = vadd.f32 %v4687, %v4622
    %v4808 = vadd.f32 %v4688, %v4622
    %v4809 = vadd.f32 %v4689, %v4622
    %v4810 = vadd.f32 %v4690, %v4622
    %v4811 = vadd.f32 %v4691, %v4622
    %v4812 = vadd.f32 %v4692, %v4622
    %v4813 = vadd.f32 %v4693, %v4622
    %v4814 = vadd.f32 %v4694, %v4622
    %v4815 = vadd.f32 %v4695, %v4622
    %v4816 = vadd.f32 %v4696, %v4622
    %v4817 = vadd.f32 %v4697, %v4622
    %v4818 = vadd.f32 %v4698, %v4622
    %v4819 = vadd.f32 %v4699, %v4622
    %v4820 = vadd.f32 %v4700, %v4622
    %v4821 = vadd.f32 %v4701, %v4622
    %v4822 = vadd.f32 %v4702, %v4622
    %v4823 = vadd.f32 %v4703, %v4622
    %v4824 = vadd.f32 %v4704, %v4622
    %v4825 = vadd.f32 %v4705, %v4622
    %v4826 = vadd.f32 %v4706, %v4622
    %v4827 = vadd.f32 %v4707, %v4622
    %v4828 = vadd.f32 %v4708, %v4622
    %v4829 = vadd.f32 %v4709, %v4622
    %v4830 = vadd.f32 %v4710, %v4622
    %v4831 = vadd.f32 %v4711, %v4622
    %v4832 = vadd.f32 %v4712, %v4622
    %v4833 = vadd.f32 %v4713, %v4622
    %v4834 = vadd.f32 %v4714, %v4622
    %v4835 = vadd.f32 %v4715, %v4622
    %v4836 = vadd.f32 %v4716, %v4622
    %v4837 = vadd.f32 %v4717, %v4622
    %v4838 = vadd.f32 %v4718, %v4622
    %v4839 = vadd.f32 %v4719, %v4622
    %v4840 = vadd.f32 %v4720, %v4622
    %v4841 = vadd.f32 %v4721, %v4622
    %v4842 = vadd.f32 %v4722, %v4622
    %v4843 = vadd.f32 %v4723, %v4622
    %v4844 = vadd.f32 %v4724, %v4622
    %v4845 = vadd.f32 %v4725, %v4622
    %v4846 = vadd.f32 %v4726, %v4622
    %v4847 = vadd.f32 %v4727, %v4622
    %v4848 = vadd.f32 %v4728, %v4622
    %v4849 = vadd.f32 %v4729, %v4622
    %v4850 = vadd.f32 %v4730, %v4622
    %v4851 = vadd.f32 %v4731, %v4622
    %v4852 = vadd.f32 %v4732, %v4622
    %v4853 = vadd.f32 %v4733, %v4622
    %v4854 = vadd.f32 %v4734, %v4622
    %v4855 = vadd.f32 %v4735, %v4622
    %v4856 = vadd.f32 %v4736, %v4622
    %v4857 = vadd.f32 %v4737, %v4622
    %v4858 = vadd.f32 %v4738, %v4622
    %v4859 = vadd.f32 %v4739, %v4622
    %v4860 = vadd.f32 %v4740, %v4622
    %v4861 = vadd.f32 %v4741, %v4622
    %v4862 = vadd.f32 %v4742, %v4622
    %v4863 = vadd.f32 %v4743, %v4622
    %v4864 = vadd.f32 %v4744, %v4622
    %v4865 = vadd.f32 %v4745, %v4622
    %v4866 = vadd.f32 %v4746, %v4622
    %v4867 = vadd.f32 %v4747, %v4622
    %v4868 = vmul.f32 %v4748, %v3875
    %v4869 = vmul.f32 %v4749, %v3876
    %v4870 = vmul.f32 %v4750, %v3877
    %v4871 = vmul.f32 %v4751, %v3878
    %v4872 = vmul.f32 %v4752, %v3879
    %v4873 = vmul.f32 %v4753, %v3880
    %v4874 = vmul.f32 %v4754, %v3881
    %v4875 = vmul.f32 %v4755, %v3882
    %v4876 = vmul.f32 %v4756, %v3883
    %v4877 = vmul.f32 %v4757, %v3884
    %v4878 = vmul.f32 %v4758, %v3885
    %v4879 = vmul.f32 %v4759, %v3886
    %v4880 = vmul.f32 %v4760, %v3887
    %v4881 = vmul.f32 %v4761, %v3888
    %v4882 = vmul.f32 %v4762, %v3889
    %v4883 = vmul.f32 %v4763, %v3890
    %v4884 = vmul.f32 %v4764, %v3891
    %v4885 = vmul.f32 %v4765, %v3892
    %v4886 = vmul.f32 %v4766, %v3893
    %v4887 = vmul.f32 %v4767, %v3894
    %v4888 = vmul.f32 %v4768, %v3895
    %v4889 = vmul.f32 %v4769, %v3896
    %v4890 = vmul.f32 %v4770, %v3897
    %v4891 = vmul.f32 %v4771, %v3898
    %v4892 = vmul.f32 %v4772, %v3899
    %v4893 = vmul.f32 %v4773, %v3900
    %v4894 = vmul.f32 %v4774, %v3901
    %v4895 = vmul.f32 %v4775, %v3902
    %v4896 = vmul.f32 %v4776, %v3903
    %v4897 = vmul.f32 %v4777, %v3904
    %v4898 = vmul.f32 %v4778, %v3905
    %v4899 = vmul.f32 %v4779, %v3906
    %v4900 = vmul.f32 %v4780, %v3907
    %v4901 = vmul.f32 %v4781, %v3908
    %v4902 = vmul.f32 %v4782, %v3909
    %v4903 = vmul.f32 %v4783, %v3910
    %v4904 = vmul.f32 %v4784, %v3911
    %v4905 = vmul.f32 %v4785, %v3912
    %v4906 = vmul.f32 %v4786, %v3913
    %v4907 = vmul.f32 %v4787, %v3914
    %v4908 = vmul.f32 %v4788, %v3915
    %v4909 = vmul.f32 %v4789, %v3916
    %v4910 = vmul.f32 %v4790, %v3917
    %v4911 = vmul.f32 %v4791, %v3918
    %v4912 = vmul.f32 %v4792, %v3919
    %v4913 = vmul.f32 %v4793, %v3920
    %v4914 = vmul.f32 %v4794, %v3921
    %v4915 = vmul.f32 %v4795, %v3922
    %v4916 = vmul.f32 %v4796, %v3923
    %v4917 = vmul.f32 %v4797, %v3924
    %v4918 = vmul.f32 %v4798, %v3925
    %v4919 = vmul.f32 %v4799, %v3926
    %v4920 = vmul.f32 %v4800, %v3927
    %v4921 = vmul.f32 %v4801, %v3928
    %v4922 = vmul.f32 %v4802, %v3929
    %v4923 = vmul.f32 %v4803, %v3930
    %v4924 = vmul.f32 %v4804, %v3931
    %v4925 = vmul.f32 %v4805, %v3932
    %v4926 = vmul.f32 %v4806, %v3933
    %v4927 = vmul.f32 %v4807, %v3934
    %v4928 = vmul.f32 %v4808, %v3935
    %v4929 = vmul.f32 %v4809, %v3936
    %v4930 = vmul.f32 %v4810, %v3937
    %v4931 = vmul.f32 %v4811, %v3938
    %v4932 = vmul.f32 %v4812, %v3939
    %v4933 = vmul.f32 %v4813, %v3940
    %v4934 = vmul.f32 %v4814, %v3941
    %v4935 = vmul.f32 %v4815, %v3942
    %v4936 = vmul.f32 %v4816, %v3943
    %v4937 = vmul.f32 %v4817, %v3944
    %v4938 = vmul.f32 %v4818, %v3945
    %v4939 = vmul.f32 %v4819, %v3946
    %v4940 = vmul.f32 %v4820, %v3947
    %v4941 = vmul.f32 %v4821, %v3948
    %v4942 = vmul.f32 %v4822, %v3949
    %v4943 = vmul.f32 %v4823, %v3950
    %v4944 = vmul.f32 %v4824, %v3951
    %v4945 = vmul.f32 %v4825, %v3952
    %v4946 = vmul.f32 %v4826, %v3953
    %v4947 = vmul.f32 %v4827, %v3954
    %v4948 = vmul.f32 %v4828, %v3955
    %v4949 = vmul.f32 %v4829, %v3956
    %v4950 = vmul.f32 %v4830, %v3957
    %v4951 = vmul.f32 %v4831, %v3958
    %v4952 = vmul.f32 %v4832, %v3959
    %v4953 = vmul.f32 %v4833, %v3960
    %v4954 = vmul.f32 %v4834, %v3961
    %v4955 = vmul.f32 %v4835, %v3962
    %v4956 = vmul.f32 %v4836, %v3963
    %v4957 = vmul.f32 %v4837, %v3964
    %v4958 = vmul.f32 %v4838, %v3965
    %v4959 = vmul.f32 %v4839, %v3966
    %v4960 = vmul.f32 %v4840, %v3967
    %v4961 = vmul.f32 %v4841, %v3968
    %v4962 = vmul.f32 %v4842, %v3969
    %v4963 = vmul.f32 %v4843, %v3970
    %v4964 = vmul.f32 %v4844, %v3971
    %v4965 = vmul.f32 %v4845, %v3972
    %v4966 = vmul.f32 %v4846, %v3973
    %v4967 = vmul.f32 %v4847, %v3974
    %v4968 = vmul.f32 %v4848, %v3975
    %v4969 = vmul.f32 %v4849, %v3976
    %v4970 = vmul.f32 %v4850, %v3977
    %v4971 = vmul.f32 %v4851, %v3978
    %v4972 = vmul.f32 %v4852, %v3979
    %v4973 = vmul.f32 %v4853, %v3980
    %v4974 = vmul.f32 %v4854, %v3981
    %v4975 = vmul.f32 %v4855, %v3982
    %v4976 = vmul.f32 %v4856, %v3983
    %v4977 = vmul.f32 %v4857, %v3984
    %v4978 = vmul.f32 %v4858, %v3985
    %v4979 = vmul.f32 %v4859, %v3986
    %v4980 = vmul.f32 %v4860, %v3987
    %v4981 = vmul.f32 %v4861, %v3988
    %v4982 = vmul.f32 %v4862, %v3989
    %v4983 = vmul.f32 %v4863, %v3990
    %v4984 = vmul.f32 %v4864, %v3991
    %v4985 = vmul.f32 %v4865, %v3992
    %v4986 = vmul.f32 %v4866, %v3993
    %v4987 = vmul.f32 %v4867, %v3994
    %v4988 = vadd.f32 %v4868, %v4627
    %v4989 = vadd.f32 %v4869, %v4627
    %v4990 = vadd.f32 %v4870, %v4627
    %v4991 = vadd.f32 %v4871, %v4627
    %v4992 = vadd.f32 %v4872, %v4627
    %v4993 = vadd.f32 %v4873, %v4627
    %v4994 = vadd.f32 %v4874, %v4627
    %v4995 = vadd.f32 %v4875, %v4627
    %v4996 = vadd.f32 %v4876, %v4627
    %v4997 = vadd.f32 %v4877, %v4627
    %v4998 = vadd.f32 %v4878, %v4627
    %v4999 = vadd.f32 %v4879, %v4627
    %v5000 = vadd.f32 %v4880, %v4627
    %v5001 = vadd.f32 %v4881, %v4627
    %v5002 = vadd.f32 %v4882, %v4627
    %v5003 = vadd.f32 %v4883, %v4627
    %v5004 = vadd.f32 %v4884, %v4627
    %v5005 = vadd.f32 %v4885, %v4627
    %v5006 = vadd.f32 %v4886, %v4627
    %v5007 = vadd.f32 %v4887, %v4627
    %v5008 = vadd.f32 %v4888, %v4627
    %v5009 = vadd.f32 %v4889, %v4627
    %v5010 = vadd.f32 %v4890, %v4627
    %v5011 = vadd.f32 %v4891, %v4627
    %v5012 = vadd.f32 %v4892, %v4627
    %v5013 = vadd.f32 %v4893, %v4627
    %v5014 = vadd.f32 %v4894, %v4627
    %v5015 = vadd.f32 %v4895, %v4627
    %v5016 = vadd.f32 %v4896, %v4627
    %v5017 = vadd.f32 %v4897, %v4627
    %v5018 = vadd.f32 %v4898, %v4627
    %v5019 = vadd.f32 %v4899, %v4627
    %v5020 = vadd.f32 %v4900, %v4627
    %v5021 = vadd.f32 %v4901, %v4627
    %v5022 = vadd.f32 %v4902, %v4627
    %v5023 = vadd.f32 %v4903, %v4627
    %v5024 = vadd.f32 %v4904, %v4627
    %v5025 = vadd.f32 %v4905, %v4627
    %v5026 = vadd.f32 %v4906, %v4627
    %v5027 = vadd.f32 %v4907, %v4627
    %v5028 = vadd.f32 %v4908, %v4627
    %v5029 = vadd.f32 %v4909, %v4627
    %v5030 = vadd.f32 %v4910, %v4627
    %v5031 = vadd.f32 %v4911, %v4627
    %v5032 = vadd.f32 %v4912, %v4627
    %v5033 = vadd.f32 %v4913, %v4627
    %v5034 = vadd.f32 %v4914, %v4627
    %v5035 = vadd.f32 %v4915, %v4627
    %v5036 = vadd.f32 %v4916, %v4627
    %v5037 = vadd.f32 %v4917, %v4627
    %v5038 = vadd.f32 %v4918, %v4627
    %v5039 = vadd.f32 %v4919, %v4627
    %v5040 = vadd.f32 %v4920, %v4627
    %v5041 = vadd.f32 %v4921, %v4627
    %v5042 = vadd.f32 %v4922, %v4627
    %v5043 = vadd.f32 %v4923, %v4627
    %v5044 = vadd.f32 %v4924, %v4627
    %v5045 = vadd.f32 %v4925, %v4627
    %v5046 = vadd.f32 %v4926, %v4627
    %v5047 = vadd.f32 %v4927, %v4627
    %v5048 = vadd.f32 %v4928, %v4627
    %v5049 = vadd.f32 %v4929, %v4627
    %v5050 = vadd.f32 %v4930, %v4627
    %v5051 = vadd.f32 %v4931, %v4627
    %v5052 = vadd.f32 %v4932, %v4627
    %v5053 = vadd.f32 %v4933, %v4627
    %v5054 = vadd.f32 %v4934, %v4627
    %v5055 = vadd.f32 %v4935, %v4627
    %v5056 = vadd.f32 %v4936, %v4627
    %v5057 = vadd.f32 %v4937, %v4627
    %v5058 = vadd.f32 %v4938, %v4627
    %v5059 = vadd.f32 %v4939, %v4627
    %v5060 = vadd.f32 %v4940, %v4627
    %v5061 = vadd.f32 %v4941, %v4627
    %v5062 = vadd.f32 %v4942, %v4627
    %v5063 = vadd.f32 %v4943, %v4627
    %v5064 = vadd.f32 %v4944, %v4627
    %v5065 = vadd.f32 %v4945, %v4627
    %v5066 = vadd.f32 %v4946, %v4627
    %v5067 = vadd.f32 %v4947, %v4627
    %v5068 = vadd.f32 %v4948, %v4627
    %v5069 = vadd.f32 %v4949, %v4627
    %v5070 = vadd.f32 %v4950, %v4627
    %v5071 = vadd.f32 %v4951, %v4627
    %v5072 = vadd.f32 %v4952, %v4627
    %v5073 = vadd.f32 %v4953, %v4627
    %v5074 = vadd.f32 %v4954, %v4627
    %v5075 = vadd.f32 %v4955, %v4627
    %v5076 = vadd.f32 %v4956, %v4627
    %v5077 = vadd.f32 %v4957, %v4627
    %v5078 = vadd.f32 %v4958, %v4627
    %v5079 = vadd.f32 %v4959, %v4627
    %v5080 = vadd.f32 %v4960, %v4627
    %v5081 = vadd.f32 %v4961, %v4627
    %v5082 = vadd.f32 %v4962, %v4627
    %v5083 = vadd.f32 %v4963, %v4627
    %v5084 = vadd.f32 %v4964, %v4627
    %v5085 = vadd.f32 %v4965, %v4627
    %v5086 = vadd.f32 %v4966, %v4627
    %v5087 = vadd.f32 %v4967, %v4627
    %v5088 = vadd.f32 %v4968, %v4627
    %v5089 = vadd.f32 %v4969, %v4627
    %v5090 = vadd.f32 %v4970, %v4627
    %v5091 = vadd.f32 %v4971, %v4627
    %v5092 = vadd.f32 %v4972, %v4627
    %v5093 = vadd.f32 %v4973, %v4627
    %v5094 = vadd.f32 %v4974, %v4627
    %v5095 = vadd.f32 %v4975, %v4627
    %v5096 = vadd.f32 %v4976, %v4627
    %v5097 = vadd.f32 %v4977, %v4627
    %v5098 = vadd.f32 %v4978, %v4627
    %v5099 = vadd.f32 %v4979, %v4627
    %v5100 = vadd.f32 %v4980, %v4627
    %v5101 = vadd.f32 %v4981, %v4627
    %v5102 = vadd.f32 %v4982, %v4627
    %v5103 = vadd.f32 %v4983, %v4627
    %v5104 = vadd.f32 %v4984, %v4627
    %v5105 = vadd.f32 %v4985, %v4627
    %v5106 = vadd.f32 %v4986, %v4627
    %v5107 = vadd.f32 %v4987, %v4627
    %5108 = vst.msk [vmem:[#allocation3] sm:$0xff] %vm3995, %v4988
    %5109 = vst.msk [vmem:[#allocation3 + $0x8] sm:$0xff] %vm3995, %v4989
    %5110 = vst.msk [vmem:[#allocation3 + $0x10] sm:$0xff] %vm3995, %v4990
    %5111 = vst.msk [vmem:[#allocation3 + $0x18] sm:$0xff] %vm3995, %v4991
    %5112 = vst.msk [vmem:[#allocation3 + $0x20] sm:$0xff] %vm3995, %v4992
    %5113 = vst.msk [vmem:[#allocation3 + $0x28] sm:$0xff] %vm3995, %v4993
    %5114 = vst.msk [vmem:[#allocation3 + $0x30] sm:$0xff] %vm3995, %v4994
    %5115 = vst.msk [vmem:[#allocation3 + $0x38] sm:$0xff] %vm3995, %v4995
    %5116 = vst.msk [vmem:[#allocation3 + $0x40] sm:$0xff] %vm3995, %v4996
    %5117 = vst.msk [vmem:[#allocation3 + $0x48] sm:$0xff] %vm3995, %v4997
    %5118 = vst.msk [vmem:[#allocation3 + $0x50] sm:$0xff] %vm3995, %v4998
    %5119 = vst.msk [vmem:[#allocation3 + $0x58] sm:$0xff] %vm3995, %v4999
    %5120 = vst.msk [vmem:[#allocation3 + $0x60] sm:$0xff] %vm3995, %v5000
    %5121 = vst.msk [vmem:[#allocation3 + $0x68] sm:$0xff] %vm3995, %v5001
    %5122 = vst.msk [vmem:[#allocation3 + $0x70] sm:$0xff] %vm3995, %v5002
    %5123 = vst.msk [vmem:[#allocation3 + $0x78] sm:$0xff] %vm3995, %v5003
    %5124 = vst.msk [vmem:[#allocation3 + $0x80] sm:$0xff] %vm3995, %v5004
    %5125 = vst.msk [vmem:[#allocation3 + $0x88] sm:$0xff] %vm3995, %v5005
    %5126 = vst.msk [vmem:[#allocation3 + $0x90] sm:$0xff] %vm3995, %v5006
    %5127 = vst.msk [vmem:[#allocation3 + $0x98] sm:$0xff] %vm3995, %v5007
    %5128 = vst.msk [vmem:[#allocation3 + $0xa0] sm:$0xff] %vm3995, %v5008
    %5129 = vst.msk [vmem:[#allocation3 + $0xa8] sm:$0xff] %vm3995, %v5009
    %5130 = vst.msk [vmem:[#allocation3 + $0xb0] sm:$0xff] %vm3995, %v5010
    %5131 = vst.msk [vmem:[#allocation3 + $0xb8] sm:$0xff] %vm3995, %v5011
    %5132 = vst.msk [vmem:[#allocation3 + $0xc0] sm:$0xff] %vm3995, %v5012
    %5133 = vst.msk [vmem:[#allocation3 + $0xc8] sm:$0xff] %vm3995, %v5013
    %5134 = vst.msk [vmem:[#allocation3 + $0xd0] sm:$0xff] %vm3995, %v5014
    %5135 = vst.msk [vmem:[#allocation3 + $0xd8] sm:$0xff] %vm3995, %v5015
    %5136 = vst.msk [vmem:[#allocation3 + $0xe0] sm:$0xff] %vm3995, %v5016
    %5137 = vst.msk [vmem:[#allocation3 + $0xe8] sm:$0xff] %vm3995, %v5017
    %5138 = vst.msk [vmem:[#allocation3 + $0xf0] sm:$0xff] %vm3995, %v5018
    %5139 = vst.msk [vmem:[#allocation3 + $0xf8] sm:$0xff] %vm3995, %v5019
    %5140 = vst.msk [vmem:[#allocation3 + $0x100] sm:$0xff] %vm3995, %v5020
    %5141 = vst.msk [vmem:[#allocation3 + $0x108] sm:$0xff] %vm3995, %v5021
    %5142 = vst.msk [vmem:[#allocation3 + $0x110] sm:$0xff] %vm3995, %v5022
    %5143 = vst.msk [vmem:[#allocation3 + $0x118] sm:$0xff] %vm3995, %v5023
    %5144 = vst.msk [vmem:[#allocation3 + $0x120] sm:$0xff] %vm3995, %v5024
    %5145 = vst.msk [vmem:[#allocation3 + $0x128] sm:$0xff] %vm3995, %v5025
    %5146 = vst.msk [vmem:[#allocation3 + $0x130] sm:$0xff] %vm3995, %v5026
    %5147 = vst.msk [vmem:[#allocation3 + $0x138] sm:$0xff] %vm3995, %v5027
    %5148 = vst.msk [vmem:[#allocation3 + $0x140] sm:$0xff] %vm3995, %v5028
    %5149 = vst.msk [vmem:[#allocation3 + $0x148] sm:$0xff] %vm3995, %v5029
    %5150 = vst.msk [vmem:[#allocation3 + $0x150] sm:$0xff] %vm3995, %v5030
    %5151 = vst.msk [vmem:[#allocation3 + $0x158] sm:$0xff] %vm3995, %v5031
    %5152 = vst.msk [vmem:[#allocation3 + $0x160] sm:$0xff] %vm3995, %v5032
    %5153 = vst.msk [vmem:[#allocation3 + $0x168] sm:$0xff] %vm3995, %v5033
    %5154 = vst.msk [vmem:[#allocation3 + $0x170] sm:$0xff] %vm3995, %v5034
    %5155 = vst.msk [vmem:[#allocation3 + $0x178] sm:$0xff] %vm3995, %v5035
    %5156 = vst.msk [vmem:[#allocation3 + $0x180] sm:$0xff] %vm3995, %v5036
    %5157 = vst.msk [vmem:[#allocation3 + $0x188] sm:$0xff] %vm3995, %v5037
    %5158 = vst.msk [vmem:[#allocation3 + $0x190] sm:$0xff] %vm3995, %v5038
    %5159 = vst.msk [vmem:[#allocation3 + $0x198] sm:$0xff] %vm3995, %v5039
    %5160 = vst.msk [vmem:[#allocation3 + $0x1a0] sm:$0xff] %vm3995, %v5040
    %5161 = vst.msk [vmem:[#allocation3 + $0x1a8] sm:$0xff] %vm3995, %v5041
    %5162 = vst.msk [vmem:[#allocation3 + $0x1b0] sm:$0xff] %vm3995, %v5042
    %5163 = vst.msk [vmem:[#allocation3 + $0x1b8] sm:$0xff] %vm3995, %v5043
    %5164 = vst.msk [vmem:[#allocation3 + $0x1c0] sm:$0xff] %vm3995, %v5044
    %5165 = vst.msk [vmem:[#allocation3 + $0x1c8] sm:$0xff] %vm3995, %v5045
    %5166 = vst.msk [vmem:[#allocation3 + $0x1d0] sm:$0xff] %vm3995, %v5046
    %5167 = vst.msk [vmem:[#allocation3 + $0x1d8] sm:$0xff] %vm3995, %v5047
    %5168 = vst.msk [vmem:[#allocation3 + $0x1e0] sm:$0xff] %vm3995, %v5048
    %5169 = vst.msk [vmem:[#allocation3 + $0x1e8] sm:$0xff] %vm3995, %v5049
    %5170 = vst.msk [vmem:[#allocation3 + $0x1f0] sm:$0xff] %vm3995, %v5050
    %5171 = vst.msk [vmem:[#allocation3 + $0x1f8] sm:$0xff] %vm3995, %v5051
    %5172 = vst.msk [vmem:[#allocation3 + $0x200] sm:$0xff] %vm3995, %v5052
    %5173 = vst.msk [vmem:[#allocation3 + $0x208] sm:$0xff] %vm3995, %v5053
    %5174 = vst.msk [vmem:[#allocation3 + $0x210] sm:$0xff] %vm3995, %v5054
    %5175 = vst.msk [vmem:[#allocation3 + $0x218] sm:$0xff] %vm3995, %v5055
    %5176 = vst.msk [vmem:[#allocation3 + $0x220] sm:$0xff] %vm3995, %v5056
    %5177 = vst.msk [vmem:[#allocation3 + $0x228] sm:$0xff] %vm3995, %v5057
    %5178 = vst.msk [vmem:[#allocation3 + $0x230] sm:$0xff] %vm3995, %v5058
    %5179 = vst.msk [vmem:[#allocation3 + $0x238] sm:$0xff] %vm3995, %v5059
    %5180 = vst.msk [vmem:[#allocation3 + $0x240] sm:$0xff] %vm3995, %v5060
    %5181 = vst.msk [vmem:[#allocation3 + $0x248] sm:$0xff] %vm3995, %v5061
    %5182 = vst.msk [vmem:[#allocation3 + $0x250] sm:$0xff] %vm3995, %v5062
    %5183 = vst.msk [vmem:[#allocation3 + $0x258] sm:$0xff] %vm3995, %v5063
    %5184 = vst.msk [vmem:[#allocation3 + $0x260] sm:$0xff] %vm3995, %v5064
    %5185 = vst.msk [vmem:[#allocation3 + $0x268] sm:$0xff] %vm3995, %v5065
    %5186 = vst.msk [vmem:[#allocation3 + $0x270] sm:$0xff] %vm3995, %v5066
    %5187 = vst.msk [vmem:[#allocation3 + $0x278] sm:$0xff] %vm3995, %v5067
    %5188 = vst.msk [vmem:[#allocation3 + $0x280] sm:$0xff] %vm3995, %v5068
    %5189 = vst.msk [vmem:[#allocation3 + $0x288] sm:$0xff] %vm3995, %v5069
    %5190 = vst.msk [vmem:[#allocation3 + $0x290] sm:$0xff] %vm3995, %v5070
    %5191 = vst.msk [vmem:[#allocation3 + $0x298] sm:$0xff] %vm3995, %v5071
    %5192 = vst.msk [vmem:[#allocation3 + $0x2a0] sm:$0xff] %vm3995, %v5072
    %5193 = vst.msk [vmem:[#allocation3 + $0x2a8] sm:$0xff] %vm3995, %v5073
    %5194 = vst.msk [vmem:[#allocation3 + $0x2b0] sm:$0xff] %vm3995, %v5074
    %5195 = vst.msk [vmem:[#allocation3 + $0x2b8] sm:$0xff] %vm3995, %v5075
    %5196 = vst.msk [vmem:[#allocation3 + $0x2c0] sm:$0xff] %vm3995, %v5076
    %5197 = vst.msk [vmem:[#allocation3 + $0x2c8] sm:$0xff] %vm3995, %v5077
    %5198 = vst.msk [vmem:[#allocation3 + $0x2d0] sm:$0xff] %vm3995, %v5078
    %5199 = vst.msk [vmem:[#allocation3 + $0x2d8] sm:$0xff] %vm3995, %v5079
    %5200 = vst.msk [vmem:[#allocation3 + $0x2e0] sm:$0xff] %vm3995, %v5080
    %5201 = vst.msk [vmem:[#allocation3 + $0x2e8] sm:$0xff] %vm3995, %v5081
    %5202 = vst.msk [vmem:[#allocation3 + $0x2f0] sm:$0xff] %vm3995, %v5082
    %5203 = vst.msk [vmem:[#allocation3 + $0x2f8] sm:$0xff] %vm3995, %v5083
    %5204 = vst.msk [vmem:[#allocation3 + $0x300] sm:$0xff] %vm3995, %v5084
    %5205 = vst.msk [vmem:[#allocation3 + $0x308] sm:$0xff] %vm3995, %v5085
    %5206 = vst.msk [vmem:[#allocation3 + $0x310] sm:$0xff] %vm3995, %v5086
    %5207 = vst.msk [vmem:[#allocation3 + $0x318] sm:$0xff] %vm3995, %v5087
    %5208 = vst.msk [vmem:[#allocation3 + $0x320] sm:$0xff] %vm3995, %v5088
    %5209 = vst.msk [vmem:[#allocation3 + $0x328] sm:$0xff] %vm3995, %v5089
    %5210 = vst.msk [vmem:[#allocation3 + $0x330] sm:$0xff] %vm3995, %v5090
    %5211 = vst.msk [vmem:[#allocation3 + $0x338] sm:$0xff] %vm3995, %v5091
    %5212 = vst.msk [vmem:[#allocation3 + $0x340] sm:$0xff] %vm3995, %v5092
    %5213 = vst.msk [vmem:[#allocation3 + $0x348] sm:$0xff] %vm3995, %v5093
    %5214 = vst.msk [vmem:[#allocation3 + $0x350] sm:$0xff] %vm3995, %v5094
    %5215 = vst.msk [vmem:[#allocation3 + $0x358] sm:$0xff] %vm3995, %v5095
    %5216 = vst.msk [vmem:[#allocation3 + $0x360] sm:$0xff] %vm3995, %v5096
    %5217 = vst.msk [vmem:[#allocation3 + $0x368] sm:$0xff] %vm3995, %v5097
    %5218 = vst.msk [vmem:[#allocation3 + $0x370] sm:$0xff] %vm3995, %v5098
    %5219 = vst.msk [vmem:[#allocation3 + $0x378] sm:$0xff] %vm3995, %v5099
    %5220 = vst.msk [vmem:[#allocation3 + $0x380] sm:$0xff] %vm3995, %v5100
    %5221 = vst.msk [vmem:[#allocation3 + $0x388] sm:$0xff] %vm3995, %v5101
    %5222 = vst.msk [vmem:[#allocation3 + $0x390] sm:$0xff] %vm3995, %v5102
    %5223 = vst.msk [vmem:[#allocation3 + $0x398] sm:$0xff] %vm3995, %v5103
    %5224 = vst.msk [vmem:[#allocation3 + $0x3a0] sm:$0xff] %vm3995, %v5104
    %5225 = vst.msk [vmem:[#allocation3 + $0x3a8] sm:$0xff] %vm3995, %v5105
    %5226 = vst.msk [vmem:[#allocation3 + $0x3b0] sm:$0xff] %vm3995, %v5106
    %5227 = vst.msk [vmem:[#allocation3 + $0x3b8] sm:$0xff] %vm3995, %v5107
    %v5228 = vld [vmem:[#allocation3] ss:$2 sm:$0xff]
    %s5229 = scalar_lea.vmem [#allocation3], 16
    %v5230 = vld [vmem:[%s5229] ss:$2 sm:$0xff]
    %s5231 = scalar_lea.vmem [#allocation3], 32
    %v5232 = vld [vmem:[%s5231] ss:$2 sm:$0xff]
    %s5233 = scalar_lea.vmem [#allocation3], 48
    %v5234 = vld [vmem:[%s5233] ss:$2 sm:$0xff]
    %s5235 = scalar_lea.vmem [#allocation3], 64
    %v5236 = vld [vmem:[%s5235] ss:$2 sm:$0xff]
    %s5237 = scalar_lea.vmem [#allocation3], 80
    %v5238 = vld [vmem:[%s5237] ss:$2 sm:$0xff]
    %s5239 = scalar_lea.vmem [#allocation3], 96
    %v5240 = vld [vmem:[%s5239] ss:$2 sm:$0xff]
    %s5241 = scalar_lea.vmem [#allocation3], 112
    %v5242 = vld [vmem:[%s5241] ss:$2 sm:$0xff]
    %s5243 = scalar_lea.vmem [#allocation3], 128
    %v5244 = vld [vmem:[%s5243] ss:$2 sm:$0xff]
    %s5245 = scalar_lea.vmem [#allocation3], 144
    %v5246 = vld [vmem:[%s5245] ss:$2 sm:$0xff]
    %s5247 = scalar_lea.vmem [#allocation3], 160
    %v5248 = vld [vmem:[%s5247] ss:$2 sm:$0xff]
    %s5249 = scalar_lea.vmem [#allocation3], 176
    %v5250 = vld [vmem:[%s5249] ss:$2 sm:$0xff]
    %s5251 = scalar_lea.vmem [#allocation3], 192
    %v5252 = vld [vmem:[%s5251] ss:$2 sm:$0xff]
    %s5253 = scalar_lea.vmem [#allocation3], 208
    %v5254 = vld [vmem:[%s5253] ss:$2 sm:$0xff]
    %s5255 = scalar_lea.vmem [#allocation3], 224
    %v5256 = vld [vmem:[%s5255] ss:$2 sm:$0xff]
    %s5257 = scalar_lea.vmem [#allocation3], 240
    %v5258 = vld [vmem:[%s5257] ss:$2 sm:$0xff]
    %s5259 = scalar_lea.vmem [#allocation3], 256
    %v5260 = vld [vmem:[%s5259] ss:$2 sm:$0xff]
    %s5261 = scalar_lea.vmem [#allocation3], 272
    %v5262 = vld [vmem:[%s5261] ss:$2 sm:$0xff]
    %s5263 = scalar_lea.vmem [#allocation3], 288
    %v5264 = vld [vmem:[%s5263] ss:$2 sm:$0xff]
    %s5265 = scalar_lea.vmem [#allocation3], 304
    %v5266 = vld [vmem:[%s5265] ss:$2 sm:$0xff]
    %s5267 = scalar_lea.vmem [#allocation3], 320
    %v5268 = vld [vmem:[%s5267] ss:$2 sm:$0xff]
    %s5269 = scalar_lea.vmem [#allocation3], 336
    %v5270 = vld [vmem:[%s5269] ss:$2 sm:$0xff]
    %s5271 = scalar_lea.vmem [#allocation3], 352
    %v5272 = vld [vmem:[%s5271] ss:$2 sm:$0xff]
    %s5273 = scalar_lea.vmem [#allocation3], 368
    %v5274 = vld [vmem:[%s5273] ss:$2 sm:$0xff]
    %s5275 = scalar_lea.vmem [#allocation3], 384
    %v5276 = vld [vmem:[%s5275] ss:$2 sm:$0xff]
    %s5277 = scalar_lea.vmem [#allocation3], 400
    %v5278 = vld [vmem:[%s5277] ss:$2 sm:$0xff]
    %s5279 = scalar_lea.vmem [#allocation3], 416
    %v5280 = vld [vmem:[%s5279] ss:$2 sm:$0xff]
    %s5281 = scalar_lea.vmem [#allocation3], 432
    %v5282 = vld [vmem:[%s5281] ss:$2 sm:$0xff]
    %s5283 = scalar_lea.vmem [#allocation3], 448
    %v5284 = vld [vmem:[%s5283] ss:$2 sm:$0xff]
    %s5285 = scalar_lea.vmem [#allocation3], 464
    %v5286 = vld [vmem:[%s5285] ss:$2 sm:$0xff]
    %s5287 = scalar_lea.vmem [#allocation3], 480
    %v5288 = vld [vmem:[%s5287] ss:$2 sm:$0xff]
    %s5289 = scalar_lea.vmem [#allocation3], 496
    %v5290 = vld [vmem:[%s5289] ss:$2 sm:$0xff]
    %s5291 = scalar_lea.vmem [#allocation3], 512
    %v5292 = vld [vmem:[%s5291] ss:$2 sm:$0xff]
    %s5293 = scalar_lea.vmem [#allocation3], 528
    %v5294 = vld [vmem:[%s5293] ss:$2 sm:$0xff]
    %s5295 = scalar_lea.vmem [#allocation3], 544
    %v5296 = vld [vmem:[%s5295] ss:$2 sm:$0xff]
    %s5297 = scalar_lea.vmem [#allocation3], 560
    %v5298 = vld [vmem:[%s5297] ss:$2 sm:$0xff]
    %s5299 = scalar_lea.vmem [#allocation3], 576
    %v5300 = vld [vmem:[%s5299] ss:$2 sm:$0xff]
    %s5301 = scalar_lea.vmem [#allocation3], 592
    %v5302 = vld [vmem:[%s5301] ss:$2 sm:$0xff]
    %s5303 = scalar_lea.vmem [#allocation3], 608
    %v5304 = vld [vmem:[%s5303] ss:$2 sm:$0xff]
    %s5305 = scalar_lea.vmem [#allocation3], 624
    %v5306 = vld [vmem:[%s5305] ss:$2 sm:$0xff]
    %s5307 = scalar_lea.vmem [#allocation3], 640
    %v5308 = vld [vmem:[%s5307] ss:$2 sm:$0xff]
    %s5309 = scalar_lea.vmem [#allocation3], 656
    %v5310 = vld [vmem:[%s5309] ss:$2 sm:$0xff]
    %s5311 = scalar_lea.vmem [#allocation3], 672
    %v5312 = vld [vmem:[%s5311] ss:$2 sm:$0xff]
    %s5313 = scalar_lea.vmem [#allocation3], 688
    %v5314 = vld [vmem:[%s5313] ss:$2 sm:$0xff]
    %s5315 = scalar_lea.vmem [#allocation3], 704
    %v5316 = vld [vmem:[%s5315] ss:$2 sm:$0xff]
    %s5317 = scalar_lea.vmem [#allocation3], 720
    %v5318 = vld [vmem:[%s5317] ss:$2 sm:$0xff]
    %s5319 = scalar_lea.vmem [#allocation3], 736
    %v5320 = vld [vmem:[%s5319] ss:$2 sm:$0xff]
    %s5321 = scalar_lea.vmem [#allocation3], 752
    %v5322 = vld [vmem:[%s5321] ss:$2 sm:$0xff]
    %s5323 = scalar_lea.vmem [#allocation3], 768
    %v5324 = vld [vmem:[%s5323] ss:$2 sm:$0xff]
    %s5325 = scalar_lea.vmem [#allocation3], 784
    %v5326 = vld [vmem:[%s5325] ss:$2 sm:$0xff]
    %s5327 = scalar_lea.vmem [#allocation3], 800
    %v5328 = vld [vmem:[%s5327] ss:$2 sm:$0xff]
    %s5329 = scalar_lea.vmem [#allocation3], 816
    %v5330 = vld [vmem:[%s5329] ss:$2 sm:$0xff]
    %s5331 = scalar_lea.vmem [#allocation3], 832
    %v5332 = vld [vmem:[%s5331] ss:$2 sm:$0xff]
    %s5333 = scalar_lea.vmem [#allocation3], 848
    %v5334 = vld [vmem:[%s5333] ss:$2 sm:$0xff]
    %s5335 = scalar_lea.vmem [#allocation3], 864
    %v5336 = vld [vmem:[%s5335] ss:$2 sm:$0xff]
    %s5337 = scalar_lea.vmem [#allocation3], 880
    %v5338 = vld [vmem:[%s5337] ss:$2 sm:$0xff]
    %s5339 = scalar_lea.vmem [#allocation3], 896
    %v5340 = vld [vmem:[%s5339] ss:$2 sm:$0xff]
    %s5341 = scalar_lea.vmem [#allocation3], 912
    %v5342 = vld [vmem:[%s5341] ss:$2 sm:$0xff]
    %s5343 = scalar_lea.vmem [#allocation3], 928
    %v5344 = vld [vmem:[%s5343] ss:$2 sm:$0xff]
    %s5345 = scalar_lea.vmem [#allocation3], 944
    %v5346 = vld [vmem:[%s5345] ss:$2 sm:$0xff]
    %s5347 = scalar_lea.vmem [#allocation3], 1
    %v5348 = vld [vmem:[%s5347] ss:$2 sm:$0xff]
    %s5349 = scalar_lea.vmem [#allocation3], 17
    %v5350 = vld [vmem:[%s5349] ss:$2 sm:$0xff]
    %s5351 = scalar_lea.vmem [#allocation3], 33
    %v5352 = vld [vmem:[%s5351] ss:$2 sm:$0xff]
    %s5353 = scalar_lea.vmem [#allocation3], 49
    %v5354 = vld [vmem:[%s5353] ss:$2 sm:$0xff]
    %s5355 = scalar_lea.vmem [#allocation3], 65
    %v5356 = vld [vmem:[%s5355] ss:$2 sm:$0xff]
    %s5357 = scalar_lea.vmem [#allocation3], 81
    %v5358 = vld [vmem:[%s5357] ss:$2 sm:$0xff]
    %s5359 = scalar_lea.vmem [#allocation3], 97
    %v5360 = vld [vmem:[%s5359] ss:$2 sm:$0xff]
    %s5361 = scalar_lea.vmem [#allocation3], 113
    %v5362 = vld [vmem:[%s5361] ss:$2 sm:$0xff]
    %s5363 = scalar_lea.vmem [#allocation3], 129
    %v5364 = vld [vmem:[%s5363] ss:$2 sm:$0xff]
    %s5365 = scalar_lea.vmem [#allocation3], 145
    %v5366 = vld [vmem:[%s5365] ss:$2 sm:$0xff]
    %s5367 = scalar_lea.vmem [#allocation3], 161
    %v5368 = vld [vmem:[%s5367] ss:$2 sm:$0xff]
    %s5369 = scalar_lea.vmem [#allocation3], 177
    %v5370 = vld [vmem:[%s5369] ss:$2 sm:$0xff]
    %s5371 = scalar_lea.vmem [#allocation3], 193
    %v5372 = vld [vmem:[%s5371] ss:$2 sm:$0xff]
    %s5373 = scalar_lea.vmem [#allocation3], 209
    %v5374 = vld [vmem:[%s5373] ss:$2 sm:$0xff]
    %s5375 = scalar_lea.vmem [#allocation3], 225
    %v5376 = vld [vmem:[%s5375] ss:$2 sm:$0xff]
    %s5377 = scalar_lea.vmem [#allocation3], 241
    %v5378 = vld [vmem:[%s5377] ss:$2 sm:$0xff]
    %s5379 = scalar_lea.vmem [#allocation3], 257
    %v5380 = vld [vmem:[%s5379] ss:$2 sm:$0xff]
    %s5381 = scalar_lea.vmem [#allocation3], 273
    %v5382 = vld [vmem:[%s5381] ss:$2 sm:$0xff]
    %s5383 = scalar_lea.vmem [#allocation3], 289
    %v5384 = vld [vmem:[%s5383] ss:$2 sm:$0xff]
    %s5385 = scalar_lea.vmem [#allocation3], 305
    %v5386 = vld [vmem:[%s5385] ss:$2 sm:$0xff]
    %s5387 = scalar_lea.vmem [#allocation3], 321
    %v5388 = vld [vmem:[%s5387] ss:$2 sm:$0xff]
    %s5389 = scalar_lea.vmem [#allocation3], 337
    %v5390 = vld [vmem:[%s5389] ss:$2 sm:$0xff]
    %s5391 = scalar_lea.vmem [#allocation3], 353
    %v5392 = vld [vmem:[%s5391] ss:$2 sm:$0xff]
    %s5393 = scalar_lea.vmem [#allocation3], 369
    %v5394 = vld [vmem:[%s5393] ss:$2 sm:$0xff]
    %s5395 = scalar_lea.vmem [#allocation3], 385
    %v5396 = vld [vmem:[%s5395] ss:$2 sm:$0xff]
    %s5397 = scalar_lea.vmem [#allocation3], 401
    %v5398 = vld [vmem:[%s5397] ss:$2 sm:$0xff]
    %s5399 = scalar_lea.vmem [#allocation3], 417
    %v5400 = vld [vmem:[%s5399] ss:$2 sm:$0xff]
    %s5401 = scalar_lea.vmem [#allocation3], 433
    %v5402 = vld [vmem:[%s5401] ss:$2 sm:$0xff]
    %s5403 = scalar_lea.vmem [#allocation3], 449
    %v5404 = vld [vmem:[%s5403] ss:$2 sm:$0xff]
    %s5405 = scalar_lea.vmem [#allocation3], 465
    %v5406 = vld [vmem:[%s5405] ss:$2 sm:$0xff]
    %s5407 = scalar_lea.vmem [#allocation3], 481
    %v5408 = vld [vmem:[%s5407] ss:$2 sm:$0xff]
    %s5409 = scalar_lea.vmem [#allocation3], 497
    %v5410 = vld [vmem:[%s5409] ss:$2 sm:$0xff]
    %s5411 = scalar_lea.vmem [#allocation3], 513
    %v5412 = vld [vmem:[%s5411] ss:$2 sm:$0xff]
    %s5413 = scalar_lea.vmem [#allocation3], 529
    %v5414 = vld [vmem:[%s5413] ss:$2 sm:$0xff]
    %s5415 = scalar_lea.vmem [#allocation3], 545
    %v5416 = vld [vmem:[%s5415] ss:$2 sm:$0xff]
    %s5417 = scalar_lea.vmem [#allocation3], 561
    %v5418 = vld [vmem:[%s5417] ss:$2 sm:$0xff]
    %s5419 = scalar_lea.vmem [#allocation3], 577
    %v5420 = vld [vmem:[%s5419] ss:$2 sm:$0xff]
    %s5421 = scalar_lea.vmem [#allocation3], 593
    %v5422 = vld [vmem:[%s5421] ss:$2 sm:$0xff]
    %s5423 = scalar_lea.vmem [#allocation3], 609
    %v5424 = vld [vmem:[%s5423] ss:$2 sm:$0xff]
    %s5425 = scalar_lea.vmem [#allocation3], 625
    %v5426 = vld [vmem:[%s5425] ss:$2 sm:$0xff]
    %s5427 = scalar_lea.vmem [#allocation3], 641
    %v5428 = vld [vmem:[%s5427] ss:$2 sm:$0xff]
    %s5429 = scalar_lea.vmem [#allocation3], 657
    %v5430 = vld [vmem:[%s5429] ss:$2 sm:$0xff]
    %s5431 = scalar_lea.vmem [#allocation3], 673
    %v5432 = vld [vmem:[%s5431] ss:$2 sm:$0xff]
    %s5433 = scalar_lea.vmem [#allocation3], 689
    %v5434 = vld [vmem:[%s5433] ss:$2 sm:$0xff]
    %s5435 = scalar_lea.vmem [#allocation3], 705
    %v5436 = vld [vmem:[%s5435] ss:$2 sm:$0xff]
    %s5437 = scalar_lea.vmem [#allocation3], 721
    %v5438 = vld [vmem:[%s5437] ss:$2 sm:$0xff]
    %s5439 = scalar_lea.vmem [#allocation3], 737
    %v5440 = vld [vmem:[%s5439] ss:$2 sm:$0xff]
    %s5441 = scalar_lea.vmem [#allocation3], 753
    %v5442 = vld [vmem:[%s5441] ss:$2 sm:$0xff]
    %s5443 = scalar_lea.vmem [#allocation3], 769
    %v5444 = vld [vmem:[%s5443] ss:$2 sm:$0xff]
    %s5445 = scalar_lea.vmem [#allocation3], 785
    %v5446 = vld [vmem:[%s5445] ss:$2 sm:$0xff]
    %s5447 = scalar_lea.vmem [#allocation3], 801
    %v5448 = vld [vmem:[%s5447] ss:$2 sm:$0xff]
    %s5449 = scalar_lea.vmem [#allocation3], 817
    %v5450 = vld [vmem:[%s5449] ss:$2 sm:$0xff]
    %s5451 = scalar_lea.vmem [#allocation3], 833
    %v5452 = vld [vmem:[%s5451] ss:$2 sm:$0xff]
    %s5453 = scalar_lea.vmem [#allocation3], 849
    %v5454 = vld [vmem:[%s5453] ss:$2 sm:$0xff]
    %s5455 = scalar_lea.vmem [#allocation3], 865
    %v5456 = vld [vmem:[%s5455] ss:$2 sm:$0xff]
    %s5457 = scalar_lea.vmem [#allocation3], 881
    %v5458 = vld [vmem:[%s5457] ss:$2 sm:$0xff]
    %s5459 = scalar_lea.vmem [#allocation3], 897
    %v5460 = vld [vmem:[%s5459] ss:$2 sm:$0xff]
    %s5461 = scalar_lea.vmem [#allocation3], 913
    %v5462 = vld [vmem:[%s5461] ss:$2 sm:$0xff]
    %s5463 = scalar_lea.vmem [#allocation3], 929
    %v5464 = vld [vmem:[%s5463] ss:$2 sm:$0xff]
    %s5465 = scalar_lea.vmem [#allocation3], 945
    %v5466 = vld [vmem:[%s5465] ss:$2 sm:$0xff]
    %v5467 = vadd.f32 %v5228, %v5348
    %v5468 = vadd.f32 %v5230, %v5350
    %v5469 = vadd.f32 %v5232, %v5352
    %v5470 = vadd.f32 %v5234, %v5354
    %v5471 = vadd.f32 %v5236, %v5356
    %v5472 = vadd.f32 %v5238, %v5358
    %v5473 = vadd.f32 %v5240, %v5360
    %v5474 = vadd.f32 %v5242, %v5362
    %v5475 = vadd.f32 %v5244, %v5364
    %v5476 = vadd.f32 %v5246, %v5366
    %v5477 = vadd.f32 %v5248, %v5368
    %v5478 = vadd.f32 %v5250, %v5370
    %v5479 = vadd.f32 %v5252, %v5372
    %v5480 = vadd.f32 %v5254, %v5374
    %v5481 = vadd.f32 %v5256, %v5376
    %v5482 = vadd.f32 %v5258, %v5378
    %v5483 = vadd.f32 %v5260, %v5380
    %v5484 = vadd.f32 %v5262, %v5382
    %v5485 = vadd.f32 %v5264, %v5384
    %v5486 = vadd.f32 %v5266, %v5386
    %v5487 = vadd.f32 %v5268, %v5388
    %v5488 = vadd.f32 %v5270, %v5390
    %v5489 = vadd.f32 %v5272, %v5392
    %v5490 = vadd.f32 %v5274, %v5394
    %v5491 = vadd.f32 %v5276, %v5396
    %v5492 = vadd.f32 %v5278, %v5398
    %v5493 = vadd.f32 %v5280, %v5400
    %v5494 = vadd.f32 %v5282, %v5402
    %v5495 = vadd.f32 %v5284, %v5404
    %v5496 = vadd.f32 %v5286, %v5406
    %v5497 = vadd.f32 %v5288, %v5408
    %v5498 = vadd.f32 %v5290, %v5410
    %v5499 = vadd.f32 %v5292, %v5412
    %v5500 = vadd.f32 %v5294, %v5414
    %v5501 = vadd.f32 %v5296, %v5416
    %v5502 = vadd.f32 %v5298, %v5418
    %v5503 = vadd.f32 %v5300, %v5420
    %v5504 = vadd.f32 %v5302, %v5422
    %v5505 = vadd.f32 %v5304, %v5424
    %v5506 = vadd.f32 %v5306, %v5426
    %v5507 = vadd.f32 %v5308, %v5428
    %v5508 = vadd.f32 %v5310, %v5430
    %v5509 = vadd.f32 %v5312, %v5432
    %v5510 = vadd.f32 %v5314, %v5434
    %v5511 = vadd.f32 %v5316, %v5436
    %v5512 = vadd.f32 %v5318, %v5438
    %v5513 = vadd.f32 %v5320, %v5440
    %v5514 = vadd.f32 %v5322, %v5442
    %v5515 = vadd.f32 %v5324, %v5444
    %v5516 = vadd.f32 %v5326, %v5446
    %v5517 = vadd.f32 %v5328, %v5448
    %v5518 = vadd.f32 %v5330, %v5450
    %v5519 = vadd.f32 %v5332, %v5452
    %v5520 = vadd.f32 %v5334, %v5454
    %v5521 = vadd.f32 %v5336, %v5456
    %v5522 = vadd.f32 %v5338, %v5458
    %v5523 = vadd.f32 %v5340, %v5460
    %v5524 = vadd.f32 %v5342, %v5462
    %v5525 = vadd.f32 %v5344, %v5464
    %v5526 = vadd.f32 %v5346, %v5466
    %v5527 = vmul.f32 %v5467, 0.5
    %v5528 = vmul.f32 %v5468, 0.5
    %v5529 = vmul.f32 %v5469, 0.5
    %v5530 = vmul.f32 %v5470, 0.5
    %v5531 = vmul.f32 %v5471, 0.5
    %v5532 = vmul.f32 %v5472, 0.5
    %v5533 = vmul.f32 %v5473, 0.5
    %v5534 = vmul.f32 %v5474, 0.5
    %v5535 = vmul.f32 %v5475, 0.5
    %v5536 = vmul.f32 %v5476, 0.5
    %v5537 = vmul.f32 %v5477, 0.5
    %v5538 = vmul.f32 %v5478, 0.5
    %v5539 = vmul.f32 %v5479, 0.5
    %v5540 = vmul.f32 %v5480, 0.5
    %v5541 = vmul.f32 %v5481, 0.5
    %v5542 = vmul.f32 %v5482, 0.5
    %v5543 = vmul.f32 %v5483, 0.5
    %v5544 = vmul.f32 %v5484, 0.5
    %v5545 = vmul.f32 %v5485, 0.5
    %v5546 = vmul.f32 %v5486, 0.5
    %v5547 = vmul.f32 %v5487, 0.5
    %v5548 = vmul.f32 %v5488, 0.5
    %v5549 = vmul.f32 %v5489, 0.5
    %v5550 = vmul.f32 %v5490, 0.5
    %v5551 = vmul.f32 %v5491, 0.5
    %v5552 = vmul.f32 %v5492, 0.5
    %v5553 = vmul.f32 %v5493, 0.5
    %v5554 = vmul.f32 %v5494, 0.5
    %v5555 = vmul.f32 %v5495, 0.5
    %v5556 = vmul.f32 %v5496, 0.5
    %v5557 = vmul.f32 %v5497, 0.5
    %v5558 = vmul.f32 %v5498, 0.5
    %v5559 = vmul.f32 %v5499, 0.5
    %v5560 = vmul.f32 %v5500, 0.5
    %v5561 = vmul.f32 %v5501, 0.5
    %v5562 = vmul.f32 %v5502, 0.5
    %v5563 = vmul.f32 %v5503, 0.5
    %v5564 = vmul.f32 %v5504, 0.5
    %v5565 = vmul.f32 %v5505, 0.5
    %v5566 = vmul.f32 %v5506, 0.5
    %v5567 = vmul.f32 %v5507, 0.5
    %v5568 = vmul.f32 %v5508, 0.5
    %v5569 = vmul.f32 %v5509, 0.5
    %v5570 = vmul.f32 %v5510, 0.5
    %v5571 = vmul.f32 %v5511, 0.5
    %v5572 = vmul.f32 %v5512, 0.5
    %v5573 = vmul.f32 %v5513, 0.5
    %v5574 = vmul.f32 %v5514, 0.5
    %v5575 = vmul.f32 %v5515, 0.5
    %v5576 = vmul.f32 %v5516, 0.5
    %v5577 = vmul.f32 %v5517, 0.5
    %v5578 = vmul.f32 %v5518, 0.5
    %v5579 = vmul.f32 %v5519, 0.5
    %v5580 = vmul.f32 %v5520, 0.5
    %v5581 = vmul.f32 %v5521, 0.5
    %v5582 = vmul.f32 %v5522, 0.5
    %v5583 = vmul.f32 %v5523, 0.5
    %v5584 = vmul.f32 %v5524, 0.5
    %v5585 = vmul.f32 %v5525, 0.5
    %v5586 = vmul.f32 %v5526, 0.5
    %vm5587 = vcmask 253952
    %5588 = vst.msk [vmem:[#allocation4] sm:$0x1] %vm5587, 0.0
    %5589 = vst.msk [vmem:[#allocation4 + $0xf8] sm:$0x1] %vm5587, 0.0
    %5590 = vst.msk [vmem:[#allocation4 + $0xf1] sm:$0x1] %vm5587, 0.0
    %5591 = vst.msk [vmem:[#allocation4 + $0x1e9] sm:$0x1] %vm5587, 0.0
    %5592 = vst.msk [vmem:[#allocation4 + $0x1] sm:$0xff] %vm3995, %v5527
    %5593 = vst.msk [vmem:[#allocation4 + $0x9] sm:$0xff] %vm3995, %v5528
    %5594 = vst.msk [vmem:[#allocation4 + $0x11] sm:$0xff] %vm3995, %v5529
    %5595 = vst.msk [vmem:[#allocation4 + $0x19] sm:$0xff] %vm3995, %v5530
    %5596 = vst.msk [vmem:[#allocation4 + $0x21] sm:$0xff] %vm3995, %v5531
    %5597 = vst.msk [vmem:[#allocation4 + $0x29] sm:$0xff] %vm3995, %v5532
    %5598 = vst.msk [vmem:[#allocation4 + $0x31] sm:$0xff] %vm3995, %v5533
    %5599 = vst.msk [vmem:[#allocation4 + $0x39] sm:$0xff] %vm3995, %v5534
    %5600 = vst.msk [vmem:[#allocation4 + $0x41] sm:$0xff] %vm3995, %v5535
    %5601 = vst.msk [vmem:[#allocation4 + $0x49] sm:$0xff] %vm3995, %v5536
    %5602 = vst.msk [vmem:[#allocation4 + $0x51] sm:$0xff] %vm3995, %v5537
    %5603 = vst.msk [vmem:[#allocation4 + $0x59] sm:$0xff] %vm3995, %v5538
    %5604 = vst.msk [vmem:[#allocation4 + $0x61] sm:$0xff] %vm3995, %v5539
    %5605 = vst.msk [vmem:[#allocation4 + $0x69] sm:$0xff] %vm3995, %v5540
    %5606 = vst.msk [vmem:[#allocation4 + $0x71] sm:$0xff] %vm3995, %v5541
    %5607 = vst.msk [vmem:[#allocation4 + $0x79] sm:$0xff] %vm3995, %v5542
    %5608 = vst.msk [vmem:[#allocation4 + $0x81] sm:$0xff] %vm3995, %v5543
    %5609 = vst.msk [vmem:[#allocation4 + $0x89] sm:$0xff] %vm3995, %v5544
    %5610 = vst.msk [vmem:[#allocation4 + $0x91] sm:$0xff] %vm3995, %v5545
    %5611 = vst.msk [vmem:[#allocation4 + $0x99] sm:$0xff] %vm3995, %v5546
    %5612 = vst.msk [vmem:[#allocation4 + $0xa1] sm:$0xff] %vm3995, %v5547
    %5613 = vst.msk [vmem:[#allocation4 + $0xa9] sm:$0xff] %vm3995, %v5548
    %5614 = vst.msk [vmem:[#allocation4 + $0xb1] sm:$0xff] %vm3995, %v5549
    %5615 = vst.msk [vmem:[#allocation4 + $0xb9] sm:$0xff] %vm3995, %v5550
    %5616 = vst.msk [vmem:[#allocation4 + $0xc1] sm:$0xff] %vm3995, %v5551
    %5617 = vst.msk [vmem:[#allocation4 + $0xc9] sm:$0xff] %vm3995, %v5552
    %5618 = vst.msk [vmem:[#allocation4 + $0xd1] sm:$0xff] %vm3995, %v5553
    %5619 = vst.msk [vmem:[#allocation4 + $0xd9] sm:$0xff] %vm3995, %v5554
    %5620 = vst.msk [vmem:[#allocation4 + $0xe1] sm:$0xff] %vm3995, %v5555
    %5621 = vst.msk [vmem:[#allocation4 + $0xe9] sm:$0xff] %vm3995, %v5556
    %5622 = vst.msk [vmem:[#allocation4 + $0xf9] sm:$0xff] %vm3995, %v5557
    %5623 = vst.msk [vmem:[#allocation4 + $0x101] sm:$0xff] %vm3995, %v5558
    %5624 = vst.msk [vmem:[#allocation4 + $0x109] sm:$0xff] %vm3995, %v5559
    %5625 = vst.msk [vmem:[#allocation4 + $0x111] sm:$0xff] %vm3995, %v5560
    %5626 = vst.msk [vmem:[#allocation4 + $0x119] sm:$0xff] %vm3995, %v5561
    %5627 = vst.msk [vmem:[#allocation4 + $0x121] sm:$0xff] %vm3995, %v5562
    %5628 = vst.msk [vmem:[#allocation4 + $0x129] sm:$0xff] %vm3995, %v5563
    %5629 = vst.msk [vmem:[#allocation4 + $0x131] sm:$0xff] %vm3995, %v5564
    %5630 = vst.msk [vmem:[#allocation4 + $0x139] sm:$0xff] %vm3995, %v5565
    %5631 = vst.msk [vmem:[#allocation4 + $0x141] sm:$0xff] %vm3995, %v5566
    %5632 = vst.msk [vmem:[#allocation4 + $0x149] sm:$0xff] %vm3995, %v5567
    %5633 = vst.msk [vmem:[#allocation4 + $0x151] sm:$0xff] %vm3995, %v5568
    %5634 = vst.msk [vmem:[#allocation4 + $0x159] sm:$0xff] %vm3995, %v5569
    %5635 = vst.msk [vmem:[#allocation4 + $0x161] sm:$0xff] %vm3995, %v5570
    %5636 = vst.msk [vmem:[#allocation4 + $0x169] sm:$0xff] %vm3995, %v5571
    %5637 = vst.msk [vmem:[#allocation4 + $0x171] sm:$0xff] %vm3995, %v5572
    %5638 = vst.msk [vmem:[#allocation4 + $0x179] sm:$0xff] %vm3995, %v5573
    %5639 = vst.msk [vmem:[#allocation4 + $0x181] sm:$0xff] %vm3995, %v5574
    %5640 = vst.msk [vmem:[#allocation4 + $0x189] sm:$0xff] %vm3995, %v5575
    %5641 = vst.msk [vmem:[#allocation4 + $0x191] sm:$0xff] %vm3995, %v5576
    %5642 = vst.msk [vmem:[#allocation4 + $0x199] sm:$0xff] %vm3995, %v5577
    %5643 = vst.msk [vmem:[#allocation4 + $0x1a1] sm:$0xff] %vm3995, %v5578
    %5644 = vst.msk [vmem:[#allocation4 + $0x1a9] sm:$0xff] %vm3995, %v5579
    %5645 = vst.msk [vmem:[#allocation4 + $0x1b1] sm:$0xff] %vm3995, %v5580
    %5646 = vst.msk [vmem:[#allocation4 + $0x1b9] sm:$0xff] %vm3995, %v5581
    %5647 = vst.msk [vmem:[#allocation4 + $0x1c1] sm:$0xff] %vm3995, %v5582
    %5648 = vst.msk [vmem:[#allocation4 + $0x1c9] sm:$0xff] %vm3995, %v5583
    %5649 = vst.msk [vmem:[#allocation4 + $0x1d1] sm:$0xff] %vm3995, %v5584
    %5650 = vst.msk [vmem:[#allocation4 + $0x1d9] sm:$0xff] %vm3995, %v5585
    %5651 = vst.msk [vmem:[#allocation4 + $0x1e1] sm:$0xff] %vm3995, %v5586
    %s5652 = sld [smem:[#allocation7 + $0x3]]
    %s5653 = sld [smem:[#allocation7 + $0x4]]
    %s5654 = sld [smem:[#allocation7 + $0x5]]
    %v5655 = vld [vmem:[#allocation4] sm:$0xff]
    %v5656 = vld [vmem:[#allocation4 + $0x8] sm:$0xff]
    %v5657 = vld [vmem:[#allocation4 + $0x10] sm:$0xff]
    %v5658 = vld [vmem:[#allocation4 + $0x18] sm:$0xff]
    %v5659 = vld [vmem:[#allocation4 + $0x20] sm:$0xff]
    %v5660 = vld [vmem:[#allocation4 + $0x28] sm:$0xff]
    %v5661 = vld [vmem:[#allocation4 + $0x30] sm:$0xff]
    %v5662 = vld [vmem:[#allocation4 + $0x38] sm:$0xff]
    %v5663 = vld [vmem:[#allocation4 + $0x40] sm:$0xff]
    %v5664 = vld [vmem:[#allocation4 + $0x48] sm:$0xff]
    %v5665 = vld [vmem:[#allocation4 + $0x50] sm:$0xff]
    %v5666 = vld [vmem:[#allocation4 + $0x58] sm:$0xff]
    %v5667 = vld [vmem:[#allocation4 + $0x60] sm:$0xff]
    %v5668 = vld [vmem:[#allocation4 + $0x68] sm:$0xff]
    %v5669 = vld [vmem:[#allocation4 + $0x70] sm:$0xff]
    %v5670 = vld [vmem:[#allocation4 + $0x78] sm:$0xff]
    %v5671 = vld [vmem:[#allocation4 + $0x80] sm:$0xff]
    %v5672 = vld [vmem:[#allocation4 + $0x88] sm:$0xff]
    %v5673 = vld [vmem:[#allocation4 + $0x90] sm:$0xff]
    %v5674 = vld [vmem:[#allocation4 + $0x98] sm:$0xff]
    %v5675 = vld [vmem:[#allocation4 + $0xa0] sm:$0xff]
    %v5676 = vld [vmem:[#allocation4 + $0xa8] sm:$0xff]
    %v5677 = vld [vmem:[#allocation4 + $0xb0] sm:$0xff]
    %v5678 = vld [vmem:[#allocation4 + $0xb8] sm:$0xff]
    %v5679 = vld [vmem:[#allocation4 + $0xc0] sm:$0xff]
    %v5680 = vld [vmem:[#allocation4 + $0xc8] sm:$0xff]
    %v5681 = vld [vmem:[#allocation4 + $0xd0] sm:$0xff]
    %v5682 = vld [vmem:[#allocation4 + $0xd8] sm:$0xff]
    %v5683 = vld [vmem:[#allocation4 + $0xe0] sm:$0xff]
    %v5684 = vld [vmem:[#allocation4 + $0xe8] sm:$0xff]
    %v5685 = vld [vmem:[#allocation4 + $0xf8] sm:$0xff]
    %v5686 = vld [vmem:[#allocation4 + $0x100] sm:$0xff]
    %v5687 = vld [vmem:[#allocation4 + $0x108] sm:$0xff]
    %v5688 = vld [vmem:[#allocation4 + $0x110] sm:$0xff]
    %v5689 = vld [vmem:[#allocation4 + $0x118] sm:$0xff]
    %v5690 = vld [vmem:[#allocation4 + $0x120] sm:$0xff]
    %v5691 = vld [vmem:[#allocation4 + $0x128] sm:$0xff]
    %v5692 = vld [vmem:[#allocation4 + $0x130] sm:$0xff]
    %v5693 = vld [vmem:[#allocation4 + $0x138] sm:$0xff]
    %v5694 = vld [vmem:[#allocation4 + $0x140] sm:$0xff]
    %v5695 = vld [vmem:[#allocation4 + $0x148] sm:$0xff]
    %v5696 = vld [vmem:[#allocation4 + $0x150] sm:$0xff]
    %v5697 = vld [vmem:[#allocation4 + $0x158] sm:$0xff]
    %v5698 = vld [vmem:[#allocation4 + $0x160] sm:$0xff]
    %v5699 = vld [vmem:[#allocation4 + $0x168] sm:$0xff]
    %v5700 = vld [vmem:[#allocation4 + $0x170] sm:$0xff]
    %v5701 = vld [vmem:[#allocation4 + $0x178] sm:$0xff]
    %v5702 = vld [vmem:[#allocation4 + $0x180] sm:$0xff]
    %v5703 = vld [vmem:[#allocation4 + $0x188] sm:$0xff]
    %v5704 = vld [vmem:[#allocation4 + $0x190] sm:$0xff]
    %v5705 = vld [vmem:[#allocation4 + $0x198] sm:$0xff]
    %v5706 = vld [vmem:[#allocation4 + $0x1a0] sm:$0xff]
    %v5707 = vld [vmem:[#allocation4 + $0x1a8] sm:$0xff]
    %v5708 = vld [vmem:[#allocation4 + $0x1b0] sm:$0xff]
    %v5709 = vld [vmem:[#allocation4 + $0x1b8] sm:$0xff]
    %v5710 = vld [vmem:[#allocation4 + $0x1c0] sm:$0xff]
    %v5711 = vld [vmem:[#allocation4 + $0x1c8] sm:$0xff]
    %v5712 = vld [vmem:[#allocation4 + $0x1d0] sm:$0xff]
    %v5713 = vld [vmem:[#allocation4 + $0x1d8] sm:$0xff]
    %v5714 = vld [vmem:[#allocation4 + $0x1e0] sm:$0xff]
    %v5715 = vld [vmem:[#allocation4 + $0x1] sm:$0xff]
    %v5716 = vld [vmem:[#allocation4 + $0x9] sm:$0xff]
    %v5717 = vld [vmem:[#allocation4 + $0x11] sm:$0xff]
    %v5718 = vld [vmem:[#allocation4 + $0x19] sm:$0xff]
    %v5719 = vld [vmem:[#allocation4 + $0x21] sm:$0xff]
    %v5720 = vld [vmem:[#allocation4 + $0x29] sm:$0xff]
    %v5721 = vld [vmem:[#allocation4 + $0x31] sm:$0xff]
    %v5722 = vld [vmem:[#allocation4 + $0x39] sm:$0xff]
    %v5723 = vld [vmem:[#allocation4 + $0x41] sm:$0xff]
    %v5724 = vld [vmem:[#allocation4 + $0x49] sm:$0xff]
    %v5725 = vld [vmem:[#allocation4 + $0x51] sm:$0xff]
    %v5726 = vld [vmem:[#allocation4 + $0x59] sm:$0xff]
    %v5727 = vld [vmem:[#allocation4 + $0x61] sm:$0xff]
    %v5728 = vld [vmem:[#allocation4 + $0x69] sm:$0xff]
    %v5729 = vld [vmem:[#allocation4 + $0x71] sm:$0xff]
    %v5730 = vld [vmem:[#allocation4 + $0x79] sm:$0xff]
    %v5731 = vld [vmem:[#allocation4 + $0x81] sm:$0xff]
    %v5732 = vld [vmem:[#allocation4 + $0x89] sm:$0xff]
    %v5733 = vld [vmem:[#allocation4 + $0x91] sm:$0xff]
    %v5734 = vld [vmem:[#allocation4 + $0x99] sm:$0xff]
    %v5735 = vld [vmem:[#allocation4 + $0xa1] sm:$0xff]
    %v5736 = vld [vmem:[#allocation4 + $0xa9] sm:$0xff]
    %v5737 = vld [vmem:[#allocation4 + $0xb1] sm:$0xff]
    %v5738 = vld [vmem:[#allocation4 + $0xb9] sm:$0xff]
    %v5739 = vld [vmem:[#allocation4 + $0xc1] sm:$0xff]
    %v5740 = vld [vmem:[#allocation4 + $0xc9] sm:$0xff]
    %v5741 = vld [vmem:[#allocation4 + $0xd1] sm:$0xff]
    %v5742 = vld [vmem:[#allocation4 + $0xd9] sm:$0xff]
    %v5743 = vld [vmem:[#allocation4 + $0xe1] sm:$0xff]
    %v5744 = vld [vmem:[#allocation4 + $0xe9] sm:$0xff]
    %v5745 = vld [vmem:[#allocation4 + $0xf9] sm:$0xff]
    %v5746 = vld [vmem:[#allocation4 + $0x101] sm:$0xff]
    %v5747 = vld [vmem:[#allocation4 + $0x109] sm:$0xff]
    %v5748 = vld [vmem:[#allocation4 + $0x111] sm:$0xff]
    %v5749 = vld [vmem:[#allocation4 + $0x119] sm:$0xff]
    %v5750 = vld [vmem:[#allocation4 + $0x121] sm:$0xff]
    %v5751 = vld [vmem:[#allocation4 + $0x129] sm:$0xff]
    %v5752 = vld [vmem:[#allocation4 + $0x131] sm:$0xff]
    %v5753 = vld [vmem:[#allocation4 + $0x139] sm:$0xff]
    %v5754 = vld [vmem:[#allocation4 + $0x141] sm:$0xff]
    %v5755 = vld [vmem:[#allocation4 + $0x149] sm:$0xff]
    %v5756 = vld [vmem:[#allocation4 + $0x151] sm:$0xff]
    %v5757 = vld [vmem:[#allocation4 + $0x159] sm:$0xff]
    %v5758 = vld [vmem:[#allocation4 + $0x161] sm:$0xff]
    %v5759 = vld [vmem:[#allocation4 + $0x169] sm:$0xff]
    %v5760 = vld [vmem:[#allocation4 + $0x171] sm:$0xff]
    %v5761 = vld [vmem:[#allocation4 + $0x179] sm:$0xff]
    %v5762 = vld [vmem:[#allocation4 + $0x181] sm:$0xff]
    %v5763 = vld [vmem:[#allocation4 + $0x189] sm:$0xff]
    %v5764 = vld [vmem:[#allocation4 + $0x191] sm:$0xff]
    %v5765 = vld [vmem:[#allocation4 + $0x199] sm:$0xff]
    %v5766 = vld [vmem:[#allocation4 + $0x1a1] sm:$0xff]
    %v5767 = vld [vmem:[#allocation4 + $0x1a9] sm:$0xff]
    %v5768 = vld [vmem:[#allocation4 + $0x1b1] sm:$0xff]
    %v5769 = vld [vmem:[#allocation4 + $0x1b9] sm:$0xff]
    %v5770 = vld [vmem:[#allocation4 + $0x1c1] sm:$0xff]
    %v5771 = vld [vmem:[#allocation4 + $0x1c9] sm:$0xff]
    %v5772 = vld [vmem:[#allocation4 + $0x1d1] sm:$0xff]
    %v5773 = vld [vmem:[#allocation4 + $0x1d9] sm:$0xff]
    %v5774 = vld [vmem:[#allocation4 + $0x1e1] sm:$0xff]
    %v5775 = vld [vmem:[#allocation4 + $0x2] sm:$0xff]
    %v5776 = vld [vmem:[#allocation4 + $0xa] sm:$0xff]
    %v5777 = vld [vmem:[#allocation4 + $0x12] sm:$0xff]
    %v5778 = vld [vmem:[#allocation4 + $0x1a] sm:$0xff]
    %v5779 = vld [vmem:[#allocation4 + $0x22] sm:$0xff]
    %v5780 = vld [vmem:[#allocation4 + $0x2a] sm:$0xff]
    %v5781 = vld [vmem:[#allocation4 + $0x32] sm:$0xff]
    %v5782 = vld [vmem:[#allocation4 + $0x3a] sm:$0xff]
    %v5783 = vld [vmem:[#allocation4 + $0x42] sm:$0xff]
    %v5784 = vld [vmem:[#allocation4 + $0x4a] sm:$0xff]
    %v5785 = vld [vmem:[#allocation4 + $0x52] sm:$0xff]
    %v5786 = vld [vmem:[#allocation4 + $0x5a] sm:$0xff]
    %v5787 = vld [vmem:[#allocation4 + $0x62] sm:$0xff]
    %v5788 = vld [vmem:[#allocation4 + $0x6a] sm:$0xff]
    %v5789 = vld [vmem:[#allocation4 + $0x72] sm:$0xff]
    %v5790 = vld [vmem:[#allocation4 + $0x7a] sm:$0xff]
    %v5791 = vld [vmem:[#allocation4 + $0x82] sm:$0xff]
    %v5792 = vld [vmem:[#allocation4 + $0x8a] sm:$0xff]
    %v5793 = vld [vmem:[#allocation4 + $0x92] sm:$0xff]
    %v5794 = vld [vmem:[#allocation4 + $0x9a] sm:$0xff]
    %v5795 = vld [vmem:[#allocation4 + $0xa2] sm:$0xff]
    %v5796 = vld [vmem:[#allocation4 + $0xaa] sm:$0xff]
    %v5797 = vld [vmem:[#allocation4 + $0xb2] sm:$0xff]
    %v5798 = vld [vmem:[#allocation4 + $0xba] sm:$0xff]
    %v5799 = vld [vmem:[#allocation4 + $0xc2] sm:$0xff]
    %v5800 = vld [vmem:[#allocation4 + $0xca] sm:$0xff]
    %v5801 = vld [vmem:[#allocation4 + $0xd2] sm:$0xff]
    %v5802 = vld [vmem:[#allocation4 + $0xda] sm:$0xff]
    %v5803 = vld [vmem:[#allocation4 + $0xe2] sm:$0xff]
    %v5804 = vld [vmem:[#allocation4 + $0xea] sm:$0xff]
    %v5805 = vld [vmem:[#allocation4 + $0xfa] sm:$0xff]
    %v5806 = vld [vmem:[#allocation4 + $0x102] sm:$0xff]
    %v5807 = vld [vmem:[#allocation4 + $0x10a] sm:$0xff]
    %v5808 = vld [vmem:[#allocation4 + $0x112] sm:$0xff]
    %v5809 = vld [vmem:[#allocation4 + $0x11a] sm:$0xff]
    %v5810 = vld [vmem:[#allocation4 + $0x122] sm:$0xff]
    %v5811 = vld [vmem:[#allocation4 + $0x12a] sm:$0xff]
    %v5812 = vld [vmem:[#allocation4 + $0x132] sm:$0xff]
    %v5813 = vld [vmem:[#allocation4 + $0x13a] sm:$0xff]
    %v5814 = vld [vmem:[#allocation4 + $0x142] sm:$0xff]
    %v5815 = vld [vmem:[#allocation4 + $0x14a] sm:$0xff]
    %v5816 = vld [vmem:[#allocation4 + $0x152] sm:$0xff]
    %v5817 = vld [vmem:[#allocation4 + $0x15a] sm:$0xff]
    %v5818 = vld [vmem:[#allocation4 + $0x162] sm:$0xff]
    %v5819 = vld [vmem:[#allocation4 + $0x16a] sm:$0xff]
    %v5820 = vld [vmem:[#allocation4 + $0x172] sm:$0xff]
    %v5821 = vld [vmem:[#allocation4 + $0x17a] sm:$0xff]
    %v5822 = vld [vmem:[#allocation4 + $0x182] sm:$0xff]
    %v5823 = vld [vmem:[#allocation4 + $0x18a] sm:$0xff]
    %v5824 = vld [vmem:[#allocation4 + $0x192] sm:$0xff]
    %v5825 = vld [vmem:[#allocation4 + $0x19a] sm:$0xff]
    %v5826 = vld [vmem:[#allocation4 + $0x1a2] sm:$0xff]
    %v5827 = vld [vmem:[#allocation4 + $0x1aa] sm:$0xff]
    %v5828 = vld [vmem:[#allocation4 + $0x1b2] sm:$0xff]
    %v5829 = vld [vmem:[#allocation4 + $0x1ba] sm:$0xff]
    %v5830 = vld [vmem:[#allocation4 + $0x1c2] sm:$0xff]
    %v5831 = vld [vmem:[#allocation4 + $0x1ca] sm:$0xff]
    %v5832 = vld [vmem:[#allocation4 + $0x1d2] sm:$0xff]
    %v5833 = vld [vmem:[#allocation4 + $0x1da] sm:$0xff]
    %v5834 = vld [vmem:[#allocation4 + $0x1e2] sm:$0xff]
    %v5835 = vld [vmem:[%s3] sm:$0xff]
    %v5836 = vld [vmem:[%s3 + $0x8] sm:$0xff]
    %v5837 = vld [vmem:[%s3 + $0x10] sm:$0xff]
    %v5838 = vld [vmem:[%s3 + $0x18] sm:$0xff]
    %s5839 = scalar_lea.vmem %s3, 32
    %v5840 = vld [vmem:[%s5839] sm:$0xff]
    %v5841 = vld [vmem:[%s5839 + $0x8] sm:$0xff]
    %v5842 = vld [vmem:[%s5839 + $0x10] sm:$0xff]
    %v5843 = vld [vmem:[%s5839 + $0x18] sm:$0xff]
    %v5845 = vsel %vm3995, %v5715, 0
    %v5848 = vsel %vm3995, %v5716, 0
    %v5851 = vsel %vm3995, %v5717, 0
    %v5854 = vsel %vm3995, %v5718, 0
    %v5857 = vsel %vm3995, %v5719, 0
    %v5860 = vsel %vm3995, %v5720, 0
    %v5863 = vsel %vm3995, %v5721, 0
    %v5866 = vsel %vm3995, %v5722, 0
    %v5869 = vsel %vm3995, %v5723, 0
    %v5872 = vsel %vm3995, %v5724, 0
    %v5875 = vsel %vm3995, %v5725, 0
    %v5878 = vsel %vm3995, %v5726, 0
    %v5881 = vsel %vm3995, %v5727, 0
    %v5884 = vsel %vm3995, %v5728, 0
    %v5887 = vsel %vm3995, %v5729, 0
    %v5890 = vsel %vm3995, %v5730, 0
    %v5893 = vsel %vm3995, %v5731, 0
    %v5896 = vsel %vm3995, %v5732, 0
    %v5899 = vsel %vm3995, %v5733, 0
    %v5902 = vsel %vm3995, %v5734, 0
    %v5905 = vsel %vm3995, %v5735, 0
    %v5908 = vsel %vm3995, %v5736, 0
    %v5911 = vsel %vm3995, %v5737, 0
    %v5914 = vsel %vm3995, %v5738, 0
    %v5917 = vsel %vm3995, %v5739, 0
    %v5920 = vsel %vm3995, %v5740, 0
    %v5923 = vsel %vm3995, %v5741, 0
    %v5926 = vsel %vm3995, %v5742, 0
    %v5929 = vsel %vm3995, %v5743, 0
    %v5932 = vsel %vm3995, %v5744, 0
    %v5935 = vsel %vm3995, %v5745, 0
    %v5938 = vsel %vm3995, %v5746, 0
    %v5941 = vsel %vm3995, %v5747, 0
    %v5944 = vsel %vm3995, %v5748, 0
    %v5947 = vsel %vm3995, %v5749, 0
    %v5950 = vsel %vm3995, %v5750, 0
    %v5953 = vsel %vm3995, %v5751, 0
    %v5956 = vsel %vm3995, %v5752, 0
    %v5959 = vsel %vm3995, %v5753, 0
    %v5962 = vsel %vm3995, %v5754, 0
    %v5965 = vsel %vm3995, %v5755, 0
    %v5968 = vsel %vm3995, %v5756, 0
    %v5971 = vsel %vm3995, %v5757, 0
    %v5974 = vsel %vm3995, %v5758, 0
    %v5977 = vsel %vm3995, %v5759, 0
    %v5980 = vsel %vm3995, %v5760, 0
    %v5983 = vsel %vm3995, %v5761, 0
    %v5986 = vsel %vm3995, %v5762, 0
    %v5989 = vsel %vm3995, %v5763, 0
    %v5992 = vsel %vm3995, %v5764, 0
    %v5995 = vsel %vm3995, %v5765, 0
    %v5998 = vsel %vm3995, %v5766, 0
    %v6001 = vsel %vm3995, %v5767, 0
    %v6004 = vsel %vm3995, %v5768, 0
    %v6007 = vsel %vm3995, %v5769, 0
    %v6010 = vsel %vm3995, %v5770, 0
    %v6013 = vsel %vm3995, %v5771, 0
    %v6016 = vsel %vm3995, %v5772, 0
    %v6019 = vsel %vm3995, %v5773, 0
    %v6022 = vsel %vm3995, %v5774, 0
    %6024 = vmatprep.subr.mxu0 0.0
    %6025 = vmatpush1.msra.mxu0 %v5840
    %6026 = vmatprep.subr.mxu0 0.0
    %6027 = vmatpush1.msra.mxu0 %v5841
    %6028 = vmatprep.subr.mxu0 0.0
    %6029 = vmatpush1.msra.mxu0 %v5842
    %6030 = vmatprep.subr.mxu0 0.0
    %6031 = vmatpush1.msra.mxu0 %v5843
    %6032 = vmatprep.subr.mxu0 0.0
    %6033 = vmatpush1.msra.mxu0 0.0
    %6034 = vmatprep.subr.mxu0 0.0
    %6035 = vmatpush1.msra.mxu0 0.0
    %6036 = vmatprep.subr.mxu0 0.0
    %6037 = vmatpush1.msra.mxu0 0.0
    %6038 = vmatprep.subr.mxu0 0.0
    %6039 = vmatpush1.msra.mxu0 0.0
    %6040 = vmatprep.subr.mxu0 0.0
    %6041 = vmatpush1.msra.mxu0 0.0
    %6042 = vmatprep.subr.mxu0 0.0
    %6043 = vmatpush1.msra.mxu0 0.0
    %6044 = vmatprep.subr.mxu0 0.0
    %6045 = vmatpush1.msra.mxu0 0.0
    %6046 = vmatprep.subr.mxu0 0.0
    %6047 = vmatpush1.msra.mxu0 0.0
    %6048 = vmatprep.subr.mxu0 0.0
    %6049 = vmatpush1.msra.mxu0 0.0
    %6050 = vmatprep.subr.mxu0 0.0
    %6051 = vmatpush1.msra.mxu0 0.0
    %6052 = vmatprep.subr.mxu0 0.0
    %6053 = vmatpush1.msra.mxu0 0.0
    %6054 = vmatprep.subr.mxu0 0.0
    %6055 = vmatpush1.msra.mxu0 0.0
    %6056 = vmatprep.subr.mxu0 0.0
    %6057 = vmatpush1.msra.mxu0 0.0
    %6058 = vmatprep.subr.mxu0 0.0
    %6059 = vmatpush1.msra.mxu0 0.0
    %6060 = vmatprep.subr.mxu0 0.0
    %6061 = vmatpush1.msra.mxu0 0.0
    %6062 = vmatprep.subr.mxu0 0.0
    %6063 = vmatpush1.msra.mxu0 0.0
    %6064 = vmatprep.subr.mxu0 0.0
    %6065 = vmatpush1.msra.mxu0 0.0
    %6066 = vmatprep.subr.mxu0 0.0
    %6067 = vmatpush1.msra.mxu0 0.0
    %6068 = vmatprep.subr.mxu0 0.0
    %6069 = vmatpush1.msra.mxu0 0.0
    %6070 = vmatprep.subr.mxu0 0.0
    %6071 = vmatpush1.msra.mxu0 0.0
    %6072 = vmatprep.subr.mxu0 0.0
    %6073 = vmatpush1.msra.mxu0 0.0
    %6074 = vmatprep.subr.mxu0 0.0
    %6075 = vmatpush1.msra.mxu0 0.0
    %6076 = vmatprep.subr.mxu0 0.0
    %6077 = vmatpush1.msra.mxu0 0.0
    %6078 = vmatprep.subr.mxu0 0.0
    %6079 = vmatpush1.msra.mxu0 0.0
    %6080 = vmatprep.subr.mxu0 0.0
    %6081 = vmatpush1.msra.mxu0 0.0
    %6082 = vmatprep.subr.mxu0 0.0
    %6083 = vmatpush1.msra.mxu0 0.0
    %6084 = vmatprep.subr.mxu0 0.0
    %6085 = vmatpush1.msra.mxu0 0.0
    %6086 = vmatprep.subr.mxu0 0.0
    %6087 = vmatpush1.msra.mxu0 0.0
    %6088 = vmatprep.mubr.f32.mxu0 0.0
    %6089 = vmatmul.mubr.f32.gmra.mrb[0].mxu0 %v5845
    %v6090 = vpop.f32.mrb[0].mxu0
    %v6091 = vadd.f32 0.0, %v6090
    %v6092 = vpop.f32.mrb[0].mxu0
    %6093 = vmatprep.mubr.f32.mxu0 0.0
    %6094 = vmatmul.mubr.f32.gmra.mrb[0].mxu0 %v5848
    %v6095 = vpop.f32.mrb[0].mxu0
    %v6096 = vadd.f32 0.0, %v6095
    %v6097 = vpop.f32.mrb[0].mxu0
    %6098 = vmatprep.mubr.f32.mxu0 0.0
    %6099 = vmatmul.mubr.f32.gmra.mrb[0].mxu0 %v5851
    %v6100 = vpop.f32.mrb[0].mxu0
    %v6101 = vadd.f32 0.0, %v6100
    %v6102 = vpop.f32.mrb[0].mxu0
    %6103 = vmatprep.mubr.f32.mxu0 0.0
    %6104 = vmatmul.mubr.f32.gmra.mrb[0].mxu0 %v5854
    %v6105 = vpop.f32.mrb[0].mxu0
    %v6106 = vadd.f32 0.0, %v6105
    %v6107 = vpop.f32.mrb[0].mxu0
    %6108 = vmatprep.mubr.f32.mxu0 0.0
    %6109 = vmatmul.mubr.f32.gmra.mrb[0].mxu0 %v5857
    %v6110 = vpop.f32.mrb[0].mxu0
    %v6111 = vadd.f32 0.0, %v6110
    %v6112 = vpop.f32.mrb[0].mxu0
    %6113 = vmatprep.mubr.f32.mxu0 0.0
    %6114 = vmatmul.mubr.f32.gmra.mrb[0].mxu0 %v5860
    %v6115 = vpop.f32.mrb[0].mxu0
    %v6116 = vadd.f32 0.0, %v6115
    %v6117 = vpop.f32.mrb[0].mxu0
    %6118 = vmatprep.mubr.f32.mxu0 0.0
    %6119 = vmatmul.mubr.f32.gmra.mrb[0].mxu0 %v5863
    %v6120 = vpop.f32.mrb[0].mxu0
    %v6121 = vadd.f32 0.0, %v6120
    %v6122 = vpop.f32.mrb[0].mxu0
    %6123 = vmatprep.mubr.f32.mxu0 0.0
    %6124 = vmatmul.mubr.f32.gmra.mrb[0].mxu0 %v5866
    %v6125 = vpop.f32.mrb[0].mxu0
    %v6126 = vadd.f32 0.0, %v6125
    %v6127 = vpop.f32.mrb[0].mxu0
    %6128 = vmatprep.mubr.f32.mxu0 0.0
    %6129 = vmatmul.mubr.f32.gmra.mrb[0].mxu0 %v5869
    %v6130 = vpop.f32.mrb[0].mxu0
    %v6131 = vadd.f32 0.0, %v6130
    %v6132 = vpop.f32.mrb[0].mxu0
    %6133 = vmatprep.mubr.f32.mxu0 0.0
    %6134 = vmatmul.mubr.f32.gmra.mrb[0].mxu0 %v5872
    %v6135 = vpop.f32.mrb[0].mxu0
    %v6136 = vadd.f32 0.0, %v6135
    %v6137 = vpop.f32.mrb[0].mxu0
    %6138 = vmatprep.mubr.f32.mxu0 0.0
    %6139 = vmatmul.mubr.f32.gmra.mrb[0].mxu0 %v5875
    %v6140 = vpop.f32.mrb[0].mxu0
    %v6141 = vadd.f32 0.0, %v6140
    %v6142 = vpop.f32.mrb[0].mxu0
    %6143 = vmatprep.mubr.f32.mxu0 0.0
    %6144 = vmatmul.mubr.f32.gmra.mrb[0].mxu0 %v5878
    %v6145 = vpop.f32.mrb[0].mxu0
    %v6146 = vadd.f32 0.0, %v6145
    %v6147 = vpop.f32.mrb[0].mxu0
    %6148 = vmatprep.mubr.f32.mxu0 0.0
    %6149 = vmatmul.mubr.f32.gmra.mrb[0].mxu0 %v5881
    %v6150 = vpop.f32.mrb[0].mxu0
    %v6151 = vadd.f32 0.0, %v6150
    %v6152 = vpop.f32.mrb[0].mxu0
    %6153 = vmatprep.mubr.f32.mxu0 0.0
    %6154 = vmatmul.mubr.f32.gmra.mrb[0].mxu0 %v5884
    %v6155 = vpop.f32.mrb[0].mxu0
    %v6156 = vadd.f32 0.0, %v6155
    %v6157 = vpop.f32.mrb[0].mxu0
    %6158 = vmatprep.mubr.f32.mxu0 0.0
    %6159 = vmatmul.mubr.f32.gmra.mrb[0].mxu0 %v5887
    %v6160 = vpop.f32.mrb[0].mxu0
    %v6161 = vadd.f32 0.0, %v6160
    %v6162 = vpop.f32.mrb[0].mxu0
    %6163 = vmatprep.mubr.f32.mxu0 0.0
    %6164 = vmatmul.mubr.f32.gmra.mrb[0].mxu0 %v5890
    %v6165 = vpop.f32.mrb[0].mxu0
    %v6166 = vadd.f32 0.0, %v6165
    %v6167 = vpop.f32.mrb[0].mxu0
    %6168 = vmatprep.mubr.f32.mxu0 0.0
    %6169 = vmatmul.mubr.f32.gmra.mrb[0].mxu0 %v5893
    %v6170 = vpop.f32.mrb[0].mxu0
    %v6171 = vadd.f32 0.0, %v6170
    %v6172 = vpop.f32.mrb[0].mxu0
    %6173 = vmatprep.mubr.f32.mxu0 0.0
    %6174 = vmatmul.mubr.f32.gmra.mrb[0].mxu0 %v5896
    %v6175 = vpop.f32.mrb[0].mxu0
    %v6176 = vadd.f32 0.0, %v6175
    %v6177 = vpop.f32.mrb[0].mxu0
    %6178 = vmatprep.mubr.f32.mxu0 0.0
    %6179 = vmatmul.mubr.f32.gmra.mrb[0].mxu0 %v5899
    %v6180 = vpop.f32.mrb[0].mxu0
    %v6181 = vadd.f32 0.0, %v6180
    %v6182 = vpop.f32.mrb[0].mxu0
    %6183 = vmatprep.mubr.f32.mxu0 0.0
    %6184 = vmatmul.mubr.f32.gmra.mrb[0].mxu0 %v5902
    %v6185 = vpop.f32.mrb[0].mxu0
    %v6186 = vadd.f32 0.0, %v6185
    %v6187 = vpop.f32.mrb[0].mxu0
    %6188 = vmatprep.mubr.f32.mxu0 0.0
    %6189 = vmatmul.mubr.f32.gmra.mrb[0].mxu0 %v5905
    %v6190 = vpop.f32.mrb[0].mxu0
    %v6191 = vadd.f32 0.0, %v6190
    %v6192 = vpop.f32.mrb[0].mxu0
    %6193 = vmatprep.mubr.f32.mxu0 0.0
    %6194 = vmatmul.mubr.f32.gmra.mrb[0].mxu0 %v5908
    %v6195 = vpop.f32.mrb[0].mxu0
    %v6196 = vadd.f32 0.0, %v6195
    %v6197 = vpop.f32.mrb[0].mxu0
    %6198 = vmatprep.mubr.f32.mxu0 0.0
    %6199 = vmatmul.mubr.f32.gmra.mrb[0].mxu0 %v5911
    %v6200 = vpop.f32.mrb[0].mxu0
    %v6201 = vadd.f32 0.0, %v6200
    %v6202 = vpop.f32.mrb[0].mxu0
    %6203 = vmatprep.mubr.f32.mxu0 0.0
    %6204 = vmatmul.mubr.f32.gmra.mrb[0].mxu0 %v5914
    %v6205 = vpop.f32.mrb[0].mxu0
    %v6206 = vadd.f32 0.0, %v6205
    %v6207 = vpop.f32.mrb[0].mxu0
    %6208 = vmatprep.mubr.f32.mxu0 0.0
    %6209 = vmatmul.mubr.f32.gmra.mrb[0].mxu0 %v5917
    %v6210 = vpop.f32.mrb[0].mxu0
    %v6211 = vadd.f32 0.0, %v6210
    %v6212 = vpop.f32.mrb[0].mxu0
    %6213 = vmatprep.mubr.f32.mxu0 0.0
    %6214 = vmatmul.mubr.f32.gmra.mrb[0].mxu0 %v5920
    %v6215 = vpop.f32.mrb[0].mxu0
    %v6216 = vadd.f32 0.0, %v6215
    %v6217 = vpop.f32.mrb[0].mxu0
    %6218 = vmatprep.mubr.f32.mxu0 0.0
    %6219 = vmatmul.mubr.f32.gmra.mrb[0].mxu0 %v5923
    %v6220 = vpop.f32.mrb[0].mxu0
    %v6221 = vadd.f32 0.0, %v6220
    %v6222 = vpop.f32.mrb[0].mxu0
    %6223 = vmatprep.mubr.f32.mxu0 0.0
    %6224 = vmatmul.mubr.f32.gmra.mrb[0].mxu0 %v5926
    %v6225 = vpop.f32.mrb[0].mxu0
    %v6226 = vadd.f32 0.0, %v6225
    %v6227 = vpop.f32.mrb[0].mxu0
    %6228 = vmatprep.mubr.f32.mxu0 0.0
    %6229 = vmatmul.mubr.f32.gmra.mrb[0].mxu0 %v5929
    %v6230 = vpop.f32.mrb[0].mxu0
    %v6231 = vadd.f32 0.0, %v6230
    %v6232 = vpop.f32.mrb[0].mxu0
    %6233 = vmatprep.mubr.f32.mxu0 0.0
    %6234 = vmatmul.mubr.f32.gmra.mrb[0].mxu0 %v5932
    %v6235 = vpop.f32.mrb[0].mxu0
    %v6236 = vadd.f32 0.0, %v6235
    %v6237 = vpop.f32.mrb[0].mxu0
    %6238 = vmatprep.mubr.f32.mxu0 0.0
    %6239 = vmatmul.mubr.f32.gmra.mrb[0].mxu0 %v5935
    %v6240 = vpop.f32.mrb[0].mxu0
    %v6241 = vadd.f32 0.0, %v6240
    %v6242 = vpop.f32.mrb[0].mxu0
    %6243 = vmatprep.mubr.f32.mxu0 0.0
    %6244 = vmatmul.mubr.f32.gmra.mrb[0].mxu0 %v5938
    %v6245 = vpop.f32.mrb[0].mxu0
    %v6246 = vadd.f32 0.0, %v6245
    %v6247 = vpop.f32.mrb[0].mxu0
    %6248 = vmatprep.mubr.f32.mxu0 0.0
    %6249 = vmatmul.mubr.f32.gmra.mrb[0].mxu0 %v5941
    %v6250 = vpop.f32.mrb[0].mxu0
    %v6251 = vadd.f32 0.0, %v6250
    %v6252 = vpop.f32.mrb[0].mxu0
    %6253 = vmatprep.mubr.f32.mxu0 0.0
    %6254 = vmatmul.mubr.f32.gmra.mrb[0].mxu0 %v5944
    %v6255 = vpop.f32.mrb[0].mxu0
    %v6256 = vadd.f32 0.0, %v6255
    %v6257 = vpop.f32.mrb[0].mxu0
    %6258 = vmatprep.mubr.f32.mxu0 0.0
    %6259 = vmatmul.mubr.f32.gmra.mrb[0].mxu0 %v5947
    %v6260 = vpop.f32.mrb[0].mxu0
    %v6261 = vadd.f32 0.0, %v6260
    %v6262 = vpop.f32.mrb[0].mxu0
    %6263 = vmatprep.mubr.f32.mxu0 0.0
    %6264 = vmatmul.mubr.f32.gmra.mrb[0].mxu0 %v5950
    %v6265 = vpop.f32.mrb[0].mxu0
    %v6266 = vadd.f32 0.0, %v6265
    %v6267 = vpop.f32.mrb[0].mxu0
    %6268 = vmatprep.mubr.f32.mxu0 0.0
    %6269 = vmatmul.mubr.f32.gmra.mrb[0].mxu0 %v5953
    %v6270 = vpop.f32.mrb[0].mxu0
    %v6271 = vadd.f32 0.0, %v6270
    %v6272 = vpop.f32.mrb[0].mxu0
    %6273 = vmatprep.mubr.f32.mxu0 0.0
    %6274 = vmatmul.mubr.f32.gmra.mrb[0].mxu0 %v5956
    %v6275 = vpop.f32.mrb[0].mxu0
    %v6276 = vadd.f32 0.0, %v6275
    %v6277 = vpop.f32.mrb[0].mxu0
    %6278 = vmatprep.mubr.f32.mxu0 0.0
    %6279 = vmatmul.mubr.f32.gmra.mrb[0].mxu0 %v5959
    %v6280 = vpop.f32.mrb[0].mxu0
    %v6281 = vadd.f32 0.0, %v6280
    %v6282 = vpop.f32.mrb[0].mxu0
    %6283 = vmatprep.mubr.f32.mxu0 0.0
    %6284 = vmatmul.mubr.f32.gmra.mrb[0].mxu0 %v5962
    %v6285 = vpop.f32.mrb[0].mxu0
    %v6286 = vadd.f32 0.0, %v6285
    %v6287 = vpop.f32.mrb[0].mxu0
    %6288 = vmatprep.mubr.f32.mxu0 0.0
    %6289 = vmatmul.mubr.f32.gmra.mrb[0].mxu0 %v5965
    %v6290 = vpop.f32.mrb[0].mxu0
    %v6291 = vadd.f32 0.0, %v6290
    %v6292 = vpop.f32.mrb[0].mxu0
    %6293 = vmatprep.mubr.f32.mxu0 0.0
    %6294 = vmatmul.mubr.f32.gmra.mrb[0].mxu0 %v5968
    %v6295 = vpop.f32.mrb[0].mxu0
    %v6296 = vadd.f32 0.0, %v6295
    %v6297 = vpop.f32.mrb[0].mxu0
    %6298 = vmatprep.mubr.f32.mxu0 0.0
    %6299 = vmatmul.mubr.f32.gmra.mrb[0].mxu0 %v5971
    %v6300 = vpop.f32.mrb[0].mxu0
    %v6301 = vadd.f32 0.0, %v6300
    %v6302 = vpop.f32.mrb[0].mxu0
    %6303 = vmatprep.mubr.f32.mxu0 0.0
    %6304 = vmatmul.mubr.f32.gmra.mrb[0].mxu0 %v5974
    %v6305 = vpop.f32.mrb[0].mxu0
    %v6306 = vadd.f32 0.0, %v6305
    %v6307 = vpop.f32.mrb[0].mxu0
    %6308 = vmatprep.mubr.f32.mxu0 0.0
    %6309 = vmatmul.mubr.f32.gmra.mrb[0].mxu0 %v5977
    %v6310 = vpop.f32.mrb[0].mxu0
    %v6311 = vadd.f32 0.0, %v6310
    %v6312 = vpop.f32.mrb[0].mxu0
    %6313 = vmatprep.mubr.f32.mxu0 0.0
    %6314 = vmatmul.mubr.f32.gmra.mrb[0].mxu0 %v5980
    %v6315 = vpop.f32.mrb[0].mxu0
    %v6316 = vadd.f32 0.0, %v6315
    %v6317 = vpop.f32.mrb[0].mxu0
    %6318 = vmatprep.mubr.f32.mxu0 0.0
    %6319 = vmatmul.mubr.f32.gmra.mrb[0].mxu0 %v5983
    %v6320 = vpop.f32.mrb[0].mxu0
    %v6321 = vadd.f32 0.0, %v6320
    %v6322 = vpop.f32.mrb[0].mxu0
    %6323 = vmatprep.mubr.f32.mxu0 0.0
    %6324 = vmatmul.mubr.f32.gmra.mrb[0].mxu0 %v5986
    %v6325 = vpop.f32.mrb[0].mxu0
    %v6326 = vadd.f32 0.0, %v6325
    %v6327 = vpop.f32.mrb[0].mxu0
    %6328 = vmatprep.mubr.f32.mxu0 0.0
    %6329 = vmatmul.mubr.f32.gmra.mrb[0].mxu0 %v5989
    %v6330 = vpop.f32.mrb[0].mxu0
    %v6331 = vadd.f32 0.0, %v6330
    %v6332 = vpop.f32.mrb[0].mxu0
    %6333 = vmatprep.mubr.f32.mxu0 0.0
    %6334 = vmatmul.mubr.f32.gmra.mrb[0].mxu0 %v5992
    %v6335 = vpop.f32.mrb[0].mxu0
    %v6336 = vadd.f32 0.0, %v6335
    %v6337 = vpop.f32.mrb[0].mxu0
    %6338 = vmatprep.mubr.f32.mxu0 0.0
    %6339 = vmatmul.mubr.f32.gmra.mrb[0].mxu0 %v5995
    %v6340 = vpop.f32.mrb[0].mxu0
    %v6341 = vadd.f32 0.0, %v6340
    %v6342 = vpop.f32.mrb[0].mxu0
    %6343 = vmatprep.mubr.f32.mxu0 0.0
    %6344 = vmatmul.mubr.f32.gmra.mrb[0].mxu0 %v5998
    %v6345 = vpop.f32.mrb[0].mxu0
    %v6346 = vadd.f32 0.0, %v6345
    %v6347 = vpop.f32.mrb[0].mxu0
    %6348 = vmatprep.mubr.f32.mxu0 0.0
    %6349 = vmatmul.mubr.f32.gmra.mrb[0].mxu0 %v6001
    %v6350 = vpop.f32.mrb[0].mxu0
    %v6351 = vadd.f32 0.0, %v6350
    %v6352 = vpop.f32.mrb[0].mxu0
    %6353 = vmatprep.mubr.f32.mxu0 0.0
    %6354 = vmatmul.mubr.f32.gmra.mrb[0].mxu0 %v6004
    %v6355 = vpop.f32.mrb[0].mxu0
    %v6356 = vadd.f32 0.0, %v6355
    %v6357 = vpop.f32.mrb[0].mxu0
    %6358 = vmatprep.mubr.f32.mxu0 0.0
    %6359 = vmatmul.mubr.f32.gmra.mrb[0].mxu0 %v6007
    %v6360 = vpop.f32.mrb[0].mxu0
    %v6361 = vadd.f32 0.0, %v6360
    %v6362 = vpop.f32.mrb[0].mxu0
    %6363 = vmatprep.mubr.f32.mxu0 0.0
    %6364 = vmatmul.mubr.f32.gmra.mrb[0].mxu0 %v6010
    %v6365 = vpop.f32.mrb[0].mxu0
    %v6366 = vadd.f32 0.0, %v6365
    %v6367 = vpop.f32.mrb[0].mxu0
    %6368 = vmatprep.mubr.f32.mxu0 0.0
    %6369 = vmatmul.mubr.f32.gmra.mrb[0].mxu0 %v6013
    %v6370 = vpop.f32.mrb[0].mxu0
    %v6371 = vadd.f32 0.0, %v6370
    %v6372 = vpop.f32.mrb[0].mxu0
    %6373 = vmatprep.mubr.f32.mxu0 0.0
    %6374 = vmatmul.mubr.f32.gmra.mrb[0].mxu0 %v6016
    %v6375 = vpop.f32.mrb[0].mxu0
    %v6376 = vadd.f32 0.0, %v6375
    %v6377 = vpop.f32.mrb[0].mxu0
    %6378 = vmatprep.mubr.f32.mxu0 0.0
    %6379 = vmatmul.mubr.f32.gmra.mrb[0].mxu0 %v6019
    %v6380 = vpop.f32.mrb[0].mxu0
    %v6381 = vadd.f32 0.0, %v6380
    %v6382 = vpop.f32.mrb[0].mxu0
    %6383 = vmatprep.mubr.f32.mxu0 0.0
    %6384 = vmatmul.mubr.f32.gmra.mrb[0].mxu0 %v6022
    %v6385 = vpop.f32.mrb[0].mxu0
    %v6386 = vadd.f32 0.0, %v6385
    %v6387 = vpop.f32.mrb[0].mxu0
    %6388 = vdwg.mxu0
    %v6390 = vsel %vm3995, %v5655, 0
    %v6393 = vsel %vm3995, %v5656, 0
    %v6396 = vsel %vm3995, %v5657, 0
    %v6399 = vsel %vm3995, %v5658, 0
    %v6402 = vsel %vm3995, %v5659, 0
    %v6405 = vsel %vm3995, %v5660, 0
    %v6408 = vsel %vm3995, %v5661, 0
    %v6411 = vsel %vm3995, %v5662, 0
    %v6414 = vsel %vm3995, %v5663, 0
    %v6417 = vsel %vm3995, %v5664, 0
    %v6420 = vsel %vm3995, %v5665, 0
    %v6423 = vsel %vm3995, %v5666, 0
    %v6426 = vsel %vm3995, %v5667, 0
    %v6429 = vsel %vm3995, %v5668, 0
    %v6432 = vsel %vm3995, %v5669, 0
    %v6435 = vsel %vm3995, %v5670, 0
    %v6438 = vsel %vm3995, %v5671, 0
    %v6441 = vsel %vm3995, %v5672, 0
    %v6444 = vsel %vm3995, %v5673, 0
    %v6447 = vsel %vm3995, %v5674, 0
    %v6450 = vsel %vm3995, %v5675, 0
    %v6453 = vsel %vm3995, %v5676, 0
    %v6456 = vsel %vm3995, %v5677, 0
    %v6459 = vsel %vm3995, %v5678, 0
    %v6462 = vsel %vm3995, %v5679, 0
    %v6465 = vsel %vm3995, %v5680, 0
    %v6468 = vsel %vm3995, %v5681, 0
    %v6471 = vsel %vm3995, %v5682, 0
    %v6474 = vsel %vm3995, %v5683, 0
    %v6477 = vsel %vm3995, %v5684, 0
    %v6480 = vsel %vm3995, %v5685, 0
    %v6483 = vsel %vm3995, %v5686, 0
    %v6486 = vsel %vm3995, %v5687, 0
    %v6489 = vsel %vm3995, %v5688, 0
    %v6492 = vsel %vm3995, %v5689, 0
    %v6495 = vsel %vm3995, %v5690, 0
    %v6498 = vsel %vm3995, %v5691, 0
    %v6501 = vsel %vm3995, %v5692, 0
    %v6504 = vsel %vm3995, %v5693, 0
    %v6507 = vsel %vm3995, %v5694, 0
    %v6510 = vsel %vm3995, %v5695, 0
    %v6513 = vsel %vm3995, %v5696, 0
    %v6516 = vsel %vm3995, %v5697, 0
    %v6519 = vsel %vm3995, %v5698, 0
    %v6522 = vsel %vm3995, %v5699, 0
    %v6525 = vsel %vm3995, %v5700, 0
    %v6528 = vsel %vm3995, %v5701, 0
    %v6531 = vsel %vm3995, %v5702, 0
    %v6534 = vsel %vm3995, %v5703, 0
    %v6537 = vsel %vm3995, %v5704, 0
    %v6540 = vsel %vm3995, %v5705, 0
    %v6543 = vsel %vm3995, %v5706, 0
    %v6546 = vsel %vm3995, %v5707, 0
    %v6549 = vsel %vm3995, %v5708, 0
    %v6552 = vsel %vm3995, %v5709, 0
    %v6555 = vsel %vm3995, %v5710, 0
    %v6558 = vsel %vm3995, %v5711, 0
    %v6561 = vsel %vm3995, %v5712, 0
    %v6564 = vsel %vm3995, %v5713, 0
    %v6567 = vsel %vm3995, %v5714, 0
    %6569 = vmatprep.subr.mxu0 0.0
    %6570 = vmatpush1.msra.mxu0 %v5835
    %6571 = vmatprep.subr.mxu0 0.0
    %6572 = vmatpush1.msra.mxu0 %v5836
    %6573 = vmatprep.subr.mxu0 0.0
    %6574 = vmatpush1.msra.mxu0 %v5837
    %6575 = vmatprep.subr.mxu0 0.0
    %6576 = vmatpush1.msra.mxu0 %v5838
    %6577 = vmatprep.subr.mxu0 0.0
    %6578 = vmatpush1.msra.mxu0 0.0
    %6579 = vmatprep.subr.mxu0 0.0
    %6580 = vmatpush1.msra.mxu0 0.0
    %6581 = vmatprep.subr.mxu0 0.0
    %6582 = vmatpush1.msra.mxu0 0.0
    %6583 = vmatprep.subr.mxu0 0.0
    %6584 = vmatpush1.msra.mxu0 0.0
    %6585 = vmatprep.subr.mxu0 0.0
    %6586 = vmatpush1.msra.mxu0 0.0
    %6587 = vmatprep.subr.mxu0 0.0
    %6588 = vmatpush1.msra.mxu0 0.0
    %6589 = vmatprep.subr.mxu0 0.0
    %6590 = vmatpush1.msra.mxu0 0.0
    %6591 = vmatprep.subr.mxu0 0.0
    %6592 = vmatpush1.msra.mxu0 0.0
    %6593 = vmatprep.subr.mxu0 0.0
    %6594 = vmatpush1.msra.mxu0 0.0
    %6595 = vmatprep.subr.mxu0 0.0
    %6596 = vmatpush1.msra.mxu0 0.0
    %6597 = vmatprep.subr.mxu0 0.0
    %6598 = vmatpush1.msra.mxu0 0.0
    %6599 = vmatprep.subr.mxu0 0.0
    %6600 = vmatpush1.msra.mxu0 0.0
    %6601 = vmatprep.subr.mxu0 0.0
    %6602 = vmatpush1.msra.mxu0 0.0
    %6603 = vmatprep.subr.mxu0 0.0
    %6604 = vmatpush1.msra.mxu0 0.0
    %6605 = vmatprep.subr.mxu0 0.0
    %6606 = vmatpush1.msra.mxu0 0.0
    %6607 = vmatprep.subr.mxu0 0.0
    %6608 = vmatpush1.msra.mxu0 0.0
    %6609 = vmatprep.subr.mxu0 0.0
    %6610 = vmatpush1.msra.mxu0 0.0
    %6611 = vmatprep.subr.mxu0 0.0
    %6612 = vmatpush1.msra.mxu0 0.0
    %6613 = vmatprep.subr.mxu0 0.0
    %6614 = vmatpush1.msra.mxu0 0.0
    %6615 = vmatprep.subr.mxu0 0.0
    %6616 = vmatpush1.msra.mxu0 0.0
    %6617 = vmatprep.subr.mxu0 0.0
    %6618 = vmatpush1.msra.mxu0 0.0
    %6619 = vmatprep.subr.mxu0 0.0
    %6620 = vmatpush1.msra.mxu0 0.0
    %6621 = vmatprep.subr.mxu0 0.0
    %6622 = vmatpush1.msra.mxu0 0.0
    %6623 = vmatprep.subr.mxu0 0.0
    %6624 = vmatpush1.msra.mxu0 0.0
    %6625 = vmatprep.subr.mxu0 0.0
    %6626 = vmatpush1.msra.mxu0 0.0
    %6627 = vmatprep.subr.mxu0 0.0
    %6628 = vmatpush1.msra.mxu0 0.0
    %6629 = vmatprep.subr.mxu0 0.0
    %6630 = vmatpush1.msra.mxu0 0.0
    %6631 = vmatprep.subr.mxu0 0.0
    %6632 = vmatpush1.msra.mxu0 0.0
    %6633 = vmatprep.mubr.f32.mxu0 0.0
    %6634 = vmatmul.mubr.f32.gmra.mrb[0].mxu0 %v6390
    %v6635 = vpop.f32.mrb[0].mxu0
    %v6636 = vadd.f32 %v6091, %v6635
    %v6637 = vpop.f32.mrb[0].mxu0
    %6638 = vmatprep.mubr.f32.mxu0 0.0
    %6639 = vmatmul.mubr.f32.gmra.mrb[0].mxu0 %v6393
    %v6640 = vpop.f32.mrb[0].mxu0
    %v6641 = vadd.f32 %v6096, %v6640
    %v6642 = vpop.f32.mrb[0].mxu0
    %6643 = vmatprep.mubr.f32.mxu0 0.0
    %6644 = vmatmul.mubr.f32.gmra.mrb[0].mxu0 %v6396
    %v6645 = vpop.f32.mrb[0].mxu0
    %v6646 = vadd.f32 %v6101, %v6645
    %v6647 = vpop.f32.mrb[0].mxu0
    %6648 = vmatprep.mubr.f32.mxu0 0.0
    %6649 = vmatmul.mubr.f32.gmra.mrb[0].mxu0 %v6399
    %v6650 = vpop.f32.mrb[0].mxu0
    %v6651 = vadd.f32 %v6106, %v6650
    %v6652 = vpop.f32.mrb[0].mxu0
    %6653 = vmatprep.mubr.f32.mxu0 0.0
    %6654 = vmatmul.mubr.f32.gmra.mrb[0].mxu0 %v6402
    %v6655 = vpop.f32.mrb[0].mxu0
    %v6656 = vadd.f32 %v6111, %v6655
    %v6657 = vpop.f32.mrb[0].mxu0
    %6658 = vmatprep.mubr.f32.mxu0 0.0
    %6659 = vmatmul.mubr.f32.gmra.mrb[0].mxu0 %v6405
    %v6660 = vpop.f32.mrb[0].mxu0
    %v6661 = vadd.f32 %v6116, %v6660
    %v6662 = vpop.f32.mrb[0].mxu0
    %6663 = vmatprep.mubr.f32.mxu0 0.0
    %6664 = vmatmul.mubr.f32.gmra.mrb[0].mxu0 %v6408
    %v6665 = vpop.f32.mrb[0].mxu0
    %v6666 = vadd.f32 %v6121, %v6665
    %v6667 = vpop.f32.mrb[0].mxu0
    %6668 = vmatprep.mubr.f32.mxu0 0.0
    %6669 = vmatmul.mubr.f32.gmra.mrb[0].mxu0 %v6411
    %v6670 = vpop.f32.mrb[0].mxu0
    %v6671 = vadd.f32 %v6126, %v6670
    %v6672 = vpop.f32.mrb[0].mxu0
    %6673 = vmatprep.mubr.f32.mxu0 0.0
    %6674 = vmatmul.mubr.f32.gmra.mrb[0].mxu0 %v6414
    %v6675 = vpop.f32.mrb[0].mxu0
    %v6676 = vadd.f32 %v6131, %v6675
    %v6677 = vpop.f32.mrb[0].mxu0
    %6678 = vmatprep.mubr.f32.mxu0 0.0
    %6679 = vmatmul.mubr.f32.gmra.mrb[0].mxu0 %v6417
    %v6680 = vpop.f32.mrb[0].mxu0
    %v6681 = vadd.f32 %v6136, %v6680
    %v6682 = vpop.f32.mrb[0].mxu0
    %6683 = vmatprep.mubr.f32.mxu0 0.0
    %6684 = vmatmul.mubr.f32.gmra.mrb[0].mxu0 %v6420
    %v6685 = vpop.f32.mrb[0].mxu0
    %v6686 = vadd.f32 %v6141, %v6685
    %v6687 = vpop.f32.mrb[0].mxu0
    %6688 = vmatprep.mubr.f32.mxu0 0.0
    %6689 = vmatmul.mubr.f32.gmra.mrb[0].mxu0 %v6423
    %v6690 = vpop.f32.mrb[0].mxu0
    %v6691 = vadd.f32 %v6146, %v6690
    %v6692 = vpop.f32.mrb[0].mxu0
    %6693 = vmatprep.mubr.f32.mxu0 0.0
    %6694 = vmatmul.mubr.f32.gmra.mrb[0].mxu0 %v6426
    %v6695 = vpop.f32.mrb[0].mxu0
    %v6696 = vadd.f32 %v6151, %v6695
    %v6697 = vpop.f32.mrb[0].mxu0
    %6698 = vmatprep.mubr.f32.mxu0 0.0
    %6699 = vmatmul.mubr.f32.gmra.mrb[0].mxu0 %v6429
    %v6700 = vpop.f32.mrb[0].mxu0
    %v6701 = vadd.f32 %v6156, %v6700
    %v6702 = vpop.f32.mrb[0].mxu0
    %6703 = vmatprep.mubr.f32.mxu0 0.0
    %6704 = vmatmul.mubr.f32.gmra.mrb[0].mxu0 %v6432
    %v6705 = vpop.f32.mrb[0].mxu0
    %v6706 = vadd.f32 %v6161, %v6705
    %v6707 = vpop.f32.mrb[0].mxu0
    %6708 = vmatprep.mubr.f32.mxu0 0.0
    %6709 = vmatmul.mubr.f32.gmra.mrb[0].mxu0 %v6435
    %v6710 = vpop.f32.mrb[0].mxu0
    %v6711 = vadd.f32 %v6166, %v6710
    %v6712 = vpop.f32.mrb[0].mxu0
    %6713 = vmatprep.mubr.f32.mxu0 0.0
    %6714 = vmatmul.mubr.f32.gmra.mrb[0].mxu0 %v6438
    %v6715 = vpop.f32.mrb[0].mxu0
    %v6716 = vadd.f32 %v6171, %v6715
    %v6717 = vpop.f32.mrb[0].mxu0
    %6718 = vmatprep.mubr.f32.mxu0 0.0
    %6719 = vmatmul.mubr.f32.gmra.mrb[0].mxu0 %v6441
    %v6720 = vpop.f32.mrb[0].mxu0
    %v6721 = vadd.f32 %v6176, %v6720
    %v6722 = vpop.f32.mrb[0].mxu0
    %6723 = vmatprep.mubr.f32.mxu0 0.0
    %6724 = vmatmul.mubr.f32.gmra.mrb[0].mxu0 %v6444
    %v6725 = vpop.f32.mrb[0].mxu0
    %v6726 = vadd.f32 %v6181, %v6725
    %v6727 = vpop.f32.mrb[0].mxu0
    %6728 = vmatprep.mubr.f32.mxu0 0.0
    %6729 = vmatmul.mubr.f32.gmra.mrb[0].mxu0 %v6447
    %v6730 = vpop.f32.mrb[0].mxu0
    %v6731 = vadd.f32 %v6186, %v6730
    %v6732 = vpop.f32.mrb[0].mxu0
    %6733 = vmatprep.mubr.f32.mxu0 0.0
    %6734 = vmatmul.mubr.f32.gmra.mrb[0].mxu0 %v6450
    %v6735 = vpop.f32.mrb[0].mxu0
    %v6736 = vadd.f32 %v6191, %v6735
    %v6737 = vpop.f32.mrb[0].mxu0
    %6738 = vmatprep.mubr.f32.mxu0 0.0
    %6739 = vmatmul.mubr.f32.gmra.mrb[0].mxu0 %v6453
    %v6740 = vpop.f32.mrb[0].mxu0
    %v6741 = vadd.f32 %v6196, %v6740
    %v6742 = vpop.f32.mrb[0].mxu0
    %6743 = vmatprep.mubr.f32.mxu0 0.0
    %6744 = vmatmul.mubr.f32.gmra.mrb[0].mxu0 %v6456
    %v6745 = vpop.f32.mrb[0].mxu0
    %v6746 = vadd.f32 %v6201, %v6745
    %v6747 = vpop.f32.mrb[0].mxu0
    %6748 = vmatprep.mubr.f32.mxu0 0.0
    %6749 = vmatmul.mubr.f32.gmra.mrb[0].mxu0 %v6459
    %v6750 = vpop.f32.mrb[0].mxu0
    %v6751 = vadd.f32 %v6206, %v6750
    %v6752 = vpop.f32.mrb[0].mxu0
    %6753 = vmatprep.mubr.f32.mxu0 0.0
    %6754 = vmatmul.mubr.f32.gmra.mrb[0].mxu0 %v6462
    %v6755 = vpop.f32.mrb[0].mxu0
    %v6756 = vadd.f32 %v6211, %v6755
    %v6757 = vpop.f32.mrb[0].mxu0
    %6758 = vmatprep.mubr.f32.mxu0 0.0
    %6759 = vmatmul.mubr.f32.gmra.mrb[0].mxu0 %v6465
    %v6760 = vpop.f32.mrb[0].mxu0
    %v6761 = vadd.f32 %v6216, %v6760
    %v6762 = vpop.f32.mrb[0].mxu0
    %6763 = vmatprep.mubr.f32.mxu0 0.0
    %6764 = vmatmul.mubr.f32.gmra.mrb[0].mxu0 %v6468
    %v6765 = vpop.f32.mrb[0].mxu0
    %v6766 = vadd.f32 %v6221, %v6765
    %v6767 = vpop.f32.mrb[0].mxu0
    %6768 = vmatprep.mubr.f32.mxu0 0.0
    %6769 = vmatmul.mubr.f32.gmra.mrb[0].mxu0 %v6471
    %v6770 = vpop.f32.mrb[0].mxu0
    %v6771 = vadd.f32 %v6226, %v6770
    %v6772 = vpop.f32.mrb[0].mxu0
    %6773 = vmatprep.mubr.f32.mxu0 0.0
    %6774 = vmatmul.mubr.f32.gmra.mrb[0].mxu0 %v6474
    %v6775 = vpop.f32.mrb[0].mxu0
    %v6776 = vadd.f32 %v6231, %v6775
    %v6777 = vpop.f32.mrb[0].mxu0
    %6778 = vmatprep.mubr.f32.mxu0 0.0
    %6779 = vmatmul.mubr.f32.gmra.mrb[0].mxu0 %v6477
    %v6780 = vpop.f32.mrb[0].mxu0
    %v6781 = vadd.f32 %v6236, %v6780
    %v6782 = vpop.f32.mrb[0].mxu0
    %6783 = vmatprep.mubr.f32.mxu0 0.0
    %6784 = vmatmul.mubr.f32.gmra.mrb[0].mxu0 %v6480
    %v6785 = vpop.f32.mrb[0].mxu0
    %v6786 = vadd.f32 %v6241, %v6785
    %v6787 = vpop.f32.mrb[0].mxu0
    %6788 = vmatprep.mubr.f32.mxu0 0.0
    %6789 = vmatmul.mubr.f32.gmra.mrb[0].mxu0 %v6483
    %v6790 = vpop.f32.mrb[0].mxu0
    %v6791 = vadd.f32 %v6246, %v6790
    %v6792 = vpop.f32.mrb[0].mxu0
    %6793 = vmatprep.mubr.f32.mxu0 0.0
    %6794 = vmatmul.mubr.f32.gmra.mrb[0].mxu0 %v6486
    %v6795 = vpop.f32.mrb[0].mxu0
    %v6796 = vadd.f32 %v6251, %v6795
    %v6797 = vpop.f32.mrb[0].mxu0
    %6798 = vmatprep.mubr.f32.mxu0 0.0
    %6799 = vmatmul.mubr.f32.gmra.mrb[0].mxu0 %v6489
    %v6800 = vpop.f32.mrb[0].mxu0
    %v6801 = vadd.f32 %v6256, %v6800
    %v6802 = vpop.f32.mrb[0].mxu0
    %6803 = vmatprep.mubr.f32.mxu0 0.0
    %6804 = vmatmul.mubr.f32.gmra.mrb[0].mxu0 %v6492
    %v6805 = vpop.f32.mrb[0].mxu0
    %v6806 = vadd.f32 %v6261, %v6805
    %v6807 = vpop.f32.mrb[0].mxu0
    %6808 = vmatprep.mubr.f32.mxu0 0.0
    %6809 = vmatmul.mubr.f32.gmra.mrb[0].mxu0 %v6495
    %v6810 = vpop.f32.mrb[0].mxu0
    %v6811 = vadd.f32 %v6266, %v6810
    %v6812 = vpop.f32.mrb[0].mxu0
    %6813 = vmatprep.mubr.f32.mxu0 0.0
    %6814 = vmatmul.mubr.f32.gmra.mrb[0].mxu0 %v6498
    %v6815 = vpop.f32.mrb[0].mxu0
    %v6816 = vadd.f32 %v6271, %v6815
    %v6817 = vpop.f32.mrb[0].mxu0
    %6818 = vmatprep.mubr.f32.mxu0 0.0
    %6819 = vmatmul.mubr.f32.gmra.mrb[0].mxu0 %v6501
    %v6820 = vpop.f32.mrb[0].mxu0
    %v6821 = vadd.f32 %v6276, %v6820
    %v6822 = vpop.f32.mrb[0].mxu0
    %6823 = vmatprep.mubr.f32.mxu0 0.0
    %6824 = vmatmul.mubr.f32.gmra.mrb[0].mxu0 %v6504
    %v6825 = vpop.f32.mrb[0].mxu0
    %v6826 = vadd.f32 %v6281, %v6825
    %v6827 = vpop.f32.mrb[0].mxu0
    %6828 = vmatprep.mubr.f32.mxu0 0.0
    %6829 = vmatmul.mubr.f32.gmra.mrb[0].mxu0 %v6507
    %v6830 = vpop.f32.mrb[0].mxu0
    %v6831 = vadd.f32 %v6286, %v6830
    %v6832 = vpop.f32.mrb[0].mxu0
    %6833 = vmatprep.mubr.f32.mxu0 0.0
    %6834 = vmatmul.mubr.f32.gmra.mrb[0].mxu0 %v6510
    %v6835 = vpop.f32.mrb[0].mxu0
    %v6836 = vadd.f32 %v6291, %v6835
    %v6837 = vpop.f32.mrb[0].mxu0
    %6838 = vmatprep.mubr.f32.mxu0 0.0
    %6839 = vmatmul.mubr.f32.gmra.mrb[0].mxu0 %v6513
    %v6840 = vpop.f32.mrb[0].mxu0
    %v6841 = vadd.f32 %v6296, %v6840
    %v6842 = vpop.f32.mrb[0].mxu0
    %6843 = vmatprep.mubr.f32.mxu0 0.0
    %6844 = vmatmul.mubr.f32.gmra.mrb[0].mxu0 %v6516
    %v6845 = vpop.f32.mrb[0].mxu0
    %v6846 = vadd.f32 %v6301, %v6845
    %v6847 = vpop.f32.mrb[0].mxu0
    %6848 = vmatprep.mubr.f32.mxu0 0.0
    %6849 = vmatmul.mubr.f32.gmra.mrb[0].mxu0 %v6519
    %v6850 = vpop.f32.mrb[0].mxu0
    %v6851 = vadd.f32 %v6306, %v6850
    %v6852 = vpop.f32.mrb[0].mxu0
    %6853 = vmatprep.mubr.f32.mxu0 0.0
    %6854 = vmatmul.mubr.f32.gmra.mrb[0].mxu0 %v6522
    %v6855 = vpop.f32.mrb[0].mxu0
    %v6856 = vadd.f32 %v6311, %v6855
    %v6857 = vpop.f32.mrb[0].mxu0
    %6858 = vmatprep.mubr.f32.mxu0 0.0
    %6859 = vmatmul.mubr.f32.gmra.mrb[0].mxu0 %v6525
    %v6860 = vpop.f32.mrb[0].mxu0
    %v6861 = vadd.f32 %v6316, %v6860
    %v6862 = vpop.f32.mrb[0].mxu0
    %6863 = vmatprep.mubr.f32.mxu0 0.0
    %6864 = vmatmul.mubr.f32.gmra.mrb[0].mxu0 %v6528
    %v6865 = vpop.f32.mrb[0].mxu0
    %v6866 = vadd.f32 %v6321, %v6865
    %v6867 = vpop.f32.mrb[0].mxu0
    %6868 = vmatprep.mubr.f32.mxu0 0.0
    %6869 = vmatmul.mubr.f32.gmra.mrb[0].mxu0 %v6531
    %v6870 = vpop.f32.mrb[0].mxu0
    %v6871 = vadd.f32 %v6326, %v6870
    %v6872 = vpop.f32.mrb[0].mxu0
    %6873 = vmatprep.mubr.f32.mxu0 0.0
    %6874 = vmatmul.mubr.f32.gmra.mrb[0].mxu0 %v6534
    %v6875 = vpop.f32.mrb[0].mxu0
    %v6876 = vadd.f32 %v6331, %v6875
    %v6877 = vpop.f32.mrb[0].mxu0
    %6878 = vmatprep.mubr.f32.mxu0 0.0
    %6879 = vmatmul.mubr.f32.gmra.mrb[0].mxu0 %v6537
    %v6880 = vpop.f32.mrb[0].mxu0
    %v6881 = vadd.f32 %v6336, %v6880
    %v6882 = vpop.f32.mrb[0].mxu0
    %6883 = vmatprep.mubr.f32.mxu0 0.0
    %6884 = vmatmul.mubr.f32.gmra.mrb[0].mxu0 %v6540
    %v6885 = vpop.f32.mrb[0].mxu0
    %v6886 = vadd.f32 %v6341, %v6885
    %v6887 = vpop.f32.mrb[0].mxu0
    %6888 = vmatprep.mubr.f32.mxu0 0.0
    %6889 = vmatmul.mubr.f32.gmra.mrb[0].mxu0 %v6543
    %v6890 = vpop.f32.mrb[0].mxu0
    %v6891 = vadd.f32 %v6346, %v6890
    %v6892 = vpop.f32.mrb[0].mxu0
    %6893 = vmatprep.mubr.f32.mxu0 0.0
    %6894 = vmatmul.mubr.f32.gmra.mrb[0].mxu0 %v6546
    %v6895 = vpop.f32.mrb[0].mxu0
    %v6896 = vadd.f32 %v6351, %v6895
    %v6897 = vpop.f32.mrb[0].mxu0
    %6898 = vmatprep.mubr.f32.mxu0 0.0
    %6899 = vmatmul.mubr.f32.gmra.mrb[0].mxu0 %v6549
    %v6900 = vpop.f32.mrb[0].mxu0
    %v6901 = vadd.f32 %v6356, %v6900
    %v6902 = vpop.f32.mrb[0].mxu0
    %6903 = vmatprep.mubr.f32.mxu0 0.0
    %6904 = vmatmul.mubr.f32.gmra.mrb[0].mxu0 %v6552
    %v6905 = vpop.f32.mrb[0].mxu0
    %v6906 = vadd.f32 %v6361, %v6905
    %v6907 = vpop.f32.mrb[0].mxu0
    %6908 = vmatprep.mubr.f32.mxu0 0.0
    %6909 = vmatmul.mubr.f32.gmra.mrb[0].mxu0 %v6555
    %v6910 = vpop.f32.mrb[0].mxu0
    %v6911 = vadd.f32 %v6366, %v6910
    %v6912 = vpop.f32.mrb[0].mxu0
    %6913 = vmatprep.mubr.f32.mxu0 0.0
    %6914 = vmatmul.mubr.f32.gmra.mrb[0].mxu0 %v6558
    %v6915 = vpop.f32.mrb[0].mxu0
    %v6916 = vadd.f32 %v6371, %v6915
    %v6917 = vpop.f32.mrb[0].mxu0
    %6918 = vmatprep.mubr.f32.mxu0 0.0
    %6919 = vmatmul.mubr.f32.gmra.mrb[0].mxu0 %v6561
    %v6920 = vpop.f32.mrb[0].mxu0
    %v6921 = vadd.f32 %v6376, %v6920
    %v6922 = vpop.f32.mrb[0].mxu0
    %6923 = vmatprep.mubr.f32.mxu0 0.0
    %6924 = vmatmul.mubr.f32.gmra.mrb[0].mxu0 %v6564
    %v6925 = vpop.f32.mrb[0].mxu0
    %v6926 = vadd.f32 %v6381, %v6925
    %v6927 = vpop.f32.mrb[0].mxu0
    %6928 = vmatprep.mubr.f32.mxu0 0.0
    %6929 = vmatmul.mubr.f32.gmra.mrb[0].mxu0 %v6567
    %v6930 = vpop.f32.mrb[0].mxu0
    %v6931 = vadd.f32 %v6386, %v6930
    %v6932 = vpop.f32.mrb[0].mxu0
    %6933 = vdwg.mxu0
    %s6934 = scalar_lea.vmem %s3, 64
    %v6935 = vld [vmem:[%s6934] sm:$0xff]
    %v6936 = vld [vmem:[%s6934 + $0x8] sm:$0xff]
    %v6937 = vld [vmem:[%s6934 + $0x10] sm:$0xff]
    %v6938 = vld [vmem:[%s6934 + $0x18] sm:$0xff]
    %v6940 = vsel %vm3995, %v5775, 0
    %v6943 = vsel %vm3995, %v5776, 0
    %v6946 = vsel %vm3995, %v5777, 0
    %v6949 = vsel %vm3995, %v5778, 0
    %v6952 = vsel %vm3995, %v5779, 0
    %v6955 = vsel %vm3995, %v5780, 0
    %v6958 = vsel %vm3995, %v5781, 0
    %v6961 = vsel %vm3995, %v5782, 0
    %v6964 = vsel %vm3995, %v5783, 0
    %v6967 = vsel %vm3995, %v5784, 0
    %v6970 = vsel %vm3995, %v5785, 0
    %v6973 = vsel %vm3995, %v5786, 0
    %v6976 = vsel %vm3995, %v5787, 0
    %v6979 = vsel %vm3995, %v5788, 0
    %v6982 = vsel %vm3995, %v5789, 0
    %v6985 = vsel %vm3995, %v5790, 0
    %v6988 = vsel %vm3995, %v5791, 0
    %v6991 = vsel %vm3995, %v5792, 0
    %v6994 = vsel %vm3995, %v5793, 0
    %v6997 = vsel %vm3995, %v5794, 0
    %v7000 = vsel %vm3995, %v5795, 0
    %v7003 = vsel %vm3995, %v5796, 0
    %v7006 = vsel %vm3995, %v5797, 0
    %v7009 = vsel %vm3995, %v5798, 0
    %v7012 = vsel %vm3995, %v5799, 0
    %v7015 = vsel %vm3995, %v5800, 0
    %v7018 = vsel %vm3995, %v5801, 0
    %v7021 = vsel %vm3995, %v5802, 0
    %v7024 = vsel %vm3995, %v5803, 0
    %v7027 = vsel %vm3995, %v5804, 0
    %v7030 = vsel %vm3995, %v5805, 0
    %v7033 = vsel %vm3995, %v5806, 0
    %v7036 = vsel %vm3995, %v5807, 0
    %v7039 = vsel %vm3995, %v5808, 0
    %v7042 = vsel %vm3995, %v5809, 0
    %v7045 = vsel %vm3995, %v5810, 0
    %v7048 = vsel %vm3995, %v5811, 0
    %v7051 = vsel %vm3995, %v5812, 0
    %v7054 = vsel %vm3995, %v5813, 0
    %v7057 = vsel %vm3995, %v5814, 0
    %v7060 = vsel %vm3995, %v5815, 0
    %v7063 = vsel %vm3995, %v5816, 0
    %v7066 = vsel %vm3995, %v5817, 0
    %v7069 = vsel %vm3995, %v5818, 0
    %v7072 = vsel %vm3995, %v5819, 0
    %v7075 = vsel %vm3995, %v5820, 0
    %v7078 = vsel %vm3995, %v5821, 0
    %v7081 = vsel %vm3995, %v5822, 0
    %v7084 = vsel %vm3995, %v5823, 0
    %v7087 = vsel %vm3995, %v5824, 0
    %v7090 = vsel %vm3995, %v5825, 0
    %v7093 = vsel %vm3995, %v5826, 0
    %v7096 = vsel %vm3995, %v5827, 0
    %v7099 = vsel %vm3995, %v5828, 0
    %v7102 = vsel %vm3995, %v5829, 0
    %v7105 = vsel %vm3995, %v5830, 0
    %v7108 = vsel %vm3995, %v5831, 0
    %v7111 = vsel %vm3995, %v5832, 0
    %v7114 = vsel %vm3995, %v5833, 0
    %v7117 = vsel %vm3995, %v5834, 0
    %7119 = vmatprep.subr.mxu0 0.0
    %7120 = vmatpush1.msra.mxu0 %v6935
    %7121 = vmatprep.subr.mxu0 0.0
    %7122 = vmatpush1.msra.mxu0 %v6936
    %7123 = vmatprep.subr.mxu0 0.0
    %7124 = vmatpush1.msra.mxu0 %v6937
    %7125 = vmatprep.subr.mxu0 0.0
    %7126 = vmatpush1.msra.mxu0 %v6938
    %7127 = vmatprep.subr.mxu0 0.0
    %7128 = vmatpush1.msra.mxu0 0.0
    %7129 = vmatprep.subr.mxu0 0.0
    %7130 = vmatpush1.msra.mxu0 0.0
    %7131 = vmatprep.subr.mxu0 0.0
    %7132 = vmatpush1.msra.mxu0 0.0
    %7133 = vmatprep.subr.mxu0 0.0
    %7134 = vmatpush1.msra.mxu0 0.0
    %7135 = vmatprep.subr.mxu0 0.0
    %7136 = vmatpush1.msra.mxu0 0.0
    %7137 = vmatprep.subr.mxu0 0.0
    %7138 = vmatpush1.msra.mxu0 0.0
    %7139 = vmatprep.subr.mxu0 0.0
    %7140 = vmatpush1.msra.mxu0 0.0
    %7141 = vmatprep.subr.mxu0 0.0
    %7142 = vmatpush1.msra.mxu0 0.0
    %7143 = vmatprep.subr.mxu0 0.0
    %7144 = vmatpush1.msra.mxu0 0.0
    %7145 = vmatprep.subr.mxu0 0.0
    %7146 = vmatpush1.msra.mxu0 0.0
    %7147 = vmatprep.subr.mxu0 0.0
    %7148 = vmatpush1.msra.mxu0 0.0
    %7149 = vmatprep.subr.mxu0 0.0
    %7150 = vmatpush1.msra.mxu0 0.0
    %7151 = vmatprep.subr.mxu0 0.0
    %7152 = vmatpush1.msra.mxu0 0.0
    %7153 = vmatprep.subr.mxu0 0.0
    %7154 = vmatpush1.msra.mxu0 0.0
    %7155 = vmatprep.subr.mxu0 0.0
    %7156 = vmatpush1.msra.mxu0 0.0
    %7157 = vmatprep.subr.mxu0 0.0
    %7158 = vmatpush1.msra.mxu0 0.0
    %7159 = vmatprep.subr.mxu0 0.0
    %7160 = vmatpush1.msra.mxu0 0.0
    %7161 = vmatprep.subr.mxu0 0.0
    %7162 = vmatpush1.msra.mxu0 0.0
    %7163 = vmatprep.subr.mxu0 0.0
    %7164 = vmatpush1.msra.mxu0 0.0
    %7165 = vmatprep.subr.mxu0 0.0
    %7166 = vmatpush1.msra.mxu0 0.0
    %7167 = vmatprep.subr.mxu0 0.0
    %7168 = vmatpush1.msra.mxu0 0.0
    %7169 = vmatprep.subr.mxu0 0.0
    %7170 = vmatpush1.msra.mxu0 0.0
    %7171 = vmatprep.subr.mxu0 0.0
    %7172 = vmatpush1.msra.mxu0 0.0
    %7173 = vmatprep.subr.mxu0 0.0
    %7174 = vmatpush1.msra.mxu0 0.0
    %7175 = vmatprep.subr.mxu0 0.0
    %7176 = vmatpush1.msra.mxu0 0.0
    %7177 = vmatprep.subr.mxu0 0.0
    %7178 = vmatpush1.msra.mxu0 0.0
    %7179 = vmatprep.subr.mxu0 0.0
    %7180 = vmatpush1.msra.mxu0 0.0
    %7181 = vmatprep.subr.mxu0 0.0
    %7182 = vmatpush1.msra.mxu0 0.0
    %7183 = vmatprep.mubr.f32.mxu0 0.0
    %7184 = vmatmul.mubr.f32.gmra.mrb[0].mxu0 %v6940
    %v7185 = vpop.f32.mrb[0].mxu0
    %v7186 = vadd.f32 0.0, %v7185
    %v7187 = vpop.f32.mrb[0].mxu0
    %7188 = vmatprep.mubr.f32.mxu0 0.0
    %7189 = vmatmul.mubr.f32.gmra.mrb[0].mxu0 %v6943
    %v7190 = vpop.f32.mrb[0].mxu0
    %v7191 = vadd.f32 0.0, %v7190
    %v7192 = vpop.f32.mrb[0].mxu0
    %7193 = vmatprep.mubr.f32.mxu0 0.0
    %7194 = vmatmul.mubr.f32.gmra.mrb[0].mxu0 %v6946
    %v7195 = vpop.f32.mrb[0].mxu0
    %v7196 = vadd.f32 0.0, %v7195
    %v7197 = vpop.f32.mrb[0].mxu0
    %7198 = vmatprep.mubr.f32.mxu0 0.0
    %7199 = vmatmul.mubr.f32.gmra.mrb[0].mxu0 %v6949
    %v7200 = vpop.f32.mrb[0].mxu0
    %v7201 = vadd.f32 0.0, %v7200
    %v7202 = vpop.f32.mrb[0].mxu0
    %7203 = vmatprep.mubr.f32.mxu0 0.0
    %7204 = vmatmul.mubr.f32.gmra.mrb[0].mxu0 %v6952
    %v7205 = vpop.f32.mrb[0].mxu0
    %v7206 = vadd.f32 0.0, %v7205
    %v7207 = vpop.f32.mrb[0].mxu0
    %7208 = vmatprep.mubr.f32.mxu0 0.0
    %7209 = vmatmul.mubr.f32.gmra.mrb[0].mxu0 %v6955
    %v7210 = vpop.f32.mrb[0].mxu0
    %v7211 = vadd.f32 0.0, %v7210
    %v7212 = vpop.f32.mrb[0].mxu0
    %7213 = vmatprep.mubr.f32.mxu0 0.0
    %7214 = vmatmul.mubr.f32.gmra.mrb[0].mxu0 %v6958
    %v7215 = vpop.f32.mrb[0].mxu0
    %v7216 = vadd.f32 0.0, %v7215
    %v7217 = vpop.f32.mrb[0].mxu0
    %7218 = vmatprep.mubr.f32.mxu0 0.0
    %7219 = vmatmul.mubr.f32.gmra.mrb[0].mxu0 %v6961
    %v7220 = vpop.f32.mrb[0].mxu0
    %v7221 = vadd.f32 0.0, %v7220
    %v7222 = vpop.f32.mrb[0].mxu0
    %7223 = vmatprep.mubr.f32.mxu0 0.0
    %7224 = vmatmul.mubr.f32.gmra.mrb[0].mxu0 %v6964
    %v7225 = vpop.f32.mrb[0].mxu0
    %v7226 = vadd.f32 0.0, %v7225
    %v7227 = vpop.f32.mrb[0].mxu0
    %7228 = vmatprep.mubr.f32.mxu0 0.0
    %7229 = vmatmul.mubr.f32.gmra.mrb[0].mxu0 %v6967
    %v7230 = vpop.f32.mrb[0].mxu0
    %v7231 = vadd.f32 0.0, %v7230
    %v7232 = vpop.f32.mrb[0].mxu0
    %7233 = vmatprep.mubr.f32.mxu0 0.0
    %7234 = vmatmul.mubr.f32.gmra.mrb[0].mxu0 %v6970
    %v7235 = vpop.f32.mrb[0].mxu0
    %v7236 = vadd.f32 0.0, %v7235
    %v7237 = vpop.f32.mrb[0].mxu0
    %7238 = vmatprep.mubr.f32.mxu0 0.0
    %7239 = vmatmul.mubr.f32.gmra.mrb[0].mxu0 %v6973
    %v7240 = vpop.f32.mrb[0].mxu0
    %v7241 = vadd.f32 0.0, %v7240
    %v7242 = vpop.f32.mrb[0].mxu0
    %7243 = vmatprep.mubr.f32.mxu0 0.0
    %7244 = vmatmul.mubr.f32.gmra.mrb[0].mxu0 %v6976
    %v7245 = vpop.f32.mrb[0].mxu0
    %v7246 = vadd.f32 0.0, %v7245
    %v7247 = vpop.f32.mrb[0].mxu0
    %7248 = vmatprep.mubr.f32.mxu0 0.0
    %7249 = vmatmul.mubr.f32.gmra.mrb[0].mxu0 %v6979
    %v7250 = vpop.f32.mrb[0].mxu0
    %v7251 = vadd.f32 0.0, %v7250
    %v7252 = vpop.f32.mrb[0].mxu0
    %7253 = vmatprep.mubr.f32.mxu0 0.0
    %7254 = vmatmul.mubr.f32.gmra.mrb[0].mxu0 %v6982
    %v7255 = vpop.f32.mrb[0].mxu0
    %v7256 = vadd.f32 0.0, %v7255
    %v7257 = vpop.f32.mrb[0].mxu0
    %7258 = vmatprep.mubr.f32.mxu0 0.0
    %7259 = vmatmul.mubr.f32.gmra.mrb[0].mxu0 %v6985
    %v7260 = vpop.f32.mrb[0].mxu0
    %v7261 = vadd.f32 0.0, %v7260
    %v7262 = vpop.f32.mrb[0].mxu0
    %7263 = vmatprep.mubr.f32.mxu0 0.0
    %7264 = vmatmul.mubr.f32.gmra.mrb[0].mxu0 %v6988
    %v7265 = vpop.f32.mrb[0].mxu0
    %v7266 = vadd.f32 0.0, %v7265
    %v7267 = vpop.f32.mrb[0].mxu0
    %7268 = vmatprep.mubr.f32.mxu0 0.0
    %7269 = vmatmul.mubr.f32.gmra.mrb[0].mxu0 %v6991
    %v7270 = vpop.f32.mrb[0].mxu0
    %v7271 = vadd.f32 0.0, %v7270
    %v7272 = vpop.f32.mrb[0].mxu0
    %7273 = vmatprep.mubr.f32.mxu0 0.0
    %7274 = vmatmul.mubr.f32.gmra.mrb[0].mxu0 %v6994
    %v7275 = vpop.f32.mrb[0].mxu0
    %v7276 = vadd.f32 0.0, %v7275
    %v7277 = vpop.f32.mrb[0].mxu0
    %7278 = vmatprep.mubr.f32.mxu0 0.0
    %7279 = vmatmul.mubr.f32.gmra.mrb[0].mxu0 %v6997
    %v7280 = vpop.f32.mrb[0].mxu0
    %v7281 = vadd.f32 0.0, %v7280
    %v7282 = vpop.f32.mrb[0].mxu0
    %7283 = vmatprep.mubr.f32.mxu0 0.0
    %7284 = vmatmul.mubr.f32.gmra.mrb[0].mxu0 %v7000
    %v7285 = vpop.f32.mrb[0].mxu0
    %v7286 = vadd.f32 0.0, %v7285
    %v7287 = vpop.f32.mrb[0].mxu0
    %7288 = vmatprep.mubr.f32.mxu0 0.0
    %7289 = vmatmul.mubr.f32.gmra.mrb[0].mxu0 %v7003
    %v7290 = vpop.f32.mrb[0].mxu0
    %v7291 = vadd.f32 0.0, %v7290
    %v7292 = vpop.f32.mrb[0].mxu0
    %7293 = vmatprep.mubr.f32.mxu0 0.0
    %7294 = vmatmul.mubr.f32.gmra.mrb[0].mxu0 %v7006
    %v7295 = vpop.f32.mrb[0].mxu0
    %v7296 = vadd.f32 0.0, %v7295
    %v7297 = vpop.f32.mrb[0].mxu0
    %7298 = vmatprep.mubr.f32.mxu0 0.0
    %7299 = vmatmul.mubr.f32.gmra.mrb[0].mxu0 %v7009
    %v7300 = vpop.f32.mrb[0].mxu0
    %v7301 = vadd.f32 0.0, %v7300
    %v7302 = vpop.f32.mrb[0].mxu0
    %7303 = vmatprep.mubr.f32.mxu0 0.0
    %7304 = vmatmul.mubr.f32.gmra.mrb[0].mxu0 %v7012
    %v7305 = vpop.f32.mrb[0].mxu0
    %v7306 = vadd.f32 0.0, %v7305
    %v7307 = vpop.f32.mrb[0].mxu0
    %7308 = vmatprep.mubr.f32.mxu0 0.0
    %7309 = vmatmul.mubr.f32.gmra.mrb[0].mxu0 %v7015
    %v7310 = vpop.f32.mrb[0].mxu0
    %v7311 = vadd.f32 0.0, %v7310
    %v7312 = vpop.f32.mrb[0].mxu0
    %7313 = vmatprep.mubr.f32.mxu0 0.0
    %7314 = vmatmul.mubr.f32.gmra.mrb[0].mxu0 %v7018
    %v7315 = vpop.f32.mrb[0].mxu0
    %v7316 = vadd.f32 0.0, %v7315
    %v7317 = vpop.f32.mrb[0].mxu0
    %7318 = vmatprep.mubr.f32.mxu0 0.0
    %7319 = vmatmul.mubr.f32.gmra.mrb[0].mxu0 %v7021
    %v7320 = vpop.f32.mrb[0].mxu0
    %v7321 = vadd.f32 0.0, %v7320
    %v7322 = vpop.f32.mrb[0].mxu0
    %7323 = vmatprep.mubr.f32.mxu0 0.0
    %7324 = vmatmul.mubr.f32.gmra.mrb[0].mxu0 %v7024
    %v7325 = vpop.f32.mrb[0].mxu0
    %v7326 = vadd.f32 0.0, %v7325
    %v7327 = vpop.f32.mrb[0].mxu0
    %7328 = vmatprep.mubr.f32.mxu0 0.0
    %7329 = vmatmul.mubr.f32.gmra.mrb[0].mxu0 %v7027
    %v7330 = vpop.f32.mrb[0].mxu0
    %v7331 = vadd.f32 0.0, %v7330
    %v7332 = vpop.f32.mrb[0].mxu0
    %7333 = vmatprep.mubr.f32.mxu0 0.0
    %7334 = vmatmul.mubr.f32.gmra.mrb[0].mxu0 %v7030
    %v7335 = vpop.f32.mrb[0].mxu0
    %v7336 = vadd.f32 0.0, %v7335
    %v7337 = vpop.f32.mrb[0].mxu0
    %7338 = vmatprep.mubr.f32.mxu0 0.0
    %7339 = vmatmul.mubr.f32.gmra.mrb[0].mxu0 %v7033
    %v7340 = vpop.f32.mrb[0].mxu0
    %v7341 = vadd.f32 0.0, %v7340
    %v7342 = vpop.f32.mrb[0].mxu0
    %7343 = vmatprep.mubr.f32.mxu0 0.0
    %7344 = vmatmul.mubr.f32.gmra.mrb[0].mxu0 %v7036
    %v7345 = vpop.f32.mrb[0].mxu0
    %v7346 = vadd.f32 0.0, %v7345
    %v7347 = vpop.f32.mrb[0].mxu0
    %7348 = vmatprep.mubr.f32.mxu0 0.0
    %7349 = vmatmul.mubr.f32.gmra.mrb[0].mxu0 %v7039
    %v7350 = vpop.f32.mrb[0].mxu0
    %v7351 = vadd.f32 0.0, %v7350
    %v7352 = vpop.f32.mrb[0].mxu0
    %7353 = vmatprep.mubr.f32.mxu0 0.0
    %7354 = vmatmul.mubr.f32.gmra.mrb[0].mxu0 %v7042
    %v7355 = vpop.f32.mrb[0].mxu0
    %v7356 = vadd.f32 0.0, %v7355
    %v7357 = vpop.f32.mrb[0].mxu0
    %7358 = vmatprep.mubr.f32.mxu0 0.0
    %7359 = vmatmul.mubr.f32.gmra.mrb[0].mxu0 %v7045
    %v7360 = vpop.f32.mrb[0].mxu0
    %v7361 = vadd.f32 0.0, %v7360
    %v7362 = vpop.f32.mrb[0].mxu0
    %7363 = vmatprep.mubr.f32.mxu0 0.0
    %7364 = vmatmul.mubr.f32.gmra.mrb[0].mxu0 %v7048
    %v7365 = vpop.f32.mrb[0].mxu0
    %v7366 = vadd.f32 0.0, %v7365
    %v7367 = vpop.f32.mrb[0].mxu0
    %7368 = vmatprep.mubr.f32.mxu0 0.0
    %7369 = vmatmul.mubr.f32.gmra.mrb[0].mxu0 %v7051
    %v7370 = vpop.f32.mrb[0].mxu0
    %v7371 = vadd.f32 0.0, %v7370
    %v7372 = vpop.f32.mrb[0].mxu0
    %7373 = vmatprep.mubr.f32.mxu0 0.0
    %7374 = vmatmul.mubr.f32.gmra.mrb[0].mxu0 %v7054
    %v7375 = vpop.f32.mrb[0].mxu0
    %v7376 = vadd.f32 0.0, %v7375
    %v7377 = vpop.f32.mrb[0].mxu0
    %7378 = vmatprep.mubr.f32.mxu0 0.0
    %7379 = vmatmul.mubr.f32.gmra.mrb[0].mxu0 %v7057
    %v7380 = vpop.f32.mrb[0].mxu0
    %v7381 = vadd.f32 0.0, %v7380
    %v7382 = vpop.f32.mrb[0].mxu0
    %7383 = vmatprep.mubr.f32.mxu0 0.0
    %7384 = vmatmul.mubr.f32.gmra.mrb[0].mxu0 %v7060
    %v7385 = vpop.f32.mrb[0].mxu0
    %v7386 = vadd.f32 0.0, %v7385
    %v7387 = vpop.f32.mrb[0].mxu0
    %7388 = vmatprep.mubr.f32.mxu0 0.0
    %7389 = vmatmul.mubr.f32.gmra.mrb[0].mxu0 %v7063
    %v7390 = vpop.f32.mrb[0].mxu0
    %v7391 = vadd.f32 0.0, %v7390
    %v7392 = vpop.f32.mrb[0].mxu0
    %7393 = vmatprep.mubr.f32.mxu0 0.0
    %7394 = vmatmul.mubr.f32.gmra.mrb[0].mxu0 %v7066
    %v7395 = vpop.f32.mrb[0].mxu0
    %v7396 = vadd.f32 0.0, %v7395
    %v7397 = vpop.f32.mrb[0].mxu0
    %7398 = vmatprep.mubr.f32.mxu0 0.0
    %7399 = vmatmul.mubr.f32.gmra.mrb[0].mxu0 %v7069
    %v7400 = vpop.f32.mrb[0].mxu0
    %v7401 = vadd.f32 0.0, %v7400
    %v7402 = vpop.f32.mrb[0].mxu0
    %7403 = vmatprep.mubr.f32.mxu0 0.0
    %7404 = vmatmul.mubr.f32.gmra.mrb[0].mxu0 %v7072
    %v7405 = vpop.f32.mrb[0].mxu0
    %v7406 = vadd.f32 0.0, %v7405
    %v7407 = vpop.f32.mrb[0].mxu0
    %7408 = vmatprep.mubr.f32.mxu0 0.0
    %7409 = vmatmul.mubr.f32.gmra.mrb[0].mxu0 %v7075
    %v7410 = vpop.f32.mrb[0].mxu0
    %v7411 = vadd.f32 0.0, %v7410
    %v7412 = vpop.f32.mrb[0].mxu0
    %7413 = vmatprep.mubr.f32.mxu0 0.0
    %7414 = vmatmul.mubr.f32.gmra.mrb[0].mxu0 %v7078
    %v7415 = vpop.f32.mrb[0].mxu0
    %v7416 = vadd.f32 0.0, %v7415
    %v7417 = vpop.f32.mrb[0].mxu0
    %7418 = vmatprep.mubr.f32.mxu0 0.0
    %7419 = vmatmul.mubr.f32.gmra.mrb[0].mxu0 %v7081
    %v7420 = vpop.f32.mrb[0].mxu0
    %v7421 = vadd.f32 0.0, %v7420
    %v7422 = vpop.f32.mrb[0].mxu0
    %7423 = vmatprep.mubr.f32.mxu0 0.0
    %7424 = vmatmul.mubr.f32.gmra.mrb[0].mxu0 %v7084
    %v7425 = vpop.f32.mrb[0].mxu0
    %v7426 = vadd.f32 0.0, %v7425
    %v7427 = vpop.f32.mrb[0].mxu0
    %7428 = vmatprep.mubr.f32.mxu0 0.0
    %7429 = vmatmul.mubr.f32.gmra.mrb[0].mxu0 %v7087
    %v7430 = vpop.f32.mrb[0].mxu0
    %v7431 = vadd.f32 0.0, %v7430
    %v7432 = vpop.f32.mrb[0].mxu0
    %7433 = vmatprep.mubr.f32.mxu0 0.0
    %7434 = vmatmul.mubr.f32.gmra.mrb[0].mxu0 %v7090
    %v7435 = vpop.f32.mrb[0].mxu0
    %v7436 = vadd.f32 0.0, %v7435
    %v7437 = vpop.f32.mrb[0].mxu0
    %7438 = vmatprep.mubr.f32.mxu0 0.0
    %7439 = vmatmul.mubr.f32.gmra.mrb[0].mxu0 %v7093
    %v7440 = vpop.f32.mrb[0].mxu0
    %v7441 = vadd.f32 0.0, %v7440
    %v7442 = vpop.f32.mrb[0].mxu0
    %7443 = vmatprep.mubr.f32.mxu0 0.0
    %7444 = vmatmul.mubr.f32.gmra.mrb[0].mxu0 %v7096
    %v7445 = vpop.f32.mrb[0].mxu0
    %v7446 = vadd.f32 0.0, %v7445
    %v7447 = vpop.f32.mrb[0].mxu0
    %7448 = vmatprep.mubr.f32.mxu0 0.0
    %7449 = vmatmul.mubr.f32.gmra.mrb[0].mxu0 %v7099
    %v7450 = vpop.f32.mrb[0].mxu0
    %v7451 = vadd.f32 0.0, %v7450
    %v7452 = vpop.f32.mrb[0].mxu0
    %7453 = vmatprep.mubr.f32.mxu0 0.0
    %7454 = vmatmul.mubr.f32.gmra.mrb[0].mxu0 %v7102
    %v7455 = vpop.f32.mrb[0].mxu0
    %v7456 = vadd.f32 0.0, %v7455
    %v7457 = vpop.f32.mrb[0].mxu0
    %7458 = vmatprep.mubr.f32.mxu0 0.0
    %7459 = vmatmul.mubr.f32.gmra.mrb[0].mxu0 %v7105
    %v7460 = vpop.f32.mrb[0].mxu0
    %v7461 = vadd.f32 0.0, %v7460
    %v7462 = vpop.f32.mrb[0].mxu0
    %7463 = vmatprep.mubr.f32.mxu0 0.0
    %7464 = vmatmul.mubr.f32.gmra.mrb[0].mxu0 %v7108
    %v7465 = vpop.f32.mrb[0].mxu0
    %v7466 = vadd.f32 0.0, %v7465
    %v7467 = vpop.f32.mrb[0].mxu0
    %7468 = vmatprep.mubr.f32.mxu0 0.0
    %7469 = vmatmul.mubr.f32.gmra.mrb[0].mxu0 %v7111
    %v7470 = vpop.f32.mrb[0].mxu0
    %v7471 = vadd.f32 0.0, %v7470
    %v7472 = vpop.f32.mrb[0].mxu0
    %7473 = vmatprep.mubr.f32.mxu0 0.0
    %7474 = vmatmul.mubr.f32.gmra.mrb[0].mxu0 %v7114
    %v7475 = vpop.f32.mrb[0].mxu0
    %v7476 = vadd.f32 0.0, %v7475
    %v7477 = vpop.f32.mrb[0].mxu0
    %7478 = vmatprep.mubr.f32.mxu0 0.0
    %7479 = vmatmul.mubr.f32.gmra.mrb[0].mxu0 %v7117
    %v7480 = vpop.f32.mrb[0].mxu0
    %v7481 = vadd.f32 0.0, %v7480
    %v7482 = vpop.f32.mrb[0].mxu0
    %7483 = vdwg.mxu0
    %v7484 = vadd.f32 %v6636, %v7186
    %v7485 = vadd.f32 %v6641, %v7191
    %v7486 = vadd.f32 %v6646, %v7196
    %v7487 = vadd.f32 %v6651, %v7201
    %v7488 = vadd.f32 %v6656, %v7206
    %v7489 = vadd.f32 %v6661, %v7211
    %v7490 = vadd.f32 %v6666, %v7216
    %v7491 = vadd.f32 %v6671, %v7221
    %v7492 = vadd.f32 %v6676, %v7226
    %v7493 = vadd.f32 %v6681, %v7231
    %v7494 = vadd.f32 %v6686, %v7236
    %v7495 = vadd.f32 %v6691, %v7241
    %v7496 = vadd.f32 %v6696, %v7246
    %v7497 = vadd.f32 %v6701, %v7251
    %v7498 = vadd.f32 %v6706, %v7256
    %v7499 = vadd.f32 %v6711, %v7261
    %v7500 = vadd.f32 %v6716, %v7266
    %v7501 = vadd.f32 %v6721, %v7271
    %v7502 = vadd.f32 %v6726, %v7276
    %v7503 = vadd.f32 %v6731, %v7281
    %v7504 = vadd.f32 %v6736, %v7286
    %v7505 = vadd.f32 %v6741, %v7291
    %v7506 = vadd.f32 %v6746, %v7296
    %v7507 = vadd.f32 %v6751, %v7301
    %v7508 = vadd.f32 %v6756, %v7306
    %v7509 = vadd.f32 %v6761, %v7311
    %v7510 = vadd.f32 %v6766, %v7316
    %v7511 = vadd.f32 %v6771, %v7321
    %v7512 = vadd.f32 %v6776, %v7326
    %v7513 = vadd.f32 %v6781, %v7331
    %v7514 = vadd.f32 %v6786, %v7336
    %v7515 = vadd.f32 %v6791, %v7341
    %v7516 = vadd.f32 %v6796, %v7346
    %v7517 = vadd.f32 %v6801, %v7351
    %v7518 = vadd.f32 %v6806, %v7356
    %v7519 = vadd.f32 %v6811, %v7361
    %v7520 = vadd.f32 %v6816, %v7366
    %v7521 = vadd.f32 %v6821, %v7371
    %v7522 = vadd.f32 %v6826, %v7376
    %v7523 = vadd.f32 %v6831, %v7381
    %v7524 = vadd.f32 %v6836, %v7386
    %v7525 = vadd.f32 %v6841, %v7391
    %v7526 = vadd.f32 %v6846, %v7396
    %v7527 = vadd.f32 %v6851, %v7401
    %v7528 = vadd.f32 %v6856, %v7406
    %v7529 = vadd.f32 %v6861, %v7411
    %v7530 = vadd.f32 %v6866, %v7416
    %v7531 = vadd.f32 %v6871, %v7421
    %v7532 = vadd.f32 %v6876, %v7426
    %v7533 = vadd.f32 %v6881, %v7431
    %v7534 = vadd.f32 %v6886, %v7436
    %v7535 = vadd.f32 %v6891, %v7441
    %v7536 = vadd.f32 %v6896, %v7446
    %v7537 = vadd.f32 %v6901, %v7451
    %v7538 = vadd.f32 %v6906, %v7456
    %v7539 = vadd.f32 %v6911, %v7461
    %v7540 = vadd.f32 %v6916, %v7466
    %v7541 = vadd.f32 %v6921, %v7471
    %v7542 = vadd.f32 %v6926, %v7476
    %v7543 = vadd.f32 %v6931, %v7481
    %v7544 = vld [vmem:[%s4] sm:$0x1]
    %v7546 = vlaneseq
    %v7547 = vshrl.u32 %v7546, 7
    %v7548 = vsub.s32 0, %v7547
    %v7549 = vrot.slane %v7544, %v7548
    %v7551 = vadd.f32 %v7484, %v7549
    %v7552 = vadd.f32 %v7485, %v7549
    %v7553 = vadd.f32 %v7486, %v7549
    %v7554 = vadd.f32 %v7487, %v7549
    %v7555 = vadd.f32 %v7488, %v7549
    %v7556 = vadd.f32 %v7489, %v7549
    %v7557 = vadd.f32 %v7490, %v7549
    %v7558 = vadd.f32 %v7491, %v7549
    %v7559 = vadd.f32 %v7492, %v7549
    %v7560 = vadd.f32 %v7493, %v7549
    %v7561 = vadd.f32 %v7494, %v7549
    %v7562 = vadd.f32 %v7495, %v7549
    %v7563 = vadd.f32 %v7496, %v7549
    %v7564 = vadd.f32 %v7497, %v7549
    %v7565 = vadd.f32 %v7498, %v7549
    %v7566 = vadd.f32 %v7499, %v7549
    %v7567 = vadd.f32 %v7500, %v7549
    %v7568 = vadd.f32 %v7501, %v7549
    %v7569 = vadd.f32 %v7502, %v7549
    %v7570 = vadd.f32 %v7503, %v7549
    %v7571 = vadd.f32 %v7504, %v7549
    %v7572 = vadd.f32 %v7505, %v7549
    %v7573 = vadd.f32 %v7506, %v7549
    %v7574 = vadd.f32 %v7507, %v7549
    %v7575 = vadd.f32 %v7508, %v7549
    %v7576 = vadd.f32 %v7509, %v7549
    %v7577 = vadd.f32 %v7510, %v7549
    %v7578 = vadd.f32 %v7511, %v7549
    %v7579 = vadd.f32 %v7512, %v7549
    %v7580 = vadd.f32 %v7513, %v7549
    %v7581 = vadd.f32 %v7514, %v7549
    %v7582 = vadd.f32 %v7515, %v7549
    %v7583 = vadd.f32 %v7516, %v7549
    %v7584 = vadd.f32 %v7517, %v7549
    %v7585 = vadd.f32 %v7518, %v7549
    %v7586 = vadd.f32 %v7519, %v7549
    %v7587 = vadd.f32 %v7520, %v7549
    %v7588 = vadd.f32 %v7521, %v7549
    %v7589 = vadd.f32 %v7522, %v7549
    %v7590 = vadd.f32 %v7523, %v7549
    %v7591 = vadd.f32 %v7524, %v7549
    %v7592 = vadd.f32 %v7525, %v7549
    %v7593 = vadd.f32 %v7526, %v7549
    %v7594 = vadd.f32 %v7527, %v7549
    %v7595 = vadd.f32 %v7528, %v7549
    %v7596 = vadd.f32 %v7529, %v7549
    %v7597 = vadd.f32 %v7530, %v7549
    %v7598 = vadd.f32 %v7531, %v7549
    %v7599 = vadd.f32 %v7532, %v7549
    %v7600 = vadd.f32 %v7533, %v7549
    %v7601 = vadd.f32 %v7534, %v7549
    %v7602 = vadd.f32 %v7535, %v7549
    %v7603 = vadd.f32 %v7536, %v7549
    %v7604 = vadd.f32 %v7537, %v7549
    %v7605 = vadd.f32 %v7538, %v7549
    %v7606 = vadd.f32 %v7539, %v7549
    %v7607 = vadd.f32 %v7540, %v7549
    %v7608 = vadd.f32 %v7541, %v7549
    %v7609 = vadd.f32 %v7542, %v7549
    %v7610 = vadd.f32 %v7543, %v7549
    %vm7611 = vcmask 523264
    %v7612 = vsel %vm7611, %v7551, 0.0
    %v7613 = vsel %vm7611, %v7552, 0.0
    %v7614 = vadd.f32 %v7612, %v7613
    %v7615 = vsel %vm7611, %v7553, 0.0
    %v7616 = vadd.f32 %v7614, %v7615
    %v7617 = vsel %vm7611, %v7554, 0.0
    %v7618 = vadd.f32 %v7616, %v7617
    %v7619 = vsel %vm7611, %v7555, 0.0
    %v7620 = vadd.f32 %v7618, %v7619
    %v7621 = vsel %vm7611, %v7556, 0.0
    %v7622 = vadd.f32 %v7620, %v7621
    %v7623 = vsel %vm7611, %v7557, 0.0
    %v7624 = vadd.f32 %v7622, %v7623
    %v7625 = vsel %vm7611, %v7558, 0.0
    %v7626 = vadd.f32 %v7624, %v7625
    %v7627 = vsel %vm7611, %v7559, 0.0
    %v7628 = vadd.f32 %v7626, %v7627
    %v7629 = vsel %vm7611, %v7560, 0.0
    %v7630 = vadd.f32 %v7628, %v7629
    %v7631 = vsel %vm7611, %v7561, 0.0
    %v7632 = vadd.f32 %v7630, %v7631
    %v7633 = vsel %vm7611, %v7562, 0.0
    %v7634 = vadd.f32 %v7632, %v7633
    %v7635 = vsel %vm7611, %v7563, 0.0
    %v7636 = vadd.f32 %v7634, %v7635
    %v7637 = vsel %vm7611, %v7564, 0.0
    %v7638 = vadd.f32 %v7636, %v7637
    %v7639 = vsel %vm7611, %v7565, 0.0
    %v7640 = vadd.f32 %v7638, %v7639
    %v7641 = vsel %vm7611, %v7566, 0.0
    %v7642 = vadd.f32 %v7640, %v7641
    %v7643 = vsel %vm7611, %v7567, 0.0
    %v7644 = vadd.f32 %v7642, %v7643
    %v7645 = vsel %vm7611, %v7568, 0.0
    %v7646 = vadd.f32 %v7644, %v7645
    %v7647 = vsel %vm7611, %v7569, 0.0
    %v7648 = vadd.f32 %v7646, %v7647
    %v7649 = vsel %vm7611, %v7570, 0.0
    %v7650 = vadd.f32 %v7648, %v7649
    %v7651 = vsel %vm7611, %v7571, 0.0
    %v7652 = vadd.f32 %v7650, %v7651
    %v7653 = vsel %vm7611, %v7572, 0.0
    %v7654 = vadd.f32 %v7652, %v7653
    %v7655 = vsel %vm7611, %v7573, 0.0
    %v7656 = vadd.f32 %v7654, %v7655
    %v7657 = vsel %vm7611, %v7574, 0.0
    %v7658 = vadd.f32 %v7656, %v7657
    %v7659 = vsel %vm7611, %v7575, 0.0
    %v7660 = vadd.f32 %v7658, %v7659
    %v7661 = vsel %vm7611, %v7576, 0.0
    %v7662 = vadd.f32 %v7660, %v7661
    %v7663 = vsel %vm7611, %v7577, 0.0
    %v7664 = vadd.f32 %v7662, %v7663
    %v7665 = vsel %vm7611, %v7578, 0.0
    %v7666 = vadd.f32 %v7664, %v7665
    %v7667 = vsel %vm7611, %v7579, 0.0
    %v7668 = vadd.f32 %v7666, %v7667
    %v7669 = vsel %vm7611, %v7580, 0.0
    %v7670 = vadd.f32 %v7668, %v7669
    %v7671 = vsel %vm7611, %v7581, 0.0
    %v7672 = vadd.f32 %v7670, %v7671
    %v7673 = vsel %vm7611, %v7582, 0.0
    %v7674 = vadd.f32 %v7672, %v7673
    %v7675 = vsel %vm7611, %v7583, 0.0
    %v7676 = vadd.f32 %v7674, %v7675
    %v7677 = vsel %vm7611, %v7584, 0.0
    %v7678 = vadd.f32 %v7676, %v7677
    %v7679 = vsel %vm7611, %v7585, 0.0
    %v7680 = vadd.f32 %v7678, %v7679
    %v7681 = vsel %vm7611, %v7586, 0.0
    %v7682 = vadd.f32 %v7680, %v7681
    %v7683 = vsel %vm7611, %v7587, 0.0
    %v7684 = vadd.f32 %v7682, %v7683
    %v7685 = vsel %vm7611, %v7588, 0.0
    %v7686 = vadd.f32 %v7684, %v7685
    %v7687 = vsel %vm7611, %v7589, 0.0
    %v7688 = vadd.f32 %v7686, %v7687
    %v7689 = vsel %vm7611, %v7590, 0.0
    %v7690 = vadd.f32 %v7688, %v7689
    %v7691 = vsel %vm7611, %v7591, 0.0
    %v7692 = vadd.f32 %v7690, %v7691
    %v7693 = vsel %vm7611, %v7592, 0.0
    %v7694 = vadd.f32 %v7692, %v7693
    %v7695 = vsel %vm7611, %v7593, 0.0
    %v7696 = vadd.f32 %v7694, %v7695
    %v7697 = vsel %vm7611, %v7594, 0.0
    %v7698 = vadd.f32 %v7696, %v7697
    %v7699 = vsel %vm7611, %v7595, 0.0
    %v7700 = vadd.f32 %v7698, %v7699
    %v7701 = vsel %vm7611, %v7596, 0.0
    %v7702 = vadd.f32 %v7700, %v7701
    %v7703 = vsel %vm7611, %v7597, 0.0
    %v7704 = vadd.f32 %v7702, %v7703
    %v7705 = vsel %vm7611, %v7598, 0.0
    %v7706 = vadd.f32 %v7704, %v7705
    %v7707 = vsel %vm7611, %v7599, 0.0
    %v7708 = vadd.f32 %v7706, %v7707
    %v7709 = vsel %vm7611, %v7600, 0.0
    %v7710 = vadd.f32 %v7708, %v7709
    %v7711 = vsel %vm7611, %v7601, 0.0
    %v7712 = vadd.f32 %v7710, %v7711
    %v7713 = vsel %vm7611, %v7602, 0.0
    %v7714 = vadd.f32 %v7712, %v7713
    %v7715 = vsel %vm7611, %v7603, 0.0
    %v7716 = vadd.f32 %v7714, %v7715
    %v7717 = vsel %vm7611, %v7604, 0.0
    %v7718 = vadd.f32 %v7716, %v7717
    %v7719 = vsel %vm7611, %v7605, 0.0
    %v7720 = vadd.f32 %v7718, %v7719
    %v7721 = vsel %vm7611, %v7606, 0.0
    %v7722 = vadd.f32 %v7720, %v7721
    %v7723 = vsel %vm7611, %v7607, 0.0
    %v7724 = vadd.f32 %v7722, %v7723
    %v7725 = vsel %vm7611, %v7608, 0.0
    %v7726 = vadd.f32 %v7724, %v7725
    %v7727 = vsel %vm7611, %v7609, 0.0
    %v7728 = vadd.f32 %v7726, %v7727
    %v7729 = vsel %vm7611, %v7610, 0.0
    %v7730 = vadd.f32 %v7728, %v7729
    %v7731 = vrot.slane %v7730, 4
    %v7732 = vadd.f32 %v7730, %v7731
    %v7733 = vrot.slane %v7732, 2
    %v7734 = vadd.f32 %v7732, %v7733
    %v7735 = vrot.slane %v7734, 1
    %v7736 = vadd.f32 %v7734, %v7735
    %v7737 = vmul.f32 %v7736, 0.0020833334
    %v7738 = vmul.f32 %v7551, %v7551
    %v7739 = vmul.f32 %v7552, %v7552
    %v7740 = vmul.f32 %v7553, %v7553
    %v7741 = vmul.f32 %v7554, %v7554
    %v7742 = vmul.f32 %v7555, %v7555
    %v7743 = vmul.f32 %v7556, %v7556
    %v7744 = vmul.f32 %v7557, %v7557
    %v7745 = vmul.f32 %v7558, %v7558
    %v7746 = vmul.f32 %v7559, %v7559
    %v7747 = vmul.f32 %v7560, %v7560
    %v7748 = vmul.f32 %v7561, %v7561
    %v7749 = vmul.f32 %v7562, %v7562
    %v7750 = vmul.f32 %v7563, %v7563
    %v7751 = vmul.f32 %v7564, %v7564
    %v7752 = vmul.f32 %v7565, %v7565
    %v7753 = vmul.f32 %v7566, %v7566
    %v7754 = vmul.f32 %v7567, %v7567
    %v7755 = vmul.f32 %v7568, %v7568
    %v7756 = vmul.f32 %v7569, %v7569
    %v7757 = vmul.f32 %v7570, %v7570
    %v7758 = vmul.f32 %v7571, %v7571
    %v7759 = vmul.f32 %v7572, %v7572
    %v7760 = vmul.f32 %v7573, %v7573
    %v7761 = vmul.f32 %v7574, %v7574
    %v7762 = vmul.f32 %v7575, %v7575
    %v7763 = vmul.f32 %v7576, %v7576
    %v7764 = vmul.f32 %v7577, %v7577
    %v7765 = vmul.f32 %v7578, %v7578
    %v7766 = vmul.f32 %v7579, %v7579
    %v7767 = vmul.f32 %v7580, %v7580
    %v7768 = vmul.f32 %v7581, %v7581
    %v7769 = vmul.f32 %v7582, %v7582
    %v7770 = vmul.f32 %v7583, %v7583
    %v7771 = vmul.f32 %v7584, %v7584
    %v7772 = vmul.f32 %v7585, %v7585
    %v7773 = vmul.f32 %v7586, %v7586
    %v7774 = vmul.f32 %v7587, %v7587
    %v7775 = vmul.f32 %v7588, %v7588
    %v7776 = vmul.f32 %v7589, %v7589
    %v7777 = vmul.f32 %v7590, %v7590
    %v7778 = vmul.f32 %v7591, %v7591
    %v7779 = vmul.f32 %v7592, %v7592
    %v7780 = vmul.f32 %v7593, %v7593
    %v7781 = vmul.f32 %v7594, %v7594
    %v7782 = vmul.f32 %v7595, %v7595
    %v7783 = vmul.f32 %v7596, %v7596
    %v7784 = vmul.f32 %v7597, %v7597
    %v7785 = vmul.f32 %v7598, %v7598
    %v7786 = vmul.f32 %v7599, %v7599
    %v7787 = vmul.f32 %v7600, %v7600
    %v7788 = vmul.f32 %v7601, %v7601
    %v7789 = vmul.f32 %v7602, %v7602
    %v7790 = vmul.f32 %v7603, %v7603
    %v7791 = vmul.f32 %v7604, %v7604
    %v7792 = vmul.f32 %v7605, %v7605
    %v7793 = vmul.f32 %v7606, %v7606
    %v7794 = vmul.f32 %v7607, %v7607
    %v7795 = vmul.f32 %v7608, %v7608
    %v7796 = vmul.f32 %v7609, %v7609
    %v7797 = vmul.f32 %v7610, %v7610
    %v7798 = vsel %vm7611, %v7738, 0.0
    %v7799 = vsel %vm7611, %v7739, 0.0
    %v7800 = vadd.f32 %v7798, %v7799
    %v7801 = vsel %vm7611, %v7740, 0.0
    %v7802 = vadd.f32 %v7800, %v7801
    %v7803 = vsel %vm7611, %v7741, 0.0
    %v7804 = vadd.f32 %v7802, %v7803
    %v7805 = vsel %vm7611, %v7742, 0.0
    %v7806 = vadd.f32 %v7804, %v7805
    %v7807 = vsel %vm7611, %v7743, 0.0
    %v7808 = vadd.f32 %v7806, %v7807
    %v7809 = vsel %vm7611, %v7744, 0.0
    %v7810 = vadd.f32 %v7808, %v7809
    %v7811 = vsel %vm7611, %v7745, 0.0
    %v7812 = vadd.f32 %v7810, %v7811
    %v7813 = vsel %vm7611, %v7746, 0.0
    %v7814 = vadd.f32 %v7812, %v7813
    %v7815 = vsel %vm7611, %v7747, 0.0
    %v7816 = vadd.f32 %v7814, %v7815
    %v7817 = vsel %vm7611, %v7748, 0.0
    %v7818 = vadd.f32 %v7816, %v7817
    %v7819 = vsel %vm7611, %v7749, 0.0
    %v7820 = vadd.f32 %v7818, %v7819
    %v7821 = vsel %vm7611, %v7750, 0.0
    %v7822 = vadd.f32 %v7820, %v7821
    %v7823 = vsel %vm7611, %v7751, 0.0
    %v7824 = vadd.f32 %v7822, %v7823
    %v7825 = vsel %vm7611, %v7752, 0.0
    %v7826 = vadd.f32 %v7824, %v7825
    %v7827 = vsel %vm7611, %v7753, 0.0
    %v7828 = vadd.f32 %v7826, %v7827
    %v7829 = vsel %vm7611, %v7754, 0.0
    %v7830 = vadd.f32 %v7828, %v7829
    %v7831 = vsel %vm7611, %v7755, 0.0
    %v7832 = vadd.f32 %v7830, %v7831
    %v7833 = vsel %vm7611, %v7756, 0.0
    %v7834 = vadd.f32 %v7832, %v7833
    %v7835 = vsel %vm7611, %v7757, 0.0
    %v7836 = vadd.f32 %v7834, %v7835
    %v7837 = vsel %vm7611, %v7758, 0.0
    %v7838 = vadd.f32 %v7836, %v7837
    %v7839 = vsel %vm7611, %v7759, 0.0
    %v7840 = vadd.f32 %v7838, %v7839
    %v7841 = vsel %vm7611, %v7760, 0.0
    %v7842 = vadd.f32 %v7840, %v7841
    %v7843 = vsel %vm7611, %v7761, 0.0
    %v7844 = vadd.f32 %v7842, %v7843
    %v7845 = vsel %vm7611, %v7762, 0.0
    %v7846 = vadd.f32 %v7844, %v7845
    %v7847 = vsel %vm7611, %v7763, 0.0
    %v7848 = vadd.f32 %v7846, %v7847
    %v7849 = vsel %vm7611, %v7764, 0.0
    %v7850 = vadd.f32 %v7848, %v7849
    %v7851 = vsel %vm7611, %v7765, 0.0
    %v7852 = vadd.f32 %v7850, %v7851
    %v7853 = vsel %vm7611, %v7766, 0.0
    %v7854 = vadd.f32 %v7852, %v7853
    %v7855 = vsel %vm7611, %v7767, 0.0
    %v7856 = vadd.f32 %v7854, %v7855
    %v7857 = vsel %vm7611, %v7768, 0.0
    %v7858 = vadd.f32 %v7856, %v7857
    %v7859 = vsel %vm7611, %v7769, 0.0
    %v7860 = vadd.f32 %v7858, %v7859
    %v7861 = vsel %vm7611, %v7770, 0.0
    %v7862 = vadd.f32 %v7860, %v7861
    %v7863 = vsel %vm7611, %v7771, 0.0
    %v7864 = vadd.f32 %v7862, %v7863
    %v7865 = vsel %vm7611, %v7772, 0.0
    %v7866 = vadd.f32 %v7864, %v7865
    %v7867 = vsel %vm7611, %v7773, 0.0
    %v7868 = vadd.f32 %v7866, %v7867
    %v7869 = vsel %vm7611, %v7774, 0.0
    %v7870 = vadd.f32 %v7868, %v7869
    %v7871 = vsel %vm7611, %v7775, 0.0
    %v7872 = vadd.f32 %v7870, %v7871
    %v7873 = vsel %vm7611, %v7776, 0.0
    %v7874 = vadd.f32 %v7872, %v7873
    %v7875 = vsel %vm7611, %v7777, 0.0
    %v7876 = vadd.f32 %v7874, %v7875
    %v7877 = vsel %vm7611, %v7778, 0.0
    %v7878 = vadd.f32 %v7876, %v7877
    %v7879 = vsel %vm7611, %v7779, 0.0
    %v7880 = vadd.f32 %v7878, %v7879
    %v7881 = vsel %vm7611, %v7780, 0.0
    %v7882 = vadd.f32 %v7880, %v7881
    %v7883 = vsel %vm7611, %v7781, 0.0
    %v7884 = vadd.f32 %v7882, %v7883
    %v7885 = vsel %vm7611, %v7782, 0.0
    %v7886 = vadd.f32 %v7884, %v7885
    %v7887 = vsel %vm7611, %v7783, 0.0
    %v7888 = vadd.f32 %v7886, %v7887
    %v7889 = vsel %vm7611, %v7784, 0.0
    %v7890 = vadd.f32 %v7888, %v7889
    %v7891 = vsel %vm7611, %v7785, 0.0
    %v7892 = vadd.f32 %v7890, %v7891
    %v7893 = vsel %vm7611, %v7786, 0.0
    %v7894 = vadd.f32 %v7892, %v7893
    %v7895 = vsel %vm7611, %v7787, 0.0
    %v7896 = vadd.f32 %v7894, %v7895
    %v7897 = vsel %vm7611, %v7788, 0.0
    %v7898 = vadd.f32 %v7896, %v7897
    %v7899 = vsel %vm7611, %v7789, 0.0
    %v7900 = vadd.f32 %v7898, %v7899
    %v7901 = vsel %vm7611, %v7790, 0.0
    %v7902 = vadd.f32 %v7900, %v7901
    %v7903 = vsel %vm7611, %v7791, 0.0
    %v7904 = vadd.f32 %v7902, %v7903
    %v7905 = vsel %vm7611, %v7792, 0.0
    %v7906 = vadd.f32 %v7904, %v7905
    %v7907 = vsel %vm7611, %v7793, 0.0
    %v7908 = vadd.f32 %v7906, %v7907
    %v7909 = vsel %vm7611, %v7794, 0.0
    %v7910 = vadd.f32 %v7908, %v7909
    %v7911 = vsel %vm7611, %v7795, 0.0
    %v7912 = vadd.f32 %v7910, %v7911
    %v7913 = vsel %vm7611, %v7796, 0.0
    %v7914 = vadd.f32 %v7912, %v7913
    %v7915 = vsel %vm7611, %v7797, 0.0
    %v7916 = vadd.f32 %v7914, %v7915
    %v7917 = vrot.slane %v7916, 4
    %v7918 = vadd.f32 %v7916, %v7917
    %v7919 = vrot.slane %v7918, 2
    %v7920 = vadd.f32 %v7918, %v7919
    %v7921 = vrot.slane %v7920, 1
    %v7922 = vadd.f32 %v7920, %v7921
    %v7923 = vmul.f32 %v7922, 0.0020833334
    %v7924 = vmul.f32 %v7737, %v7737
    %v7925 = vsub.f32 %v7923, %v7924
    %v7926 = vadd.f32 %v7925, 1e-05
    %v7927 = vrsqrt.pop %v7926
    %v7928 = vmul.f32 %v7737, %v7927
    %v7929 = vstv %s5652
    %v7930 = vmul.f32 %v7929, %v7927
    %v7931 = vmul.f32 %v7930, %v7927
    %v7932 = vstv %s5653
    %v7933 = vmul.f32 %v7927, %v7932
    %s7934 = smul.f32 %s5652, 2.0
    %v7935 = vstv %s7934
    %v7936 = vmul.f32 %v7935, %v7927
    %v7937 = vmul.f32 %v7936, %v7928
    %v7938 = vsub.f32 %v7933, %v7937
    %v7939 = vmul.f32 %v7929, %v7928
    %v7940 = vsub.f32 %v7939, %v7932
    %v7941 = vmul.f32 %v7940, %v7928
    %v7942 = vstv %s5654
    %v7943 = vadd.f32 %v7941, %v7942
    %v7944 = vmul.f32 %v7931, %v7551
    %v7945 = vmul.f32 %v7931, %v7552
    %v7946 = vmul.f32 %v7931, %v7553
    %v7947 = vmul.f32 %v7931, %v7554
    %v7948 = vmul.f32 %v7931, %v7555
    %v7949 = vmul.f32 %v7931, %v7556
    %v7950 = vmul.f32 %v7931, %v7557
    %v7951 = vmul.f32 %v7931, %v7558
    %v7952 = vmul.f32 %v7931, %v7559
    %v7953 = vmul.f32 %v7931, %v7560
    %v7954 = vmul.f32 %v7931, %v7561
    %v7955 = vmul.f32 %v7931, %v7562
    %v7956 = vmul.f32 %v7931, %v7563
    %v7957 = vmul.f32 %v7931, %v7564
    %v7958 = vmul.f32 %v7931, %v7565
    %v7959 = vmul.f32 %v7931, %v7566
    %v7960 = vmul.f32 %v7931, %v7567
    %v7961 = vmul.f32 %v7931, %v7568
    %v7962 = vmul.f32 %v7931, %v7569
    %v7963 = vmul.f32 %v7931, %v7570
    %v7964 = vmul.f32 %v7931, %v7571
    %v7965 = vmul.f32 %v7931, %v7572
    %v7966 = vmul.f32 %v7931, %v7573
    %v7967 = vmul.f32 %v7931, %v7574
    %v7968 = vmul.f32 %v7931, %v7575
    %v7969 = vmul.f32 %v7931, %v7576
    %v7970 = vmul.f32 %v7931, %v7577
    %v7971 = vmul.f32 %v7931, %v7578
    %v7972 = vmul.f32 %v7931, %v7579
    %v7973 = vmul.f32 %v7931, %v7580
    %v7974 = vmul.f32 %v7931, %v7581
    %v7975 = vmul.f32 %v7931, %v7582
    %v7976 = vmul.f32 %v7931, %v7583
    %v7977 = vmul.f32 %v7931, %v7584
    %v7978 = vmul.f32 %v7931, %v7585
    %v7979 = vmul.f32 %v7931, %v7586
    %v7980 = vmul.f32 %v7931, %v7587
    %v7981 = vmul.f32 %v7931, %v7588
    %v7982 = vmul.f32 %v7931, %v7589
    %v7983 = vmul.f32 %v7931, %v7590
    %v7984 = vmul.f32 %v7931, %v7591
    %v7985 = vmul.f32 %v7931, %v7592
    %v7986 = vmul.f32 %v7931, %v7593
    %v7987 = vmul.f32 %v7931, %v7594
    %v7988 = vmul.f32 %v7931, %v7595
    %v7989 = vmul.f32 %v7931, %v7596
    %v7990 = vmul.f32 %v7931, %v7597
    %v7991 = vmul.f32 %v7931, %v7598
    %v7992 = vmul.f32 %v7931, %v7599
    %v7993 = vmul.f32 %v7931, %v7600
    %v7994 = vmul.f32 %v7931, %v7601
    %v7995 = vmul.f32 %v7931, %v7602
    %v7996 = vmul.f32 %v7931, %v7603
    %v7997 = vmul.f32 %v7931, %v7604
    %v7998 = vmul.f32 %v7931, %v7605
    %v7999 = vmul.f32 %v7931, %v7606
    %v8000 = vmul.f32 %v7931, %v7607
    %v8001 = vmul.f32 %v7931, %v7608
    %v8002 = vmul.f32 %v7931, %v7609
    %v8003 = vmul.f32 %v7931, %v7610
    %v8004 = vadd.f32 %v7944, %v7938
    %v8005 = vadd.f32 %v7945, %v7938
    %v8006 = vadd.f32 %v7946, %v7938
    %v8007 = vadd.f32 %v7947, %v7938
    %v8008 = vadd.f32 %v7948, %v7938
    %v8009 = vadd.f32 %v7949, %v7938
    %v8010 = vadd.f32 %v7950, %v7938
    %v8011 = vadd.f32 %v7951, %v7938
    %v8012 = vadd.f32 %v7952, %v7938
    %v8013 = vadd.f32 %v7953, %v7938
    %v8014 = vadd.f32 %v7954, %v7938
    %v8015 = vadd.f32 %v7955, %v7938
    %v8016 = vadd.f32 %v7956, %v7938
    %v8017 = vadd.f32 %v7957, %v7938
    %v8018 = vadd.f32 %v7958, %v7938
    %v8019 = vadd.f32 %v7959, %v7938
    %v8020 = vadd.f32 %v7960, %v7938
    %v8021 = vadd.f32 %v7961, %v7938
    %v8022 = vadd.f32 %v7962, %v7938
    %v8023 = vadd.f32 %v7963, %v7938
    %v8024 = vadd.f32 %v7964, %v7938
    %v8025 = vadd.f32 %v7965, %v7938
    %v8026 = vadd.f32 %v7966, %v7938
    %v8027 = vadd.f32 %v7967, %v7938
    %v8028 = vadd.f32 %v7968, %v7938
    %v8029 = vadd.f32 %v7969, %v7938
    %v8030 = vadd.f32 %v7970, %v7938
    %v8031 = vadd.f32 %v7971, %v7938
    %v8032 = vadd.f32 %v7972, %v7938
    %v8033 = vadd.f32 %v7973, %v7938
    %v8034 = vadd.f32 %v7974, %v7938
    %v8035 = vadd.f32 %v7975, %v7938
    %v8036 = vadd.f32 %v7976, %v7938
    %v8037 = vadd.f32 %v7977, %v7938
    %v8038 = vadd.f32 %v7978, %v7938
    %v8039 = vadd.f32 %v7979, %v7938
    %v8040 = vadd.f32 %v7980, %v7938
    %v8041 = vadd.f32 %v7981, %v7938
    %v8042 = vadd.f32 %v7982, %v7938
    %v8043 = vadd.f32 %v7983, %v7938
    %v8044 = vadd.f32 %v7984, %v7938
    %v8045 = vadd.f32 %v7985, %v7938
    %v8046 = vadd.f32 %v7986, %v7938
    %v8047 = vadd.f32 %v7987, %v7938
    %v8048 = vadd.f32 %v7988, %v7938
    %v8049 = vadd.f32 %v7989, %v7938
    %v8050 = vadd.f32 %v7990, %v7938
    %v8051 = vadd.f32 %v7991, %v7938
    %v8052 = vadd.f32 %v7992, %v7938
    %v8053 = vadd.f32 %v7993, %v7938
    %v8054 = vadd.f32 %v7994, %v7938
    %v8055 = vadd.f32 %v7995, %v7938
    %v8056 = vadd.f32 %v7996, %v7938
    %v8057 = vadd.f32 %v7997, %v7938
    %v8058 = vadd.f32 %v7998, %v7938
    %v8059 = vadd.f32 %v7999, %v7938
    %v8060 = vadd.f32 %v8000, %v7938
    %v8061 = vadd.f32 %v8001, %v7938
    %v8062 = vadd.f32 %v8002, %v7938
    %v8063 = vadd.f32 %v8003, %v7938
    %v8064 = vmul.f32 %v8004, %v7551
    %v8065 = vmul.f32 %v8005, %v7552
    %v8066 = vmul.f32 %v8006, %v7553
    %v8067 = vmul.f32 %v8007, %v7554
    %v8068 = vmul.f32 %v8008, %v7555
    %v8069 = vmul.f32 %v8009, %v7556
    %v8070 = vmul.f32 %v8010, %v7557
    %v8071 = vmul.f32 %v8011, %v7558
    %v8072 = vmul.f32 %v8012, %v7559
    %v8073 = vmul.f32 %v8013, %v7560
    %v8074 = vmul.f32 %v8014, %v7561
    %v8075 = vmul.f32 %v8015, %v7562
    %v8076 = vmul.f32 %v8016, %v7563
    %v8077 = vmul.f32 %v8017, %v7564
    %v8078 = vmul.f32 %v8018, %v7565
    %v8079 = vmul.f32 %v8019, %v7566
    %v8080 = vmul.f32 %v8020, %v7567
    %v8081 = vmul.f32 %v8021, %v7568
    %v8082 = vmul.f32 %v8022, %v7569
    %v8083 = vmul.f32 %v8023, %v7570
    %v8084 = vmul.f32 %v8024, %v7571
    %v8085 = vmul.f32 %v8025, %v7572
    %v8086 = vmul.f32 %v8026, %v7573
    %v8087 = vmul.f32 %v8027, %v7574
    %v8088 = vmul.f32 %v8028, %v7575
    %v8089 = vmul.f32 %v8029, %v7576
    %v8090 = vmul.f32 %v8030, %v7577
    %v8091 = vmul.f32 %v8031, %v7578
    %v8092 = vmul.f32 %v8032, %v7579
    %v8093 = vmul.f32 %v8033, %v7580
    %v8094 = vmul.f32 %v8034, %v7581
    %v8095 = vmul.f32 %v8035, %v7582
    %v8096 = vmul.f32 %v8036, %v7583
    %v8097 = vmul.f32 %v8037, %v7584
    %v8098 = vmul.f32 %v8038, %v7585
    %v8099 = vmul.f32 %v8039, %v7586
    %v8100 = vmul.f32 %v8040, %v7587
    %v8101 = vmul.f32 %v8041, %v7588
    %v8102 = vmul.f32 %v8042, %v7589
    %v8103 = vmul.f32 %v8043, %v7590
    %v8104 = vmul.f32 %v8044, %v7591
    %v8105 = vmul.f32 %v8045, %v7592
    %v8106 = vmul.f32 %v8046, %v7593
    %v8107 = vmul.f32 %v8047, %v7594
    %v8108 = vmul.f32 %v8048, %v7595
    %v8109 = vmul.f32 %v8049, %v7596
    %v8110 = vmul.f32 %v8050, %v7597
    %v8111 = vmul.f32 %v8051, %v7598
    %v8112 = vmul.f32 %v8052, %v7599
    %v8113 = vmul.f32 %v8053, %v7600
    %v8114 = vmul.f32 %v8054, %v7601
    %v8115 = vmul.f32 %v8055, %v7602
    %v8116 = vmul.f32 %v8056, %v7603
    %v8117 = vmul.f32 %v8057, %v7604
    %v8118 = vmul.f32 %v8058, %v7605
    %v8119 = vmul.f32 %v8059, %v7606
    %v8120 = vmul.f32 %v8060, %v7607
    %v8121 = vmul.f32 %v8061, %v7608
    %v8122 = vmul.f32 %v8062, %v7609
    %v8123 = vmul.f32 %v8063, %v7610
    %v8124 = vadd.f32 %v8064, %v7943
    %v8125 = vadd.f32 %v8065, %v7943
    %v8126 = vadd.f32 %v8066, %v7943
    %v8127 = vadd.f32 %v8067, %v7943
    %v8128 = vadd.f32 %v8068, %v7943
    %v8129 = vadd.f32 %v8069, %v7943
    %v8130 = vadd.f32 %v8070, %v7943
    %v8131 = vadd.f32 %v8071, %v7943
    %v8132 = vadd.f32 %v8072, %v7943
    %v8133 = vadd.f32 %v8073, %v7943
    %v8134 = vadd.f32 %v8074, %v7943
    %v8135 = vadd.f32 %v8075, %v7943
    %v8136 = vadd.f32 %v8076, %v7943
    %v8137 = vadd.f32 %v8077, %v7943
    %v8138 = vadd.f32 %v8078, %v7943
    %v8139 = vadd.f32 %v8079, %v7943
    %v8140 = vadd.f32 %v8080, %v7943
    %v8141 = vadd.f32 %v8081, %v7943
    %v8142 = vadd.f32 %v8082, %v7943
    %v8143 = vadd.f32 %v8083, %v7943
    %v8144 = vadd.f32 %v8084, %v7943
    %v8145 = vadd.f32 %v8085, %v7943
    %v8146 = vadd.f32 %v8086, %v7943
    %v8147 = vadd.f32 %v8087, %v7943
    %v8148 = vadd.f32 %v8088, %v7943
    %v8149 = vadd.f32 %v8089, %v7943
    %v8150 = vadd.f32 %v8090, %v7943
    %v8151 = vadd.f32 %v8091, %v7943
    %v8152 = vadd.f32 %v8092, %v7943
    %v8153 = vadd.f32 %v8093, %v7943
    %v8154 = vadd.f32 %v8094, %v7943
    %v8155 = vadd.f32 %v8095, %v7943
    %v8156 = vadd.f32 %v8096, %v7943
    %v8157 = vadd.f32 %v8097, %v7943
    %v8158 = vadd.f32 %v8098, %v7943
    %v8159 = vadd.f32 %v8099, %v7943
    %v8160 = vadd.f32 %v8100, %v7943
    %v8161 = vadd.f32 %v8101, %v7943
    %v8162 = vadd.f32 %v8102, %v7943
    %v8163 = vadd.f32 %v8103, %v7943
    %v8164 = vadd.f32 %v8104, %v7943
    %v8165 = vadd.f32 %v8105, %v7943
    %v8166 = vadd.f32 %v8106, %v7943
    %v8167 = vadd.f32 %v8107, %v7943
    %v8168 = vadd.f32 %v8108, %v7943
    %v8169 = vadd.f32 %v8109, %v7943
    %v8170 = vadd.f32 %v8110, %v7943
    %v8171 = vadd.f32 %v8111, %v7943
    %v8172 = vadd.f32 %v8112, %v7943
    %v8173 = vadd.f32 %v8113, %v7943
    %v8174 = vadd.f32 %v8114, %v7943
    %v8175 = vadd.f32 %v8115, %v7943
    %v8176 = vadd.f32 %v8116, %v7943
    %v8177 = vadd.f32 %v8117, %v7943
    %v8178 = vadd.f32 %v8118, %v7943
    %v8179 = vadd.f32 %v8119, %v7943
    %v8180 = vadd.f32 %v8120, %v7943
    %v8181 = vadd.f32 %v8121, %v7943
    %v8182 = vadd.f32 %v8122, %v7943
    %v8183 = vadd.f32 %v8123, %v7943
    %8184 = vst.msk [vmem:[#allocation5] sm:$0xff] %vm7611, %v8124
    %8185 = vst.msk [vmem:[#allocation5 + $0x8] sm:$0xff] %vm7611, %v8125
    %8186 = vst.msk [vmem:[#allocation5 + $0x10] sm:$0xff] %vm7611, %v8126
    %8187 = vst.msk [vmem:[#allocation5 + $0x18] sm:$0xff] %vm7611, %v8127
    %8188 = vst.msk [vmem:[#allocation5 + $0x20] sm:$0xff] %vm7611, %v8128
    %8189 = vst.msk [vmem:[#allocation5 + $0x28] sm:$0xff] %vm7611, %v8129
    %8190 = vst.msk [vmem:[#allocation5 + $0x30] sm:$0xff] %vm7611, %v8130
    %8191 = vst.msk [vmem:[#allocation5 + $0x38] sm:$0xff] %vm7611, %v8131
    %8192 = vst.msk [vmem:[#allocation5 + $0x40] sm:$0xff] %vm7611, %v8132
    %8193 = vst.msk [vmem:[#allocation5 + $0x48] sm:$0xff] %vm7611, %v8133
    %8194 = vst.msk [vmem:[#allocation5 + $0x50] sm:$0xff] %vm7611, %v8134
    %8195 = vst.msk [vmem:[#allocation5 + $0x58] sm:$0xff] %vm7611, %v8135
    %8196 = vst.msk [vmem:[#allocation5 + $0x60] sm:$0xff] %vm7611, %v8136
    %8197 = vst.msk [vmem:[#allocation5 + $0x68] sm:$0xff] %vm7611, %v8137
    %8198 = vst.msk [vmem:[#allocation5 + $0x70] sm:$0xff] %vm7611, %v8138
    %8199 = vst.msk [vmem:[#allocation5 + $0x78] sm:$0xff] %vm7611, %v8139
    %8200 = vst.msk [vmem:[#allocation5 + $0x80] sm:$0xff] %vm7611, %v8140
    %8201 = vst.msk [vmem:[#allocation5 + $0x88] sm:$0xff] %vm7611, %v8141
    %8202 = vst.msk [vmem:[#allocation5 + $0x90] sm:$0xff] %vm7611, %v8142
    %8203 = vst.msk [vmem:[#allocation5 + $0x98] sm:$0xff] %vm7611, %v8143
    %8204 = vst.msk [vmem:[#allocation5 + $0xa0] sm:$0xff] %vm7611, %v8144
    %8205 = vst.msk [vmem:[#allocation5 + $0xa8] sm:$0xff] %vm7611, %v8145
    %8206 = vst.msk [vmem:[#allocation5 + $0xb0] sm:$0xff] %vm7611, %v8146
    %8207 = vst.msk [vmem:[#allocation5 + $0xb8] sm:$0xff] %vm7611, %v8147
    %8208 = vst.msk [vmem:[#allocation5 + $0xc0] sm:$0xff] %vm7611, %v8148
    %8209 = vst.msk [vmem:[#allocation5 + $0xc8] sm:$0xff] %vm7611, %v8149
    %8210 = vst.msk [vmem:[#allocation5 + $0xd0] sm:$0xff] %vm7611, %v8150
    %8211 = vst.msk [vmem:[#allocation5 + $0xd8] sm:$0xff] %vm7611, %v8151
    %8212 = vst.msk [vmem:[#allocation5 + $0xe0] sm:$0xff] %vm7611, %v8152
    %8213 = vst.msk [vmem:[#allocation5 + $0xe8] sm:$0xff] %vm7611, %v8153
    %8214 = vst.msk [vmem:[#allocation5 + $0xf0] sm:$0xff] %vm7611, %v8154
    %8215 = vst.msk [vmem:[#allocation5 + $0xf8] sm:$0xff] %vm7611, %v8155
    %8216 = vst.msk [vmem:[#allocation5 + $0x100] sm:$0xff] %vm7611, %v8156
    %8217 = vst.msk [vmem:[#allocation5 + $0x108] sm:$0xff] %vm7611, %v8157
    %8218 = vst.msk [vmem:[#allocation5 + $0x110] sm:$0xff] %vm7611, %v8158
    %8219 = vst.msk [vmem:[#allocation5 + $0x118] sm:$0xff] %vm7611, %v8159
    %8220 = vst.msk [vmem:[#allocation5 + $0x120] sm:$0xff] %vm7611, %v8160
    %8221 = vst.msk [vmem:[#allocation5 + $0x128] sm:$0xff] %vm7611, %v8161
    %8222 = vst.msk [vmem:[#allocation5 + $0x130] sm:$0xff] %vm7611, %v8162
    %8223 = vst.msk [vmem:[#allocation5 + $0x138] sm:$0xff] %vm7611, %v8163
    %8224 = vst.msk [vmem:[#allocation5 + $0x140] sm:$0xff] %vm7611, %v8164
    %8225 = vst.msk [vmem:[#allocation5 + $0x148] sm:$0xff] %vm7611, %v8165
    %8226 = vst.msk [vmem:[#allocation5 + $0x150] sm:$0xff] %vm7611, %v8166
    %8227 = vst.msk [vmem:[#allocation5 + $0x158] sm:$0xff] %vm7611, %v8167
    %8228 = vst.msk [vmem:[#allocation5 + $0x160] sm:$0xff] %vm7611, %v8168
    %8229 = vst.msk [vmem:[#allocation5 + $0x168] sm:$0xff] %vm7611, %v8169
    %8230 = vst.msk [vmem:[#allocation5 + $0x170] sm:$0xff] %vm7611, %v8170
    %8231 = vst.msk [vmem:[#allocation5 + $0x178] sm:$0xff] %vm7611, %v8171
    %8232 = vst.msk [vmem:[#allocation5 + $0x180] sm:$0xff] %vm7611, %v8172
    %8233 = vst.msk [vmem:[#allocation5 + $0x188] sm:$0xff] %vm7611, %v8173
    %8234 = vst.msk [vmem:[#allocation5 + $0x190] sm:$0xff] %vm7611, %v8174
    %8235 = vst.msk [vmem:[#allocation5 + $0x198] sm:$0xff] %vm7611, %v8175
    %8236 = vst.msk [vmem:[#allocation5 + $0x1a0] sm:$0xff] %vm7611, %v8176
    %8237 = vst.msk [vmem:[#allocation5 + $0x1a8] sm:$0xff] %vm7611, %v8177
    %8238 = vst.msk [vmem:[#allocation5 + $0x1b0] sm:$0xff] %vm7611, %v8178
    %8239 = vst.msk [vmem:[#allocation5 + $0x1b8] sm:$0xff] %vm7611, %v8179
    %8240 = vst.msk [vmem:[#allocation5 + $0x1c0] sm:$0xff] %vm7611, %v8180
    %8241 = vst.msk [vmem:[#allocation5 + $0x1c8] sm:$0xff] %vm7611, %v8181
    %8242 = vst.msk [vmem:[#allocation5 + $0x1d0] sm:$0xff] %vm7611, %v8182
    %8243 = vst.msk [vmem:[#allocation5 + $0x1d8] sm:$0xff] %vm7611, %v8183
    %v8244 = vld [vmem:[#allocation5] ss:$2 sm:$0xff]
    %s8245 = scalar_lea.vmem [#allocation5], 16
    %v8246 = vld [vmem:[%s8245] ss:$2 sm:$0xff]
    %s8247 = scalar_lea.vmem [#allocation5], 32
    %v8248 = vld [vmem:[%s8247] ss:$2 sm:$0xff]
    %s8249 = scalar_lea.vmem [#allocation5], 48
    %v8250 = vld [vmem:[%s8249] ss:$2 sm:$0xff]
    %s8251 = scalar_lea.vmem [#allocation5], 64
    %v8252 = vld [vmem:[%s8251] ss:$2 sm:$0xff]
    %s8253 = scalar_lea.vmem [#allocation5], 80
    %v8254 = vld [vmem:[%s8253] ss:$2 sm:$0xff]
    %s8255 = scalar_lea.vmem [#allocation5], 96
    %v8256 = vld [vmem:[%s8255] ss:$2 sm:$0xff]
    %s8257 = scalar_lea.vmem [#allocation5], 112
    %v8258 = vld [vmem:[%s8257] ss:$2 sm:$0xff]
    %s8259 = scalar_lea.vmem [#allocation5], 128
    %v8260 = vld [vmem:[%s8259] ss:$2 sm:$0xff]
    %s8261 = scalar_lea.vmem [#allocation5], 144
    %v8262 = vld [vmem:[%s8261] ss:$2 sm:$0xff]
    %s8263 = scalar_lea.vmem [#allocation5], 160
    %v8264 = vld [vmem:[%s8263] ss:$2 sm:$0xff]
    %s8265 = scalar_lea.vmem [#allocation5], 176
    %v8266 = vld [vmem:[%s8265] ss:$2 sm:$0xff]
    %s8267 = scalar_lea.vmem [#allocation5], 192
    %v8268 = vld [vmem:[%s8267] ss:$2 sm:$0xff]
    %s8269 = scalar_lea.vmem [#allocation5], 208
    %v8270 = vld [vmem:[%s8269] ss:$2 sm:$0xff]
    %s8271 = scalar_lea.vmem [#allocation5], 224
    %v8272 = vld [vmem:[%s8271] ss:$2 sm:$0xff]
    %s8273 = scalar_lea.vmem [#allocation5], 240
    %v8274 = vld [vmem:[%s8273] ss:$2 sm:$0xff]
    %s8275 = scalar_lea.vmem [#allocation5], 256
    %v8276 = vld [vmem:[%s8275] ss:$2 sm:$0xff]
    %s8277 = scalar_lea.vmem [#allocation5], 272
    %v8278 = vld [vmem:[%s8277] ss:$2 sm:$0xff]
    %s8279 = scalar_lea.vmem [#allocation5], 288
    %v8280 = vld [vmem:[%s8279] ss:$2 sm:$0xff]
    %s8281 = scalar_lea.vmem [#allocation5], 304
    %v8282 = vld [vmem:[%s8281] ss:$2 sm:$0xff]
    %s8283 = scalar_lea.vmem [#allocation5], 320
    %v8284 = vld [vmem:[%s8283] ss:$2 sm:$0xff]
    %s8285 = scalar_lea.vmem [#allocation5], 336
    %v8286 = vld [vmem:[%s8285] ss:$2 sm:$0xff]
    %s8287 = scalar_lea.vmem [#allocation5], 352
    %v8288 = vld [vmem:[%s8287] ss:$2 sm:$0xff]
    %s8289 = scalar_lea.vmem [#allocation5], 368
    %v8290 = vld [vmem:[%s8289] ss:$2 sm:$0xff]
    %s8291 = scalar_lea.vmem [#allocation5], 384
    %v8292 = vld [vmem:[%s8291] ss:$2 sm:$0xff]
    %s8293 = scalar_lea.vmem [#allocation5], 400
    %v8294 = vld [vmem:[%s8293] ss:$2 sm:$0xff]
    %s8295 = scalar_lea.vmem [#allocation5], 416
    %v8296 = vld [vmem:[%s8295] ss:$2 sm:$0xff]
    %s8297 = scalar_lea.vmem [#allocation5], 432
    %v8298 = vld [vmem:[%s8297] ss:$2 sm:$0xff]
    %s8299 = scalar_lea.vmem [#allocation5], 448
    %v8300 = vld [vmem:[%s8299] ss:$2 sm:$0xff]
    %s8301 = scalar_lea.vmem [#allocation5], 464
    %v8302 = vld [vmem:[%s8301] ss:$2 sm:$0xff]
    %s8303 = scalar_lea.vmem [#allocation5], 1
    %v8304 = vld [vmem:[%s8303] ss:$2 sm:$0xff]
    %s8305 = scalar_lea.vmem [#allocation5], 17
    %v8306 = vld [vmem:[%s8305] ss:$2 sm:$0xff]
    %s8307 = scalar_lea.vmem [#allocation5], 33
    %v8308 = vld [vmem:[%s8307] ss:$2 sm:$0xff]
    %s8309 = scalar_lea.vmem [#allocation5], 49
    %v8310 = vld [vmem:[%s8309] ss:$2 sm:$0xff]
    %s8311 = scalar_lea.vmem [#allocation5], 65
    %v8312 = vld [vmem:[%s8311] ss:$2 sm:$0xff]
    %s8313 = scalar_lea.vmem [#allocation5], 81
    %v8314 = vld [vmem:[%s8313] ss:$2 sm:$0xff]
    %s8315 = scalar_lea.vmem [#allocation5], 97
    %v8316 = vld [vmem:[%s8315] ss:$2 sm:$0xff]
    %s8317 = scalar_lea.vmem [#allocation5], 113
    %v8318 = vld [vmem:[%s8317] ss:$2 sm:$0xff]
    %s8319 = scalar_lea.vmem [#allocation5], 129
    %v8320 = vld [vmem:[%s8319] ss:$2 sm:$0xff]
    %s8321 = scalar_lea.vmem [#allocation5], 145
    %v8322 = vld [vmem:[%s8321] ss:$2 sm:$0xff]
    %s8323 = scalar_lea.vmem [#allocation5], 161
    %v8324 = vld [vmem:[%s8323] ss:$2 sm:$0xff]
    %s8325 = scalar_lea.vmem [#allocation5], 177
    %v8326 = vld [vmem:[%s8325] ss:$2 sm:$0xff]
    %s8327 = scalar_lea.vmem [#allocation5], 193
    %v8328 = vld [vmem:[%s8327] ss:$2 sm:$0xff]
    %s8329 = scalar_lea.vmem [#allocation5], 209
    %v8330 = vld [vmem:[%s8329] ss:$2 sm:$0xff]
    %s8331 = scalar_lea.vmem [#allocation5], 225
    %v8332 = vld [vmem:[%s8331] ss:$2 sm:$0xff]
    %s8333 = scalar_lea.vmem [#allocation5], 241
    %v8334 = vld [vmem:[%s8333] ss:$2 sm:$0xff]
    %s8335 = scalar_lea.vmem [#allocation5], 257
    %v8336 = vld [vmem:[%s8335] ss:$2 sm:$0xff]
    %s8337 = scalar_lea.vmem [#allocation5], 273
    %v8338 = vld [vmem:[%s8337] ss:$2 sm:$0xff]
    %s8339 = scalar_lea.vmem [#allocation5], 289
    %v8340 = vld [vmem:[%s8339] ss:$2 sm:$0xff]
    %s8341 = scalar_lea.vmem [#allocation5], 305
    %v8342 = vld [vmem:[%s8341] ss:$2 sm:$0xff]
    %s8343 = scalar_lea.vmem [#allocation5], 321
    %v8344 = vld [vmem:[%s8343] ss:$2 sm:$0xff]
    %s8345 = scalar_lea.vmem [#allocation5], 337
    %v8346 = vld [vmem:[%s8345] ss:$2 sm:$0xff]
    %s8347 = scalar_lea.vmem [#allocation5], 353
    %v8348 = vld [vmem:[%s8347] ss:$2 sm:$0xff]
    %s8349 = scalar_lea.vmem [#allocation5], 369
    %v8350 = vld [vmem:[%s8349] ss:$2 sm:$0xff]
    %s8351 = scalar_lea.vmem [#allocation5], 385
    %v8352 = vld [vmem:[%s8351] ss:$2 sm:$0xff]
    %s8353 = scalar_lea.vmem [#allocation5], 401
    %v8354 = vld [vmem:[%s8353] ss:$2 sm:$0xff]
    %s8355 = scalar_lea.vmem [#allocation5], 417
    %v8356 = vld [vmem:[%s8355] ss:$2 sm:$0xff]
    %s8357 = scalar_lea.vmem [#allocation5], 433
    %v8358 = vld [vmem:[%s8357] ss:$2 sm:$0xff]
    %s8359 = scalar_lea.vmem [#allocation5], 449
    %v8360 = vld [vmem:[%s8359] ss:$2 sm:$0xff]
    %s8361 = scalar_lea.vmem [#allocation5], 465
    %v8362 = vld [vmem:[%s8361] ss:$2 sm:$0xff]
    %v8363 = vadd.f32 %v8244, %v8304
    %v8364 = vadd.f32 %v8246, %v8306
    %v8365 = vadd.f32 %v8248, %v8308
    %v8366 = vadd.f32 %v8250, %v8310
    %v8367 = vadd.f32 %v8252, %v8312
    %v8368 = vadd.f32 %v8254, %v8314
    %v8369 = vadd.f32 %v8256, %v8316
    %v8370 = vadd.f32 %v8258, %v8318
    %v8371 = vadd.f32 %v8260, %v8320
    %v8372 = vadd.f32 %v8262, %v8322
    %v8373 = vadd.f32 %v8264, %v8324
    %v8374 = vadd.f32 %v8266, %v8326
    %v8375 = vadd.f32 %v8268, %v8328
    %v8376 = vadd.f32 %v8270, %v8330
    %v8377 = vadd.f32 %v8272, %v8332
    %v8378 = vadd.f32 %v8274, %v8334
    %v8379 = vadd.f32 %v8276, %v8336
    %v8380 = vadd.f32 %v8278, %v8338
    %v8381 = vadd.f32 %v8280, %v8340
    %v8382 = vadd.f32 %v8282, %v8342
    %v8383 = vadd.f32 %v8284, %v8344
    %v8384 = vadd.f32 %v8286, %v8346
    %v8385 = vadd.f32 %v8288, %v8348
    %v8386 = vadd.f32 %v8290, %v8350
    %v8387 = vadd.f32 %v8292, %v8352
    %v8388 = vadd.f32 %v8294, %v8354
    %v8389 = vadd.f32 %v8296, %v8356
    %v8390 = vadd.f32 %v8298, %v8358
    %v8391 = vadd.f32 %v8300, %v8360
    %v8392 = vadd.f32 %v8302, %v8362
    %v8393 = vmul.f32 %v8363, 0.5
    %v8394 = vmul.f32 %v8364, 0.5
    %v8395 = vmul.f32 %v8365, 0.5
    %v8396 = vmul.f32 %v8366, 0.5
    %v8397 = vmul.f32 %v8367, 0.5
    %v8398 = vmul.f32 %v8368, 0.5
    %v8399 = vmul.f32 %v8369, 0.5
    %v8400 = vmul.f32 %v8370, 0.5
    %v8401 = vmul.f32 %v8371, 0.5
    %v8402 = vmul.f32 %v8372, 0.5
    %v8403 = vmul.f32 %v8373, 0.5
    %v8404 = vmul.f32 %v8374, 0.5
    %v8405 = vmul.f32 %v8375, 0.5
    %v8406 = vmul.f32 %v8376, 0.5
    %v8407 = vmul.f32 %v8377, 0.5
    %v8408 = vmul.f32 %v8378, 0.5
    %v8409 = vmul.f32 %v8379, 0.5
    %v8410 = vmul.f32 %v8380, 0.5
    %v8411 = vmul.f32 %v8381, 0.5
    %v8412 = vmul.f32 %v8382, 0.5
    %v8413 = vmul.f32 %v8383, 0.5
    %v8414 = vmul.f32 %v8384, 0.5
    %v8415 = vmul.f32 %v8385, 0.5
    %v8416 = vmul.f32 %v8386, 0.5
    %v8417 = vmul.f32 %v8387, 0.5
    %v8418 = vmul.f32 %v8388, 0.5
    %v8419 = vmul.f32 %v8389, 0.5
    %v8420 = vmul.f32 %v8390, 0.5
    %v8421 = vmul.f32 %v8391, 0.5
    %v8422 = vmul.f32 %v8392, 0.5
    %vm8423 = vcmask 516096
    %8424 = vst.msk [vmem:[#allocation6] sm:$0x1] %vm8423, 0.0
    %8425 = vst.msk [vmem:[#allocation6 + $0x80] sm:$0x1] %vm8423, 0.0
    %8426 = vst.msk [vmem:[#allocation6 + $0x79] sm:$0x1] %vm8423, 0.0
    %8427 = vst.msk [vmem:[#allocation6 + $0xf9] sm:$0x1] %vm8423, 0.0
    %8428 = vst.msk [vmem:[#allocation6 + $0x1] sm:$0xff] %vm7611, %v8393
    %8429 = vst.msk [vmem:[#allocation6 + $0x9] sm:$0xff] %vm7611, %v8394
    %8430 = vst.msk [vmem:[#allocation6 + $0x11] sm:$0xff] %vm7611, %v8395
    %8431 = vst.msk [vmem:[#allocation6 + $0x19] sm:$0xff] %vm7611, %v8396
    %8432 = vst.msk [vmem:[#allocation6 + $0x21] sm:$0xff] %vm7611, %v8397
    %8433 = vst.msk [vmem:[#allocation6 + $0x29] sm:$0xff] %vm7611, %v8398
    %8434 = vst.msk [vmem:[#allocation6 + $0x31] sm:$0xff] %vm7611, %v8399
    %8435 = vst.msk [vmem:[#allocation6 + $0x39] sm:$0xff] %vm7611, %v8400
    %8436 = vst.msk [vmem:[#allocation6 + $0x41] sm:$0xff] %vm7611, %v8401
    %8437 = vst.msk [vmem:[#allocation6 + $0x49] sm:$0xff] %vm7611, %v8402
    %8438 = vst.msk [vmem:[#allocation6 + $0x51] sm:$0xff] %vm7611, %v8403
    %8439 = vst.msk [vmem:[#allocation6 + $0x59] sm:$0xff] %vm7611, %v8404
    %8440 = vst.msk [vmem:[#allocation6 + $0x61] sm:$0xff] %vm7611, %v8405
    %8441 = vst.msk [vmem:[#allocation6 + $0x69] sm:$0xff] %vm7611, %v8406
    %8442 = vst.msk [vmem:[#allocation6 + $0x71] sm:$0xff] %vm7611, %v8407
    %8443 = vst.msk [vmem:[#allocation6 + $0x81] sm:$0xff] %vm7611, %v8408
    %8444 = vst.msk [vmem:[#allocation6 + $0x89] sm:$0xff] %vm7611, %v8409
    %8445 = vst.msk [vmem:[#allocation6 + $0x91] sm:$0xff] %vm7611, %v8410
    %8446 = vst.msk [vmem:[#allocation6 + $0x99] sm:$0xff] %vm7611, %v8411
    %8447 = vst.msk [vmem:[#allocation6 + $0xa1] sm:$0xff] %vm7611, %v8412
    %8448 = vst.msk [vmem:[#allocation6 + $0xa9] sm:$0xff] %vm7611, %v8413
    %8449 = vst.msk [vmem:[#allocation6 + $0xb1] sm:$0xff] %vm7611, %v8414
    %8450 = vst.msk [vmem:[#allocation6 + $0xb9] sm:$0xff] %vm7611, %v8415
    %8451 = vst.msk [vmem:[#allocation6 + $0xc1] sm:$0xff] %vm7611, %v8416
    %8452 = vst.msk [vmem:[#allocation6 + $0xc9] sm:$0xff] %vm7611, %v8417
    %8453 = vst.msk [vmem:[#allocation6 + $0xd1] sm:$0xff] %vm7611, %v8418
    %8454 = vst.msk [vmem:[#allocation6 + $0xd9] sm:$0xff] %vm7611, %v8419
    %8455 = vst.msk [vmem:[#allocation6 + $0xe1] sm:$0xff] %vm7611, %v8420
    %8456 = vst.msk [vmem:[#allocation6 + $0xe9] sm:$0xff] %vm7611, %v8421
    %8457 = vst.msk [vmem:[#allocation6 + $0xf1] sm:$0xff] %vm7611, %v8422
    %s8458 = sld [smem:[#allocation7 + $0x6]]
    %s8459 = sld [smem:[#allocation7 + $0x7]]
    %s8460 = sld [smem:[#allocation7 + $0x8]]
    %v8461 = vld [vmem:[#allocation6] sm:$0xff]
    %v8462 = vld [vmem:[#allocation6 + $0x8] sm:$0xff]
    %v8463 = vld [vmem:[#allocation6 + $0x10] sm:$0xff]
    %v8464 = vld [vmem:[#allocation6 + $0x18] sm:$0xff]
    %v8465 = vld [vmem:[#allocation6 + $0x20] sm:$0xff]
    %v8466 = vld [vmem:[#allocation6 + $0x28] sm:$0xff]
    %v8467 = vld [vmem:[#allocation6 + $0x30] sm:$0xff]
    %v8468 = vld [vmem:[#allocation6 + $0x38] sm:$0xff]
    %v8469 = vld [vmem:[#allocation6 + $0x40] sm:$0xff]
    %v8470 = vld [vmem:[#allocation6 + $0x48] sm:$0xff]
    %v8471 = vld [vmem:[#allocation6 + $0x50] sm:$0xff]
    %v8472 = vld [vmem:[#allocation6 + $0x58] sm:$0xff]
    %v8473 = vld [vmem:[#allocation6 + $0x60] sm:$0xff]
    %v8474 = vld [vmem:[#allocation6 + $0x68] sm:$0xff]
    %v8475 = vld [vmem:[#allocation6 + $0x70] sm:$0xff]
    %v8476 = vld [vmem:[#allocation6 + $0x80] sm:$0xff]
    %v8477 = vld [vmem:[#allocation6 + $0x88] sm:$0xff]
    %v8478 = vld [vmem:[#allocation6 + $0x90] sm:$0xff]
    %v8479 = vld [vmem:[#allocation6 + $0x98] sm:$0xff]
    %v8480 = vld [vmem:[#allocation6 + $0xa0] sm:$0xff]
    %v8481 = vld [vmem:[#allocation6 + $0xa8] sm:$0xff]
    %v8482 = vld [vmem:[#allocation6 + $0xb0] sm:$0xff]
    %v8483 = vld [vmem:[#allocation6 + $0xb8] sm:$0xff]
    %v8484 = vld [vmem:[#allocation6 + $0xc0] sm:$0xff]
    %v8485 = vld [vmem:[#allocation6 + $0xc8] sm:$0xff]
    %v8486 = vld [vmem:[#allocation6 + $0xd0] sm:$0xff]
    %v8487 = vld [vmem:[#allocation6 + $0xd8] sm:$0xff]
    %v8488 = vld [vmem:[#allocation6 + $0xe0] sm:$0xff]
    %v8489 = vld [vmem:[#allocation6 + $0xe8] sm:$0xff]
    %v8490 = vld [vmem:[#allocation6 + $0xf0] sm:$0xff]
    %v8491 = vld [vmem:[#allocation6 + $0x1] sm:$0xff]
    %v8492 = vld [vmem:[#allocation6 + $0x9] sm:$0xff]
    %v8493 = vld [vmem:[#allocation6 + $0x11] sm:$0xff]
    %v8494 = vld [vmem:[#allocation6 + $0x19] sm:$0xff]
    %v8495 = vld [vmem:[#allocation6 + $0x21] sm:$0xff]
    %v8496 = vld [vmem:[#allocation6 + $0x29] sm:$0xff]
    %v8497 = vld [vmem:[#allocation6 + $0x31] sm:$0xff]
    %v8498 = vld [vmem:[#allocation6 + $0x39] sm:$0xff]
    %v8499 = vld [vmem:[#allocation6 + $0x41] sm:$0xff]
    %v8500 = vld [vmem:[#allocation6 + $0x49] sm:$0xff]
    %v8501 = vld [vmem:[#allocation6 + $0x51] sm:$0xff]
    %v8502 = vld [vmem:[#allocation6 + $0x59] sm:$0xff]
    %v8503 = vld [vmem:[#allocation6 + $0x61] sm:$0xff]
    %v8504 = vld [vmem:[#allocation6 + $0x69] sm:$0xff]
    %v8505 = vld [vmem:[#allocation6 + $0x71] sm:$0xff]
    %v8506 = vld [vmem:[#allocation6 + $0x81] sm:$0xff]
    %v8507 = vld [vmem:[#allocation6 + $0x89] sm:$0xff]
    %v8508 = vld [vmem:[#allocation6 + $0x91] sm:$0xff]
    %v8509 = vld [vmem:[#allocation6 + $0x99] sm:$0xff]
    %v8510 = vld [vmem:[#allocation6 + $0xa1] sm:$0xff]
    %v8511 = vld [vmem:[#allocation6 + $0xa9] sm:$0xff]
    %v8512 = vld [vmem:[#allocation6 + $0xb1] sm:$0xff]
    %v8513 = vld [vmem:[#allocation6 + $0xb9] sm:$0xff]
    %v8514 = vld [vmem:[#allocation6 + $0xc1] sm:$0xff]
    %v8515 = vld [vmem:[#allocation6 + $0xc9] sm:$0xff]
    %v8516 = vld [vmem:[#allocation6 + $0xd1] sm:$0xff]
    %v8517 = vld [vmem:[#allocation6 + $0xd9] sm:$0xff]
    %v8518 = vld [vmem:[#allocation6 + $0xe1] sm:$0xff]
    %v8519 = vld [vmem:[#allocation6 + $0xe9] sm:$0xff]
    %v8520 = vld [vmem:[#allocation6 + $0xf1] sm:$0xff]
    %v8521 = vld [vmem:[#allocation6 + $0x2] sm:$0xff]
    %v8522 = vld [vmem:[#allocation6 + $0xa] sm:$0xff]
    %v8523 = vld [vmem:[#allocation6 + $0x12] sm:$0xff]
    %v8524 = vld [vmem:[#allocation6 + $0x1a] sm:$0xff]
    %v8525 = vld [vmem:[#allocation6 + $0x22] sm:$0xff]
    %v8526 = vld [vmem:[#allocation6 + $0x2a] sm:$0xff]
    %v8527 = vld [vmem:[#allocation6 + $0x32] sm:$0xff]
    %v8528 = vld [vmem:[#allocation6 + $0x3a] sm:$0xff]
    %v8529 = vld [vmem:[#allocation6 + $0x42] sm:$0xff]
    %v8530 = vld [vmem:[#allocation6 + $0x4a] sm:$0xff]
    %v8531 = vld [vmem:[#allocation6 + $0x52] sm:$0xff]
    %v8532 = vld [vmem:[#allocation6 + $0x5a] sm:$0xff]
    %v8533 = vld [vmem:[#allocation6 + $0x62] sm:$0xff]
    %v8534 = vld [vmem:[#allocation6 + $0x6a] sm:$0xff]
    %v8535 = vld [vmem:[#allocation6 + $0x72] sm:$0xff]
    %v8536 = vld [vmem:[#allocation6 + $0x82] sm:$0xff]
    %v8537 = vld [vmem:[#allocation6 + $0x8a] sm:$0xff]
    %v8538 = vld [vmem:[#allocation6 + $0x92] sm:$0xff]
    %v8539 = vld [vmem:[#allocation6 + $0x9a] sm:$0xff]
    %v8540 = vld [vmem:[#allocation6 + $0xa2] sm:$0xff]
    %v8541 = vld [vmem:[#allocation6 + $0xaa] sm:$0xff]
    %v8542 = vld [vmem:[#allocation6 + $0xb2] sm:$0xff]
    %v8543 = vld [vmem:[#allocation6 + $0xba] sm:$0xff]
    %v8544 = vld [vmem:[#allocation6 + $0xc2] sm:$0xff]
    %v8545 = vld [vmem:[#allocation6 + $0xca] sm:$0xff]
    %v8546 = vld [vmem:[#allocation6 + $0xd2] sm:$0xff]
    %v8547 = vld [vmem:[#allocation6 + $0xda] sm:$0xff]
    %v8548 = vld [vmem:[#allocation6 + $0xe2] sm:$0xff]
    %v8549 = vld [vmem:[#allocation6 + $0xea] sm:$0xff]
    %v8550 = vld [vmem:[#allocation6 + $0xf2] sm:$0xff]
    %v8551 = vld [vmem:[%s5] sm:$0xff]
    %v8552 = vld [vmem:[%s5 + $0x8] sm:$0xff]
    %v8553 = vld [vmem:[%s5 + $0x10] sm:$0xff]
    %v8554 = vld [vmem:[%s5 + $0x18] sm:$0xff]
    %v8555 = vld [vmem:[%s5 + $0x20] sm:$0xff]
    %v8556 = vld [vmem:[%s5 + $0x28] sm:$0xff]
    %v8557 = vld [vmem:[%s5 + $0x30] sm:$0xff]
    %v8558 = vld [vmem:[%s5 + $0x38] sm:$0xff]
    %s8559 = scalar_lea.vmem %s5, 64
    %v8560 = vld [vmem:[%s8559] sm:$0xff]
    %v8561 = vld [vmem:[%s8559 + $0x8] sm:$0xff]
    %v8562 = vld [vmem:[%s8559 + $0x10] sm:$0xff]
    %v8563 = vld [vmem:[%s8559 + $0x18] sm:$0xff]
    %v8564 = vld [vmem:[%s8559 + $0x20] sm:$0xff]
    %v8565 = vld [vmem:[%s8559 + $0x28] sm:$0xff]
    %v8566 = vld [vmem:[%s8559 + $0x30] sm:$0xff]
    %v8567 = vld [vmem:[%s8559 + $0x38] sm:$0xff]
    %v8569 = vsel %vm7611, %v8491, 0
    %v8572 = vsel %vm7611, %v8492, 0
    %v8575 = vsel %vm7611, %v8493, 0
    %v8578 = vsel %vm7611, %v8494, 0
    %v8581 = vsel %vm7611, %v8495, 0
    %v8584 = vsel %vm7611, %v8496, 0
    %v8587 = vsel %vm7611, %v8497, 0
    %v8590 = vsel %vm7611, %v8498, 0
    %v8593 = vsel %vm7611, %v8499, 0
    %v8596 = vsel %vm7611, %v8500, 0
    %v8599 = vsel %vm7611, %v8501, 0
    %v8602 = vsel %vm7611, %v8502, 0
    %v8605 = vsel %vm7611, %v8503, 0
    %v8608 = vsel %vm7611, %v8504, 0
    %v8611 = vsel %vm7611, %v8505, 0
    %v8614 = vsel %vm7611, %v8506, 0
    %v8617 = vsel %vm7611, %v8507, 0
    %v8620 = vsel %vm7611, %v8508, 0
    %v8623 = vsel %vm7611, %v8509, 0
    %v8626 = vsel %vm7611, %v8510, 0
    %v8629 = vsel %vm7611, %v8511, 0
    %v8632 = vsel %vm7611, %v8512, 0
    %v8635 = vsel %vm7611, %v8513, 0
    %v8638 = vsel %vm7611, %v8514, 0
    %v8641 = vsel %vm7611, %v8515, 0
    %v8644 = vsel %vm7611, %v8516, 0
    %v8647 = vsel %vm7611, %v8517, 0
    %v8650 = vsel %vm7611, %v8518, 0
    %v8653 = vsel %vm7611, %v8519, 0
    %v8656 = vsel %vm7611, %v8520, 0
    %8658 = vmatprep.subr.mxu0 0.0
    %8659 = vmatpush1.msra.mxu0 %v8560
    %8660 = vmatprep.subr.mxu0 0.0
    %8661 = vmatpush1.msra.mxu0 %v8561
    %8662 = vmatprep.subr.mxu0 0.0
    %8663 = vmatpush1.msra.mxu0 %v8562
    %8664 = vmatprep.subr.mxu0 0.0
    %8665 = vmatpush1.msra.mxu0 %v8563
    %8666 = vmatprep.subr.mxu0 0.0
    %8667 = vmatpush1.msra.mxu0 %v8564
    %8668 = vmatprep.subr.mxu0 0.0
    %8669 = vmatpush1.msra.mxu0 %v8565
    %8670 = vmatprep.subr.mxu0 0.0
    %8671 = vmatpush1.msra.mxu0 %v8566
    %8672 = vmatprep.subr.mxu0 0.0
    %8673 = vmatpush1.msra.mxu0 %v8567
    %8674 = vmatprep.subr.mxu0 0.0
    %8675 = vmatpush1.msra.mxu0 0.0
    %8676 = vmatprep.subr.mxu0 0.0
    %8677 = vmatpush1.msra.mxu0 0.0
    %8678 = vmatprep.subr.mxu0 0.0
    %8679 = vmatpush1.msra.mxu0 0.0
    %8680 = vmatprep.subr.mxu0 0.0
    %8681 = vmatpush1.msra.mxu0 0.0
    %8682 = vmatprep.subr.mxu0 0.0
    %8683 = vmatpush1.msra.mxu0 0.0
    %8684 = vmatprep.subr.mxu0 0.0
    %8685 = vmatpush1.msra.mxu0 0.0
    %8686 = vmatprep.subr.mxu0 0.0
    %8687 = vmatpush1.msra.mxu0 0.0
    %8688 = vmatprep.subr.mxu0 0.0
    %8689 = vmatpush1.msra.mxu0 0.0
    %8690 = vmatprep.subr.mxu0 0.0
    %8691 = vmatpush1.msra.mxu0 0.0
    %8692 = vmatprep.subr.mxu0 0.0
    %8693 = vmatpush1.msra.mxu0 0.0
    %8694 = vmatprep.subr.mxu0 0.0
    %8695 = vmatpush1.msra.mxu0 0.0
    %8696 = vmatprep.subr.mxu0 0.0
    %8697 = vmatpush1.msra.mxu0 0.0
    %8698 = vmatprep.subr.mxu0 0.0
    %8699 = vmatpush1.msra.mxu0 0.0
    %8700 = vmatprep.subr.mxu0 0.0
    %8701 = vmatpush1.msra.mxu0 0.0
    %8702 = vmatprep.subr.mxu0 0.0
    %8703 = vmatpush1.msra.mxu0 0.0
    %8704 = vmatprep.subr.mxu0 0.0
    %8705 = vmatpush1.msra.mxu0 0.0
    %8706 = vmatprep.subr.mxu0 0.0
    %8707 = vmatpush1.msra.mxu0 0.0
    %8708 = vmatprep.subr.mxu0 0.0
    %8709 = vmatpush1.msra.mxu0 0.0
    %8710 = vmatprep.subr.mxu0 0.0
    %8711 = vmatpush1.msra.mxu0 0.0
    %8712 = vmatprep.subr.mxu0 0.0
    %8713 = vmatpush1.msra.mxu0 0.0
    %8714 = vmatprep.subr.mxu0 0.0
    %8715 = vmatpush1.msra.mxu0 0.0
    %8716 = vmatprep.subr.mxu0 0.0
    %8717 = vmatpush1.msra.mxu0 0.0
    %8718 = vmatprep.subr.mxu0 0.0
    %8719 = vmatpush1.msra.mxu0 0.0
    %8720 = vmatprep.subr.mxu0 0.0
    %8721 = vmatpush1.msra.mxu0 0.0
    %8722 = vmatprep.mubr.f32.mxu0 0.0
    %8723 = vmatmul.mubr.f32.gmra.mrb[0].mxu0 %v8569
    %v8724 = vpop.f32.mrb[0].mxu0
    %v8725 = vadd.f32 0.0, %v8724
    %v8726 = vpop.f32.mrb[0].mxu0
    %8727 = vmatprep.mubr.f32.mxu0 0.0
    %8728 = vmatmul.mubr.f32.gmra.mrb[0].mxu0 %v8572
    %v8729 = vpop.f32.mrb[0].mxu0
    %v8730 = vadd.f32 0.0, %v8729
    %v8731 = vpop.f32.mrb[0].mxu0
    %8732 = vmatprep.mubr.f32.mxu0 0.0
    %8733 = vmatmul.mubr.f32.gmra.mrb[0].mxu0 %v8575
    %v8734 = vpop.f32.mrb[0].mxu0
    %v8735 = vadd.f32 0.0, %v8734
    %v8736 = vpop.f32.mrb[0].mxu0
    %8737 = vmatprep.mubr.f32.mxu0 0.0
    %8738 = vmatmul.mubr.f32.gmra.mrb[0].mxu0 %v8578
    %v8739 = vpop.f32.mrb[0].mxu0
    %v8740 = vadd.f32 0.0, %v8739
    %v8741 = vpop.f32.mrb[0].mxu0
    %8742 = vmatprep.mubr.f32.mxu0 0.0
    %8743 = vmatmul.mubr.f32.gmra.mrb[0].mxu0 %v8581
    %v8744 = vpop.f32.mrb[0].mxu0
    %v8745 = vadd.f32 0.0, %v8744
    %v8746 = vpop.f32.mrb[0].mxu0
    %8747 = vmatprep.mubr.f32.mxu0 0.0
    %8748 = vmatmul.mubr.f32.gmra.mrb[0].mxu0 %v8584
    %v8749 = vpop.f32.mrb[0].mxu0
    %v8750 = vadd.f32 0.0, %v8749
    %v8751 = vpop.f32.mrb[0].mxu0
    %8752 = vmatprep.mubr.f32.mxu0 0.0
    %8753 = vmatmul.mubr.f32.gmra.mrb[0].mxu0 %v8587
    %v8754 = vpop.f32.mrb[0].mxu0
    %v8755 = vadd.f32 0.0, %v8754
    %v8756 = vpop.f32.mrb[0].mxu0
    %8757 = vmatprep.mubr.f32.mxu0 0.0
    %8758 = vmatmul.mubr.f32.gmra.mrb[0].mxu0 %v8590
    %v8759 = vpop.f32.mrb[0].mxu0
    %v8760 = vadd.f32 0.0, %v8759
    %v8761 = vpop.f32.mrb[0].mxu0
    %8762 = vmatprep.mubr.f32.mxu0 0.0
    %8763 = vmatmul.mubr.f32.gmra.mrb[0].mxu0 %v8593
    %v8764 = vpop.f32.mrb[0].mxu0
    %v8765 = vadd.f32 0.0, %v8764
    %v8766 = vpop.f32.mrb[0].mxu0
    %8767 = vmatprep.mubr.f32.mxu0 0.0
    %8768 = vmatmul.mubr.f32.gmra.mrb[0].mxu0 %v8596
    %v8769 = vpop.f32.mrb[0].mxu0
    %v8770 = vadd.f32 0.0, %v8769
    %v8771 = vpop.f32.mrb[0].mxu0
    %8772 = vmatprep.mubr.f32.mxu0 0.0
    %8773 = vmatmul.mubr.f32.gmra.mrb[0].mxu0 %v8599
    %v8774 = vpop.f32.mrb[0].mxu0
    %v8775 = vadd.f32 0.0, %v8774
    %v8776 = vpop.f32.mrb[0].mxu0
    %8777 = vmatprep.mubr.f32.mxu0 0.0
    %8778 = vmatmul.mubr.f32.gmra.mrb[0].mxu0 %v8602
    %v8779 = vpop.f32.mrb[0].mxu0
    %v8780 = vadd.f32 0.0, %v8779
    %v8781 = vpop.f32.mrb[0].mxu0
    %8782 = vmatprep.mubr.f32.mxu0 0.0
    %8783 = vmatmul.mubr.f32.gmra.mrb[0].mxu0 %v8605
    %v8784 = vpop.f32.mrb[0].mxu0
    %v8785 = vadd.f32 0.0, %v8784
    %v8786 = vpop.f32.mrb[0].mxu0
    %8787 = vmatprep.mubr.f32.mxu0 0.0
    %8788 = vmatmul.mubr.f32.gmra.mrb[0].mxu0 %v8608
    %v8789 = vpop.f32.mrb[0].mxu0
    %v8790 = vadd.f32 0.0, %v8789
    %v8791 = vpop.f32.mrb[0].mxu0
    %8792 = vmatprep.mubr.f32.mxu0 0.0
    %8793 = vmatmul.mubr.f32.gmra.mrb[0].mxu0 %v8611
    %v8794 = vpop.f32.mrb[0].mxu0
    %v8795 = vadd.f32 0.0, %v8794
    %v8796 = vpop.f32.mrb[0].mxu0
    %8797 = vmatprep.mubr.f32.mxu0 0.0
    %8798 = vmatmul.mubr.f32.gmra.mrb[0].mxu0 %v8614
    %v8799 = vpop.f32.mrb[0].mxu0
    %v8800 = vadd.f32 0.0, %v8799
    %v8801 = vpop.f32.mrb[0].mxu0
    %8802 = vmatprep.mubr.f32.mxu0 0.0
    %8803 = vmatmul.mubr.f32.gmra.mrb[0].mxu0 %v8617
    %v8804 = vpop.f32.mrb[0].mxu0
    %v8805 = vadd.f32 0.0, %v8804
    %v8806 = vpop.f32.mrb[0].mxu0
    %8807 = vmatprep.mubr.f32.mxu0 0.0
    %8808 = vmatmul.mubr.f32.gmra.mrb[0].mxu0 %v8620
    %v8809 = vpop.f32.mrb[0].mxu0
    %v8810 = vadd.f32 0.0, %v8809
    %v8811 = vpop.f32.mrb[0].mxu0
    %8812 = vmatprep.mubr.f32.mxu0 0.0
    %8813 = vmatmul.mubr.f32.gmra.mrb[0].mxu0 %v8623
    %v8814 = vpop.f32.mrb[0].mxu0
    %v8815 = vadd.f32 0.0, %v8814
    %v8816 = vpop.f32.mrb[0].mxu0
    %8817 = vmatprep.mubr.f32.mxu0 0.0
    %8818 = vmatmul.mubr.f32.gmra.mrb[0].mxu0 %v8626
    %v8819 = vpop.f32.mrb[0].mxu0
    %v8820 = vadd.f32 0.0, %v8819
    %v8821 = vpop.f32.mrb[0].mxu0
    %8822 = vmatprep.mubr.f32.mxu0 0.0
    %8823 = vmatmul.mubr.f32.gmra.mrb[0].mxu0 %v8629
    %v8824 = vpop.f32.mrb[0].mxu0
    %v8825 = vadd.f32 0.0, %v8824
    %v8826 = vpop.f32.mrb[0].mxu0
    %8827 = vmatprep.mubr.f32.mxu0 0.0
    %8828 = vmatmul.mubr.f32.gmra.mrb[0].mxu0 %v8632
    %v8829 = vpop.f32.mrb[0].mxu0
    %v8830 = vadd.f32 0.0, %v8829
    %v8831 = vpop.f32.mrb[0].mxu0
    %8832 = vmatprep.mubr.f32.mxu0 0.0
    %8833 = vmatmul.mubr.f32.gmra.mrb[0].mxu0 %v8635
    %v8834 = vpop.f32.mrb[0].mxu0
    %v8835 = vadd.f32 0.0, %v8834
    %v8836 = vpop.f32.mrb[0].mxu0
    %8837 = vmatprep.mubr.f32.mxu0 0.0
    %8838 = vmatmul.mubr.f32.gmra.mrb[0].mxu0 %v8638
    %v8839 = vpop.f32.mrb[0].mxu0
    %v8840 = vadd.f32 0.0, %v8839
    %v8841 = vpop.f32.mrb[0].mxu0
    %8842 = vmatprep.mubr.f32.mxu0 0.0
    %8843 = vmatmul.mubr.f32.gmra.mrb[0].mxu0 %v8641
    %v8844 = vpop.f32.mrb[0].mxu0
    %v8845 = vadd.f32 0.0, %v8844
    %v8846 = vpop.f32.mrb[0].mxu0
    %8847 = vmatprep.mubr.f32.mxu0 0.0
    %8848 = vmatmul.mubr.f32.gmra.mrb[0].mxu0 %v8644
    %v8849 = vpop.f32.mrb[0].mxu0
    %v8850 = vadd.f32 0.0, %v8849
    %v8851 = vpop.f32.mrb[0].mxu0
    %8852 = vmatprep.mubr.f32.mxu0 0.0
    %8853 = vmatmul.mubr.f32.gmra.mrb[0].mxu0 %v8647
    %v8854 = vpop.f32.mrb[0].mxu0
    %v8855 = vadd.f32 0.0, %v8854
    %v8856 = vpop.f32.mrb[0].mxu0
    %8857 = vmatprep.mubr.f32.mxu0 0.0
    %8858 = vmatmul.mubr.f32.gmra.mrb[0].mxu0 %v8650
    %v8859 = vpop.f32.mrb[0].mxu0
    %v8860 = vadd.f32 0.0, %v8859
    %v8861 = vpop.f32.mrb[0].mxu0
    %8862 = vmatprep.mubr.f32.mxu0 0.0
    %8863 = vmatmul.mubr.f32.gmra.mrb[0].mxu0 %v8653
    %v8864 = vpop.f32.mrb[0].mxu0
    %v8865 = vadd.f32 0.0, %v8864
    %v8866 = vpop.f32.mrb[0].mxu0
    %8867 = vmatprep.mubr.f32.mxu0 0.0
    %8868 = vmatmul.mubr.f32.gmra.mrb[0].mxu0 %v8656
    %v8869 = vpop.f32.mrb[0].mxu0
    %v8870 = vadd.f32 0.0, %v8869
    %v8871 = vpop.f32.mrb[0].mxu0
    %8872 = vdwg.mxu0
    %v8874 = vsel %vm7611, %v8461, 0
    %v8877 = vsel %vm7611, %v8462, 0
    %v8880 = vsel %vm7611, %v8463, 0
    %v8883 = vsel %vm7611, %v8464, 0
    %v8886 = vsel %vm7611, %v8465, 0
    %v8889 = vsel %vm7611, %v8466, 0
    %v8892 = vsel %vm7611, %v8467, 0
    %v8895 = vsel %vm7611, %v8468, 0
    %v8898 = vsel %vm7611, %v8469, 0
    %v8901 = vsel %vm7611, %v8470, 0
    %v8904 = vsel %vm7611, %v8471, 0
    %v8907 = vsel %vm7611, %v8472, 0
    %v8910 = vsel %vm7611, %v8473, 0
    %v8913 = vsel %vm7611, %v8474, 0
    %v8916 = vsel %vm7611, %v8475, 0
    %v8919 = vsel %vm7611, %v8476, 0
    %v8922 = vsel %vm7611, %v8477, 0
    %v8925 = vsel %vm7611, %v8478, 0
    %v8928 = vsel %vm7611, %v8479, 0
    %v8931 = vsel %vm7611, %v8480, 0
    %v8934 = vsel %vm7611, %v8481, 0
    %v8937 = vsel %vm7611, %v8482, 0
    %v8940 = vsel %vm7611, %v8483, 0
    %v8943 = vsel %vm7611, %v8484, 0
    %v8946 = vsel %vm7611, %v8485, 0
    %v8949 = vsel %vm7611, %v8486, 0
    %v8952 = vsel %vm7611, %v8487, 0
    %v8955 = vsel %vm7611, %v8488, 0
    %v8958 = vsel %vm7611, %v8489, 0
    %v8961 = vsel %vm7611, %v8490, 0
    %8963 = vmatprep.subr.mxu0 0.0
    %8964 = vmatpush1.msra.mxu0 %v8551
    %8965 = vmatprep.subr.mxu0 0.0
    %8966 = vmatpush1.msra.mxu0 %v8552
    %8967 = vmatprep.subr.mxu0 0.0
    %8968 = vmatpush1.msra.mxu0 %v8553
    %8969 = vmatprep.subr.mxu0 0.0
    %8970 = vmatpush1.msra.mxu0 %v8554
    %8971 = vmatprep.subr.mxu0 0.0
    %8972 = vmatpush1.msra.mxu0 %v8555
    %8973 = vmatprep.subr.mxu0 0.0
    %8974 = vmatpush1.msra.mxu0 %v8556
    %8975 = vmatprep.subr.mxu0 0.0
    %8976 = vmatpush1.msra.mxu0 %v8557
    %8977 = vmatprep.subr.mxu0 0.0
    %8978 = vmatpush1.msra.mxu0 %v8558
    %8979 = vmatprep.subr.mxu0 0.0
    %8980 = vmatpush1.msra.mxu0 0.0
    %8981 = vmatprep.subr.mxu0 0.0
    %8982 = vmatpush1.msra.mxu0 0.0
    %8983 = vmatprep.subr.mxu0 0.0
    %8984 = vmatpush1.msra.mxu0 0.0
    %8985 = vmatprep.subr.mxu0 0.0
    %8986 = vmatpush1.msra.mxu0 0.0
    %8987 = vmatprep.subr.mxu0 0.0
    %8988 = vmatpush1.msra.mxu0 0.0
    %8989 = vmatprep.subr.mxu0 0.0
    %8990 = vmatpush1.msra.mxu0 0.0
    %8991 = vmatprep.subr.mxu0 0.0
    %8992 = vmatpush1.msra.mxu0 0.0
    %8993 = vmatprep.subr.mxu0 0.0
    %8994 = vmatpush1.msra.mxu0 0.0
    %8995 = vmatprep.subr.mxu0 0.0
    %8996 = vmatpush1.msra.mxu0 0.0
    %8997 = vmatprep.subr.mxu0 0.0
    %8998 = vmatpush1.msra.mxu0 0.0
    %8999 = vmatprep.subr.mxu0 0.0
    %9000 = vmatpush1.msra.mxu0 0.0
    %9001 = vmatprep.subr.mxu0 0.0
    %9002 = vmatpush1.msra.mxu0 0.0
    %9003 = vmatprep.subr.mxu0 0.0
    %9004 = vmatpush1.msra.mxu0 0.0
    %9005 = vmatprep.subr.mxu0 0.0
    %9006 = vmatpush1.msra.mxu0 0.0
    %9007 = vmatprep.subr.mxu0 0.0
    %9008 = vmatpush1.msra.mxu0 0.0
    %9009 = vmatprep.subr.mxu0 0.0
    %9010 = vmatpush1.msra.mxu0 0.0
    %9011 = vmatprep.subr.mxu0 0.0
    %9012 = vmatpush1.msra.mxu0 0.0
    %9013 = vmatprep.subr.mxu0 0.0
    %9014 = vmatpush1.msra.mxu0 0.0
    %9015 = vmatprep.subr.mxu0 0.0
    %9016 = vmatpush1.msra.mxu0 0.0
    %9017 = vmatprep.subr.mxu0 0.0
    %9018 = vmatpush1.msra.mxu0 0.0
    %9019 = vmatprep.subr.mxu0 0.0
    %9020 = vmatpush1.msra.mxu0 0.0
    %9021 = vmatprep.subr.mxu0 0.0
    %9022 = vmatpush1.msra.mxu0 0.0
    %9023 = vmatprep.subr.mxu0 0.0
    %9024 = vmatpush1.msra.mxu0 0.0
    %9025 = vmatprep.subr.mxu0 0.0
    %9026 = vmatpush1.msra.mxu0 0.0
    %9027 = vmatprep.mubr.f32.mxu0 0.0
    %9028 = vmatmul.mubr.f32.gmra.mrb[0].mxu0 %v8874
    %v9029 = vpop.f32.mrb[0].mxu0
    %v9030 = vadd.f32 %v8725, %v9029
    %v9031 = vpop.f32.mrb[0].mxu0
    %9032 = vmatprep.mubr.f32.mxu0 0.0
    %9033 = vmatmul.mubr.f32.gmra.mrb[0].mxu0 %v8877
    %v9034 = vpop.f32.mrb[0].mxu0
    %v9035 = vadd.f32 %v8730, %v9034
    %v9036 = vpop.f32.mrb[0].mxu0
    %9037 = vmatprep.mubr.f32.mxu0 0.0
    %9038 = vmatmul.mubr.f32.gmra.mrb[0].mxu0 %v8880
    %v9039 = vpop.f32.mrb[0].mxu0
    %v9040 = vadd.f32 %v8735, %v9039
    %v9041 = vpop.f32.mrb[0].mxu0
    %9042 = vmatprep.mubr.f32.mxu0 0.0
    %9043 = vmatmul.mubr.f32.gmra.mrb[0].mxu0 %v8883
    %v9044 = vpop.f32.mrb[0].mxu0
    %v9045 = vadd.f32 %v8740, %v9044
    %v9046 = vpop.f32.mrb[0].mxu0
    %9047 = vmatprep.mubr.f32.mxu0 0.0
    %9048 = vmatmul.mubr.f32.gmra.mrb[0].mxu0 %v8886
    %v9049 = vpop.f32.mrb[0].mxu0
    %v9050 = vadd.f32 %v8745, %v9049
    %v9051 = vpop.f32.mrb[0].mxu0
    %9052 = vmatprep.mubr.f32.mxu0 0.0
    %9053 = vmatmul.mubr.f32.gmra.mrb[0].mxu0 %v8889
    %v9054 = vpop.f32.mrb[0].mxu0
    %v9055 = vadd.f32 %v8750, %v9054
    %v9056 = vpop.f32.mrb[0].mxu0
    %9057 = vmatprep.mubr.f32.mxu0 0.0
    %9058 = vmatmul.mubr.f32.gmra.mrb[0].mxu0 %v8892
    %v9059 = vpop.f32.mrb[0].mxu0
    %v9060 = vadd.f32 %v8755, %v9059
    %v9061 = vpop.f32.mrb[0].mxu0
    %9062 = vmatprep.mubr.f32.mxu0 0.0
    %9063 = vmatmul.mubr.f32.gmra.mrb[0].mxu0 %v8895
    %v9064 = vpop.f32.mrb[0].mxu0
    %v9065 = vadd.f32 %v8760, %v9064
    %v9066 = vpop.f32.mrb[0].mxu0
    %9067 = vmatprep.mubr.f32.mxu0 0.0
    %9068 = vmatmul.mubr.f32.gmra.mrb[0].mxu0 %v8898
    %v9069 = vpop.f32.mrb[0].mxu0
    %v9070 = vadd.f32 %v8765, %v9069
    %v9071 = vpop.f32.mrb[0].mxu0
    %9072 = vmatprep.mubr.f32.mxu0 0.0
    %9073 = vmatmul.mubr.f32.gmra.mrb[0].mxu0 %v8901
    %v9074 = vpop.f32.mrb[0].mxu0
    %v9075 = vadd.f32 %v8770, %v9074
    %v9076 = vpop.f32.mrb[0].mxu0
    %9077 = vmatprep.mubr.f32.mxu0 0.0
    %9078 = vmatmul.mubr.f32.gmra.mrb[0].mxu0 %v8904
    %v9079 = vpop.f32.mrb[0].mxu0
    %v9080 = vadd.f32 %v8775, %v9079
    %v9081 = vpop.f32.mrb[0].mxu0
    %9082 = vmatprep.mubr.f32.mxu0 0.0
    %9083 = vmatmul.mubr.f32.gmra.mrb[0].mxu0 %v8907
    %v9084 = vpop.f32.mrb[0].mxu0
    %v9085 = vadd.f32 %v8780, %v9084
    %v9086 = vpop.f32.mrb[0].mxu0
    %9087 = vmatprep.mubr.f32.mxu0 0.0
    %9088 = vmatmul.mubr.f32.gmra.mrb[0].mxu0 %v8910
    %v9089 = vpop.f32.mrb[0].mxu0
    %v9090 = vadd.f32 %v8785, %v9089
    %v9091 = vpop.f32.mrb[0].mxu0
    %9092 = vmatprep.mubr.f32.mxu0 0.0
    %9093 = vmatmul.mubr.f32.gmra.mrb[0].mxu0 %v8913
    %v9094 = vpop.f32.mrb[0].mxu0
    %v9095 = vadd.f32 %v8790, %v9094
    %v9096 = vpop.f32.mrb[0].mxu0
    %9097 = vmatprep.mubr.f32.mxu0 0.0
    %9098 = vmatmul.mubr.f32.gmra.mrb[0].mxu0 %v8916
    %v9099 = vpop.f32.mrb[0].mxu0
    %v9100 = vadd.f32 %v8795, %v9099
    %v9101 = vpop.f32.mrb[0].mxu0
    %9102 = vmatprep.mubr.f32.mxu0 0.0
    %9103 = vmatmul.mubr.f32.gmra.mrb[0].mxu0 %v8919
    %v9104 = vpop.f32.mrb[0].mxu0
    %v9105 = vadd.f32 %v8800, %v9104
    %v9106 = vpop.f32.mrb[0].mxu0
    %9107 = vmatprep.mubr.f32.mxu0 0.0
    %9108 = vmatmul.mubr.f32.gmra.mrb[0].mxu0 %v8922
    %v9109 = vpop.f32.mrb[0].mxu0
    %v9110 = vadd.f32 %v8805, %v9109
    %v9111 = vpop.f32.mrb[0].mxu0
    %9112 = vmatprep.mubr.f32.mxu0 0.0
    %9113 = vmatmul.mubr.f32.gmra.mrb[0].mxu0 %v8925
    %v9114 = vpop.f32.mrb[0].mxu0
    %v9115 = vadd.f32 %v8810, %v9114
    %v9116 = vpop.f32.mrb[0].mxu0
    %9117 = vmatprep.mubr.f32.mxu0 0.0
    %9118 = vmatmul.mubr.f32.gmra.mrb[0].mxu0 %v8928
    %v9119 = vpop.f32.mrb[0].mxu0
    %v9120 = vadd.f32 %v8815, %v9119
    %v9121 = vpop.f32.mrb[0].mxu0
    %9122 = vmatprep.mubr.f32.mxu0 0.0
    %9123 = vmatmul.mubr.f32.gmra.mrb[0].mxu0 %v8931
    %v9124 = vpop.f32.mrb[0].mxu0
    %v9125 = vadd.f32 %v8820, %v9124
    %v9126 = vpop.f32.mrb[0].mxu0
    %9127 = vmatprep.mubr.f32.mxu0 0.0
    %9128 = vmatmul.mubr.f32.gmra.mrb[0].mxu0 %v8934
    %v9129 = vpop.f32.mrb[0].mxu0
    %v9130 = vadd.f32 %v8825, %v9129
    %v9131 = vpop.f32.mrb[0].mxu0
    %9132 = vmatprep.mubr.f32.mxu0 0.0
    %9133 = vmatmul.mubr.f32.gmra.mrb[0].mxu0 %v8937
    %v9134 = vpop.f32.mrb[0].mxu0
    %v9135 = vadd.f32 %v8830, %v9134
    %v9136 = vpop.f32.mrb[0].mxu0
    %9137 = vmatprep.mubr.f32.mxu0 0.0
    %9138 = vmatmul.mubr.f32.gmra.mrb[0].mxu0 %v8940
    %v9139 = vpop.f32.mrb[0].mxu0
    %v9140 = vadd.f32 %v8835, %v9139
    %v9141 = vpop.f32.mrb[0].mxu0
    %9142 = vmatprep.mubr.f32.mxu0 0.0
    %9143 = vmatmul.mubr.f32.gmra.mrb[0].mxu0 %v8943
    %v9144 = vpop.f32.mrb[0].mxu0
    %v9145 = vadd.f32 %v8840, %v9144
    %v9146 = vpop.f32.mrb[0].mxu0
    %9147 = vmatprep.mubr.f32.mxu0 0.0
    %9148 = vmatmul.mubr.f32.gmra.mrb[0].mxu0 %v8946
    %v9149 = vpop.f32.mrb[0].mxu0
    %v9150 = vadd.f32 %v8845, %v9149
    %v9151 = vpop.f32.mrb[0].mxu0
    %9152 = vmatprep.mubr.f32.mxu0 0.0
    %9153 = vmatmul.mubr.f32.gmra.mrb[0].mxu0 %v8949
    %v9154 = vpop.f32.mrb[0].mxu0
    %v9155 = vadd.f32 %v8850, %v9154
    %v9156 = vpop.f32.mrb[0].mxu0
    %9157 = vmatprep.mubr.f32.mxu0 0.0
    %9158 = vmatmul.mubr.f32.gmra.mrb[0].mxu0 %v8952
    %v9159 = vpop.f32.mrb[0].mxu0
    %v9160 = vadd.f32 %v8855, %v9159
    %v9161 = vpop.f32.mrb[0].mxu0
    %9162 = vmatprep.mubr.f32.mxu0 0.0
    %9163 = vmatmul.mubr.f32.gmra.mrb[0].mxu0 %v8955
    %v9164 = vpop.f32.mrb[0].mxu0
    %v9165 = vadd.f32 %v8860, %v9164
    %v9166 = vpop.f32.mrb[0].mxu0
    %9167 = vmatprep.mubr.f32.mxu0 0.0
    %9168 = vmatmul.mubr.f32.gmra.mrb[0].mxu0 %v8958
    %v9169 = vpop.f32.mrb[0].mxu0
    %v9170 = vadd.f32 %v8865, %v9169
    %v9171 = vpop.f32.mrb[0].mxu0
    %9172 = vmatprep.mubr.f32.mxu0 0.0
    %9173 = vmatmul.mubr.f32.gmra.mrb[0].mxu0 %v8961
    %v9174 = vpop.f32.mrb[0].mxu0
    %v9175 = vadd.f32 %v8870, %v9174
    %v9176 = vpop.f32.mrb[0].mxu0
    %9177 = vdwg.mxu0
    %s9178 = scalar_lea.vmem %s5, 128
    %v9179 = vld [vmem:[%s9178] sm:$0xff]
    %v9180 = vld [vmem:[%s9178 + $0x8] sm:$0xff]
    %v9181 = vld [vmem:[%s9178 + $0x10] sm:$0xff]
    %v9182 = vld [vmem:[%s9178 + $0x18] sm:$0xff]
    %v9183 = vld [vmem:[%s9178 + $0x20] sm:$0xff]
    %v9184 = vld [vmem:[%s9178 + $0x28] sm:$0xff]
    %v9185 = vld [vmem:[%s9178 + $0x30] sm:$0xff]
    %v9186 = vld [vmem:[%s9178 + $0x38] sm:$0xff]
    %v9188 = vsel %vm7611, %v8521, 0
    %v9191 = vsel %vm7611, %v8522, 0
    %v9194 = vsel %vm7611, %v8523, 0
    %v9197 = vsel %vm7611, %v8524, 0
    %v9200 = vsel %vm7611, %v8525, 0
    %v9203 = vsel %vm7611, %v8526, 0
    %v9206 = vsel %vm7611, %v8527, 0
    %v9209 = vsel %vm7611, %v8528, 0
    %v9212 = vsel %vm7611, %v8529, 0
    %v9215 = vsel %vm7611, %v8530, 0
    %v9218 = vsel %vm7611, %v8531, 0
    %v9221 = vsel %vm7611, %v8532, 0
    %v9224 = vsel %vm7611, %v8533, 0
    %v9227 = vsel %vm7611, %v8534, 0
    %v9230 = vsel %vm7611, %v8535, 0
    %v9233 = vsel %vm7611, %v8536, 0
    %v9236 = vsel %vm7611, %v8537, 0
    %v9239 = vsel %vm7611, %v8538, 0
    %v9242 = vsel %vm7611, %v8539, 0
    %v9245 = vsel %vm7611, %v8540, 0
    %v9248 = vsel %vm7611, %v8541, 0
    %v9251 = vsel %vm7611, %v8542, 0
    %v9254 = vsel %vm7611, %v8543, 0
    %v9257 = vsel %vm7611, %v8544, 0
    %v9260 = vsel %vm7611, %v8545, 0
    %v9263 = vsel %vm7611, %v8546, 0
    %v9266 = vsel %vm7611, %v8547, 0
    %v9269 = vsel %vm7611, %v8548, 0
    %v9272 = vsel %vm7611, %v8549, 0
    %v9275 = vsel %vm7611, %v8550, 0
    %9277 = vmatprep.subr.mxu0 0.0
    %9278 = vmatpush1.msra.mxu0 %v9179
    %9279 = vmatprep.subr.mxu0 0.0
    %9280 = vmatpush1.msra.mxu0 %v9180
    %9281 = vmatprep.subr.mxu0 0.0
    %9282 = vmatpush1.msra.mxu0 %v9181
    %9283 = vmatprep.subr.mxu0 0.0
    %9284 = vmatpush1.msra.mxu0 %v9182
    %9285 = vmatprep.subr.mxu0 0.0
    %9286 = vmatpush1.msra.mxu0 %v9183
    %9287 = vmatprep.subr.mxu0 0.0
    %9288 = vmatpush1.msra.mxu0 %v9184
    %9289 = vmatprep.subr.mxu0 0.0
    %9290 = vmatpush1.msra.mxu0 %v9185
    %9291 = vmatprep.subr.mxu0 0.0
    %9292 = vmatpush1.msra.mxu0 %v9186
    %9293 = vmatprep.subr.mxu0 0.0
    %9294 = vmatpush1.msra.mxu0 0.0
    %9295 = vmatprep.subr.mxu0 0.0
    %9296 = vmatpush1.msra.mxu0 0.0
    %9297 = vmatprep.subr.mxu0 0.0
    %9298 = vmatpush1.msra.mxu0 0.0
    %9299 = vmatprep.subr.mxu0 0.0
    %9300 = vmatpush1.msra.mxu0 0.0
    %9301 = vmatprep.subr.mxu0 0.0
    %9302 = vmatpush1.msra.mxu0 0.0
    %9303 = vmatprep.subr.mxu0 0.0
    %9304 = vmatpush1.msra.mxu0 0.0
    %9305 = vmatprep.subr.mxu0 0.0
    %9306 = vmatpush1.msra.mxu0 0.0
    %9307 = vmatprep.subr.mxu0 0.0
    %9308 = vmatpush1.msra.mxu0 0.0
    %9309 = vmatprep.subr.mxu0 0.0
    %9310 = vmatpush1.msra.mxu0 0.0
    %9311 = vmatprep.subr.mxu0 0.0
    %9312 = vmatpush1.msra.mxu0 0.0
    %9313 = vmatprep.subr.mxu0 0.0
    %9314 = vmatpush1.msra.mxu0 0.0
    %9315 = vmatprep.subr.mxu0 0.0
    %9316 = vmatpush1.msra.mxu0 0.0
    %9317 = vmatprep.subr.mxu0 0.0
    %9318 = vmatpush1.msra.mxu0 0.0
    %9319 = vmatprep.subr.mxu0 0.0
    %9320 = vmatpush1.msra.mxu0 0.0
    %9321 = vmatprep.subr.mxu0 0.0
    %9322 = vmatpush1.msra.mxu0 0.0
    %9323 = vmatprep.subr.mxu0 0.0
    %9324 = vmatpush1.msra.mxu0 0.0
    %9325 = vmatprep.subr.mxu0 0.0
    %9326 = vmatpush1.msra.mxu0 0.0
    %9327 = vmatprep.subr.mxu0 0.0
    %9328 = vmatpush1.msra.mxu0 0.0
    %9329 = vmatprep.subr.mxu0 0.0
    %9330 = vmatpush1.msra.mxu0 0.0
    %9331 = vmatprep.subr.mxu0 0.0
    %9332 = vmatpush1.msra.mxu0 0.0
    %9333 = vmatprep.subr.mxu0 0.0
    %9334 = vmatpush1.msra.mxu0 0.0
    %9335 = vmatprep.subr.mxu0 0.0
    %9336 = vmatpush1.msra.mxu0 0.0
    %9337 = vmatprep.subr.mxu0 0.0
    %9338 = vmatpush1.msra.mxu0 0.0
    %9339 = vmatprep.subr.mxu0 0.0
    %9340 = vmatpush1.msra.mxu0 0.0
    %9341 = vmatprep.mubr.f32.mxu0 0.0
    %9342 = vmatmul.mubr.f32.gmra.mrb[0].mxu0 %v9188
    %v9343 = vpop.f32.mrb[0].mxu0
    %v9344 = vadd.f32 0.0, %v9343
    %v9345 = vpop.f32.mrb[0].mxu0
    %9346 = vmatprep.mubr.f32.mxu0 0.0
    %9347 = vmatmul.mubr.f32.gmra.mrb[0].mxu0 %v9191
    %v9348 = vpop.f32.mrb[0].mxu0
    %v9349 = vadd.f32 0.0, %v9348
    %v9350 = vpop.f32.mrb[0].mxu0
    %9351 = vmatprep.mubr.f32.mxu0 0.0
    %9352 = vmatmul.mubr.f32.gmra.mrb[0].mxu0 %v9194
    %v9353 = vpop.f32.mrb[0].mxu0
    %v9354 = vadd.f32 0.0, %v9353
    %v9355 = vpop.f32.mrb[0].mxu0
    %9356 = vmatprep.mubr.f32.mxu0 0.0
    %9357 = vmatmul.mubr.f32.gmra.mrb[0].mxu0 %v9197
    %v9358 = vpop.f32.mrb[0].mxu0
    %v9359 = vadd.f32 0.0, %v9358
    %v9360 = vpop.f32.mrb[0].mxu0
    %9361 = vmatprep.mubr.f32.mxu0 0.0
    %9362 = vmatmul.mubr.f32.gmra.mrb[0].mxu0 %v9200
    %v9363 = vpop.f32.mrb[0].mxu0
    %v9364 = vadd.f32 0.0, %v9363
    %v9365 = vpop.f32.mrb[0].mxu0
    %9366 = vmatprep.mubr.f32.mxu0 0.0
    %9367 = vmatmul.mubr.f32.gmra.mrb[0].mxu0 %v9203
    %v9368 = vpop.f32.mrb[0].mxu0
    %v9369 = vadd.f32 0.0, %v9368
    %v9370 = vpop.f32.mrb[0].mxu0
    %9371 = vmatprep.mubr.f32.mxu0 0.0
    %9372 = vmatmul.mubr.f32.gmra.mrb[0].mxu0 %v9206
    %v9373 = vpop.f32.mrb[0].mxu0
    %v9374 = vadd.f32 0.0, %v9373
    %v9375 = vpop.f32.mrb[0].mxu0
    %9376 = vmatprep.mubr.f32.mxu0 0.0
    %9377 = vmatmul.mubr.f32.gmra.mrb[0].mxu0 %v9209
    %v9378 = vpop.f32.mrb[0].mxu0
    %v9379 = vadd.f32 0.0, %v9378
    %v9380 = vpop.f32.mrb[0].mxu0
    %9381 = vmatprep.mubr.f32.mxu0 0.0
    %9382 = vmatmul.mubr.f32.gmra.mrb[0].mxu0 %v9212
    %v9383 = vpop.f32.mrb[0].mxu0
    %v9384 = vadd.f32 0.0, %v9383
    %v9385 = vpop.f32.mrb[0].mxu0
    %9386 = vmatprep.mubr.f32.mxu0 0.0
    %9387 = vmatmul.mubr.f32.gmra.mrb[0].mxu0 %v9215
    %v9388 = vpop.f32.mrb[0].mxu0
    %v9389 = vadd.f32 0.0, %v9388
    %v9390 = vpop.f32.mrb[0].mxu0
    %9391 = vmatprep.mubr.f32.mxu0 0.0
    %9392 = vmatmul.mubr.f32.gmra.mrb[0].mxu0 %v9218
    %v9393 = vpop.f32.mrb[0].mxu0
    %v9394 = vadd.f32 0.0, %v9393
    %v9395 = vpop.f32.mrb[0].mxu0
    %9396 = vmatprep.mubr.f32.mxu0 0.0
    %9397 = vmatmul.mubr.f32.gmra.mrb[0].mxu0 %v9221
    %v9398 = vpop.f32.mrb[0].mxu0
    %v9399 = vadd.f32 0.0, %v9398
    %v9400 = vpop.f32.mrb[0].mxu0
    %9401 = vmatprep.mubr.f32.mxu0 0.0
    %9402 = vmatmul.mubr.f32.gmra.mrb[0].mxu0 %v9224
    %v9403 = vpop.f32.mrb[0].mxu0
    %v9404 = vadd.f32 0.0, %v9403
    %v9405 = vpop.f32.mrb[0].mxu0
    %9406 = vmatprep.mubr.f32.mxu0 0.0
    %9407 = vmatmul.mubr.f32.gmra.mrb[0].mxu0 %v9227
    %v9408 = vpop.f32.mrb[0].mxu0
    %v9409 = vadd.f32 0.0, %v9408
    %v9410 = vpop.f32.mrb[0].mxu0
    %9411 = vmatprep.mubr.f32.mxu0 0.0
    %9412 = vmatmul.mubr.f32.gmra.mrb[0].mxu0 %v9230
    %v9413 = vpop.f32.mrb[0].mxu0
    %v9414 = vadd.f32 0.0, %v9413
    %v9415 = vpop.f32.mrb[0].mxu0
    %9416 = vmatprep.mubr.f32.mxu0 0.0
    %9417 = vmatmul.mubr.f32.gmra.mrb[0].mxu0 %v9233
    %v9418 = vpop.f32.mrb[0].mxu0
    %v9419 = vadd.f32 0.0, %v9418
    %v9420 = vpop.f32.mrb[0].mxu0
    %9421 = vmatprep.mubr.f32.mxu0 0.0
    %9422 = vmatmul.mubr.f32.gmra.mrb[0].mxu0 %v9236
    %v9423 = vpop.f32.mrb[0].mxu0
    %v9424 = vadd.f32 0.0, %v9423
    %v9425 = vpop.f32.mrb[0].mxu0
    %9426 = vmatprep.mubr.f32.mxu0 0.0
    %9427 = vmatmul.mubr.f32.gmra.mrb[0].mxu0 %v9239
    %v9428 = vpop.f32.mrb[0].mxu0
    %v9429 = vadd.f32 0.0, %v9428
    %v9430 = vpop.f32.mrb[0].mxu0
    %9431 = vmatprep.mubr.f32.mxu0 0.0
    %9432 = vmatmul.mubr.f32.gmra.mrb[0].mxu0 %v9242
    %v9433 = vpop.f32.mrb[0].mxu0
    %v9434 = vadd.f32 0.0, %v9433
    %v9435 = vpop.f32.mrb[0].mxu0
    %9436 = vmatprep.mubr.f32.mxu0 0.0
    %9437 = vmatmul.mubr.f32.gmra.mrb[0].mxu0 %v9245
    %v9438 = vpop.f32.mrb[0].mxu0
    %v9439 = vadd.f32 0.0, %v9438
    %v9440 = vpop.f32.mrb[0].mxu0
    %9441 = vmatprep.mubr.f32.mxu0 0.0
    %9442 = vmatmul.mubr.f32.gmra.mrb[0].mxu0 %v9248
    %v9443 = vpop.f32.mrb[0].mxu0
    %v9444 = vadd.f32 0.0, %v9443
    %v9445 = vpop.f32.mrb[0].mxu0
    %9446 = vmatprep.mubr.f32.mxu0 0.0
    %9447 = vmatmul.mubr.f32.gmra.mrb[0].mxu0 %v9251
    %v9448 = vpop.f32.mrb[0].mxu0
    %v9449 = vadd.f32 0.0, %v9448
    %v9450 = vpop.f32.mrb[0].mxu0
    %9451 = vmatprep.mubr.f32.mxu0 0.0
    %9452 = vmatmul.mubr.f32.gmra.mrb[0].mxu0 %v9254
    %v9453 = vpop.f32.mrb[0].mxu0
    %v9454 = vadd.f32 0.0, %v9453
    %v9455 = vpop.f32.mrb[0].mxu0
    %9456 = vmatprep.mubr.f32.mxu0 0.0
    %9457 = vmatmul.mubr.f32.gmra.mrb[0].mxu0 %v9257
    %v9458 = vpop.f32.mrb[0].mxu0
    %v9459 = vadd.f32 0.0, %v9458
    %v9460 = vpop.f32.mrb[0].mxu0
    %9461 = vmatprep.mubr.f32.mxu0 0.0
    %9462 = vmatmul.mubr.f32.gmra.mrb[0].mxu0 %v9260
    %v9463 = vpop.f32.mrb[0].mxu0
    %v9464 = vadd.f32 0.0, %v9463
    %v9465 = vpop.f32.mrb[0].mxu0
    %9466 = vmatprep.mubr.f32.mxu0 0.0
    %9467 = vmatmul.mubr.f32.gmra.mrb[0].mxu0 %v9263
    %v9468 = vpop.f32.mrb[0].mxu0
    %v9469 = vadd.f32 0.0, %v9468
    %v9470 = vpop.f32.mrb[0].mxu0
    %9471 = vmatprep.mubr.f32.mxu0 0.0
    %9472 = vmatmul.mubr.f32.gmra.mrb[0].mxu0 %v9266
    %v9473 = vpop.f32.mrb[0].mxu0
    %v9474 = vadd.f32 0.0, %v9473
    %v9475 = vpop.f32.mrb[0].mxu0
    %9476 = vmatprep.mubr.f32.mxu0 0.0
    %9477 = vmatmul.mubr.f32.gmra.mrb[0].mxu0 %v9269
    %v9478 = vpop.f32.mrb[0].mxu0
    %v9479 = vadd.f32 0.0, %v9478
    %v9480 = vpop.f32.mrb[0].mxu0
    %9481 = vmatprep.mubr.f32.mxu0 0.0
    %9482 = vmatmul.mubr.f32.gmra.mrb[0].mxu0 %v9272
    %v9483 = vpop.f32.mrb[0].mxu0
    %v9484 = vadd.f32 0.0, %v9483
    %v9485 = vpop.f32.mrb[0].mxu0
    %9486 = vmatprep.mubr.f32.mxu0 0.0
    %9487 = vmatmul.mubr.f32.gmra.mrb[0].mxu0 %v9275
    %v9488 = vpop.f32.mrb[0].mxu0
    %v9489 = vadd.f32 0.0, %v9488
    %v9490 = vpop.f32.mrb[0].mxu0
    %9491 = vdwg.mxu0
    %v9492 = vadd.f32 %v9030, %v9344
    %v9493 = vadd.f32 %v9035, %v9349
    %v9494 = vadd.f32 %v9040, %v9354
    %v9495 = vadd.f32 %v9045, %v9359
    %v9496 = vadd.f32 %v9050, %v9364
    %v9497 = vadd.f32 %v9055, %v9369
    %v9498 = vadd.f32 %v9060, %v9374
    %v9499 = vadd.f32 %v9065, %v9379
    %v9500 = vadd.f32 %v9070, %v9384
    %v9501 = vadd.f32 %v9075, %v9389
    %v9502 = vadd.f32 %v9080, %v9394
    %v9503 = vadd.f32 %v9085, %v9399
    %v9504 = vadd.f32 %v9090, %v9404
    %v9505 = vadd.f32 %v9095, %v9409
    %v9506 = vadd.f32 %v9100, %v9414
    %v9507 = vadd.f32 %v9105, %v9419
    %v9508 = vadd.f32 %v9110, %v9424
    %v9509 = vadd.f32 %v9115, %v9429
    %v9510 = vadd.f32 %v9120, %v9434
    %v9511 = vadd.f32 %v9125, %v9439
    %v9512 = vadd.f32 %v9130, %v9444
    %v9513 = vadd.f32 %v9135, %v9449
    %v9514 = vadd.f32 %v9140, %v9454
    %v9515 = vadd.f32 %v9145, %v9459
    %v9516 = vadd.f32 %v9150, %v9464
    %v9517 = vadd.f32 %v9155, %v9469
    %v9518 = vadd.f32 %v9160, %v9474
    %v9519 = vadd.f32 %v9165, %v9479
    %v9520 = vadd.f32 %v9170, %v9484
    %v9521 = vadd.f32 %v9175, %v9489
    %v9522 = vld [vmem:[%s6] sm:$0x1]
    %v9524 = vlaneseq
    %v9525 = vshrl.u32 %v9524, 7
    %v9526 = vsub.s32 0, %v9525
    %v9527 = vrot.slane %v9522, %v9526
    %v9529 = vadd.f32 %v9492, %v9527
    %v9530 = vadd.f32 %v9493, %v9527
    %v9531 = vadd.f32 %v9494, %v9527
    %v9532 = vadd.f32 %v9495, %v9527
    %v9533 = vadd.f32 %v9496, %v9527
    %v9534 = vadd.f32 %v9497, %v9527
    %v9535 = vadd.f32 %v9498, %v9527
    %v9536 = vadd.f32 %v9499, %v9527
    %v9537 = vadd.f32 %v9500, %v9527
    %v9538 = vadd.f32 %v9501, %v9527
    %v9539 = vadd.f32 %v9502, %v9527
    %v9540 = vadd.f32 %v9503, %v9527
    %v9541 = vadd.f32 %v9504, %v9527
    %v9542 = vadd.f32 %v9505, %v9527
    %v9543 = vadd.f32 %v9506, %v9527
    %v9544 = vadd.f32 %v9507, %v9527
    %v9545 = vadd.f32 %v9508, %v9527
    %v9546 = vadd.f32 %v9509, %v9527
    %v9547 = vadd.f32 %v9510, %v9527
    %v9548 = vadd.f32 %v9511, %v9527
    %v9549 = vadd.f32 %v9512, %v9527
    %v9550 = vadd.f32 %v9513, %v9527
    %v9551 = vadd.f32 %v9514, %v9527
    %v9552 = vadd.f32 %v9515, %v9527
    %v9553 = vadd.f32 %v9516, %v9527
    %v9554 = vadd.f32 %v9517, %v9527
    %v9555 = vadd.f32 %v9518, %v9527
    %v9556 = vadd.f32 %v9519, %v9527
    %v9557 = vadd.f32 %v9520, %v9527
    %v9558 = vadd.f32 %v9521, %v9527
    %v9559 = vadd.f32 %v9529, %v9530
    %v9560 = vadd.f32 %v9559, %v9531
    %v9561 = vadd.f32 %v9560, %v9532
    %v9562 = vadd.f32 %v9561, %v9533
    %v9563 = vadd.f32 %v9562, %v9534
    %v9564 = vadd.f32 %v9563, %v9535
    %v9565 = vadd.f32 %v9564, %v9536
    %v9566 = vadd.f32 %v9565, %v9537
    %v9567 = vadd.f32 %v9566, %v9538
    %v9568 = vadd.f32 %v9567, %v9539
    %v9569 = vadd.f32 %v9568, %v9540
    %v9570 = vadd.f32 %v9569, %v9541
    %v9571 = vadd.f32 %v9570, %v9542
    %v9572 = vadd.f32 %v9571, %v9543
    %v9573 = vadd.f32 %v9572, %v9544
    %v9574 = vadd.f32 %v9573, %v9545
    %v9575 = vadd.f32 %v9574, %v9546
    %v9576 = vadd.f32 %v9575, %v9547
    %v9577 = vadd.f32 %v9576, %v9548
    %v9578 = vadd.f32 %v9577, %v9549
    %v9579 = vadd.f32 %v9578, %v9550
    %v9580 = vadd.f32 %v9579, %v9551
    %v9581 = vadd.f32 %v9580, %v9552
    %v9582 = vadd.f32 %v9581, %v9553
    %v9583 = vadd.f32 %v9582, %v9554
    %v9584 = vadd.f32 %v9583, %v9555
    %v9585 = vadd.f32 %v9584, %v9556
    %v9586 = vadd.f32 %v9585, %v9557
    %v9587 = vadd.f32 %v9586, %v9558
    %v9588 = vrot.slane %v9587, 4
    %v9589 = vadd.f32 %v9587, %v9588
    %v9590 = vrot.slane %v9589, 2
    %v9591 = vadd.f32 %v9589, %v9590
    %v9592 = vrot.slane %v9591, 1
    %v9593 = vadd.f32 %v9591, %v9592
    %v9594 = vmul.f32 %v9593, 0.004166667
    %v9595 = vmul.f32 %v9529, %v9529
    %v9596 = vmul.f32 %v9530, %v9530
    %v9597 = vmul.f32 %v9531, %v9531
    %v9598 = vmul.f32 %v9532, %v9532
    %v9599 = vmul.f32 %v9533, %v9533
    %v9600 = vmul.f32 %v9534, %v9534
    %v9601 = vmul.f32 %v9535, %v9535
    %v9602 = vmul.f32 %v9536, %v9536
    %v9603 = vmul.f32 %v9537, %v9537
    %v9604 = vmul.f32 %v9538, %v9538
    %v9605 = vmul.f32 %v9539, %v9539
    %v9606 = vmul.f32 %v9540, %v9540
    %v9607 = vmul.f32 %v9541, %v9541
    %v9608 = vmul.f32 %v9542, %v9542
    %v9609 = vmul.f32 %v9543, %v9543
    %v9610 = vmul.f32 %v9544, %v9544
    %v9611 = vmul.f32 %v9545, %v9545
    %v9612 = vmul.f32 %v9546, %v9546
    %v9613 = vmul.f32 %v9547, %v9547
    %v9614 = vmul.f32 %v9548, %v9548
    %v9615 = vmul.f32 %v9549, %v9549
    %v9616 = vmul.f32 %v9550, %v9550
    %v9617 = vmul.f32 %v9551, %v9551
    %v9618 = vmul.f32 %v9552, %v9552
    %v9619 = vmul.f32 %v9553, %v9553
    %v9620 = vmul.f32 %v9554, %v9554
    %v9621 = vmul.f32 %v9555, %v9555
    %v9622 = vmul.f32 %v9556, %v9556
    %v9623 = vmul.f32 %v9557, %v9557
    %v9624 = vmul.f32 %v9558, %v9558
    %v9625 = vadd.f32 %v9595, %v9596
    %v9626 = vadd.f32 %v9625, %v9597
    %v9627 = vadd.f32 %v9626, %v9598
    %v9628 = vadd.f32 %v9627, %v9599
    %v9629 = vadd.f32 %v9628, %v9600
    %v9630 = vadd.f32 %v9629, %v9601
    %v9631 = vadd.f32 %v9630, %v9602
    %v9632 = vadd.f32 %v9631, %v9603
    %v9633 = vadd.f32 %v9632, %v9604
    %v9634 = vadd.f32 %v9633, %v9605
    %v9635 = vadd.f32 %v9634, %v9606
    %v9636 = vadd.f32 %v9635, %v9607
    %v9637 = vadd.f32 %v9636, %v9608
    %v9638 = vadd.f32 %v9637, %v9609
    %v9639 = vadd.f32 %v9638, %v9610
    %v9640 = vadd.f32 %v9639, %v9611
    %v9641 = vadd.f32 %v9640, %v9612
    %v9642 = vadd.f32 %v9641, %v9613
    %v9643 = vadd.f32 %v9642, %v9614
    %v9644 = vadd.f32 %v9643, %v9615
    %v9645 = vadd.f32 %v9644, %v9616
    %v9646 = vadd.f32 %v9645, %v9617
    %v9647 = vadd.f32 %v9646, %v9618
    %v9648 = vadd.f32 %v9647, %v9619
    %v9649 = vadd.f32 %v9648, %v9620
    %v9650 = vadd.f32 %v9649, %v9621
    %v9651 = vadd.f32 %v9650, %v9622
    %v9652 = vadd.f32 %v9651, %v9623
    %v9653 = vadd.f32 %v9652, %v9624
    %v9654 = vrot.slane %v9653, 4
    %v9655 = vadd.f32 %v9653, %v9654
    %v9656 = vrot.slane %v9655, 2
    %v9657 = vadd.f32 %v9655, %v9656
    %v9658 = vrot.slane %v9657, 1
    %v9659 = vadd.f32 %v9657, %v9658
    %v9660 = vmul.f32 %v9659, 0.004166667
    %v9661 = vmul.f32 %v9594, %v9594
    %v9662 = vsub.f32 %v9660, %v9661
    %v9663 = vadd.f32 %v9662, 1e-05
    %v9664 = vrsqrt.pop %v9663
    %v9665 = vmul.f32 %v9594, %v9664
    %v9666 = vstv %s8458
    %v9667 = vmul.f32 %v9666, %v9664
    %v9668 = vmul.f32 %v9667, %v9664
    %v9669 = vstv %s8459
    %v9670 = vmul.f32 %v9664, %v9669
    %s9671 = smul.f32 %s8458, 2.0
    %v9672 = vstv %s9671
    %v9673 = vmul.f32 %v9672, %v9664
    %v9674 = vmul.f32 %v9673, %v9665
    %v9675 = vsub.f32 %v9670, %v9674
    %v9676 = vmul.f32 %v9666, %v9665
    %v9677 = vsub.f32 %v9676, %v9669
    %v9678 = vmul.f32 %v9677, %v9665
    %v9679 = vstv %s8460
    %v9680 = vadd.f32 %v9678, %v9679
    %v9681 = vmul.f32 %v9668, %v9529
    %v9682 = vmul.f32 %v9668, %v9530
    %v9683 = vmul.f32 %v9668, %v9531
    %v9684 = vmul.f32 %v9668, %v9532
    %v9685 = vmul.f32 %v9668, %v9533
    %v9686 = vmul.f32 %v9668, %v9534
    %v9687 = vmul.f32 %v9668, %v9535
    %v9688 = vmul.f32 %v9668, %v9536
    %v9689 = vmul.f32 %v9668, %v9537
    %v9690 = vmul.f32 %v9668, %v9538
    %v9691 = vmul.f32 %v9668, %v9539
    %v9692 = vmul.f32 %v9668, %v9540
    %v9693 = vmul.f32 %v9668, %v9541
    %v9694 = vmul.f32 %v9668, %v9542
    %v9695 = vmul.f32 %v9668, %v9543
    %v9696 = vmul.f32 %v9668, %v9544
    %v9697 = vmul.f32 %v9668, %v9545
    %v9698 = vmul.f32 %v9668, %v9546
    %v9699 = vmul.f32 %v9668, %v9547
    %v9700 = vmul.f32 %v9668, %v9548
    %v9701 = vmul.f32 %v9668, %v9549
    %v9702 = vmul.f32 %v9668, %v9550
    %v9703 = vmul.f32 %v9668, %v9551
    %v9704 = vmul.f32 %v9668, %v9552
    %v9705 = vmul.f32 %v9668, %v9553
    %v9706 = vmul.f32 %v9668, %v9554
    %v9707 = vmul.f32 %v9668, %v9555
    %v9708 = vmul.f32 %v9668, %v9556
    %v9709 = vmul.f32 %v9668, %v9557
    %v9710 = vmul.f32 %v9668, %v9558
    %v9711 = vadd.f32 %v9681, %v9675
    %v9712 = vadd.f32 %v9682, %v9675
    %v9713 = vadd.f32 %v9683, %v9675
    %v9714 = vadd.f32 %v9684, %v9675
    %v9715 = vadd.f32 %v9685, %v9675
    %v9716 = vadd.f32 %v9686, %v9675
    %v9717 = vadd.f32 %v9687, %v9675
    %v9718 = vadd.f32 %v9688, %v9675
    %v9719 = vadd.f32 %v9689, %v9675
    %v9720 = vadd.f32 %v9690, %v9675
    %v9721 = vadd.f32 %v9691, %v9675
    %v9722 = vadd.f32 %v9692, %v9675
    %v9723 = vadd.f32 %v9693, %v9675
    %v9724 = vadd.f32 %v9694, %v9675
    %v9725 = vadd.f32 %v9695, %v9675
    %v9726 = vadd.f32 %v9696, %v9675
    %v9727 = vadd.f32 %v9697, %v9675
    %v9728 = vadd.f32 %v9698, %v9675
    %v9729 = vadd.f32 %v9699, %v9675
    %v9730 = vadd.f32 %v9700, %v9675
    %v9731 = vadd.f32 %v9701, %v9675
    %v9732 = vadd.f32 %v9702, %v9675
    %v9733 = vadd.f32 %v9703, %v9675
    %v9734 = vadd.f32 %v9704, %v9675
    %v9735 = vadd.f32 %v9705, %v9675
    %v9736 = vadd.f32 %v9706, %v9675
    %v9737 = vadd.f32 %v9707, %v9675
    %v9738 = vadd.f32 %v9708, %v9675
    %v9739 = vadd.f32 %v9709, %v9675
    %v9740 = vadd.f32 %v9710, %v9675
    %v9741 = vmul.f32 %v9711, %v9529
    %v9742 = vmul.f32 %v9712, %v9530
    %v9743 = vmul.f32 %v9713, %v9531
    %v9744 = vmul.f32 %v9714, %v9532
    %v9745 = vmul.f32 %v9715, %v9533
    %v9746 = vmul.f32 %v9716, %v9534
    %v9747 = vmul.f32 %v9717, %v9535
    %v9748 = vmul.f32 %v9718, %v9536
    %v9749 = vmul.f32 %v9719, %v9537
    %v9750 = vmul.f32 %v9720, %v9538
    %v9751 = vmul.f32 %v9721, %v9539
    %v9752 = vmul.f32 %v9722, %v9540
    %v9753 = vmul.f32 %v9723, %v9541
    %v9754 = vmul.f32 %v9724, %v9542
    %v9755 = vmul.f32 %v9725, %v9543
    %v9756 = vmul.f32 %v9726, %v9544
    %v9757 = vmul.f32 %v9727, %v9545
    %v9758 = vmul.f32 %v9728, %v9546
    %v9759 = vmul.f32 %v9729, %v9547
    %v9760 = vmul.f32 %v9730, %v9548
    %v9761 = vmul.f32 %v9731, %v9549
    %v9762 = vmul.f32 %v9732, %v9550
    %v9763 = vmul.f32 %v9733, %v9551
    %v9764 = vmul.f32 %v9734, %v9552
    %v9765 = vmul.f32 %v9735, %v9553
    %v9766 = vmul.f32 %v9736, %v9554
    %v9767 = vmul.f32 %v9737, %v9555
    %v9768 = vmul.f32 %v9738, %v9556
    %v9769 = vmul.f32 %v9739, %v9557
    %v9770 = vmul.f32 %v9740, %v9558
    %v9771 = vadd.f32 %v9741, %v9680
    %v9772 = vadd.f32 %v9742, %v9680
    %v9773 = vadd.f32 %v9743, %v9680
    %v9774 = vadd.f32 %v9744, %v9680
    %v9775 = vadd.f32 %v9745, %v9680
    %v9776 = vadd.f32 %v9746, %v9680
    %v9777 = vadd.f32 %v9747, %v9680
    %v9778 = vadd.f32 %v9748, %v9680
    %v9779 = vadd.f32 %v9749, %v9680
    %v9780 = vadd.f32 %v9750, %v9680
    %v9781 = vadd.f32 %v9751, %v9680
    %v9782 = vadd.f32 %v9752, %v9680
    %v9783 = vadd.f32 %v9753, %v9680
    %v9784 = vadd.f32 %v9754, %v9680
    %v9785 = vadd.f32 %v9755, %v9680
    %v9786 = vadd.f32 %v9756, %v9680
    %v9787 = vadd.f32 %v9757, %v9680
    %v9788 = vadd.f32 %v9758, %v9680
    %v9789 = vadd.f32 %v9759, %v9680
    %v9790 = vadd.f32 %v9760, %v9680
    %v9791 = vadd.f32 %v9761, %v9680
    %v9792 = vadd.f32 %v9762, %v9680
    %v9793 = vadd.f32 %v9763, %v9680
    %v9794 = vadd.f32 %v9764, %v9680
    %v9795 = vadd.f32 %v9765, %v9680
    %v9796 = vadd.f32 %v9766, %v9680
    %v9797 = vadd.f32 %v9767, %v9680
    %v9798 = vadd.f32 %v9768, %v9680
    %v9799 = vadd.f32 %v9769, %v9680
    %v9800 = vadd.f32 %v9770, %v9680
    %v9801 = vadd.f32 %v9771, %v9772
    %v9802 = vadd.f32 %v9801, %v9773
    %v9803 = vadd.f32 %v9802, %v9774
    %v9804 = vadd.f32 %v9803, %v9775
    %v9805 = vadd.f32 %v9804, %v9776
    %v9806 = vadd.f32 %v9805, %v9777
    %v9807 = vadd.f32 %v9806, %v9778
    %v9808 = vadd.f32 %v9807, %v9779
    %v9809 = vadd.f32 %v9808, %v9780
    %v9810 = vadd.f32 %v9809, %v9781
    %v9811 = vadd.f32 %v9810, %v9782
    %v9812 = vadd.f32 %v9811, %v9783
    %v9813 = vadd.f32 %v9812, %v9784
    %v9814 = vadd.f32 %v9813, %v9785
    %v9815 = vrot.slane %v9814, 4
    %v9816 = vadd.f32 %v9814, %v9815
    %v9817 = vrot.slane %v9816, 2
    %v9818 = vadd.f32 %v9816, %v9817
    %v9819 = vrot.slane %v9818, 1
    %v9820 = vadd.f32 %v9818, %v9819
    %v9821 = vadd.f32 %v9786, %v9787
    %v9822 = vadd.f32 %v9821, %v9788
    %v9823 = vadd.f32 %v9822, %v9789
    %v9824 = vadd.f32 %v9823, %v9790
    %v9825 = vadd.f32 %v9824, %v9791
    %v9826 = vadd.f32 %v9825, %v9792
    %v9827 = vadd.f32 %v9826, %v9793
    %v9828 = vadd.f32 %v9827, %v9794
    %v9829 = vadd.f32 %v9828, %v9795
    %v9830 = vadd.f32 %v9829, %v9796
    %v9831 = vadd.f32 %v9830, %v9797
    %v9832 = vadd.f32 %v9831, %v9798
    %v9833 = vadd.f32 %v9832, %v9799
    %v9834 = vadd.f32 %v9833, %v9800
    %v9835 = vrot.slane %v9834, 4
    %v9836 = vadd.f32 %v9834, %v9835
    %v9837 = vrot.slane %v9836, 2
    %v9838 = vadd.f32 %v9836, %v9837
    %v9839 = vrot.slane %v9838, 1
    %v9840 = vadd.f32 %v9838, %v9839
    %v9841 = vmul.f32 %v9820, 0.008333334
    %v9842 = vmul.f32 %v9840, 0.008333334
    %v9843 = vld [vmem:[%s7] sm:$0xff]
    %v9844 = vld [vmem:[%s7 + $0x8] sm:$0xff]
    %v9845 = vld [vmem:[%s7 + $0x10] sm:$0xff]
    %v9846 = vld [vmem:[%s7 + $0x18] sm:$0xff]
    %v9847 = vld [vmem:[%s7 + $0x20] sm:$0xff]
    %v9848 = vld [vmem:[%s7 + $0x28] sm:$0xff]
    %v9849 = vld [vmem:[%s7 + $0x30] sm:$0xff]
    %v9850 = vld [vmem:[%s7 + $0x38] sm:$0xff]
    %v9851 = vld [vmem:[%s7 + $0x40] sm:$0xff]
    %v9852 = vld [vmem:[%s7 + $0x48] sm:$0xff]
    %v9853 = vld [vmem:[%s7 + $0x50] sm:$0xff]
    %v9854 = vld [vmem:[%s7 + $0x58] sm:$0xff]
    %v9855 = vld [vmem:[%s7 + $0x60] sm:$0xff]
    %v9856 = vld [vmem:[%s7 + $0x68] sm:$0xff]
    %v9857 = vld [vmem:[%s7 + $0x70] sm:$0xff]
    %v9858 = vld [vmem:[%s7 + $0x78] sm:$0xff]
    %v9859 = vld [vmem:[%s8] sm:$0x1]
    %v9861 = vlaneseq
    %v9862 = vshrl.u32 %v9861, 7
    %v9863 = vsub.s32 0, %v9862
    %v9864 = vrot.slane %v9859, %v9863
    %vm9868 = vcmask 1041409
    %v9869 = vsel %vm9868, %v9842, %v9841
    %9871 = vmatprep.subr.mxu0 0.0
    %9872 = vmatpush1.msra.mxu0 %v9843
    %9873 = vmatprep.subr.mxu0 0.0
    %9874 = vmatpush1.msra.mxu0 %v9844
    %9875 = vmatprep.subr.mxu0 0.0
    %9876 = vmatpush1.msra.mxu0 %v9845
    %9877 = vmatprep.subr.mxu0 0.0
    %9878 = vmatpush1.msra.mxu0 %v9846
    %9879 = vmatprep.subr.mxu0 0.0
    %9880 = vmatpush1.msra.mxu0 %v9847
    %9881 = vmatprep.subr.mxu0 0.0
    %9882 = vmatpush1.msra.mxu0 %v9848
    %9883 = vmatprep.subr.mxu0 0.0
    %9884 = vmatpush1.msra.mxu0 %v9849
    %9885 = vmatprep.subr.mxu0 0.0
    %9886 = vmatpush1.msra.mxu0 %v9850
    %9887 = vmatprep.subr.mxu0 0.0
    %9888 = vmatpush1.msra.mxu0 %v9851
    %9889 = vmatprep.subr.mxu0 0.0
    %9890 = vmatpush1.msra.mxu0 %v9852
    %9891 = vmatprep.subr.mxu0 0.0
    %9892 = vmatpush1.msra.mxu0 %v9853
    %9893 = vmatprep.subr.mxu0 0.0
    %9894 = vmatpush1.msra.mxu0 %v9854
    %9895 = vmatprep.subr.mxu0 0.0
    %9896 = vmatpush1.msra.mxu0 %v9855
    %9897 = vmatprep.subr.mxu0 0.0
    %9898 = vmatpush1.msra.mxu0 %v9856
    %9899 = vmatprep.subr.mxu0 0.0
    %9900 = vmatpush1.msra.mxu0 %v9857
    %9901 = vmatprep.subr.mxu0 0.0
    %9902 = vmatpush1.msra.mxu0 %v9858
    %9903 = vmatprep.subr.mxu0 0.0
    %9904 = vmatpush1.msra.mxu0 0.0
    %9905 = vmatprep.subr.mxu0 0.0
    %9906 = vmatpush1.msra.mxu0 0.0
    %9907 = vmatprep.subr.mxu0 0.0
    %9908 = vmatpush1.msra.mxu0 0.0
    %9909 = vmatprep.subr.mxu0 0.0
    %9910 = vmatpush1.msra.mxu0 0.0
    %9911 = vmatprep.subr.mxu0 0.0
    %9912 = vmatpush1.msra.mxu0 0.0
    %9913 = vmatprep.subr.mxu0 0.0
    %9914 = vmatpush1.msra.mxu0 0.0
    %9915 = vmatprep.subr.mxu0 0.0
    %9916 = vmatpush1.msra.mxu0 0.0
    %9917 = vmatprep.subr.mxu0 0.0
    %9918 = vmatpush1.msra.mxu0 0.0
    %9919 = vmatprep.subr.mxu0 0.0
    %9920 = vmatpush1.msra.mxu0 0.0
    %9921 = vmatprep.subr.mxu0 0.0
    %9922 = vmatpush1.msra.mxu0 0.0
    %9923 = vmatprep.subr.mxu0 0.0
    %9924 = vmatpush1.msra.mxu0 0.0
    %9925 = vmatprep.subr.mxu0 0.0
    %9926 = vmatpush1.msra.mxu0 0.0
    %9927 = vmatprep.subr.mxu0 0.0
    %9928 = vmatpush1.msra.mxu0 0.0
    %9929 = vmatprep.subr.mxu0 0.0
    %9930 = vmatpush1.msra.mxu0 0.0
    %9931 = vmatprep.subr.mxu0 0.0
    %9932 = vmatpush1.msra.mxu0 0.0
    %9933 = vmatprep.subr.mxu0 0.0
    %9934 = vmatpush1.msra.mxu0 0.0
    %9935 = vmatprep.mubr.f32.mxu0 0.0
    %9936 = vmatmul.mubr.f32.gmra.mrb[0].mxu0 %v9869
    %v9937 = vpop.f32.mrb[0].mxu0
    %v9938 = vadd.f32 %v9864, %v9937
    %v9939 = vpop.f32.mrb[0].mxu0
    %9940 = vdwg.mxu0
    %vm9941 = vcmask 74752
    %9942 = vst.msk [vmem:[#allocation10] sm:$0x3] %vm9941, %v9938
    // Predicated region
    $region46: #{henet_forward.1} parent=1 // pred_check
      _
    $region47: #{henet_forward.1} parent=1 // pred_check_branch
      %9944 = sbr.rel (0) target = $region49
    $region48: #{henet_forward.1} parent=1 // pred_region
      %s9946 = ssub.s32 32, 32
      %9947 = vsyncadd [#allocation8], %s9946
      %s9949 = sshll.u32 [#allocation10], 4
      %s9950 = int_to_ptr.vmem [resolvable:$true] %s9949
      %9952 = dma.vmem_to_hbm [thread:$0]  %s9950, 32, %s10, [#allocation8]
    $region49: #{henet_forward.1} parent=1 // pred_fallthru
      _
    // Predicated region
    $region50: #{henet_forward.1} parent=1 // pred_check
      _
    $region51: #{henet_forward.1} parent=1 // pred_check_branch
      %9954 = sbr.rel (0) target = $region53
    $region52: #{henet_forward.1} parent=1 // pred_region
      %9955 = dma.done [#allocation8], 32
    $region53: #{henet_forward.1} parent=1 // pred_fallthru
      _
    %9956 = vsyncpa [#allocation8], 1
    %9957 = vsyncpa [#allocation9], 1

</llo_original>
